<compile_context>
chip_gen: v6e
topology: v6e:2x2x1
jax: 0.10.0
libtpu: 0.0.40
codegen_flags: <defaults>
</compile_context>

<pallas_src>
import functools

import jax
import jax.numpy as jnp
from jax.experimental import pallas as pl
from jax.experimental.pallas import tpu as pltpu

CFG = dict(
    n_embed=32,
    bottom_stride=4,
    top_stride=2,
    use_upsample=True,
    upsample_method="nearest",
    more_resnet=False,
)

# bf16 MXU inputs + f32 accumulation (v6e/v7x).  Set False for strict f32 parity.
USE_BF16_MATMUL = True

# ----------------------------------------------------------------------------
# Pallas kernels
# ----------------------------------------------------------------------------


def _gemm_kernel(*refs, relu, has_affine, tanh_clamp, has_residual, has_aux):
    """Fused GEMM: y = x@w + b (+res) -> [relu] -> [scale*y+shift] -> [clip(tanh*1.05)].
    Optionally emits a second output aux = ascale*relu(y) + ashift (feeds the next
    ResBlock's ReLU->BN without a separate elementwise kernel)."""
    it = iter(refs)
    x_ref = next(it)
    w_ref = next(it)
    b_ref = next(it)
    if has_affine:
        s_ref = next(it)
        t_ref = next(it)
    if has_residual:
        r_ref = next(it)
    if has_aux:
        as_ref = next(it)
        at_ref = next(it)
    o_ref = next(it)
    if has_aux:
        aux_ref = next(it)

    acc = jnp.dot(x_ref[...], w_ref[...], preferred_element_type=jnp.float32)
    acc = acc + b_ref[...]
    if has_residual:
        acc = acc + r_ref[...]
    if relu:
        acc = jnp.maximum(acc, 0.0)
    if has_affine:
        acc = acc * s_ref[...] + t_ref[...]
    if tanh_clamp:
        acc = jnp.clip(jnp.tanh(acc) * 1.05, -1.0, 1.0)
    o_ref[...] = acc
    if has_aux:
        aux_ref[...] = jnp.maximum(acc, 0.0) * as_ref[...] + at_ref[...]


def _round_up(v, m):
    return ((v + m - 1) // m) * m


def _pick_tm(M):
    if M % 256 == 0 and M > 256:
        return 256
    if M % 128 == 0 and M > 128:
        return 128
    return M


def pallas_gemm(x, w, b, *, relu=False, affine=None, tanh_clamp=False,
                residual=None, aux_affine=None):
    """(M,K) @ (K,N) + b with fused epilogue.  N is padded to a multiple of 128 lanes
    inside the kernel (padded lanes stay zero) and sliced off afterwards."""
    M, K = x.shape
    N = w.shape[1]
    Npad = _round_up(N, 128)
    TM = _pick_tm(M)

    w_p = w if Npad == N else jnp.pad(w, ((0, 0), (0, Npad - N)))
    b_p = (b if Npad == N else jnp.pad(b, (0, Npad - N))).reshape(1, Npad)

    if USE_BF16_MATMUL:
        x = x.astype(jnp.bfloat16)
        w_p = w_p.astype(jnp.bfloat16)

    def vec_spec():
        return pl.BlockSpec((1, Npad), lambda i: (0, 0))

    def row_spec():
        return pl.BlockSpec((TM, Npad), lambda i: (i, 0))

    inputs = [x, w_p, b_p]
    in_specs = [
        pl.BlockSpec((TM, K), lambda i: (i, 0)),
        pl.BlockSpec((K, Npad), lambda i: (0, 0)),
        vec_spec(),
    ]

    has_affine = affine is not None
    if has_affine:
        s, t = affine
        s_p = s if Npad == N else jnp.pad(s, (0, Npad - N), constant_values=1.0)
        t_p = t if Npad == N else jnp.pad(t, (0, Npad - N))
        inputs += [s_p.reshape(1, Npad), t_p.reshape(1, Npad)]
        in_specs += [vec_spec(), vec_spec()]

    has_residual = residual is not None
    if has_residual:
        r_p = residual if Npad == N else jnp.pad(residual, ((0, 0), (0, Npad - N)))
        inputs.append(r_p)
        in_specs.append(row_spec())

    has_aux = aux_affine is not None
    if has_aux:
        a_s, a_t = aux_affine
        as_p = a_s if Npad == N else jnp.pad(a_s, (0, Npad - N), constant_values=1.0)
        at_p = a_t if Npad == N else jnp.pad(a_t, (0, Npad - N))
        inputs += [as_p.reshape(1, Npad), at_p.reshape(1, Npad)]
        in_specs += [vec_spec(), vec_spec()]

    out_shapes = [jax.ShapeDtypeStruct((M, Npad), jnp.float32)]
    out_specs = [row_spec()]
    if has_aux:
        out_shapes.append(jax.ShapeDtypeStruct((M, Npad), jnp.float32))
        out_specs.append(row_spec())

    kernel = functools.partial(
        _gemm_kernel, relu=relu, has_affine=has_affine, tanh_clamp=tanh_clamp,
        has_residual=has_residual, has_aux=has_aux)

    outs = pl.pallas_call(
        kernel,
        out_shape=tuple(out_shapes),
        grid=(M // TM,),
        in_specs=in_specs,
        out_specs=tuple(out_specs),
        compiler_params=pltpu.CompilerParams(dimension_semantics=("parallel",)),
    )(*inputs)
    if not isinstance(outs, (tuple, list)):
        outs = (outs,)
    if has_aux:
        return outs[0][:, :N], outs[1][:, :N]
    return outs[0][:, :N]


def _quantize_kernel(x_ref, e_ref, q_ref, ind_ref, diff_ref):
    x = x_ref[...]          # (M, D)
    e = e_ref[...]          # (D, n_embed)
    # |x|^2 is constant per row: drop it from the argmin distance.
    e2 = jnp.sum(e * e, axis=0, keepdims=True)
    xe = jnp.dot(x, e, preferred_element_type=jnp.float32)
    dist = e2 - 2.0 * xe                                  # (M, n_embed)
    n_embed = dist.shape[1]
    col = jax.lax.broadcasted_iota(jnp.int32, dist.shape, 1)
    minval = jnp.min(dist, axis=1, keepdims=True)
    ind = jnp.min(jnp.where(dist <= minval, col, n_embed), axis=1)   # first argmin
    onehot = (col == ind[:, None]).astype(jnp.float32)
    # quant[m, d] = sum_n onehot[m, n] * e[d, n]
    quant = jax.lax.dot_general(
        onehot, e, (((1,), (1,)), ((), ())), preferred_element_type=jnp.float32)
    diff = jnp.mean((quant - x) ** 2)
    q_ref[...] = quant
    ind_ref[...] = ind[:, None].astype(jnp.int32)
    diff_ref[...] = jnp.reshape(diff, (1, 1))


def pallas_quantize(x, embed):
    """x: (N,H,W,D) NHWC latents, embed: (D, n_embed). Kept in f32 for argmin fidelity."""
    N, H, W, D = x.shape
    flat = x.reshape(-1, D)
    M = flat.shape[0]
    n_embed = embed.shape[1]
    q, ind, diff = pl.pallas_call(
        _quantize_kernel,
        out_shape=(
            jax.ShapeDtypeStruct((M, D), jnp.float32),
            jax.ShapeDtypeStruct((M, 1), jnp.int32),
            jax.ShapeDtypeStruct((1, 1), jnp.float32),
        ),
        grid=(1,),
        in_specs=[
            pl.BlockSpec((M, D), lambda i: (0, 0)),
            pl.BlockSpec((D, n_embed), lambda i: (0, 0)),
        ],
        out_specs=(
            pl.BlockSpec((M, D), lambda i: (0, 0)),
            pl.BlockSpec((M, 1), lambda i: (0, 0)),
            pl.BlockSpec((1, 1), lambda i: (0, 0)),
        ),
    )(flat, embed)
    return q.reshape(N, H, W, D), diff.reshape(()), ind.reshape(N, H, W)


# ----------------------------------------------------------------------------
# Layer wrappers (plain-JAX glue around the Pallas GEMM), NHWC activations
# ----------------------------------------------------------------------------


def bn_scale_shift(bn, eps=1e-5):
    scale = bn["gamma"] / jnp.sqrt(bn["var"] + eps)
    shift = bn["beta"] - bn["mean"] * scale
    return scale, shift


def identity_affine(channels):
    return jnp.ones((channels,), jnp.float32), jnp.zeros((channels,), jnp.float32)


def conv2d(x, p, stride=1, padding=0, relu=False, affine=None, tanh_clamp=False,
           residual=None, aux_affine=None):
    """p['w']: (Cout, Cin, k, k) PyTorch layout, p['b']: (Cout,).  All post-ops fused
    into the GEMM epilogue.  If aux_affine is given, returns (out, ascale*relu(out)+ashift)."""
    w, b = p["w"], p["b"]
    k = w.shape[2]
    Cout = w.shape[0]
    Nb, H, W, C = x.shape
    xp = x if padding == 0 else jnp.pad(
        x, ((0, 0), (padding, padding), (padding, padding), (0, 0)))
    Ho = (H + 2 * padding - k) // stride + 1
    Wo = (W + 2 * padding - k) // stride + 1
    # TODO(synk): im2col is still materialized by XLA (k^2 blow-up of the activation);
    # in-kernel tap accumulation needs halo-window BlockSpecs and is left for a follow-up.
    if k == 1 and stride == 1:
        cols = xp.reshape(Nb * Ho * Wo, C)
    else:
        taps = []
        for di in range(k):
            for dj in range(k):
                taps.append(xp[:, di:di + stride * Ho:stride, dj:dj + stride * Wo:stride, :])
        cols = jnp.concatenate(taps, axis=-1).reshape(Nb * Ho * Wo, k * k * C)
    w2d = jnp.transpose(w, (2, 3, 1, 0)).reshape(k * k * C, Cout)
    res2d = None if residual is None else residual.reshape(Nb * Ho * Wo, Cout)
    out = pallas_gemm(cols, w2d, b, relu=relu, affine=affine, tanh_clamp=tanh_clamp,
                      residual=res2d, aux_affine=aux_affine)
    if aux_affine is not None:
        o, a = out
        return o.reshape(Nb, Ho, Wo, Cout), a.reshape(Nb, Ho, Wo, Cout)
    return out.reshape(Nb, Ho, Wo, Cout)


def _pixel_shuffle2(out, Cout):
    """(N,H,W,4*Cout) phase-major -> (N,2H,2W,Cout)."""
    Nb, H, W, _ = out.shape
    out = out.reshape(Nb, H, W, 2, 2, Cout)
    out = jnp.transpose(out, (0, 1, 3, 2, 4, 5)).reshape(Nb, 2 * H, 2 * W, Cout)
    return out


def upsample2x_conv3x3(x, p, relu=False, affine=None, tanh_clamp=False):
    """nn.Upsample(scale_factor=2, mode='nearest') followed by Conv2d(k=3, pad=1), fused:
    ONE GEMM over the ORIGINAL resolution emits all 4 output phases (channels-major per
    phase), then a pixel shuffle interleaves them.  Avoids materializing the 2x-upsampled
    activation and its 9-tap im2col; the BN affine / ReLU / tanh-clamp epilogue stays fused
    (per-channel params tiled across the 4 phases)."""
    w, b = p["w"], p["b"]          # (Cout, Cin, 3, 3)
    Cout = w.shape[0]
    # Nearest upsample folds into the conv: output phase 0 reads source taps {-1, 0}
    # (3x3 kernel rows combine as k0, k1+k2), phase 1 reads {0, +1} (k0+k1, k2).
    T = jnp.array([[[1., 0., 0.],
                    [0., 1., 1.],
                    [0., 0., 0.]],
                   [[0., 0., 0.],
                    [1., 1., 0.],
                    [0., 0., 1.]]], dtype=w.dtype)       # (phase, a, kh)
    # w_eff[r, s, co, ci, a, b] = sum_{kh,kw} T[r,a,kh] * T[s,b,kw] * w[co,ci,kh,kw]
    w_eff = jnp.einsum("rak,sbl,oikl->rsoiab", T, T, w).reshape(4 * Cout, w.shape[1], 3, 3)
    b_eq = jnp.tile(b, 4)
    aff = None
    if affine is not None:
        s_, t_ = affine
        aff = (jnp.tile(s_, 4), jnp.tile(t_, 4))
    out = conv2d(x, {"w": w_eff, "b": b_eq}, stride=1, padding=1, relu=relu,
                 affine=aff, tanh_clamp=tanh_clamp)       # (N, H, W, 4*Cout)
    return _pixel_shuffle2(out, Cout)


def conv_transpose2d_subpixel(x, p):
    """PyTorch ConvTranspose2d(k=4, stride=2, padding=1) via subpixel decomposition:
    one 3x3 GEMM over the (pad=1) input produces all 4 output phases (no zero-upsampling),
    then a pixel shuffle interleaves them.  p['w']: (Cin, Cout, 4, 4)."""
    w, b = p["w"], p["b"]
    Cin, Cout = w.shape[0], w.shape[1]
    w_eq = jnp.zeros((4, Cout, Cin, 3, 3), w.dtype)
    for r in (0, 1):
        for s in (0, 1):
            for di in (0, 1):
                for dj in (0, 1):
                    w_eq = w_eq.at[r * 2 + s, :, :, r + di, s + dj].set(
                        jnp.transpose(w[:, :, 3 - r - 2 * di, 3 - s - 2 * dj], (1, 0)))
    w_eq = w_eq.reshape(4 * Cout, Cin, 3, 3)
    b_eq = jnp.tile(b, 4)
    out = conv2d(x, {"w": w_eq, "b": b_eq}, stride=1, padding=1)   # (N, H, W, 4*Cout)
    return _pixel_shuffle2(out, Cout)


# ----------------------------------------------------------------------------
# Module forwards
# ----------------------------------------------------------------------------


def _aux_for_res0(res_params, out_channels):
    # aux = BN1_of_first_resblock(ReLU(x)); identity affine == plain ReLU if no resblocks.
    if res_params:
        return bn_scale_shift(res_params[0]["bn1"])
    return identity_affine(out_channels)


def res_chain(x, a, res_params):
    """Run the ResBlock chain.  x: raw input; a: BN1_0(ReLU(x)) (aux of the producer GEMM).
    Returns ReLU(y_last) (the trailing in-place ReLU of Encoder/Decoder blocks)."""
    n = len(res_params)
    if n == 0:
        return a
    for i, rp in enumerate(res_params):
        # ReLU -> BN1 already applied (a); 3x3 conv with fused ReLU -> BN2:
        hid = conv2d(a, rp["conv1"], stride=1, padding=1, relu=True,
                     affine=bn_scale_shift(rp["bn2"]))
        if i + 1 < n:
            nxt = bn_scale_shift(res_params[i + 1]["bn1"])
        else:
            nxt = identity_affine(rp["conv2"]["w"].shape[0])
        # 1x1 conv with fused residual add; aux output feeds the next block (or trailing ReLU).
        x, a = conv2d(hid, rp["conv2"], stride=1, padding=0,
                      residual=x, aux_affine=nxt)
    return a


def encoder_fwd(x, p, stride):
    res = p["res"]
    if stride == 4:
        x = conv2d(x, p["c0"], stride=2, padding=1, relu=True,
                   affine=bn_scale_shift(p["bn0"]))
        x = conv2d(x, p["c1"], stride=2, padding=1, relu=True,
                   affine=bn_scale_shift(p["bn1"]))
        x, a = conv2d(x, p["c2"], stride=1, padding=1,
                      aux_affine=_aux_for_res0(res, p["c2"]["w"].shape[0]))
    elif stride == 2:
        x = conv2d(x, p["c0"], stride=2, padding=1, relu=True,
                   affine=bn_scale_shift(p["bn0"]))
        x, a = conv2d(x, p["c1"], stride=1, padding=1,
                      aux_affine=_aux_for_res0(res, p["c1"]["w"].shape[0]))
    else:
        raise NotImplementedError
    return res_chain(x, a, res)


def upsample_deconv_fwd(x, p, stride):
    # cfg.upsample_method == 'nearest' -> upsample+conv fused into one subpixel GEMM.
    if stride == 2:
        x = upsample2x_conv3x3(x, p["c0"], relu=True, tanh_clamp=True)
    elif stride == 4:
        x = upsample2x_conv3x3(x, p["c0"], relu=True, affine=bn_scale_shift(p["bn0"]))
        x = upsample2x_conv3x3(x, p["c1"], relu=True, tanh_clamp=True)
    else:
        raise NotImplementedError
    # TODO(synk): stride==8 branch of UpsampleDeconv not needed for chosen cfg.
    return x


def decoder_fwd(x, p, stride):
    # cfg.use_upsample=True, cfg.more_resnet=False.  The final clamp(tanh(x)*1.05) is
    # fused into the last conv's GEMM epilogue inside upsample_deconv_fwd.
    res = p["res"]
    x, a = conv2d(x, p["c_in"], stride=1, padding=1,
                  aux_affine=_aux_for_res0(res, p["c_in"]["w"].shape[0]))
    h = res_chain(x, a, res)
    return upsample_deconv_fwd(h, p["up"], stride)


def network_forward(params, x_nchw, batch=None):
    x = jnp.transpose(x_nchw, (0, 2, 3, 1)).astype(jnp.float32)  # NCHW -> NHWC

    # --- encode ---
    enc_b = encoder_fwd(x, params["enc_b"], CFG["bottom_stride"])
    enc_t = encoder_fwd(enc_b, params["enc_t"], CFG["top_stride"])
    qt_in = conv2d(enc_t, params["quantize_conv_t"], stride=1, padding=0)
    quant_t, diff_t, id_t = pallas_quantize(qt_in, params["embed_t"])
    dec_t = decoder_fwd(quant_t, params["dec_t"], CFG["top_stride"])
    enc_b_cat = jnp.concatenate([dec_t, enc_b], axis=-1)
    qb_in = conv2d(enc_b_cat, params["quantize_conv_b"], stride=1, padding=0)
    quant_b, diff_b, id_b = pallas_quantize(qb_in, params["embed_b"])
    diff = (diff_t + diff_b).reshape(1)

    # --- decode ---
    upsample_t = conv_transpose2d_subpixel(quant_t, params["upsample_t"])
    quant = jnp.concatenate([upsample_t, quant_b], axis=-1)
    dec = decoder_fwd(quant, params["dec"], CFG["bottom_stride"])

    return {
        "latent_t": id_t,
        "latent_b": id_b,
        "quant_t": jnp.transpose(quant_t, (0, 3, 1, 2)),
        "quant_b": jnp.transpose(quant_b, (0, 3, 1, 2)),
        "x_tiled": jnp.transpose(dec, (0, 3, 1, 2)),
        "diff": diff,
    }


# ----------------------------------------------------------------------------
# Deterministic parameter initialization
# ----------------------------------------------------------------------------


class KeyGen:
    def __init__(self, key):
        self.key = key

    def __call__(self):
        self.key, sub = jax.random.split(self.key)
        return sub


def init_conv(kg, cout, cin, k):
    fan_in = cin * k * k
    w = jax.random.normal(kg(), (cout, cin, k, k), jnp.float32) / jnp.sqrt(fan_in)
    b = 0.01 * jax.random.normal(kg(), (cout,), jnp.float32)
    return {"w": w, "b": b}


def init_convT(kg, cin, cout, k):
    fan_in = cin * k * k
    w = jax.random.normal(kg(), (cin, cout, k, k), jnp.float32) / jnp.sqrt(fan_in)
    b = 0.01 * jax.random.normal(kg(), (cout,), jnp.float32)
    return {"w": w, "b": b}


def init_bn(kg, c):
    return {
        "gamma": jnp.ones((c,), jnp.float32) + 0.1 * jax.random.normal(kg(), (c,), jnp.float32),
        "beta": 0.1 * jax.random.normal(kg(), (c,), jnp.float32),
        "mean": jnp.zeros((c,), jnp.float32),
        "var": jnp.ones((c,), jnp.float32),
    }


def init_resblock(kg, in_ch, ch):
    return {
        "bn1": init_bn(kg, in_ch),
        "conv1": init_conv(kg, ch, in_ch, 3),
        "bn2": init_bn(kg, ch),
        "conv2": init_conv(kg, in_ch, ch, 1),
    }


def init_encoder(kg, in_ch, channel, n_res, n_res_ch, stride):
    p = {}
    if stride == 4:
        p["c0"] = init_conv(kg, channel // 2, in_ch, 4)
        p["bn0"] = init_bn(kg, channel // 2)
        p["c1"] = init_conv(kg, channel, channel // 2, 4)
        p["bn1"] = init_bn(kg, channel)
        p["c2"] = init_conv(kg, channel, channel, 3)
    elif stride == 2:
        p["c0"] = init_conv(kg, channel // 2, in_ch, 4)
        p["bn0"] = init_bn(kg, channel // 2)
        p["c1"] = init_conv(kg, channel, channel // 2, 3)
    else:
        raise NotImplementedError
    p["res"] = [init_resblock(kg, channel, n_res_ch) for _ in range(n_res)]
    return p


def init_upsample_deconv(kg, in_ch, ch, out_ch, stride):
    p = {}
    if stride == 2:
        p["c0"] = init_conv(kg, out_ch, in_ch, 3)
    elif stride == 4:
        p["c0"] = init_conv(kg, ch, in_ch, 3)
        p["bn0"] = init_bn(kg, ch)
        p["c1"] = init_conv(kg, out_ch, ch, 3)
    else:
        raise NotImplementedError
    return p


def init_decoder(kg, in_ch, out_ch, channel, n_res, n_res_ch, stride):
    return {
        "c_in": init_conv(kg, channel, in_ch, 3),
        "res": [init_resblock(kg, channel, n_res_ch) for _ in range(n_res)],
        "up": init_upsample_deconv(kg, channel, channel // 2, out_ch, stride),
    }


def init_network(key, in_ch, channel, n_res, n_res_ch, embed_dim, n_embed):
    kg = KeyGen(key)
    p = {}
    p["enc_b"] = init_encoder(kg, in_ch, channel, n_res, n_res_ch, CFG["bottom_stride"])
    p["enc_t"] = init_encoder(kg, channel, channel, n_res, n_res_ch, CFG["top_stride"])
    p["quantize_conv_t"] = init_conv(kg, embed_dim, channel, 1)
    p["embed_t"] = jax.random.normal(kg(), (embed_dim, n_embed), jnp.float32)
    p["dec_t"] = init_decoder(kg, embed_dim, embed_dim, channel, n_res, n_res_ch, CFG["top_stride"])
    p["quantize_conv_b"] = init_conv(kg, embed_dim, embed_dim + channel, 1)
    p["embed_b"] = jax.random.normal(kg(), (embed_dim, n_embed), jnp.float32)
    p["upsample_t"] = init_convT(kg, embed_dim, embed_dim, 4)
    p["dec"] = init_decoder(kg, embed_dim + embed_dim, in_ch, channel, n_res, n_res_ch,
                            CFG["bottom_stride"])
    return p


# ----------------------------------------------------------------------------
# Main
# ----------------------------------------------------------------------------

if __name__ == "__main__":
    key = jax.random.PRNGKey(0)
    kp, kx = jax.random.split(key)

    # small, module-consistent hyperparameters
    in_ch, channel, n_res, n_res_ch, embed_dim = 3, 32, 2, 16, 16
    params = init_network(kp, in_ch, channel, n_res, n_res_ch, embed_dim, CFG["n_embed"])

    x = jax.random.normal(kx, (2, in_ch, 32, 32), jnp.float32)  # NCHW like PyTorch

    fwd = jax.jit(network_forward)
    ret = fwd(params, x)
    ret = jax.block_until_ready(ret)

    assert ret["x_tiled"].shape == (2, 3, 32, 32)
    assert ret["latent_t"].shape == (2, 4, 4) and ret["latent_t"].dtype == jnp.int32
    assert ret["latent_b"].shape == (2, 8, 8) and ret["latent_b"].dtype == jnp.int32
    assert ret["quant_t"].shape == (2, embed_dim, 4, 4)
    assert ret["quant_b"].shape == (2, embed_dim, 8, 8)
    assert ret["diff"].shape == (1,)
    assert float(jnp.max(jnp.abs(ret["x_tiled"]))) <= 1.0 + 1e-6
    assert bool(jnp.isfinite(ret["diff"][0]))

    print("KERNEL_OK")
</pallas_src>

<mosaic_0001>
module attributes {stable_mosaic.version = 11 : i64} {
  func.func @_gemm_kernel(%arg0: i32, %arg1: memref<256x48xbf16, #tpu.memory_space<vmem>>, %arg2: memref<48x128xbf16, #tpu.memory_space<vmem>>, %arg3: memref<1x128xf32, #tpu.memory_space<vmem>>, %arg4: memref<1x128xf32, #tpu.memory_space<vmem>>, %arg5: memref<1x128xf32, #tpu.memory_space<vmem>>, %arg6: memref<256x128xf32, #tpu.memory_space<vmem>>) attributes {dimension_semantics = [#tpu.dimension_semantics<parallel>], iteration_bounds = array<i64: 2>, scalar_prefetch = 0 : i64, scratch_operands = 0 : i64, tpu.core_type = #tpu.core_type<tc>, window_params = [{transform_indices = @transform_0, window_bounds = array<i64: 256, 48>}, {pipeline_mode = #tpu.pipeline_mode<synchronous>, transform_indices = @transform_1, window_bounds = array<i64: 48, 128>}, {pipeline_mode = #tpu.pipeline_mode<synchronous>, transform_indices = @transform_2, window_bounds = array<i64: 1, 128>}, {pipeline_mode = #tpu.pipeline_mode<synchronous>, transform_indices = @transform_3, window_bounds = array<i64: 1, 128>}, {pipeline_mode = #tpu.pipeline_mode<synchronous>, transform_indices = @transform_4, window_bounds = array<i64: 1, 128>}, {transform_indices = @transform_5, window_bounds = array<i64: 256, 128>}]} {
    %c0 = arith.constant 0 : index
    %c0_0 = arith.constant 0 : index
    %0 = vector.load %arg1[%c0, %c0_0] : memref<256x48xbf16, #tpu.memory_space<vmem>>, vector<256x48xbf16>
    %c0_1 = arith.constant 0 : index
    %c0_2 = arith.constant 0 : index
    %1 = vector.load %arg2[%c0_1, %c0_2] : memref<48x128xbf16, #tpu.memory_space<vmem>>, vector<48x128xbf16>
    %cst = arith.constant dense<0.000000e+00> : vector<256x128xf32>
    %2 = tpu.matmul %0, %1, %cst {dimension_numbers = #tpu.dot_dimension_numbers<[1], [0], [0], [1], [0, 0, 1, 1], [], []>} : vector<256x48xbf16>, vector<48x128xbf16>, vector<256x128xf32> -> vector<256x128xf32>
    %c0_3 = arith.constant 0 : index
    %c0_4 = arith.constant 0 : index
    %3 = vector.load %arg3[%c0_3, %c0_4] : memref<1x128xf32, #tpu.memory_space<vmem>>, vector<1x128xf32>
    %4 = vector.broadcast %3 : vector<1x128xf32> to vector<256x128xf32>
    %5 = arith.addf %2, %4 : vector<256x128xf32>
    %cst_5 = arith.constant 0.000000e+00 : f32
    %6 = vector.broadcast %cst_5 : f32 to vector<256x128xf32>
    %7 = arith.maximumf %5, %6 : vector<256x128xf32>
    %c0_6 = arith.constant 0 : index
    %c0_7 = arith.constant 0 : index
    %8 = vector.load %arg4[%c0_6, %c0_7] : memref<1x128xf32, #tpu.memory_space<vmem>>, vector<1x128xf32>
    %9 = vector.broadcast %8 : vector<1x128xf32> to vector<256x128xf32>
    %10 = arith.mulf %7, %9 : vector<256x128xf32>
    %c0_8 = arith.constant 0 : index
    %c0_9 = arith.constant 0 : index
    %11 = vector.load %arg5[%c0_8, %c0_9] : memref<1x128xf32, #tpu.memory_space<vmem>>, vector<1x128xf32>
    %12 = vector.broadcast %11 : vector<1x128xf32> to vector<256x128xf32>
    %13 = arith.addf %10, %12 : vector<256x128xf32>
    %c0_10 = arith.constant 0 : index
    %c0_11 = arith.constant 0 : index
    %14 = vector.load %arg6[%c0_10, %c0_11] : memref<256x128xf32, #tpu.memory_space<vmem>>, vector<256x128xf32>
    tpu.vector_store %arg6[%c0_10, %c0_11], %13 {strides = array<i32>} : memref<256x128xf32, #tpu.memory_space<vmem>>, vector<256x128xf32>,
    return
  }
  func.func @transform_0(%arg0: i32) -> (i32, i32) {
    %c0_i32 = arith.constant 0 : i32
    %c0_i32_0 = arith.constant 0 : i32
    return %arg0, %c0_i32 : i32, i32
  }
  func.func @transform_1(%arg0: i32) -> (i32, i32) {
    %c0_i32 = arith.constant 0 : i32
    %c0_i32_0 = arith.constant 0 : i32
    %c0_i32_1 = arith.constant 0 : i32
    return %c0_i32, %c0_i32_0 : i32, i32
  }
  func.func @transform_2(%arg0: i32) -> (i32, i32) {
    %c0_i32 = arith.constant 0 : i32
    %c0_i32_0 = arith.constant 0 : i32
    %c0_i32_1 = arith.constant 0 : i32
    return %c0_i32, %c0_i32_0 : i32, i32
  }
  func.func @transform_3(%arg0: i32) -> (i32, i32) {
    %c0_i32 = arith.constant 0 : i32
    %c0_i32_0 = arith.constant 0 : i32
    %c0_i32_1 = arith.constant 0 : i32
    return %c0_i32, %c0_i32_0 : i32, i32
  }
  func.func @transform_4(%arg0: i32) -> (i32, i32) {
    %c0_i32 = arith.constant 0 : i32
    %c0_i32_0 = arith.constant 0 : i32
    %c0_i32_1 = arith.constant 0 : i32
    return %c0_i32, %c0_i32_0 : i32, i32
  }
  func.func @transform_5(%arg0: i32) -> (i32, i32) {
    %c0_i32 = arith.constant 0 : i32
    %c0_i32_0 = arith.constant 0 : i32
    return %arg0, %c0_i32 : i32, i32
  }
}

module attributes {stable_mosaic.version = 11 : i64} {
  func.func @_gemm_kernel(%arg0: i32, %arg1: memref<128x256xbf16, #tpu.memory_space<vmem>>, %arg2: memref<256x128xbf16, #tpu.memory_space<vmem>>, %arg3: memref<1x128xf32, #tpu.memory_space<vmem>>, %arg4: memref<1x128xf32, #tpu.memory_space<vmem>>, %arg5: memref<1x128xf32, #tpu.memory_space<vmem>>, %arg6: memref<128x128xf32, #tpu.memory_space<vmem>>) attributes {dimension_semantics = [#tpu.dimension_semantics<parallel>], iteration_bounds = array<i64: 1>, scalar_prefetch = 0 : i64, scratch_operands = 0 : i64, tpu.core_type = #tpu.core_type<tc>, window_params = [{transform_indices = @transform_0, window_bounds = array<i64: 128, 256>}, {pipeline_mode = #tpu.pipeline_mode<synchronous>, transform_indices = @transform_1, window_bounds = array<i64: 256, 128>}, {pipeline_mode = #tpu.pipeline_mode<synchronous>, transform_indices = @transform_2, window_bounds = array<i64: 1, 128>}, {pipeline_mode = #tpu.pipeline_mode<synchronous>, transform_indices = @transform_3, window_bounds = array<i64: 1, 128>}, {pipeline_mode = #tpu.pipeline_mode<synchronous>, transform_indices = @transform_4, window_bounds = array<i64: 1, 128>}, {transform_indices = @transform_5, window_bounds = array<i64: 128, 128>}]} {
    %c0 = arith.constant 0 : index
    %c0_0 = arith.constant 0 : index
    %0 = vector.load %arg1[%c0, %c0_0] : memref<128x256xbf16, #tpu.memory_space<vmem>>, vector<128x256xbf16>
    %c0_1 = arith.constant 0 : index
    %c0_2 = arith.constant 0 : index
    %1 = vector.load %arg2[%c0_1, %c0_2] : memref<256x128xbf16, #tpu.memory_space<vmem>>, vector<256x128xbf16>
    %cst = arith.constant dense<0.000000e+00> : vector<128x128xf32>
    %2 = tpu.matmul %0, %1, %cst {dimension_numbers = #tpu.dot_dimension_numbers<[1], [0], [0], [1], [0, 0, 1, 1], [], []>} : vector<128x256xbf16>, vector<256x128xbf16>, vector<128x128xf32> -> vector<128x128xf32>
    %c0_3 = arith.constant 0 : index
    %c0_4 = arith.constant 0 : index
    %3 = vector.load %arg3[%c0_3, %c0_4] : memref<1x128xf32, #tpu.memory_space<vmem>>, vector<1x128xf32>
    %4 = vector.broadcast %3 : vector<1x128xf32> to vector<128x128xf32>
    %5 = arith.addf %2, %4 : vector<128x128xf32>
    %cst_5 = arith.constant 0.000000e+00 : f32
    %6 = vector.broadcast %cst_5 : f32 to vector<128x128xf32>
    %7 = arith.maximumf %5, %6 : vector<128x128xf32>
    %c0_6 = arith.constant 0 : index
    %c0_7 = arith.constant 0 : index
    %8 = vector.load %arg4[%c0_6, %c0_7] : memref<1x128xf32, #tpu.memory_space<vmem>>, vector<1x128xf32>
    %9 = vector.broadcast %8 : vector<1x128xf32> to vector<128x128xf32>
    %10 = arith.mulf %7, %9 : vector<128x128xf32>
    %c0_8 = arith.constant 0 : index
    %c0_9 = arith.constant 0 : index
    %11 = vector.load %arg5[%c0_8, %c0_9] : memref<1x128xf32, #tpu.memory_space<vmem>>, vector<1x128xf32>
    %12 = vector.broadcast %11 : vector<1x128xf32> to vector<128x128xf32>
    %13 = arith.addf %10, %12 : vector<128x128xf32>
    %c0_10 = arith.constant 0 : index
    %c0_11 = arith.constant 0 : index
    %14 = vector.load %arg6[%c0_10, %c0_11] : memref<128x128xf32, #tpu.memory_space<vmem>>, vector<128x128xf32>
    tpu.vector_store %arg6[%c0_10, %c0_11], %13 {strides = array<i32>} : memref<128x128xf32, #tpu.memory_space<vmem>>, vector<128x128xf32>,
    return
  }
  func.func @transform_0(%arg0: i32) -> (i32, i32) {
    %c0_i32 = arith.constant 0 : i32
    %c0_i32_0 = arith.constant 0 : i32
    return %arg0, %c0_i32 : i32, i32
  }
  func.func @transform_1(%arg0: i32) -> (i32, i32) {
    %c0_i32 = arith.constant 0 : i32
    %c0_i32_0 = arith.constant 0 : i32
    %c0_i32_1 = arith.constant 0 : i32
    return %c0_i32, %c0_i32_0 : i32, i32
  }
  func.func @transform_2(%arg0: i32) -> (i32, i32) {
    %c0_i32 = arith.constant 0 : i32
    %c0_i32_0 = arith.constant 0 : i32
    %c0_i32_1 = arith.constant 0 : i32
    return %c0_i32, %c0_i32_0 : i32, i32
  }
  func.func @transform_3(%arg0: i32) -> (i32, i32) {
    %c0_i32 = arith.constant 0 : i32
    %c0_i32_0 = arith.constant 0 : i32
    %c0_i32_1 = arith.constant 0 : i32
    return %c0_i32, %c0_i32_0 : i32, i32
  }
  func.func @transform_4(%arg0: i32) -> (i32, i32) {
    %c0_i32 = arith.constant 0 : i32
    %c0_i32_0 = arith.constant 0 : i32
    %c0_i32_1 = arith.constant 0 : i32
    return %c0_i32, %c0_i32_0 : i32, i32
  }
  func.func @transform_5(%arg0: i32) -> (i32, i32) {
    %c0_i32 = arith.constant 0 : i32
    %c0_i32_0 = arith.constant 0 : i32
    return %arg0, %c0_i32 : i32, i32
  }
}

module attributes {stable_mosaic.version = 11 : i64} {
  func.func @_gemm_kernel(%arg0: i32, %arg1: memref<128x288xbf16, #tpu.memory_space<vmem>>, %arg2: memref<288x128xbf16, #tpu.memory_space<vmem>>, %arg3: memref<1x128xf32, #tpu.memory_space<vmem>>, %arg4: memref<1x128xf32, #tpu.memory_space<vmem>>, %arg5: memref<1x128xf32, #tpu.memory_space<vmem>>, %arg6: memref<128x128xf32, #tpu.memory_space<vmem>>, %arg7: memref<128x128xf32, #tpu.memory_space<vmem>>) attributes {dimension_semantics = [#tpu.dimension_semantics<parallel>], iteration_bounds = array<i64: 1>, scalar_prefetch = 0 : i64, scratch_operands = 0 : i64, tpu.core_type = #tpu.core_type<tc>, window_params = [{transform_indices = @transform_0, window_bounds = array<i64: 128, 288>}, {pipeline_mode = #tpu.pipeline_mode<synchronous>, transform_indices = @transform_1, window_bounds = array<i64: 288, 128>}, {pipeline_mode = #tpu.pipeline_mode<synchronous>, transform_indices = @transform_2, window_bounds = array<i64: 1, 128>}, {pipeline_mode = #tpu.pipeline_mode<synchronous>, transform_indices = @transform_3, window_bounds = array<i64: 1, 128>}, {pipeline_mode = #tpu.pipeline_mode<synchronous>, transform_indices = @transform_4, window_bounds = array<i64: 1, 128>}, {transform_indices = @transform_5, window_bounds = array<i64: 128, 128>}, {transform_indices = @transform_6, window_bounds = array<i64: 128, 128>}]} {
    %c0 = arith.constant 0 : index
    %c0_0 = arith.constant 0 : index
    %0 = vector.load %arg1[%c0, %c0_0] : memref<128x288xbf16, #tpu.memory_space<vmem>>, vector<128x288xbf16>
    %c0_1 = arith.constant 0 : index
    %c0_2 = arith.constant 0 : index
    %1 = vector.load %arg2[%c0_1, %c0_2] : memref<288x128xbf16, #tpu.memory_space<vmem>>, vector<288x128xbf16>
    %cst = arith.constant dense<0.000000e+00> : vector<128x128xf32>
    %2 = tpu.matmul %0, %1, %cst {dimension_numbers = #tpu.dot_dimension_numbers<[1], [0], [0], [1], [0, 0, 1, 1], [], []>} : vector<128x288xbf16>, vector<288x128xbf16>, vector<128x128xf32> -> vector<128x128xf32>
    %c0_3 = arith.constant 0 : index
    %c0_4 = arith.constant 0 : index
    %3 = vector.load %arg3[%c0_3, %c0_4] : memref<1x128xf32, #tpu.memory_space<vmem>>, vector<1x128xf32>
    %4 = vector.broadcast %3 : vector<1x128xf32> to vector<128x128xf32>
    %5 = arith.addf %2, %4 : vector<128x128xf32>
    %c0_5 = arith.constant 0 : index
    %c0_6 = arith.constant 0 : index
    %6 = vector.load %arg6[%c0_5, %c0_6] : memref<128x128xf32, #tpu.memory_space<vmem>>, vector<128x128xf32>
    tpu.vector_store %arg6[%c0_5, %c0_6], %5 {strides = array<i32>} : memref<128x128xf32, #tpu.memory_space<vmem>>, vector<128x128xf32>,
    %cst_7 = arith.constant 0.000000e+00 : f32
    %7 = vector.broadcast %cst_7 : f32 to vector<128x128xf32>
    %8 = arith.maximumf %5, %7 : vector<128x128xf32>
    %c0_8 = arith.constant 0 : index
    %c0_9 = arith.constant 0 : index
    %9 = vector.load %arg4[%c0_8, %c0_9] : memref<1x128xf32, #tpu.memory_space<vmem>>, vector<1x128xf32>
    %10 = vector.broadcast %9 : vector<1x128xf32> to vector<128x128xf32>
    %11 = arith.mulf %8, %10 : vector<128x128xf32>
    %c0_10 = arith.constant 0 : index
    %c0_11 = arith.constant 0 : index
    %12 = vector.load %arg5[%c0_10, %c0_11] : memref<1x128xf32, #tpu.memory_space<vmem>>, vector<1x128xf32>
    %13 = vector.broadcast %12 : vector<1x128xf32> to vector<128x128xf32>
    %14 = arith.addf %11, %13 : vector<128x128xf32>
    %c0_12 = arith.constant 0 : index
    %c0_13 = arith.constant 0 : index
    %15 = vector.load %arg7[%c0_12, %c0_13] : memref<128x128xf32, #tpu.memory_space<vmem>>, vector<128x128xf32>
    tpu.vector_store %arg7[%c0_12, %c0_13], %14 {strides = array<i32>} : memref<128x128xf32, #tpu.memory_space<vmem>>, vector<128x128xf32>,
    return
  }
  func.func @transform_0(%arg0: i32) -> (i32, i32) {
    %c0_i32 = arith.constant 0 : i32
    %c0_i32_0 = arith.constant 0 : i32
    return %arg0, %c0_i32 : i32, i32
  }
  func.func @transform_1(%arg0: i32) -> (i32, i32) {
    %c0_i32 = arith.constant 0 : i32
    %c0_i32_0 = arith.constant 0 : i32
    %c0_i32_1 = arith.constant 0 : i32
    return %c0_i32, %c0_i32_0 : i32, i32
  }
  func.func @transform_2(%arg0: i32) -> (i32, i32) {
    %c0_i32 = arith.constant 0 : i32
    %c0_i32_0 = arith.constant 0 : i32
    %c0_i32_1 = arith.constant 0 : i32
    return %c0_i32, %c0_i32_0 : i32, i32
  }
  func.func @transform_3(%arg0: i32) -> (i32, i32) {
    %c0_i32 = arith.constant 0 : i32
    %c0_i32_0 = arith.constant 0 : i32
    %c0_i32_1 = arith.constant 0 : i32
    return %c0_i32, %c0_i32_0 : i32, i32
  }
  func.func @transform_4(%arg0: i32) -> (i32, i32) {
    %c0_i32 = arith.constant 0 : i32
    %c0_i32_0 = arith.constant 0 : i32
    %c0_i32_1 = arith.constant 0 : i32
    return %c0_i32, %c0_i32_0 : i32, i32
  }
  func.func @transform_5(%arg0: i32) -> (i32, i32) {
    %c0_i32 = arith.constant 0 : i32
    %c0_i32_0 = arith.constant 0 : i32
    return %arg0, %c0_i32 : i32, i32
  }
  func.func @transform_6(%arg0: i32) -> (i32, i32) {
    %c0_i32 = arith.constant 0 : i32
    %c0_i32_0 = arith.constant 0 : i32
    return %arg0, %c0_i32 : i32, i32
  }
}

module attributes {stable_mosaic.version = 11 : i64} {
  func.func @_gemm_kernel(%arg0: i32, %arg1: memref<128x288xbf16, #tpu.memory_space<vmem>>, %arg2: memref<288x128xbf16, #tpu.memory_space<vmem>>, %arg3: memref<1x128xf32, #tpu.memory_space<vmem>>, %arg4: memref<1x128xf32, #tpu.memory_space<vmem>>, %arg5: memref<1x128xf32, #tpu.memory_space<vmem>>, %arg6: memref<128x128xf32, #tpu.memory_space<vmem>>) attributes {dimension_semantics = [#tpu.dimension_semantics<parallel>], iteration_bounds = array<i64: 1>, scalar_prefetch = 0 : i64, scratch_operands = 0 : i64, tpu.core_type = #tpu.core_type<tc>, window_params = [{transform_indices = @transform_0, window_bounds = array<i64: 128, 288>}, {pipeline_mode = #tpu.pipeline_mode<synchronous>, transform_indices = @transform_1, window_bounds = array<i64: 288, 128>}, {pipeline_mode = #tpu.pipeline_mode<synchronous>, transform_indices = @transform_2, window_bounds = array<i64: 1, 128>}, {pipeline_mode = #tpu.pipeline_mode<synchronous>, transform_indices = @transform_3, window_bounds = array<i64: 1, 128>}, {pipeline_mode = #tpu.pipeline_mode<synchronous>, transform_indices = @transform_4, window_bounds = array<i64: 1, 128>}, {transform_indices = @transform_5, window_bounds = array<i64: 128, 128>}]} {
    %c0 = arith.constant 0 : index
    %c0_0 = arith.constant 0 : index
    %0 = vector.load %arg1[%c0, %c0_0] : memref<128x288xbf16, #tpu.memory_space<vmem>>, vector<128x288xbf16>
    %c0_1 = arith.constant 0 : index
    %c0_2 = arith.constant 0 : index
    %1 = vector.load %arg2[%c0_1, %c0_2] : memref<288x128xbf16, #tpu.memory_space<vmem>>, vector<288x128xbf16>
    %cst = arith.constant dense<0.000000e+00> : vector<128x128xf32>
    %2 = tpu.matmul %0, %1, %cst {dimension_numbers = #tpu.dot_dimension_numbers<[1], [0], [0], [1], [0, 0, 1, 1], [], []>} : vector<128x288xbf16>, vector<288x128xbf16>, vector<128x128xf32> -> vector<128x128xf32>
    %c0_3 = arith.constant 0 : index
    %c0_4 = arith.constant 0 : index
    %3 = vector.load %arg3[%c0_3, %c0_4] : memref<1x128xf32, #tpu.memory_space<vmem>>, vector<1x128xf32>
    %4 = vector.broadcast %3 : vector<1x128xf32> to vector<128x128xf32>
    %5 = arith.addf %2, %4 : vector<128x128xf32>
    %cst_5 = arith.constant 0.000000e+00 : f32
    %6 = vector.broadcast %cst_5 : f32 to vector<128x128xf32>
    %7 = arith.maximumf %5, %6 : vector<128x128xf32>
    %c0_6 = arith.constant 0 : index
    %c0_7 = arith.constant 0 : index
    %8 = vector.load %arg4[%c0_6, %c0_7] : memref<1x128xf32, #tpu.memory_space<vmem>>, vector<1x128xf32>
    %9 = vector.broadcast %8 : vector<1x128xf32> to vector<128x128xf32>
    %10 = arith.mulf %7, %9 : vector<128x128xf32>
    %c0_8 = arith.constant 0 : index
    %c0_9 = arith.constant 0 : index
    %11 = vector.load %arg5[%c0_8, %c0_9] : memref<1x128xf32, #tpu.memory_space<vmem>>, vector<1x128xf32>
    %12 = vector.broadcast %11 : vector<1x128xf32> to vector<128x128xf32>
    %13 = arith.addf %10, %12 : vector<128x128xf32>
    %c0_10 = arith.constant 0 : index
    %c0_11 = arith.constant 0 : index
    %14 = vector.load %arg6[%c0_10, %c0_11] : memref<128x128xf32, #tpu.memory_space<vmem>>, vector<128x128xf32>
    tpu.vector_store %arg6[%c0_10, %c0_11], %13 {strides = array<i32>} : memref<128x128xf32, #tpu.memory_space<vmem>>, vector<128x128xf32>,
    return
  }
  func.func @transform_0(%arg0: i32) -> (i32, i32) {
    %c0_i32 = arith.constant 0 : i32
    %c0_i32_0 = arith.constant 0 : i32
    return %arg0, %c0_i32 : i32, i32
  }
  func.func @transform_1(%arg0: i32) -> (i32, i32) {
    %c0_i32 = arith.constant 0 : i32
    %c0_i32_0 = arith.constant 0 : i32
    %c0_i32_1 = arith.constant 0 : i32
    return %c0_i32, %c0_i32_0 : i32, i32
  }
  func.func @transform_2(%arg0: i32) -> (i32, i32) {
    %c0_i32 = arith.constant 0 : i32
    %c0_i32_0 = arith.constant 0 : i32
    %c0_i32_1 = arith.constant 0 : i32
    return %c0_i32, %c0_i32_0 : i32, i32
  }
  func.func @transform_3(%arg0: i32) -> (i32, i32) {
    %c0_i32 = arith.constant 0 : i32
    %c0_i32_0 = arith.constant 0 : i32
    %c0_i32_1 = arith.constant 0 : i32
    return %c0_i32, %c0_i32_0 : i32, i32
  }
  func.func @transform_4(%arg0: i32) -> (i32, i32) {
    %c0_i32 = arith.constant 0 : i32
    %c0_i32_0 = arith.constant 0 : i32
    %c0_i32_1 = arith.constant 0 : i32
    return %c0_i32, %c0_i32_0 : i32, i32
  }
  func.func @transform_5(%arg0: i32) -> (i32, i32) {
    %c0_i32 = arith.constant 0 : i32
    %c0_i32_0 = arith.constant 0 : i32
    return %arg0, %c0_i32 : i32, i32
  }
}

module attributes {stable_mosaic.version = 11 : i64} {
  func.func @_gemm_kernel(%arg0: i32, %arg1: memref<128x16xbf16, #tpu.memory_space<vmem>>, %arg2: memref<16x128xbf16, #tpu.memory_space<vmem>>, %arg3: memref<1x128xf32, #tpu.memory_space<vmem>>, %arg4: memref<128x128xf32, #tpu.memory_space<vmem>>, %arg5: memref<1x128xf32, #tpu.memory_space<vmem>>, %arg6: memref<1x128xf32, #tpu.memory_space<vmem>>, %arg7: memref<128x128xf32, #tpu.memory_space<vmem>>, %arg8: memref<128x128xf32, #tpu.memory_space<vmem>>) attributes {dimension_semantics = [#tpu.dimension_semantics<parallel>], iteration_bounds = array<i64: 1>, scalar_prefetch = 0 : i64, scratch_operands = 0 : i64, tpu.core_type = #tpu.core_type<tc>, window_params = [{transform_indices = @transform_0, window_bounds = array<i64: 128, 16>}, {pipeline_mode = #tpu.pipeline_mode<synchronous>, transform_indices = @transform_1, window_bounds = array<i64: 16, 128>}, {pipeline_mode = #tpu.pipeline_mode<synchronous>, transform_indices = @transform_2, window_bounds = array<i64: 1, 128>}, {transform_indices = @transform_3, window_bounds = array<i64: 128, 128>}, {pipeline_mode = #tpu.pipeline_mode<synchronous>, transform_indices = @transform_4, window_bounds = array<i64: 1, 128>}, {pipeline_mode = #tpu.pipeline_mode<synchronous>, transform_indices = @transform_5, window_bounds = array<i64: 1, 128>}, {transform_indices = @transform_6, window_bounds = array<i64: 128, 128>}, {transform_indices = @transform_7, window_bounds = array<i64: 128, 128>}]} {
    %c0 = arith.constant 0 : index
    %c0_0 = arith.constant 0 : index
    %0 = vector.load %arg1[%c0, %c0_0] : memref<128x16xbf16, #tpu.memory_space<vmem>>, vector<128x16xbf16>
    %c0_1 = arith.constant 0 : index
    %c0_2 = arith.constant 0 : index
    %1 = vector.load %arg2[%c0_1, %c0_2] : memref<16x128xbf16, #tpu.memory_space<vmem>>, vector<16x128xbf16>
    %cst = arith.constant dense<0.000000e+00> : vector<128x128xf32>
    %2 = tpu.matmul %0, %1, %cst {dimension_numbers = #tpu.dot_dimension_numbers<[1], [0], [0], [1], [0, 0, 1, 1], [], []>} : vector<128x16xbf16>, vector<16x128xbf16>, vector<128x128xf32> -> vector<128x128xf32>
    %c0_3 = arith.constant 0 : index
    %c0_4 = arith.constant 0 : index
    %3 = vector.load %arg3[%c0_3, %c0_4] : memref<1x128xf32, #tpu.memory_space<vmem>>, vector<1x128xf32>
    %4 = vector.broadcast %3 : vector<1x128xf32> to vector<128x128xf32>
    %5 = arith.addf %2, %4 : vector<128x128xf32>
    %c0_5 = arith.constant 0 : index
    %c0_6 = arith.constant 0 : index
    %6 = vector.load %arg4[%c0_5, %c0_6] : memref<128x128xf32, #tpu.memory_space<vmem>>, vector<128x128xf32>
    %7 = arith.addf %5, %6 : vector<128x128xf32>
    %c0_7 = arith.constant 0 : index
    %c0_8 = arith.constant 0 : index
    %8 = vector.load %arg7[%c0_7, %c0_8] : memref<128x128xf32, #tpu.memory_space<vmem>>, vector<128x128xf32>
    tpu.vector_store %arg7[%c0_7, %c0_8], %7 {strides = array<i32>} : memref<128x128xf32, #tpu.memory_space<vmem>>, vector<128x128xf32>,
    %cst_9 = arith.constant 0.000000e+00 : f32
    %9 = vector.broadcast %cst_9 : f32 to vector<128x128xf32>
    %10 = arith.maximumf %7, %9 : vector<128x128xf32>
    %c0_10 = arith.constant 0 : index
    %c0_11 = arith.constant 0 : index
    %11 = vector.load %arg5[%c0_10, %c0_11] : memref<1x128xf32, #tpu.memory_space<vmem>>, vector<1x128xf32>
    %12 = vector.broadcast %11 : vector<1x128xf32> to vector<128x128xf32>
    %13 = arith.mulf %10, %12 : vector<128x128xf32>
    %c0_12 = arith.constant 0 : index
    %c0_13 = arith.constant 0 : index
    %14 = vector.load %arg6[%c0_12, %c0_13] : memref<1x128xf32, #tpu.memory_space<vmem>>, vector<1x128xf32>
    %15 = vector.broadcast %14 : vector<1x128xf32> to vector<128x128xf32>
    %16 = arith.addf %13, %15 : vector<128x128xf32>
    %c0_14 = arith.constant 0 : index
    %c0_15 = arith.constant 0 : index
    %17 = vector.load %arg8[%c0_14, %c0_15] : memref<128x128xf32, #tpu.memory_space<vmem>>, vector<128x128xf32>
    tpu.vector_store %arg8[%c0_14, %c0_15], %16 {strides = array<i32>} : memref<128x128xf32, #tpu.memory_space<vmem>>, vector<128x128xf32>,
    return
  }
  func.func @transform_0(%arg0: i32) -> (i32, i32) {
    %c0_i32 = arith.constant 0 : i32
    %c0_i32_0 = arith.constant 0 : i32
    return %arg0, %c0_i32 : i32, i32
  }
  func.func @transform_1(%arg0: i32) -> (i32, i32) {
    %c0_i32 = arith.constant 0 : i32
    %c0_i32_0 = arith.constant 0 : i32
    %c0_i32_1 = arith.constant 0 : i32
    return %c0_i32, %c0_i32_0 : i32, i32
  }
  func.func @transform_2(%arg0: i32) -> (i32, i32) {
    %c0_i32 = arith.constant 0 : i32
    %c0_i32_0 = arith.constant 0 : i32
    %c0_i32_1 = arith.constant 0 : i32
    return %c0_i32, %c0_i32_0 : i32, i32
  }
  func.func @transform_3(%arg0: i32) -> (i32, i32) {
    %c0_i32 = arith.constant 0 : i32
    %c0_i32_0 = arith.constant 0 : i32
    return %arg0, %c0_i32 : i32, i32
  }
  func.func @transform_4(%arg0: i32) -> (i32, i32) {
    %c0_i32 = arith.constant 0 : i32
    %c0_i32_0 = arith.constant 0 : i32
    %c0_i32_1 = arith.constant 0 : i32
    return %c0_i32, %c0_i32_0 : i32, i32
  }
  func.func @transform_5(%arg0: i32) -> (i32, i32) {
    %c0_i32 = arith.constant 0 : i32
    %c0_i32_0 = arith.constant 0 : i32
    %c0_i32_1 = arith.constant 0 : i32
    return %c0_i32, %c0_i32_0 : i32, i32
  }
  func.func @transform_6(%arg0: i32) -> (i32, i32) {
    %c0_i32 = arith.constant 0 : i32
    %c0_i32_0 = arith.constant 0 : i32
    return %arg0, %c0_i32 : i32, i32
  }
  func.func @transform_7(%arg0: i32) -> (i32, i32) {
    %c0_i32 = arith.constant 0 : i32
    %c0_i32_0 = arith.constant 0 : i32
    return %arg0, %c0_i32 : i32, i32
  }
}

module attributes {stable_mosaic.version = 11 : i64} {
  func.func @_gemm_kernel(%arg0: i32, %arg1: memref<128x16xbf16, #tpu.memory_space<vmem>>, %arg2: memref<16x128xbf16, #tpu.memory_space<vmem>>, %arg3: memref<1x128xf32, #tpu.memory_space<vmem>>, %arg4: memref<128x128xf32, #tpu.memory_space<vmem>>, %arg5: memref<1x128xf32, #tpu.memory_space<vmem>>, %arg6: memref<1x128xf32, #tpu.memory_space<vmem>>, %arg7: memref<128x128xf32, #tpu.memory_space<vmem>>, %arg8: memref<128x128xf32, #tpu.memory_space<vmem>>) attributes {dimension_semantics = [#tpu.dimension_semantics<parallel>], iteration_bounds = array<i64: 1>, scalar_prefetch = 0 : i64, scratch_operands = 0 : i64, tpu.core_type = #tpu.core_type<tc>, window_params = [{transform_indices = @transform_0, window_bounds = array<i64: 128, 16>}, {pipeline_mode = #tpu.pipeline_mode<synchronous>, transform_indices = @transform_1, window_bounds = array<i64: 16, 128>}, {pipeline_mode = #tpu.pipeline_mode<synchronous>, transform_indices = @transform_2, window_bounds = array<i64: 1, 128>}, {transform_indices = @transform_3, window_bounds = array<i64: 128, 128>}, {pipeline_mode = #tpu.pipeline_mode<synchronous>, transform_indices = @transform_4, window_bounds = array<i64: 1, 128>}, {pipeline_mode = #tpu.pipeline_mode<synchronous>, transform_indices = @transform_5, window_bounds = array<i64: 1, 128>}, {transform_indices = @transform_6, window_bounds = array<i64: 128, 128>}, {transform_indices = @transform_7, window_bounds = array<i64: 128, 128>}]} {
    %c0 = arith.constant 0 : index
    %c0_0 = arith.constant 0 : index
    %0 = vector.load %arg1[%c0, %c0_0] : memref<128x16xbf16, #tpu.memory_space<vmem>>, vector<128x16xbf16>
    %c0_1 = arith.constant 0 : index
    %c0_2 = arith.constant 0 : index
    %1 = vector.load %arg2[%c0_1, %c0_2] : memref<16x128xbf16, #tpu.memory_space<vmem>>, vector<16x128xbf16>
    %cst = arith.constant dense<0.000000e+00> : vector<128x128xf32>
    %2 = tpu.matmul %0, %1, %cst {dimension_numbers = #tpu.dot_dimension_numbers<[1], [0], [0], [1], [0, 0, 1, 1], [], []>} : vector<128x16xbf16>, vector<16x128xbf16>, vector<128x128xf32> -> vector<128x128xf32>
    %c0_3 = arith.constant 0 : index
    %c0_4 = arith.constant 0 : index
    %3 = vector.load %arg3[%c0_3, %c0_4] : memref<1x128xf32, #tpu.memory_space<vmem>>, vector<1x128xf32>
    %4 = vector.broadcast %3 : vector<1x128xf32> to vector<128x128xf32>
    %5 = arith.addf %2, %4 : vector<128x128xf32>
    %c0_5 = arith.constant 0 : index
    %c0_6 = arith.constant 0 : index
    %6 = vector.load %arg4[%c0_5, %c0_6] : memref<128x128xf32, #tpu.memory_space<vmem>>, vector<128x128xf32>
    %7 = arith.addf %5, %6 : vector<128x128xf32>
    %c0_7 = arith.constant 0 : index
    %c0_8 = arith.constant 0 : index
    %8 = vector.load %arg7[%c0_7, %c0_8] : memref<128x128xf32, #tpu.memory_space<vmem>>, vector<128x128xf32>
    tpu.vector_store %arg7[%c0_7, %c0_8], %7 {strides = array<i32>} : memref<128x128xf32, #tpu.memory_space<vmem>>, vector<128x128xf32>,
    %cst_9 = arith.constant 0.000000e+00 : f32
    %9 = vector.broadcast %cst_9 : f32 to vector<128x128xf32>
    %10 = arith.maximumf %7, %9 : vector<128x128xf32>
    %c0_10 = arith.constant 0 : index
    %c0_11 = arith.constant 0 : index
    %11 = vector.load %arg5[%c0_10, %c0_11] : memref<1x128xf32, #tpu.memory_space<vmem>>, vector<1x128xf32>
    %12 = vector.broadcast %11 : vector<1x128xf32> to vector<128x128xf32>
    %13 = arith.mulf %10, %12 : vector<128x128xf32>
    %c0_12 = arith.constant 0 : index
    %c0_13 = arith.constant 0 : index
    %14 = vector.load %arg6[%c0_12, %c0_13] : memref<1x128xf32, #tpu.memory_space<vmem>>, vector<1x128xf32>
    %15 = vector.broadcast %14 : vector<1x128xf32> to vector<128x128xf32>
    %16 = arith.addf %13, %15 : vector<128x128xf32>
    %c0_14 = arith.constant 0 : index
    %c0_15 = arith.constant 0 : index
    %17 = vector.load %arg8[%c0_14, %c0_15] : memref<128x128xf32, #tpu.memory_space<vmem>>, vector<128x128xf32>
    tpu.vector_store %arg8[%c0_14, %c0_15], %16 {strides = array<i32>} : memref<128x128xf32, #tpu.memory_space<vmem>>, vector<128x128xf32>,
    return
  }
  func.func @transform_0(%arg0: i32) -> (i32, i32) {
    %c0_i32 = arith.constant 0 : i32
    %c0_i32_0 = arith.constant 0 : i32
    return %arg0, %c0_i32 : i32, i32
  }
  func.func @transform_1(%arg0: i32) -> (i32, i32) {
    %c0_i32 = arith.constant 0 : i32
    %c0_i32_0 = arith.constant 0 : i32
    %c0_i32_1 = arith.constant 0 : i32
    return %c0_i32, %c0_i32_0 : i32, i32
  }
  func.func @transform_2(%arg0: i32) -> (i32, i32) {
    %c0_i32 = arith.constant 0 : i32
    %c0_i32_0 = arith.constant 0 : i32
    %c0_i32_1 = arith.constant 0 : i32
    return %c0_i32, %c0_i32_0 : i32, i32
  }
  func.func @transform_3(%arg0: i32) -> (i32, i32) {
    %c0_i32 = arith.constant 0 : i32
    %c0_i32_0 = arith.constant 0 : i32
    return %arg0, %c0_i32 : i32, i32
  }
  func.func @transform_4(%arg0: i32) -> (i32, i32) {
    %c0_i32 = arith.constant 0 : i32
    %c0_i32_0 = arith.constant 0 : i32
    %c0_i32_1 = arith.constant 0 : i32
    return %c0_i32, %c0_i32_0 : i32, i32
  }
  func.func @transform_5(%arg0: i32) -> (i32, i32) {
    %c0_i32 = arith.constant 0 : i32
    %c0_i32_0 = arith.constant 0 : i32
    %c0_i32_1 = arith.constant 0 : i32
    return %c0_i32, %c0_i32_0 : i32, i32
  }
  func.func @transform_6(%arg0: i32) -> (i32, i32) {
    %c0_i32 = arith.constant 0 : i32
    %c0_i32_0 = arith.constant 0 : i32
    return %arg0, %c0_i32 : i32, i32
  }
  func.func @transform_7(%arg0: i32) -> (i32, i32) {
    %c0_i32 = arith.constant 0 : i32
    %c0_i32_0 = arith.constant 0 : i32
    return %arg0, %c0_i32 : i32, i32
  }
}

module attributes {stable_mosaic.version = 11 : i64} {
  func.func @_gemm_kernel(%arg0: i32, %arg1: memref<32x512xbf16, #tpu.memory_space<vmem>>, %arg2: memref<512x128xbf16, #tpu.memory_space<vmem>>, %arg3: memref<1x128xf32, #tpu.memory_space<vmem>>, %arg4: memref<1x128xf32, #tpu.memory_space<vmem>>, %arg5: memref<1x128xf32, #tpu.memory_space<vmem>>, %arg6: memref<32x128xf32, #tpu.memory_space<vmem>>) attributes {dimension_semantics = [#tpu.dimension_semantics<parallel>], iteration_bounds = array<i64: 1>, scalar_prefetch = 0 : i64, scratch_operands = 0 : i64, tpu.core_type = #tpu.core_type<tc>, window_params = [{transform_indices = @transform_0, window_bounds = array<i64: 32, 512>}, {pipeline_mode = #tpu.pipeline_mode<synchronous>, transform_indices = @transform_1, window_bounds = array<i64: 512, 128>}, {pipeline_mode = #tpu.pipeline_mode<synchronous>, transform_indices = @transform_2, window_bounds = array<i64: 1, 128>}, {pipeline_mode = #tpu.pipeline_mode<synchronous>, transform_indices = @transform_3, window_bounds = array<i64: 1, 128>}, {pipeline_mode = #tpu.pipeline_mode<synchronous>, transform_indices = @transform_4, window_bounds = array<i64: 1, 128>}, {transform_indices = @transform_5, window_bounds = array<i64: 32, 128>}]} {
    %c0 = arith.constant 0 : index
    %c0_0 = arith.constant 0 : index
    %0 = vector.load %arg1[%c0, %c0_0] : memref<32x512xbf16, #tpu.memory_space<vmem>>, vector<32x512xbf16>
    %c0_1 = arith.constant 0 : index
    %c0_2 = arith.constant 0 : index
    %1 = vector.load %arg2[%c0_1, %c0_2] : memref<512x128xbf16, #tpu.memory_space<vmem>>, vector<512x128xbf16>
    %cst = arith.constant dense<0.000000e+00> : vector<32x128xf32>
    %2 = tpu.matmul %0, %1, %cst {dimension_numbers = #tpu.dot_dimension_numbers<[1], [0], [0], [1], [0, 0, 1, 1], [], []>} : vector<32x512xbf16>, vector<512x128xbf16>, vector<32x128xf32> -> vector<32x128xf32>
    %c0_3 = arith.constant 0 : index
    %c0_4 = arith.constant 0 : index
    %3 = vector.load %arg3[%c0_3, %c0_4] : memref<1x128xf32, #tpu.memory_space<vmem>>, vector<1x128xf32>
    %4 = vector.broadcast %3 : vector<1x128xf32> to vector<32x128xf32>
    %5 = arith.addf %2, %4 : vector<32x128xf32>
    %cst_5 = arith.constant 0.000000e+00 : f32
    %6 = vector.broadcast %cst_5 : f32 to vector<32x128xf32>
    %7 = arith.maximumf %5, %6 : vector<32x128xf32>
    %c0_6 = arith.constant 0 : index
    %c0_7 = arith.constant 0 : index
    %8 = vector.load %arg4[%c0_6, %c0_7] : memref<1x128xf32, #tpu.memory_space<vmem>>, vector<1x128xf32>
    %9 = vector.broadcast %8 : vector<1x128xf32> to vector<32x128xf32>
    %10 = arith.mulf %7, %9 : vector<32x128xf32>
    %c0_8 = arith.constant 0 : index
    %c0_9 = arith.constant 0 : index
    %11 = vector.load %arg5[%c0_8, %c0_9] : memref<1x128xf32, #tpu.memory_space<vmem>>, vector<1x128xf32>
    %12 = vector.broadcast %11 : vector<1x128xf32> to vector<32x128xf32>
    %13 = arith.addf %10, %12 : vector<32x128xf32>
    %c0_10 = arith.constant 0 : index
    %c0_11 = arith.constant 0 : index
    %14 = vector.load %arg6[%c0_10, %c0_11] : memref<32x128xf32, #tpu.memory_space<vmem>>, vector<32x128xf32>
    tpu.vector_store %arg6[%c0_10, %c0_11], %13 {strides = array<i32>} : memref<32x128xf32, #tpu.memory_space<vmem>>, vector<32x128xf32>,
    return
  }
  func.func @transform_0(%arg0: i32) -> (i32, i32) {
    %c0_i32 = arith.constant 0 : i32
    %c0_i32_0 = arith.constant 0 : i32
    return %arg0, %c0_i32 : i32, i32
  }
  func.func @transform_1(%arg0: i32) -> (i32, i32) {
    %c0_i32 = arith.constant 0 : i32
    %c0_i32_0 = arith.constant 0 : i32
    %c0_i32_1 = arith.constant 0 : i32
    return %c0_i32, %c0_i32_0 : i32, i32
  }
  func.func @transform_2(%arg0: i32) -> (i32, i32) {
    %c0_i32 = arith.constant 0 : i32
    %c0_i32_0 = arith.constant 0 : i32
    %c0_i32_1 = arith.constant 0 : i32
    return %c0_i32, %c0_i32_0 : i32, i32
  }
  func.func @transform_3(%arg0: i32) -> (i32, i32) {
    %c0_i32 = arith.constant 0 : i32
    %c0_i32_0 = arith.constant 0 : i32
    %c0_i32_1 = arith.constant 0 : i32
    return %c0_i32, %c0_i32_0 : i32, i32
  }
  func.func @transform_4(%arg0: i32) -> (i32, i32) {
    %c0_i32 = arith.constant 0 : i32
    %c0_i32_0 = arith.constant 0 : i32
    %c0_i32_1 = arith.constant 0 : i32
    return %c0_i32, %c0_i32_0 : i32, i32
  }
  func.func @transform_5(%arg0: i32) -> (i32, i32) {
    %c0_i32 = arith.constant 0 : i32
    %c0_i32_0 = arith.constant 0 : i32
    return %arg0, %c0_i32 : i32, i32
  }
}

module attributes {stable_mosaic.version = 11 : i64} {
  func.func @_gemm_kernel(%arg0: i32, %arg1: memref<32x144xbf16, #tpu.memory_space<vmem>>, %arg2: memref<144x128xbf16, #tpu.memory_space<vmem>>, %arg3: memref<1x128xf32, #tpu.memory_space<vmem>>, %arg4: memref<1x128xf32, #tpu.memory_space<vmem>>, %arg5: memref<1x128xf32, #tpu.memory_space<vmem>>, %arg6: memref<32x128xf32, #tpu.memory_space<vmem>>, %arg7: memref<32x128xf32, #tpu.memory_space<vmem>>) attributes {dimension_semantics = [#tpu.dimension_semantics<parallel>], iteration_bounds = array<i64: 1>, scalar_prefetch = 0 : i64, scratch_operands = 0 : i64, tpu.core_type = #tpu.core_type<tc>, window_params = [{transform_indices = @transform_0, window_bounds = array<i64: 32, 144>}, {pipeline_mode = #tpu.pipeline_mode<synchronous>, transform_indices = @transform_1, window_bounds = array<i64: 144, 128>}, {pipeline_mode = #tpu.pipeline_mode<synchronous>, transform_indices = @transform_2, window_bounds = array<i64: 1, 128>}, {pipeline_mode = #tpu.pipeline_mode<synchronous>, transform_indices = @transform_3, window_bounds = array<i64: 1, 128>}, {pipeline_mode = #tpu.pipeline_mode<synchronous>, transform_indices = @transform_4, window_bounds = array<i64: 1, 128>}, {transform_indices = @transform_5, window_bounds = array<i64: 32, 128>}, {transform_indices = @transform_6, window_bounds = array<i64: 32, 128>}]} {
    %c0 = arith.constant 0 : index
    %c0_0 = arith.constant 0 : index
    %0 = vector.load %arg1[%c0, %c0_0] : memref<32x144xbf16, #tpu.memory_space<vmem>>, vector<32x144xbf16>
    %c0_1 = arith.constant 0 : index
    %c0_2 = arith.constant 0 : index
    %1 = vector.load %arg2[%c0_1, %c0_2] : memref<144x128xbf16, #tpu.memory_space<vmem>>, vector<144x128xbf16>
    %cst = arith.constant dense<0.000000e+00> : vector<32x128xf32>
    %2 = tpu.matmul %0, %1, %cst {dimension_numbers = #tpu.dot_dimension_numbers<[1], [0], [0], [1], [0, 0, 1, 1], [], []>} : vector<32x144xbf16>, vector<144x128xbf16>, vector<32x128xf32> -> vector<32x128xf32>
    %c0_3 = arith.constant 0 : index
    %c0_4 = arith.constant 0 : index
    %3 = vector.load %arg3[%c0_3, %c0_4] : memref<1x128xf32, #tpu.memory_space<vmem>>, vector<1x128xf32>
    %4 = vector.broadcast %3 : vector<1x128xf32> to vector<32x128xf32>
    %5 = arith.addf %2, %4 : vector<32x128xf32>
    %c0_5 = arith.constant 0 : index
    %c0_6 = arith.constant 0 : index
    %6 = vector.load %arg6[%c0_5, %c0_6] : memref<32x128xf32, #tpu.memory_space<vmem>>, vector<32x128xf32>
    tpu.vector_store %arg6[%c0_5, %c0_6], %5 {strides = array<i32>} : memref<32x128xf32, #tpu.memory_space<vmem>>, vector<32x128xf32>,
    %cst_7 = arith.constant 0.000000e+00 : f32
    %7 = vector.broadcast %cst_7 : f32 to vector<32x128xf32>
    %8 = arith.maximumf %5, %7 : vector<32x128xf32>
    %c0_8 = arith.constant 0 : index
    %c0_9 = arith.constant 0 : index
    %9 = vector.load %arg4[%c0_8, %c0_9] : memref<1x128xf32, #tpu.memory_space<vmem>>, vector<1x128xf32>
    %10 = vector.broadcast %9 : vector<1x128xf32> to vector<32x128xf32>
    %11 = arith.mulf %8, %10 : vector<32x128xf32>
    %c0_10 = arith.constant 0 : index
    %c0_11 = arith.constant 0 : index
    %12 = vector.load %arg5[%c0_10, %c0_11] : memref<1x128xf32, #tpu.memory_space<vmem>>, vector<1x128xf32>
    %13 = vector.broadcast %12 : vector<1x128xf32> to vector<32x128xf32>
    %14 = arith.addf %11, %13 : vector<32x128xf32>
    %c0_12 = arith.constant 0 : index
    %c0_13 = arith.constant 0 : index
    %15 = vector.load %arg7[%c0_12, %c0_13] : memref<32x128xf32, #tpu.memory_space<vmem>>, vector<32x128xf32>
    tpu.vector_store %arg7[%c0_12, %c0_13], %14 {strides = array<i32>} : memref<32x128xf32, #tpu.memory_space<vmem>>, vector<32x128xf32>,
    return
  }
  func.func @transform_0(%arg0: i32) -> (i32, i32) {
    %c0_i32 = arith.constant 0 : i32
    %c0_i32_0 = arith.constant 0 : i32
    return %arg0, %c0_i32 : i32, i32
  }
  func.func @transform_1(%arg0: i32) -> (i32, i32) {
    %c0_i32 = arith.constant 0 : i32
    %c0_i32_0 = arith.constant 0 : i32
    %c0_i32_1 = arith.constant 0 : i32
    return %c0_i32, %c0_i32_0 : i32, i32
  }
  func.func @transform_2(%arg0: i32) -> (i32, i32) {
    %c0_i32 = arith.constant 0 : i32
    %c0_i32_0 = arith.constant 0 : i32
    %c0_i32_1 = arith.constant 0 : i32
    return %c0_i32, %c0_i32_0 : i32, i32
  }
  func.func @transform_3(%arg0: i32) -> (i32, i32) {
    %c0_i32 = arith.constant 0 : i32
    %c0_i32_0 = arith.constant 0 : i32
    %c0_i32_1 = arith.constant 0 : i32
    return %c0_i32, %c0_i32_0 : i32, i32
  }
  func.func @transform_4(%arg0: i32) -> (i32, i32) {
    %c0_i32 = arith.constant 0 : i32
    %c0_i32_0 = arith.constant 0 : i32
    %c0_i32_1 = arith.constant 0 : i32
    return %c0_i32, %c0_i32_0 : i32, i32
  }
  func.func @transform_5(%arg0: i32) -> (i32, i32) {
    %c0_i32 = arith.constant 0 : i32
    %c0_i32_0 = arith.constant 0 : i32
    return %arg0, %c0_i32 : i32, i32
  }
  func.func @transform_6(%arg0: i32) -> (i32, i32) {
    %c0_i32 = arith.constant 0 : i32
    %c0_i32_0 = arith.constant 0 : i32
    return %arg0, %c0_i32 : i32, i32
  }
}

module attributes {stable_mosaic.version = 11 : i64} {
  func.func @_gemm_kernel(%arg0: i32, %arg1: memref<32x16xbf16, #tpu.memory_space<vmem>>, %arg2: memref<16x128xbf16, #tpu.memory_space<vmem>>, %arg3: memref<1x128xf32, #tpu.memory_space<vmem>>, %arg4: memref<32x128xf32, #tpu.memory_space<vmem>>, %arg5: memref<1x128xf32, #tpu.memory_space<vmem>>, %arg6: memref<1x128xf32, #tpu.memory_space<vmem>>, %arg7: memref<32x128xf32, #tpu.memory_space<vmem>>, %arg8: memref<32x128xf32, #tpu.memory_space<vmem>>) attributes {dimension_semantics = [#tpu.dimension_semantics<parallel>], iteration_bounds = array<i64: 1>, scalar_prefetch = 0 : i64, scratch_operands = 0 : i64, tpu.core_type = #tpu.core_type<tc>, window_params = [{transform_indices = @transform_0, window_bounds = array<i64: 32, 16>}, {pipeline_mode = #tpu.pipeline_mode<synchronous>, transform_indices = @transform_1, window_bounds = array<i64: 16, 128>}, {pipeline_mode = #tpu.pipeline_mode<synchronous>, transform_indices = @transform_2, window_bounds = array<i64: 1, 128>}, {transform_indices = @transform_3, window_bounds = array<i64: 32, 128>}, {pipeline_mode = #tpu.pipeline_mode<synchronous>, transform_indices = @transform_4, window_bounds = array<i64: 1, 128>}, {pipeline_mode = #tpu.pipeline_mode<synchronous>, transform_indices = @transform_5, window_bounds = array<i64: 1, 128>}, {transform_indices = @transform_6, window_bounds = array<i64: 32, 128>}, {transform_indices = @transform_7, window_bounds = array<i64: 32, 128>}]} {
    %c0 = arith.constant 0 : index
    %c0_0 = arith.constant 0 : index
    %0 = vector.load %arg1[%c0, %c0_0] : memref<32x16xbf16, #tpu.memory_space<vmem>>, vector<32x16xbf16>
    %c0_1 = arith.constant 0 : index
    %c0_2 = arith.constant 0 : index
    %1 = vector.load %arg2[%c0_1, %c0_2] : memref<16x128xbf16, #tpu.memory_space<vmem>>, vector<16x128xbf16>
    %cst = arith.constant dense<0.000000e+00> : vector<32x128xf32>
    %2 = tpu.matmul %0, %1, %cst {dimension_numbers = #tpu.dot_dimension_numbers<[1], [0], [0], [1], [0, 0, 1, 1], [], []>} : vector<32x16xbf16>, vector<16x128xbf16>, vector<32x128xf32> -> vector<32x128xf32>
    %c0_3 = arith.constant 0 : index
    %c0_4 = arith.constant 0 : index
    %3 = vector.load %arg3[%c0_3, %c0_4] : memref<1x128xf32, #tpu.memory_space<vmem>>, vector<1x128xf32>
    %4 = vector.broadcast %3 : vector<1x128xf32> to vector<32x128xf32>
    %5 = arith.addf %2, %4 : vector<32x128xf32>
    %c0_5 = arith.constant 0 : index
    %c0_6 = arith.constant 0 : index
    %6 = vector.load %arg4[%c0_5, %c0_6] : memref<32x128xf32, #tpu.memory_space<vmem>>, vector<32x128xf32>
    %7 = arith.addf %5, %6 : vector<32x128xf32>
    %c0_7 = arith.constant 0 : index
    %c0_8 = arith.constant 0 : index
    %8 = vector.load %arg7[%c0_7, %c0_8] : memref<32x128xf32, #tpu.memory_space<vmem>>, vector<32x128xf32>
    tpu.vector_store %arg7[%c0_7, %c0_8], %7 {strides = array<i32>} : memref<32x128xf32, #tpu.memory_space<vmem>>, vector<32x128xf32>,
    %cst_9 = arith.constant 0.000000e+00 : f32
    %9 = vector.broadcast %cst_9 : f32 to vector<32x128xf32>
    %10 = arith.maximumf %7, %9 : vector<32x128xf32>
    %c0_10 = arith.constant 0 : index
    %c0_11 = arith.constant 0 : index
    %11 = vector.load %arg5[%c0_10, %c0_11] : memref<1x128xf32, #tpu.memory_space<vmem>>, vector<1x128xf32>
    %12 = vector.broadcast %11 : vector<1x128xf32> to vector<32x128xf32>
    %13 = arith.mulf %10, %12 : vector<32x128xf32>
    %c0_12 = arith.constant 0 : index
    %c0_13 = arith.constant 0 : index
    %14 = vector.load %arg6[%c0_12, %c0_13] : memref<1x128xf32, #tpu.memory_space<vmem>>, vector<1x128xf32>
    %15 = vector.broadcast %14 : vector<1x128xf32> to vector<32x128xf32>
    %16 = arith.addf %13, %15 : vector<32x128xf32>
    %c0_14 = arith.constant 0 : index
    %c0_15 = arith.constant 0 : index
    %17 = vector.load %arg8[%c0_14, %c0_15] : memref<32x128xf32, #tpu.memory_space<vmem>>, vector<32x128xf32>
    tpu.vector_store %arg8[%c0_14, %c0_15], %16 {strides = array<i32>} : memref<32x128xf32, #tpu.memory_space<vmem>>, vector<32x128xf32>,
    return
  }
  func.func @transform_0(%arg0: i32) -> (i32, i32) {
    %c0_i32 = arith.constant 0 : i32
    %c0_i32_0 = arith.constant 0 : i32
    return %arg0, %c0_i32 : i32, i32
  }
  func.func @transform_1(%arg0: i32) -> (i32, i32) {
    %c0_i32 = arith.constant 0 : i32
    %c0_i32_0 = arith.constant 0 : i32
    %c0_i32_1 = arith.constant 0 : i32
    return %c0_i32, %c0_i32_0 : i32, i32
  }
  func.func @transform_2(%arg0: i32) -> (i32, i32) {
    %c0_i32 = arith.constant 0 : i32
    %c0_i32_0 = arith.constant 0 : i32
    %c0_i32_1 = arith.constant 0 : i32
    return %c0_i32, %c0_i32_0 : i32, i32
  }
  func.func @transform_3(%arg0: i32) -> (i32, i32) {
    %c0_i32 = arith.constant 0 : i32
    %c0_i32_0 = arith.constant 0 : i32
    return %arg0, %c0_i32 : i32, i32
  }
  func.func @transform_4(%arg0: i32) -> (i32, i32) {
    %c0_i32 = arith.constant 0 : i32
    %c0_i32_0 = arith.constant 0 : i32
    %c0_i32_1 = arith.constant 0 : i32
    return %c0_i32, %c0_i32_0 : i32, i32
  }
  func.func @transform_5(%arg0: i32) -> (i32, i32) {
    %c0_i32 = arith.constant 0 : i32
    %c0_i32_0 = arith.constant 0 : i32
    %c0_i32_1 = arith.constant 0 : i32
    return %c0_i32, %c0_i32_0 : i32, i32
  }
  func.func @transform_6(%arg0: i32) -> (i32, i32) {
    %c0_i32 = arith.constant 0 : i32
    %c0_i32_0 = arith.constant 0 : i32
    return %arg0, %c0_i32 : i32, i32
  }
  func.func @transform_7(%arg0: i32) -> (i32, i32) {
    %c0_i32 = arith.constant 0 : i32
    %c0_i32_0 = arith.constant 0 : i32
    return %arg0, %c0_i32 : i32, i32
  }
}

module attributes {stable_mosaic.version = 11 : i64} {
  func.func @_gemm_kernel(%arg0: i32, %arg1: memref<32x288xbf16, #tpu.memory_space<vmem>>, %arg2: memref<288x128xbf16, #tpu.memory_space<vmem>>, %arg3: memref<1x128xf32, #tpu.memory_space<vmem>>, %arg4: memref<1x128xf32, #tpu.memory_space<vmem>>, %arg5: memref<1x128xf32, #tpu.memory_space<vmem>>, %arg6: memref<32x128xf32, #tpu.memory_space<vmem>>) attributes {dimension_semantics = [#tpu.dimension_semantics<parallel>], iteration_bounds = array<i64: 1>, scalar_prefetch = 0 : i64, scratch_operands = 0 : i64, tpu.core_type = #tpu.core_type<tc>, window_params = [{transform_indices = @transform_0, window_bounds = array<i64: 32, 288>}, {pipeline_mode = #tpu.pipeline_mode<synchronous>, transform_indices = @transform_1, window_bounds = array<i64: 288, 128>}, {pipeline_mode = #tpu.pipeline_mode<synchronous>, transform_indices = @transform_2, window_bounds = array<i64: 1, 128>}, {pipeline_mode = #tpu.pipeline_mode<synchronous>, transform_indices = @transform_3, window_bounds = array<i64: 1, 128>}, {pipeline_mode = #tpu.pipeline_mode<synchronous>, transform_indices = @transform_4, window_bounds = array<i64: 1, 128>}, {transform_indices = @transform_5, window_bounds = array<i64: 32, 128>}]} {
    %c0 = arith.constant 0 : index
    %c0_0 = arith.constant 0 : index
    %0 = vector.load %arg1[%c0, %c0_0] : memref<32x288xbf16, #tpu.memory_space<vmem>>, vector<32x288xbf16>
    %c0_1 = arith.constant 0 : index
    %c0_2 = arith.constant 0 : index
    %1 = vector.load %arg2[%c0_1, %c0_2] : memref<288x128xbf16, #tpu.memory_space<vmem>>, vector<288x128xbf16>
    %cst = arith.constant dense<0.000000e+00> : vector<32x128xf32>
    %2 = tpu.matmul %0, %1, %cst {dimension_numbers = #tpu.dot_dimension_numbers<[1], [0], [0], [1], [0, 0, 1, 1], [], []>} : vector<32x288xbf16>, vector<288x128xbf16>, vector<32x128xf32> -> vector<32x128xf32>
    %c0_3 = arith.constant 0 : index
    %c0_4 = arith.constant 0 : index
    %3 = vector.load %arg3[%c0_3, %c0_4] : memref<1x128xf32, #tpu.memory_space<vmem>>, vector<1x128xf32>
    %4 = vector.broadcast %3 : vector<1x128xf32> to vector<32x128xf32>
    %5 = arith.addf %2, %4 : vector<32x128xf32>
    %cst_5 = arith.constant 0.000000e+00 : f32
    %6 = vector.broadcast %cst_5 : f32 to vector<32x128xf32>
    %7 = arith.maximumf %5, %6 : vector<32x128xf32>
    %c0_6 = arith.constant 0 : index
    %c0_7 = arith.constant 0 : index
    %8 = vector.load %arg4[%c0_6, %c0_7] : memref<1x128xf32, #tpu.memory_space<vmem>>, vector<1x128xf32>
    %9 = vector.broadcast %8 : vector<1x128xf32> to vector<32x128xf32>
    %10 = arith.mulf %7, %9 : vector<32x128xf32>
    %c0_8 = arith.constant 0 : index
    %c0_9 = arith.constant 0 : index
    %11 = vector.load %arg5[%c0_8, %c0_9] : memref<1x128xf32, #tpu.memory_space<vmem>>, vector<1x128xf32>
    %12 = vector.broadcast %11 : vector<1x128xf32> to vector<32x128xf32>
    %13 = arith.addf %10, %12 : vector<32x128xf32>
    %c0_10 = arith.constant 0 : index
    %c0_11 = arith.constant 0 : index
    %14 = vector.load %arg6[%c0_10, %c0_11] : memref<32x128xf32, #tpu.memory_space<vmem>>, vector<32x128xf32>
    tpu.vector_store %arg6[%c0_10, %c0_11], %13 {strides = array<i32>} : memref<32x128xf32, #tpu.memory_space<vmem>>, vector<32x128xf32>,
    return
  }
  func.func @transform_0(%arg0: i32) -> (i32, i32) {
    %c0_i32 = arith.constant 0 : i32
    %c0_i32_0 = arith.constant 0 : i32
    return %arg0, %c0_i32 : i32, i32
  }
  func.func @transform_1(%arg0: i32) -> (i32, i32) {
    %c0_i32 = arith.constant 0 : i32
    %c0_i32_0 = arith.constant 0 : i32
    %c0_i32_1 = arith.constant 0 : i32
    return %c0_i32, %c0_i32_0 : i32, i32
  }
  func.func @transform_2(%arg0: i32) -> (i32, i32) {
    %c0_i32 = arith.constant 0 : i32
    %c0_i32_0 = arith.constant 0 : i32
    %c0_i32_1 = arith.constant 0 : i32
    return %c0_i32, %c0_i32_0 : i32, i32
  }
  func.func @transform_3(%arg0: i32) -> (i32, i32) {
    %c0_i32 = arith.constant 0 : i32
    %c0_i32_0 = arith.constant 0 : i32
    %c0_i32_1 = arith.constant 0 : i32
    return %c0_i32, %c0_i32_0 : i32, i32
  }
  func.func @transform_4(%arg0: i32) -> (i32, i32) {
    %c0_i32 = arith.constant 0 : i32
    %c0_i32_0 = arith.constant 0 : i32
    %c0_i32_1 = arith.constant 0 : i32
    return %c0_i32, %c0_i32_0 : i32, i32
  }
  func.func @transform_5(%arg0: i32) -> (i32, i32) {
    %c0_i32 = arith.constant 0 : i32
    %c0_i32_0 = arith.constant 0 : i32
    return %arg0, %c0_i32 : i32, i32
  }
}

module attributes {stable_mosaic.version = 11 : i64} {
  func.func @_gemm_kernel(%arg0: i32, %arg1: memref<32x16xbf16, #tpu.memory_space<vmem>>, %arg2: memref<16x128xbf16, #tpu.memory_space<vmem>>, %arg3: memref<1x128xf32, #tpu.memory_space<vmem>>, %arg4: memref<32x128xf32, #tpu.memory_space<vmem>>, %arg5: memref<1x128xf32, #tpu.memory_space<vmem>>, %arg6: memref<1x128xf32, #tpu.memory_space<vmem>>, %arg7: memref<32x128xf32, #tpu.memory_space<vmem>>, %arg8: memref<32x128xf32, #tpu.memory_space<vmem>>) attributes {dimension_semantics = [#tpu.dimension_semantics<parallel>], iteration_bounds = array<i64: 1>, scalar_prefetch = 0 : i64, scratch_operands = 0 : i64, tpu.core_type = #tpu.core_type<tc>, window_params = [{transform_indices = @transform_0, window_bounds = array<i64: 32, 16>}, {pipeline_mode = #tpu.pipeline_mode<synchronous>, transform_indices = @transform_1, window_bounds = array<i64: 16, 128>}, {pipeline_mode = #tpu.pipeline_mode<synchronous>, transform_indices = @transform_2, window_bounds = array<i64: 1, 128>}, {transform_indices = @transform_3, window_bounds = array<i64: 32, 128>}, {pipeline_mode = #tpu.pipeline_mode<synchronous>, transform_indices = @transform_4, window_bounds = array<i64: 1, 128>}, {pipeline_mode = #tpu.pipeline_mode<synchronous>, transform_indices = @transform_5, window_bounds = array<i64: 1, 128>}, {transform_indices = @transform_6, window_bounds = array<i64: 32, 128>}, {transform_indices = @transform_7, window_bounds = array<i64: 32, 128>}]} {
    %c0 = arith.constant 0 : index
    %c0_0 = arith.constant 0 : index
    %0 = vector.load %arg1[%c0, %c0_0] : memref<32x16xbf16, #tpu.memory_space<vmem>>, vector<32x16xbf16>
    %c0_1 = arith.constant 0 : index
    %c0_2 = arith.constant 0 : index
    %1 = vector.load %arg2[%c0_1, %c0_2] : memref<16x128xbf16, #tpu.memory_space<vmem>>, vector<16x128xbf16>
    %cst = arith.constant dense<0.000000e+00> : vector<32x128xf32>
    %2 = tpu.matmul %0, %1, %cst {dimension_numbers = #tpu.dot_dimension_numbers<[1], [0], [0], [1], [0, 0, 1, 1], [], []>} : vector<32x16xbf16>, vector<16x128xbf16>, vector<32x128xf32> -> vector<32x128xf32>
    %c0_3 = arith.constant 0 : index
    %c0_4 = arith.constant 0 : index
    %3 = vector.load %arg3[%c0_3, %c0_4] : memref<1x128xf32, #tpu.memory_space<vmem>>, vector<1x128xf32>
    %4 = vector.broadcast %3 : vector<1x128xf32> to vector<32x128xf32>
    %5 = arith.addf %2, %4 : vector<32x128xf32>
    %c0_5 = arith.constant 0 : index
    %c0_6 = arith.constant 0 : index
    %6 = vector.load %arg4[%c0_5, %c0_6] : memref<32x128xf32, #tpu.memory_space<vmem>>, vector<32x128xf32>
    %7 = arith.addf %5, %6 : vector<32x128xf32>
    %c0_7 = arith.constant 0 : index
    %c0_8 = arith.constant 0 : index
    %8 = vector.load %arg7[%c0_7, %c0_8] : memref<32x128xf32, #tpu.memory_space<vmem>>, vector<32x128xf32>
    tpu.vector_store %arg7[%c0_7, %c0_8], %7 {strides = array<i32>} : memref<32x128xf32, #tpu.memory_space<vmem>>, vector<32x128xf32>,
    %cst_9 = arith.constant 0.000000e+00 : f32
    %9 = vector.broadcast %cst_9 : f32 to vector<32x128xf32>
    %10 = arith.maximumf %7, %9 : vector<32x128xf32>
    %c0_10 = arith.constant 0 : index
    %c0_11 = arith.constant 0 : index
    %11 = vector.load %arg5[%c0_10, %c0_11] : memref<1x128xf32, #tpu.memory_space<vmem>>, vector<1x128xf32>
    %12 = vector.broadcast %11 : vector<1x128xf32> to vector<32x128xf32>
    %13 = arith.mulf %10, %12 : vector<32x128xf32>
    %c0_12 = arith.constant 0 : index
    %c0_13 = arith.constant 0 : index
    %14 = vector.load %arg6[%c0_12, %c0_13] : memref<1x128xf32, #tpu.memory_space<vmem>>, vector<1x128xf32>
    %15 = vector.broadcast %14 : vector<1x128xf32> to vector<32x128xf32>
    %16 = arith.addf %13, %15 : vector<32x128xf32>
    %c0_14 = arith.constant 0 : index
    %c0_15 = arith.constant 0 : index
    %17 = vector.load %arg8[%c0_14, %c0_15] : memref<32x128xf32, #tpu.memory_space<vmem>>, vector<32x128xf32>
    tpu.vector_store %arg8[%c0_14, %c0_15], %16 {strides = array<i32>} : memref<32x128xf32, #tpu.memory_space<vmem>>, vector<32x128xf32>,
    return
  }
  func.func @transform_0(%arg0: i32) -> (i32, i32) {
    %c0_i32 = arith.constant 0 : i32
    %c0_i32_0 = arith.constant 0 : i32
    return %arg0, %c0_i32 : i32, i32
  }
  func.func @transform_1(%arg0: i32) -> (i32, i32) {
    %c0_i32 = arith.constant 0 : i32
    %c0_i32_0 = arith.constant 0 : i32
    %c0_i32_1 = arith.constant 0 : i32
    return %c0_i32, %c0_i32_0 : i32, i32
  }
  func.func @transform_2(%arg0: i32) -> (i32, i32) {
    %c0_i32 = arith.constant 0 : i32
    %c0_i32_0 = arith.constant 0 : i32
    %c0_i32_1 = arith.constant 0 : i32
    return %c0_i32, %c0_i32_0 : i32, i32
  }
  func.func @transform_3(%arg0: i32) -> (i32, i32) {
    %c0_i32 = arith.constant 0 : i32
    %c0_i32_0 = arith.constant 0 : i32
    return %arg0, %c0_i32 : i32, i32
  }
  func.func @transform_4(%arg0: i32) -> (i32, i32) {
    %c0_i32 = arith.constant 0 : i32
    %c0_i32_0 = arith.constant 0 : i32
    %c0_i32_1 = arith.constant 0 : i32
    return %c0_i32, %c0_i32_0 : i32, i32
  }
  func.func @transform_5(%arg0: i32) -> (i32, i32) {
    %c0_i32 = arith.constant 0 : i32
    %c0_i32_0 = arith.constant 0 : i32
    %c0_i32_1 = arith.constant 0 : i32
    return %c0_i32, %c0_i32_0 : i32, i32
  }
  func.func @transform_6(%arg0: i32) -> (i32, i32) {
    %c0_i32 = arith.constant 0 : i32
    %c0_i32_0 = arith.constant 0 : i32
    return %arg0, %c0_i32 : i32, i32
  }
  func.func @transform_7(%arg0: i32) -> (i32, i32) {
    %c0_i32 = arith.constant 0 : i32
    %c0_i32_0 = arith.constant 0 : i32
    return %arg0, %c0_i32 : i32, i32
  }
}

module attributes {stable_mosaic.version = 11 : i64} {
  func.func @_gemm_kernel(%arg0: i32, %arg1: memref<32x32xbf16, #tpu.memory_space<vmem>>, %arg2: memref<32x128xbf16, #tpu.memory_space<vmem>>, %arg3: memref<1x128xf32, #tpu.memory_space<vmem>>, %arg4: memref<32x128xf32, #tpu.memory_space<vmem>>) attributes {dimension_semantics = [#tpu.dimension_semantics<parallel>], iteration_bounds = array<i64: 1>, scalar_prefetch = 0 : i64, scratch_operands = 0 : i64, tpu.core_type = #tpu.core_type<tc>, window_params = [{transform_indices = @transform_0, window_bounds = array<i64: 32, 32>}, {pipeline_mode = #tpu.pipeline_mode<synchronous>, transform_indices = @transform_1, window_bounds = array<i64: 32, 128>}, {pipeline_mode = #tpu.pipeline_mode<synchronous>, transform_indices = @transform_2, window_bounds = array<i64: 1, 128>}, {transform_indices = @transform_3, window_bounds = array<i64: 32, 128>}]} {
    %c0 = arith.constant 0 : index
    %c0_0 = arith.constant 0 : index
    %0 = vector.load %arg1[%c0, %c0_0] : memref<32x32xbf16, #tpu.memory_space<vmem>>, vector<32x32xbf16>
    %c0_1 = arith.constant 0 : index
    %c0_2 = arith.constant 0 : index
    %1 = vector.load %arg2[%c0_1, %c0_2] : memref<32x128xbf16, #tpu.memory_space<vmem>>, vector<32x128xbf16>
    %cst = arith.constant dense<0.000000e+00> : vector<32x128xf32>
    %2 = tpu.matmul %0, %1, %cst {dimension_numbers = #tpu.dot_dimension_numbers<[1], [0], [0], [1], [0, 0, 1, 1], [], []>} : vector<32x32xbf16>, vector<32x128xbf16>, vector<32x128xf32> -> vector<32x128xf32>
    %c0_3 = arith.constant 0 : index
    %c0_4 = arith.constant 0 : index
    %3 = vector.load %arg3[%c0_3, %c0_4] : memref<1x128xf32, #tpu.memory_space<vmem>>, vector<1x128xf32>
    %4 = vector.broadcast %3 : vector<1x128xf32> to vector<32x128xf32>
    %5 = arith.addf %2, %4 : vector<32x128xf32>
    %c0_5 = arith.constant 0 : index
    %c0_6 = arith.constant 0 : index
    %6 = vector.load %arg4[%c0_5, %c0_6] : memref<32x128xf32, #tpu.memory_space<vmem>>, vector<32x128xf32>
    tpu.vector_store %arg4[%c0_5, %c0_6], %5 {strides = array<i32>} : memref<32x128xf32, #tpu.memory_space<vmem>>, vector<32x128xf32>,
    return
  }
  func.func @transform_0(%arg0: i32) -> (i32, i32) {
    %c0_i32 = arith.constant 0 : i32
    %c0_i32_0 = arith.constant 0 : i32
    return %arg0, %c0_i32 : i32, i32
  }
  func.func @transform_1(%arg0: i32) -> (i32, i32) {
    %c0_i32 = arith.constant 0 : i32
    %c0_i32_0 = arith.constant 0 : i32
    %c0_i32_1 = arith.constant 0 : i32
    return %c0_i32, %c0_i32_0 : i32, i32
  }
  func.func @transform_2(%arg0: i32) -> (i32, i32) {
    %c0_i32 = arith.constant 0 : i32
    %c0_i32_0 = arith.constant 0 : i32
    %c0_i32_1 = arith.constant 0 : i32
    return %c0_i32, %c0_i32_0 : i32, i32
  }
  func.func @transform_3(%arg0: i32) -> (i32, i32) {
    %c0_i32 = arith.constant 0 : i32
    %c0_i32_0 = arith.constant 0 : i32
    return %arg0, %c0_i32 : i32, i32
  }
}

module attributes {stable_mosaic.version = 11 : i64} {
  func.func @_quantize_kernel(%arg0: i32, %arg1: memref<32x16xf32, #tpu.memory_space<vmem>>, %arg2: memref<16x32xf32, #tpu.memory_space<vmem>>, %arg3: memref<32x16xf32, #tpu.memory_space<vmem>>, %arg4: memref<32x1xi32, #tpu.memory_space<vmem>>, %arg5: memref<1x1xf32, #tpu.memory_space<vmem>>) attributes {dimension_semantics = [#tpu.dimension_semantics<arbitrary>], iteration_bounds = array<i64: 1>, scalar_prefetch = 0 : i64, scratch_operands = 0 : i64, tpu.core_type = #tpu.core_type<tc>, window_params = [{pipeline_mode = #tpu.pipeline_mode<synchronous>, transform_indices = @transform_0, window_bounds = array<i64: 32, 16>}, {pipeline_mode = #tpu.pipeline_mode<synchronous>, transform_indices = @transform_1, window_bounds = array<i64: 16, 32>}, {pipeline_mode = #tpu.pipeline_mode<synchronous>, transform_indices = @transform_2, window_bounds = array<i64: 32, 16>}, {pipeline_mode = #tpu.pipeline_mode<synchronous>, transform_indices = @transform_3, window_bounds = array<i64: 32, 1>}, {pipeline_mode = #tpu.pipeline_mode<synchronous>, transform_indices = @transform_4, window_bounds = array<i64: 1, 1>}]} {
    %c0 = arith.constant 0 : index
    %c0_0 = arith.constant 0 : index
    %0 = vector.load %arg1[%c0, %c0_0] : memref<32x16xf32, #tpu.memory_space<vmem>>, vector<32x16xf32>
    %c0_1 = arith.constant 0 : index
    %c0_2 = arith.constant 0 : index
    %1 = vector.load %arg2[%c0_1, %c0_2] : memref<16x32xf32, #tpu.memory_space<vmem>>, vector<16x32xf32>
    %2 = arith.mulf %1, %1 : vector<16x32xf32>
    %cst = arith.constant dense<0.000000e+00> : vector<32xf32>
    %3 = vector.multi_reduction <add>, %2, %cst [0] : vector<16x32xf32> to vector<32xf32>
    %4 = vector.shape_cast %3 : vector<32xf32> to vector<1x32xf32>
    %cst_3 = arith.constant dense<0.000000e+00> : vector<32x32xf32>
    %5 = tpu.matmul %0, %1, %cst_3 {dimension_numbers = #tpu.dot_dimension_numbers<[1], [0], [0], [1], [0, 0, 1, 1], [], []>} : vector<32x16xf32>, vector<16x32xf32>, vector<32x32xf32> -> vector<32x32xf32>
    %cst_4 = arith.constant 2.000000e+00 : f32
    %6 = vector.broadcast %cst_4 : f32 to vector<32x32xf32>
    %7 = arith.mulf %6, %5 : vector<32x32xf32>
    %8 = vector.broadcast %4 : vector<1x32xf32> to vector<32x32xf32>
    %9 = arith.subf %8, %7 : vector<32x32xf32>
    %10 = tpu.iota {dimensions = array<i32: 1>} : vector<32x32xi32>
    %cst_5 = arith.constant dense<0x7F800000> : vector<32xf32>
    %11 = vector.multi_reduction <minimumf>, %9, %cst_5 [1] : vector<32x32xf32> to vector<32xf32>
    %12 = vector.shape_cast %11 : vector<32xf32> to vector<32x1xf32>
    %13 = vector.broadcast %12 : vector<32x1xf32> to vector<32x32xf32>
    %14 = arith.cmpf ole, %9, %13 : vector<32x32xf32>
    %c32_i32 = arith.constant 32 : i32
    %15 = vector.broadcast %c32_i32 : i32 to vector<32x32xi32>
    %16 = arith.select %14, %10, %15 : vector<32x32xi1>, vector<32x32xi32>
    %cst_6 = arith.constant dense<2147483647> : vector<32xi32>
    %17 = vector.multi_reduction <minsi>, %16, %cst_6 [1] : vector<32x32xi32> to vector<32xi32>
    %18 = vector.shape_cast %17 : vector<32xi32> to vector<32x1xi32>
    %19 = vector.broadcast %18 : vector<32x1xi32> to vector<32x32xi32>
    %20 = arith.cmpi eq, %10, %19 : vector<32x32xi32>
    %21 = arith.extui %20 : vector<32x32xi1> to vector<32x32xi32>
    %22 = arith.sitofp %21 : vector<32x32xi32> to vector<32x32xf32>
    %cst_7 = arith.constant dense<0.000000e+00> : vector<32x16xf32>
    %23 = tpu.matmul %22, %1, %cst_7 {dimension_numbers = #tpu.dot_dimension_numbers<[1], [1], [0], [0], [0, 0, 1, 0], [], []>} : vector<32x32xf32>, vector<16x32xf32>, vector<32x16xf32> -> vector<32x16xf32>
    %24 = arith.subf %23, %0 : vector<32x16xf32>
    %25 = arith.mulf %24, %24 : vector<32x16xf32>
    %26 = vector.shape_cast %25 : vector<32x16xf32> to vector<1x32x16xf32>
    %cst_8 = arith.constant dense<0.000000e+00> : vector<1xf32>
    %27 = vector.multi_reduction <add>, %26, %cst_8 [1, 2] : vector<1x32x16xf32> to vector<1xf32>
    %28 = vector.shape_cast %27 : vector<1xf32> to vector<1x1x1xf32>
    %29 = vector.extract %28[0, 0, 0] : f32 from vector<1x1x1xf32>
    %cst_9 = arith.constant 5.120000e+02 : f32
    %30 = arith.divf %29, %cst_9 : f32
    %c0_10 = arith.constant 0 : index
    %c0_11 = arith.constant 0 : index
    %31 = vector.load %arg3[%c0_10, %c0_11] : memref<32x16xf32, #tpu.memory_space<vmem>>, vector<32x16xf32>
    tpu.vector_store %arg3[%c0_10, %c0_11], %23 {strides = array<i32>} : memref<32x16xf32, #tpu.memory_space<vmem>>, vector<32x16xf32>,
    %32 = vector.shape_cast %17 : vector<32xi32> to vector<32x1xi32>
    %c0_12 = arith.constant 0 : index
    %c0_13 = arith.constant 0 : index
    %33 = vector.load %arg4[%c0_12, %c0_13] : memref<32x1xi32, #tpu.memory_space<vmem>>, vector<32x1xi32>
    tpu.vector_store %arg4[%c0_12, %c0_13], %32 {strides = array<i32>} : memref<32x1xi32, #tpu.memory_space<vmem>>, vector<32x1xi32>,
    %34 = vector.broadcast %30 : f32 to vector<1x1xf32>
    %c0_14 = arith.constant 0 : index
    %c0_15 = arith.constant 0 : index
    %35 = vector.load %arg5[%c0_14, %c0_15] : memref<1x1xf32, #tpu.memory_space<vmem>>, vector<1x1xf32>
    tpu.vector_store %arg5[%c0_14, %c0_15], %34 {strides = array<i32>} : memref<1x1xf32, #tpu.memory_space<vmem>>, vector<1x1xf32>,
    return
  }
  func.func @transform_0(%arg0: i32) -> (i32, i32) {
    %c0_i32 = arith.constant 0 : i32
    %c0_i32_0 = arith.constant 0 : i32
    %c0_i32_1 = arith.constant 0 : i32
    return %c0_i32, %c0_i32_0 : i32, i32
  }
  func.func @transform_1(%arg0: i32) -> (i32, i32) {
    %c0_i32 = arith.constant 0 : i32
    %c0_i32_0 = arith.constant 0 : i32
    %c0_i32_1 = arith.constant 0 : i32
    return %c0_i32, %c0_i32_0 : i32, i32
  }
  func.func @transform_2(%arg0: i32) -> (i32, i32) {
    %c0_i32 = arith.constant 0 : i32
    %c0_i32_0 = arith.constant 0 : i32
    %c0_i32_1 = arith.constant 0 : i32
    return %c0_i32, %c0_i32_0 : i32, i32
  }
  func.func @transform_3(%arg0: i32) -> (i32, i32) {
    %c0_i32 = arith.constant 0 : i32
    %c0_i32_0 = arith.constant 0 : i32
    %c0_i32_1 = arith.constant 0 : i32
    return %c0_i32, %c0_i32_0 : i32, i32
  }
  func.func @transform_4(%arg0: i32) -> (i32, i32) {
    %c0_i32 = arith.constant 0 : i32
    %c0_i32_0 = arith.constant 0 : i32
    %c0_i32_1 = arith.constant 0 : i32
    return %c0_i32, %c0_i32_0 : i32, i32
  }
}

module attributes {stable_mosaic.version = 11 : i64} {
  func.func @_gemm_kernel(%arg0: i32, %arg1: memref<32x144xbf16, #tpu.memory_space<vmem>>, %arg2: memref<144x128xbf16, #tpu.memory_space<vmem>>, %arg3: memref<1x128xf32, #tpu.memory_space<vmem>>, %arg4: memref<32x128xf32, #tpu.memory_space<vmem>>) attributes {dimension_semantics = [#tpu.dimension_semantics<parallel>], iteration_bounds = array<i64: 1>, scalar_prefetch = 0 : i64, scratch_operands = 0 : i64, tpu.core_type = #tpu.core_type<tc>, window_params = [{transform_indices = @transform_0, window_bounds = array<i64: 32, 144>}, {pipeline_mode = #tpu.pipeline_mode<synchronous>, transform_indices = @transform_1, window_bounds = array<i64: 144, 128>}, {pipeline_mode = #tpu.pipeline_mode<synchronous>, transform_indices = @transform_2, window_bounds = array<i64: 1, 128>}, {transform_indices = @transform_3, window_bounds = array<i64: 32, 128>}]} {
    %c0 = arith.constant 0 : index
    %c0_0 = arith.constant 0 : index
    %0 = vector.load %arg1[%c0, %c0_0] : memref<32x144xbf16, #tpu.memory_space<vmem>>, vector<32x144xbf16>
    %c0_1 = arith.constant 0 : index
    %c0_2 = arith.constant 0 : index
    %1 = vector.load %arg2[%c0_1, %c0_2] : memref<144x128xbf16, #tpu.memory_space<vmem>>, vector<144x128xbf16>
    %cst = arith.constant dense<0.000000e+00> : vector<32x128xf32>
    %2 = tpu.matmul %0, %1, %cst {dimension_numbers = #tpu.dot_dimension_numbers<[1], [0], [0], [1], [0, 0, 1, 1], [], []>} : vector<32x144xbf16>, vector<144x128xbf16>, vector<32x128xf32> -> vector<32x128xf32>
    %c0_3 = arith.constant 0 : index
    %c0_4 = arith.constant 0 : index
    %3 = vector.load %arg3[%c0_3, %c0_4] : memref<1x128xf32, #tpu.memory_space<vmem>>, vector<1x128xf32>
    %4 = vector.broadcast %3 : vector<1x128xf32> to vector<32x128xf32>
    %5 = arith.addf %2, %4 : vector<32x128xf32>
    %c0_5 = arith.constant 0 : index
    %c0_6 = arith.constant 0 : index
    %6 = vector.load %arg4[%c0_5, %c0_6] : memref<32x128xf32, #tpu.memory_space<vmem>>, vector<32x128xf32>
    tpu.vector_store %arg4[%c0_5, %c0_6], %5 {strides = array<i32>} : memref<32x128xf32, #tpu.memory_space<vmem>>, vector<32x128xf32>,
    return
  }
  func.func @transform_0(%arg0: i32) -> (i32, i32) {
    %c0_i32 = arith.constant 0 : i32
    %c0_i32_0 = arith.constant 0 : i32
    return %arg0, %c0_i32 : i32, i32
  }
  func.func @transform_1(%arg0: i32) -> (i32, i32) {
    %c0_i32 = arith.constant 0 : i32
    %c0_i32_0 = arith.constant 0 : i32
    %c0_i32_1 = arith.constant 0 : i32
    return %c0_i32, %c0_i32_0 : i32, i32
  }
  func.func @transform_2(%arg0: i32) -> (i32, i32) {
    %c0_i32 = arith.constant 0 : i32
    %c0_i32_0 = arith.constant 0 : i32
    %c0_i32_1 = arith.constant 0 : i32
    return %c0_i32, %c0_i32_0 : i32, i32
  }
  func.func @transform_3(%arg0: i32) -> (i32, i32) {
    %c0_i32 = arith.constant 0 : i32
    %c0_i32_0 = arith.constant 0 : i32
    return %arg0, %c0_i32 : i32, i32
  }
}

module attributes {stable_mosaic.version = 11 : i64} {
  func.func @_gemm_kernel(%arg0: i32, %arg1: memref<32x288xbf16, #tpu.memory_space<vmem>>, %arg2: memref<288x128xbf16, #tpu.memory_space<vmem>>, %arg3: memref<1x128xf32, #tpu.memory_space<vmem>>, %arg4: memref<32x128xf32, #tpu.memory_space<vmem>>) attributes {dimension_semantics = [#tpu.dimension_semantics<parallel>], iteration_bounds = array<i64: 1>, scalar_prefetch = 0 : i64, scratch_operands = 0 : i64, tpu.core_type = #tpu.core_type<tc>, window_params = [{transform_indices = @transform_0, window_bounds = array<i64: 32, 288>}, {pipeline_mode = #tpu.pipeline_mode<synchronous>, transform_indices = @transform_1, window_bounds = array<i64: 288, 128>}, {pipeline_mode = #tpu.pipeline_mode<synchronous>, transform_indices = @transform_2, window_bounds = array<i64: 1, 128>}, {transform_indices = @transform_3, window_bounds = array<i64: 32, 128>}]} {
    %c0 = arith.constant 0 : index
    %c0_0 = arith.constant 0 : index
    %0 = vector.load %arg1[%c0, %c0_0] : memref<32x288xbf16, #tpu.memory_space<vmem>>, vector<32x288xbf16>
    %c0_1 = arith.constant 0 : index
    %c0_2 = arith.constant 0 : index
    %1 = vector.load %arg2[%c0_1, %c0_2] : memref<288x128xbf16, #tpu.memory_space<vmem>>, vector<288x128xbf16>
    %cst = arith.constant dense<0.000000e+00> : vector<32x128xf32>
    %2 = tpu.matmul %0, %1, %cst {dimension_numbers = #tpu.dot_dimension_numbers<[1], [0], [0], [1], [0, 0, 1, 1], [], []>} : vector<32x288xbf16>, vector<288x128xbf16>, vector<32x128xf32> -> vector<32x128xf32>
    %c0_3 = arith.constant 0 : index
    %c0_4 = arith.constant 0 : index
    %3 = vector.load %arg3[%c0_3, %c0_4] : memref<1x128xf32, #tpu.memory_space<vmem>>, vector<1x128xf32>
    %4 = vector.broadcast %3 : vector<1x128xf32> to vector<32x128xf32>
    %5 = arith.addf %2, %4 : vector<32x128xf32>
    %cst_5 = arith.constant 0.000000e+00 : f32
    %6 = vector.broadcast %cst_5 : f32 to vector<32x128xf32>
    %7 = arith.maximumf %5, %6 : vector<32x128xf32>
    %8 = math.tanh %7 : vector<32x128xf32>
    %cst_6 = arith.constant 1.050000e+00 : f32
    %9 = vector.broadcast %cst_6 : f32 to vector<32x128xf32>
    %10 = arith.mulf %8, %9 : vector<32x128xf32>
    %cst_7 = arith.constant -1.000000e+00 : f32
    %cst_8 = arith.constant 1.000000e+00 : f32
    %11 = vector.broadcast %cst_7 : f32 to vector<32x128xf32>
    %12 = arith.maximumf %11, %10 : vector<32x128xf32>
    %13 = vector.broadcast %cst_8 : f32 to vector<32x128xf32>
    %14 = arith.minimumf %13, %12 : vector<32x128xf32>
    %c0_9 = arith.constant 0 : index
    %c0_10 = arith.constant 0 : index
    %15 = vector.load %arg4[%c0_9, %c0_10] : memref<32x128xf32, #tpu.memory_space<vmem>>, vector<32x128xf32>
    tpu.vector_store %arg4[%c0_9, %c0_10], %14 {strides = array<i32>} : memref<32x128xf32, #tpu.memory_space<vmem>>, vector<32x128xf32>,
    return
  }
  func.func @transform_0(%arg0: i32) -> (i32, i32) {
    %c0_i32 = arith.constant 0 : i32
    %c0_i32_0 = arith.constant 0 : i32
    return %arg0, %c0_i32 : i32, i32
  }
  func.func @transform_1(%arg0: i32) -> (i32, i32) {
    %c0_i32 = arith.constant 0 : i32
    %c0_i32_0 = arith.constant 0 : i32
    %c0_i32_1 = arith.constant 0 : i32
    return %c0_i32, %c0_i32_0 : i32, i32
  }
  func.func @transform_2(%arg0: i32) -> (i32, i32) {
    %c0_i32 = arith.constant 0 : i32
    %c0_i32_0 = arith.constant 0 : i32
    %c0_i32_1 = arith.constant 0 : i32
    return %c0_i32, %c0_i32_0 : i32, i32
  }
  func.func @transform_3(%arg0: i32) -> (i32, i32) {
    %c0_i32 = arith.constant 0 : i32
    %c0_i32_0 = arith.constant 0 : i32
    return %arg0, %c0_i32 : i32, i32
  }
}

module attributes {stable_mosaic.version = 11 : i64} {
  func.func @_gemm_kernel(%arg0: i32, %arg1: memref<128x48xbf16, #tpu.memory_space<vmem>>, %arg2: memref<48x128xbf16, #tpu.memory_space<vmem>>, %arg3: memref<1x128xf32, #tpu.memory_space<vmem>>, %arg4: memref<128x128xf32, #tpu.memory_space<vmem>>) attributes {dimension_semantics = [#tpu.dimension_semantics<parallel>], iteration_bounds = array<i64: 1>, scalar_prefetch = 0 : i64, scratch_operands = 0 : i64, tpu.core_type = #tpu.core_type<tc>, window_params = [{transform_indices = @transform_0, window_bounds = array<i64: 128, 48>}, {pipeline_mode = #tpu.pipeline_mode<synchronous>, transform_indices = @transform_1, window_bounds = array<i64: 48, 128>}, {pipeline_mode = #tpu.pipeline_mode<synchronous>, transform_indices = @transform_2, window_bounds = array<i64: 1, 128>}, {transform_indices = @transform_3, window_bounds = array<i64: 128, 128>}]} {
    %c0 = arith.constant 0 : index
    %c0_0 = arith.constant 0 : index
    %0 = vector.load %arg1[%c0, %c0_0] : memref<128x48xbf16, #tpu.memory_space<vmem>>, vector<128x48xbf16>
    %c0_1 = arith.constant 0 : index
    %c0_2 = arith.constant 0 : index
    %1 = vector.load %arg2[%c0_1, %c0_2] : memref<48x128xbf16, #tpu.memory_space<vmem>>, vector<48x128xbf16>
    %cst = arith.constant dense<0.000000e+00> : vector<128x128xf32>
    %2 = tpu.matmul %0, %1, %cst {dimension_numbers = #tpu.dot_dimension_numbers<[1], [0], [0], [1], [0, 0, 1, 1], [], []>} : vector<128x48xbf16>, vector<48x128xbf16>, vector<128x128xf32> -> vector<128x128xf32>
    %c0_3 = arith.constant 0 : index
    %c0_4 = arith.constant 0 : index
    %3 = vector.load %arg3[%c0_3, %c0_4] : memref<1x128xf32, #tpu.memory_space<vmem>>, vector<1x128xf32>
    %4 = vector.broadcast %3 : vector<1x128xf32> to vector<128x128xf32>
    %5 = arith.addf %2, %4 : vector<128x128xf32>
    %c0_5 = arith.constant 0 : index
    %c0_6 = arith.constant 0 : index
    %6 = vector.load %arg4[%c0_5, %c0_6] : memref<128x128xf32, #tpu.memory_space<vmem>>, vector<128x128xf32>
    tpu.vector_store %arg4[%c0_5, %c0_6], %5 {strides = array<i32>} : memref<128x128xf32, #tpu.memory_space<vmem>>, vector<128x128xf32>,
    return
  }
  func.func @transform_0(%arg0: i32) -> (i32, i32) {
    %c0_i32 = arith.constant 0 : i32
    %c0_i32_0 = arith.constant 0 : i32
    return %arg0, %c0_i32 : i32, i32
  }
  func.func @transform_1(%arg0: i32) -> (i32, i32) {
    %c0_i32 = arith.constant 0 : i32
    %c0_i32_0 = arith.constant 0 : i32
    %c0_i32_1 = arith.constant 0 : i32
    return %c0_i32, %c0_i32_0 : i32, i32
  }
  func.func @transform_2(%arg0: i32) -> (i32, i32) {
    %c0_i32 = arith.constant 0 : i32
    %c0_i32_0 = arith.constant 0 : i32
    %c0_i32_1 = arith.constant 0 : i32
    return %c0_i32, %c0_i32_0 : i32, i32
  }
  func.func @transform_3(%arg0: i32) -> (i32, i32) {
    %c0_i32 = arith.constant 0 : i32
    %c0_i32_0 = arith.constant 0 : i32
    return %arg0, %c0_i32 : i32, i32
  }
}

module attributes {stable_mosaic.version = 11 : i64} {
  func.func @_quantize_kernel(%arg0: i32, %arg1: memref<128x16xf32, #tpu.memory_space<vmem>>, %arg2: memref<16x32xf32, #tpu.memory_space<vmem>>, %arg3: memref<128x16xf32, #tpu.memory_space<vmem>>, %arg4: memref<128x1xi32, #tpu.memory_space<vmem>>, %arg5: memref<1x1xf32, #tpu.memory_space<vmem>>) attributes {dimension_semantics = [#tpu.dimension_semantics<arbitrary>], iteration_bounds = array<i64: 1>, scalar_prefetch = 0 : i64, scratch_operands = 0 : i64, tpu.core_type = #tpu.core_type<tc>, window_params = [{pipeline_mode = #tpu.pipeline_mode<synchronous>, transform_indices = @transform_0, window_bounds = array<i64: 128, 16>}, {pipeline_mode = #tpu.pipeline_mode<synchronous>, transform_indices = @transform_1, window_bounds = array<i64: 16, 32>}, {pipeline_mode = #tpu.pipeline_mode<synchronous>, transform_indices = @transform_2, window_bounds = array<i64: 128, 16>}, {pipeline_mode = #tpu.pipeline_mode<synchronous>, transform_indices = @transform_3, window_bounds = array<i64: 128, 1>}, {pipeline_mode = #tpu.pipeline_mode<synchronous>, transform_indices = @transform_4, window_bounds = array<i64: 1, 1>}]} {
    %c0 = arith.constant 0 : index
    %c0_0 = arith.constant 0 : index
    %0 = vector.load %arg1[%c0, %c0_0] : memref<128x16xf32, #tpu.memory_space<vmem>>, vector<128x16xf32>
    %c0_1 = arith.constant 0 : index
    %c0_2 = arith.constant 0 : index
    %1 = vector.load %arg2[%c0_1, %c0_2] : memref<16x32xf32, #tpu.memory_space<vmem>>, vector<16x32xf32>
    %2 = arith.mulf %1, %1 : vector<16x32xf32>
    %cst = arith.constant dense<0.000000e+00> : vector<32xf32>
    %3 = vector.multi_reduction <add>, %2, %cst [0] : vector<16x32xf32> to vector<32xf32>
    %4 = vector.shape_cast %3 : vector<32xf32> to vector<1x32xf32>
    %cst_3 = arith.constant dense<0.000000e+00> : vector<128x32xf32>
    %5 = tpu.matmul %0, %1, %cst_3 {dimension_numbers = #tpu.dot_dimension_numbers<[1], [0], [0], [1], [0, 0, 1, 1], [], []>} : vector<128x16xf32>, vector<16x32xf32>, vector<128x32xf32> -> vector<128x32xf32>
    %cst_4 = arith.constant 2.000000e+00 : f32
    %6 = vector.broadcast %cst_4 : f32 to vector<128x32xf32>
    %7 = arith.mulf %6, %5 : vector<128x32xf32>
    %8 = vector.broadcast %4 : vector<1x32xf32> to vector<128x32xf32>
    %9 = arith.subf %8, %7 : vector<128x32xf32>
    %10 = tpu.iota {dimensions = array<i32: 1>} : vector<128x32xi32>
    %cst_5 = arith.constant dense<0x7F800000> : vector<128xf32>
    %11 = vector.multi_reduction <minimumf>, %9, %cst_5 [1] : vector<128x32xf32> to vector<128xf32>
    %12 = vector.shape_cast %11 : vector<128xf32> to vector<128x1xf32>
    %13 = vector.broadcast %12 : vector<128x1xf32> to vector<128x32xf32>
    %14 = arith.cmpf ole, %9, %13 : vector<128x32xf32>
    %c32_i32 = arith.constant 32 : i32
    %15 = vector.broadcast %c32_i32 : i32 to vector<128x32xi32>
    %16 = arith.select %14, %10, %15 : vector<128x32xi1>, vector<128x32xi32>
    %cst_6 = arith.constant dense<2147483647> : vector<128xi32>
    %17 = vector.multi_reduction <minsi>, %16, %cst_6 [1] : vector<128x32xi32> to vector<128xi32>
    %18 = vector.shape_cast %17 : vector<128xi32> to vector<128x1xi32>
    %19 = vector.broadcast %18 : vector<128x1xi32> to vector<128x32xi32>
    %20 = arith.cmpi eq, %10, %19 : vector<128x32xi32>
    %21 = arith.extui %20 : vector<128x32xi1> to vector<128x32xi32>
    %22 = arith.sitofp %21 : vector<128x32xi32> to vector<128x32xf32>
    %cst_7 = arith.constant dense<0.000000e+00> : vector<128x16xf32>
    %23 = tpu.matmul %22, %1, %cst_7 {dimension_numbers = #tpu.dot_dimension_numbers<[1], [1], [0], [0], [0, 0, 1, 0], [], []>} : vector<128x32xf32>, vector<16x32xf32>, vector<128x16xf32> -> vector<128x16xf32>
    %24 = arith.subf %23, %0 : vector<128x16xf32>
    %25 = arith.mulf %24, %24 : vector<128x16xf32>
    %26 = vector.shape_cast %25 : vector<128x16xf32> to vector<1x128x16xf32>
    %cst_8 = arith.constant dense<0.000000e+00> : vector<1xf32>
    %27 = vector.multi_reduction <add>, %26, %cst_8 [1, 2] : vector<1x128x16xf32> to vector<1xf32>
    %28 = vector.shape_cast %27 : vector<1xf32> to vector<1x1x1xf32>
    %29 = vector.extract %28[0, 0, 0] : f32 from vector<1x1x1xf32>
    %cst_9 = arith.constant 2.048000e+03 : f32
    %30 = arith.divf %29, %cst_9 : f32
    %c0_10 = arith.constant 0 : index
    %c0_11 = arith.constant 0 : index
    %31 = vector.load %arg3[%c0_10, %c0_11] : memref<128x16xf32, #tpu.memory_space<vmem>>, vector<128x16xf32>
    tpu.vector_store %arg3[%c0_10, %c0_11], %23 {strides = array<i32>} : memref<128x16xf32, #tpu.memory_space<vmem>>, vector<128x16xf32>,
    %32 = vector.shape_cast %17 : vector<128xi32> to vector<128x1xi32>
    %c0_12 = arith.constant 0 : index
    %c0_13 = arith.constant 0 : index
    %33 = vector.load %arg4[%c0_12, %c0_13] : memref<128x1xi32, #tpu.memory_space<vmem>>, vector<128x1xi32>
    tpu.vector_store %arg4[%c0_12, %c0_13], %32 {strides = array<i32>} : memref<128x1xi32, #tpu.memory_space<vmem>>, vector<128x1xi32>,
    %34 = vector.broadcast %30 : f32 to vector<1x1xf32>
    %c0_14 = arith.constant 0 : index
    %c0_15 = arith.constant 0 : index
    %35 = vector.load %arg5[%c0_14, %c0_15] : memref<1x1xf32, #tpu.memory_space<vmem>>, vector<1x1xf32>
    tpu.vector_store %arg5[%c0_14, %c0_15], %34 {strides = array<i32>} : memref<1x1xf32, #tpu.memory_space<vmem>>, vector<1x1xf32>,
    return
  }
  func.func @transform_0(%arg0: i32) -> (i32, i32) {
    %c0_i32 = arith.constant 0 : i32
    %c0_i32_0 = arith.constant 0 : i32
    %c0_i32_1 = arith.constant 0 : i32
    return %c0_i32, %c0_i32_0 : i32, i32
  }
  func.func @transform_1(%arg0: i32) -> (i32, i32) {
    %c0_i32 = arith.constant 0 : i32
    %c0_i32_0 = arith.constant 0 : i32
    %c0_i32_1 = arith.constant 0 : i32
    return %c0_i32, %c0_i32_0 : i32, i32
  }
  func.func @transform_2(%arg0: i32) -> (i32, i32) {
    %c0_i32 = arith.constant 0 : i32
    %c0_i32_0 = arith.constant 0 : i32
    %c0_i32_1 = arith.constant 0 : i32
    return %c0_i32, %c0_i32_0 : i32, i32
  }
  func.func @transform_3(%arg0: i32) -> (i32, i32) {
    %c0_i32 = arith.constant 0 : i32
    %c0_i32_0 = arith.constant 0 : i32
    %c0_i32_1 = arith.constant 0 : i32
    return %c0_i32, %c0_i32_0 : i32, i32
  }
  func.func @transform_4(%arg0: i32) -> (i32, i32) {
    %c0_i32 = arith.constant 0 : i32
    %c0_i32_0 = arith.constant 0 : i32
    %c0_i32_1 = arith.constant 0 : i32
    return %c0_i32, %c0_i32_0 : i32, i32
  }
}

module attributes {stable_mosaic.version = 11 : i64} {
  func.func @_gemm_kernel(%arg0: i32, %arg1: memref<256x144xbf16, #tpu.memory_space<vmem>>, %arg2: memref<144x128xbf16, #tpu.memory_space<vmem>>, %arg3: memref<1x128xf32, #tpu.memory_space<vmem>>, %arg4: memref<256x128xf32, #tpu.memory_space<vmem>>) attributes {dimension_semantics = [#tpu.dimension_semantics<parallel>], iteration_bounds = array<i64: 2>, scalar_prefetch = 0 : i64, scratch_operands = 0 : i64, tpu.core_type = #tpu.core_type<tc>, window_params = [{transform_indices = @transform_0, window_bounds = array<i64: 256, 144>}, {pipeline_mode = #tpu.pipeline_mode<synchronous>, transform_indices = @transform_1, window_bounds = array<i64: 144, 128>}, {pipeline_mode = #tpu.pipeline_mode<synchronous>, transform_indices = @transform_2, window_bounds = array<i64: 1, 128>}, {transform_indices = @transform_3, window_bounds = array<i64: 256, 128>}]} {
    %c0 = arith.constant 0 : index
    %c0_0 = arith.constant 0 : index
    %0 = vector.load %arg1[%c0, %c0_0] : memref<256x144xbf16, #tpu.memory_space<vmem>>, vector<256x144xbf16>
    %c0_1 = arith.constant 0 : index
    %c0_2 = arith.constant 0 : index
    %1 = vector.load %arg2[%c0_1, %c0_2] : memref<144x128xbf16, #tpu.memory_space<vmem>>, vector<144x128xbf16>
    %cst = arith.constant dense<0.000000e+00> : vector<256x128xf32>
    %2 = tpu.matmul %0, %1, %cst {dimension_numbers = #tpu.dot_dimension_numbers<[1], [0], [0], [1], [0, 0, 1, 1], [], []>} : vector<256x144xbf16>, vector<144x128xbf16>, vector<256x128xf32> -> vector<256x128xf32>
    %c0_3 = arith.constant 0 : index
    %c0_4 = arith.constant 0 : index
    %3 = vector.load %arg3[%c0_3, %c0_4] : memref<1x128xf32, #tpu.memory_space<vmem>>, vector<1x128xf32>
    %4 = vector.broadcast %3 : vector<1x128xf32> to vector<256x128xf32>
    %5 = arith.addf %2, %4 : vector<256x128xf32>
    %cst_5 = arith.constant 0.000000e+00 : f32
    %6 = vector.broadcast %cst_5 : f32 to vector<256x128xf32>
    %7 = arith.maximumf %5, %6 : vector<256x128xf32>
    %8 = math.tanh %7 : vector<256x128xf32>
    %cst_6 = arith.constant 1.050000e+00 : f32
    %9 = vector.broadcast %cst_6 : f32 to vector<256x128xf32>
    %10 = arith.mulf %8, %9 : vector<256x128xf32>
    %cst_7 = arith.constant -1.000000e+00 : f32
    %cst_8 = arith.constant 1.000000e+00 : f32
    %11 = vector.broadcast %cst_7 : f32 to vector<256x128xf32>
    %12 = arith.maximumf %11, %10 : vector<256x128xf32>
    %13 = vector.broadcast %cst_8 : f32 to vector<256x128xf32>
    %14 = arith.minimumf %13, %12 : vector<256x128xf32>
    %c0_9 = arith.constant 0 : index
    %c0_10 = arith.constant 0 : index
    %15 = vector.load %arg4[%c0_9, %c0_10] : memref<256x128xf32, #tpu.memory_space<vmem>>, vector<256x128xf32>
    tpu.vector_store %arg4[%c0_9, %c0_10], %14 {strides = array<i32>} : memref<256x128xf32, #tpu.memory_space<vmem>>, vector<256x128xf32>,
    return
  }
  func.func @transform_0(%arg0: i32) -> (i32, i32) {
    %c0_i32 = arith.constant 0 : i32
    %c0_i32_0 = arith.constant 0 : i32
    return %arg0, %c0_i32 : i32, i32
  }
  func.func @transform_1(%arg0: i32) -> (i32, i32) {
    %c0_i32 = arith.constant 0 : i32
    %c0_i32_0 = arith.constant 0 : i32
    %c0_i32_1 = arith.constant 0 : i32
    return %c0_i32, %c0_i32_0 : i32, i32
  }
  func.func @transform_2(%arg0: i32) -> (i32, i32) {
    %c0_i32 = arith.constant 0 : i32
    %c0_i32_0 = arith.constant 0 : i32
    %c0_i32_1 = arith.constant 0 : i32
    return %c0_i32, %c0_i32_0 : i32, i32
  }
  func.func @transform_3(%arg0: i32) -> (i32, i32) {
    %c0_i32 = arith.constant 0 : i32
    %c0_i32_0 = arith.constant 0 : i32
    return %arg0, %c0_i32 : i32, i32
  }
}

</mosaic_0001>

<llo_original>
// kernel: network_forward.31
$region0: #{network_forward.31}
  #allocation0 [shape = 'u32[]', space=smem, size = 0x4, offset = 0x4, fixed_abs, tag = 'smem constant byte address 0x4 - core index']
  #allocation1 [shape = 'u32[144,128]{1,0:T(1,128)}', space=vmem, size = 0x12000, scoped, tag = 'internal scratch']
  %s0 = inlined_call_operand.vmem [shape: bf16[512,48], index: 0, kind: input, shape index: {}]
  %s1 = inlined_call_operand.vmem [shape: bf16[48,128], index: 1, kind: input, shape index: {}]
  %s2 = inlined_call_operand.vmem [shape: f32[1,128], index: 2, kind: input, shape index: {}]
  %s3 = inlined_call_operand.vmem [shape: f32[1,128], index: 3, kind: input, shape index: {}]
  %s4 = inlined_call_operand.vmem [shape: f32[1,128], index: 4, kind: input, shape index: {}]
  %s5 = inlined_call_operand.vmem [shape: f32[512,128], index: 5, kind: output, shape index: {}]
  %s6 = sld [smem:[#allocation0]]
  $region53: #{network_forward.31} parent=0
    _
  %s8 = ssub.s32 1, %s6
  %s9 = scalar_select 0, %s8, %s6
  loop: start=0, step=1, limit=4
  $region2: #{network_forward.31} parent=0 // loop_pre_header
    _
  $region3: #{network_forward.31} parent=0 // loop_header
    %s11 = sphi 0, %s15
    %p12 = scmp.ge.s32.totalorder %s11, 4
    %s21 = sphi 0, %s23
    %s24 = sphi 0, %s21
    %s25 = sphi 0, %s24
    %s41 = sphi 0, %s25
    %s45 = sphi 0, %s45
    %s47 = sphi 0, %s45
    %s48 = sphi 0, %s47
    %s62 = sphi 0, %s48
    %s66 = sphi 0, %s66
    %s68 = sphi 0, %s66
    %s69 = sphi 0, %s68
    %s83 = sphi 0, %s69
    %s87 = sphi 0, %s87
    %s89 = sphi 0, %s87
    %s90 = sphi 0, %s89
    %s104 = sphi 0, %s90
    %s108 = sphi 0, %s108
    %s110 = sphi 0, %s108
    %s111 = sphi 0, %s110
    %s125 = sphi 0, %s111
    %s131 = sphi 0, %s133
    %s134 = sphi 0, %s131
    %s135 = sphi 0, %s134
    %s151 = sphi 0, %s135
  $region4: #{network_forward.31} parent=0 // loop_header_branch
    %14 = sbr.rel (%p12) target = $region8
  $region5: #{network_forward.31} parent=0 // loop_body
    %s16 = ssub.s32 %s11, 1
    %s17 = ssub.s32 %s11, 2
    %s18 = sadd.s32 %s11, 1
    %s19 = ssub.s32 %s11, %s18
    %p20 = scmp.eq.s32.totalorder %s19, 0
    %s22 = sadd.s32 %s21, 1
    %s23 = scalar_select %p20, %s21, %s22
    %p26 = pneg %p20
    %p27 = scmp.eq.s32.totalorder %s11, 1
    %p28 = por %p26, %p27
    %p29 = scmp.ne.s32.totalorder %s21, %s24
    %p30 = scmp.eq.s32.totalorder %s11, 0
    %p31 = por %p29, %p30
    %p32 = scmp.ne.s32.totalorder %s21, %s24
    %p33 = scmp.eq.s32.totalorder %s16, 1
    %p34 = por %p32, %p33
    %p35 = scmp.ne.s32.totalorder %s24, %s25
    %p36 = scmp.eq.s32.totalorder %s16, 0
    %p37 = por %p35, %p36
    %p38 = scmp.ne.s32.totalorder %s24, %s25
    %p39 = scmp.eq.s32.totalorder %s17, 1
    %p40 = por %p38, %p39
    %p42 = scmp.ne.s32.totalorder %s25, %s41
    %p43 = scmp.eq.s32.totalorder %s17, 0
    %p44 = por %p42, %p43
    %s46 = sadd.s32 %s45, 1
    %p49 = scmp.eq.s32.totalorder %s11, 1
    %p50 = scmp.ne.s32.totalorder %s45, %s47
    %p51 = scmp.eq.s32.totalorder %s11, 0
    %p52 = por %p50, %p51
    %p53 = scmp.ne.s32.totalorder %s45, %s47
    %p54 = scmp.eq.s32.totalorder %s16, 1
    %p55 = por %p53, %p54
    %p56 = scmp.ne.s32.totalorder %s47, %s48
    %p57 = scmp.eq.s32.totalorder %s16, 0
    %p58 = por %p56, %p57
    %p59 = scmp.ne.s32.totalorder %s47, %s48
    %p60 = scmp.eq.s32.totalorder %s17, 1
    %p61 = por %p59, %p60
    %p63 = scmp.ne.s32.totalorder %s48, %s62
    %p64 = scmp.eq.s32.totalorder %s17, 0
    %p65 = por %p63, %p64
    %s67 = sadd.s32 %s66, 1
    %p70 = scmp.eq.s32.totalorder %s11, 1
    %p71 = scmp.ne.s32.totalorder %s66, %s68
    %p72 = scmp.eq.s32.totalorder %s11, 0
    %p73 = por %p71, %p72
    %p74 = scmp.ne.s32.totalorder %s66, %s68
    %p75 = scmp.eq.s32.totalorder %s16, 1
    %p76 = por %p74, %p75
    %p77 = scmp.ne.s32.totalorder %s68, %s69
    %p78 = scmp.eq.s32.totalorder %s16, 0
    %p79 = por %p77, %p78
    %p80 = scmp.ne.s32.totalorder %s68, %s69
    %p81 = scmp.eq.s32.totalorder %s17, 1
    %p82 = por %p80, %p81
    %p84 = scmp.ne.s32.totalorder %s69, %s83
    %p85 = scmp.eq.s32.totalorder %s17, 0
    %p86 = por %p84, %p85
    %s88 = sadd.s32 %s87, 1
    %p91 = scmp.eq.s32.totalorder %s11, 1
    %p92 = scmp.ne.s32.totalorder %s87, %s89
    %p93 = scmp.eq.s32.totalorder %s11, 0
    %p94 = por %p92, %p93
    %p95 = scmp.ne.s32.totalorder %s87, %s89
    %p96 = scmp.eq.s32.totalorder %s16, 1
    %p97 = por %p95, %p96
    %p98 = scmp.ne.s32.totalorder %s89, %s90
    %p99 = scmp.eq.s32.totalorder %s16, 0
    %p100 = por %p98, %p99
    %p101 = scmp.ne.s32.totalorder %s89, %s90
    %p102 = scmp.eq.s32.totalorder %s17, 1
    %p103 = por %p101, %p102
    %p105 = scmp.ne.s32.totalorder %s90, %s104
    %p106 = scmp.eq.s32.totalorder %s17, 0
    %p107 = por %p105, %p106
    %s109 = sadd.s32 %s108, 1
    %p112 = scmp.eq.s32.totalorder %s11, 1
    %p113 = scmp.ne.s32.totalorder %s108, %s110
    %p114 = scmp.eq.s32.totalorder %s11, 0
    %p115 = por %p113, %p114
    %p116 = scmp.ne.s32.totalorder %s108, %s110
    %p117 = scmp.eq.s32.totalorder %s16, 1
    %p118 = por %p116, %p117
    %p119 = scmp.ne.s32.totalorder %s110, %s111
    %p120 = scmp.eq.s32.totalorder %s16, 0
    %p121 = por %p119, %p120
    %p122 = scmp.ne.s32.totalorder %s110, %s111
    %p123 = scmp.eq.s32.totalorder %s17, 1
    %p124 = por %p122, %p123
    %p126 = scmp.ne.s32.totalorder %s111, %s125
    %p127 = scmp.eq.s32.totalorder %s17, 0
    %p128 = por %p126, %p127
    %s129 = ssub.s32 %s11, %s18
    %p130 = scmp.eq.s32.totalorder %s129, 0
    %s132 = sadd.s32 %s131, 1
    %s133 = scalar_select %p130, %s131, %s132
    %p136 = pneg %p130
    %p137 = scmp.eq.s32.totalorder %s11, 1
    %p138 = por %p136, %p137
    %p139 = scmp.ne.s32.totalorder %s131, %s134
    %p140 = scmp.eq.s32.totalorder %s11, 0
    %p141 = por %p139, %p140
    %p142 = scmp.ne.s32.totalorder %s131, %s134
    %p143 = scmp.eq.s32.totalorder %s16, 1
    %p144 = por %p142, %p143
    %p145 = scmp.ne.s32.totalorder %s134, %s135
    %p146 = scmp.eq.s32.totalorder %s16, 0
    %p147 = por %p145, %p146
    %p148 = scmp.ne.s32.totalorder %s134, %s135
    %p149 = scmp.eq.s32.totalorder %s17, 1
    %p150 = por %p148, %p149
    %p152 = scmp.ne.s32.totalorder %s135, %s151
    %p153 = scmp.eq.s32.totalorder %s17, 0
    %p154 = por %p152, %p153
    %p155 = scmp.le.s32.totalorder 1, %s11
    %p156 = scmp.lt.s32.totalorder %s11, 3
    %p157 = pnand %p155, %p156
    %p158 = pneg %p157
    // Predicated region
    $region9: #{network_forward.31} parent=5 // pred_check
      _
    $region10: #{network_forward.31} parent=5 // pred_check_branch
      %160 = sbr.rel (%p157) target = $region12
    $region11: #{network_forward.31} parent=5 // pred_region
      %s161 = ssub.s32 %s11, 1
      // Predicated region
      $region13: #{network_forward.31} parent=11 // pred_check
        %p162 = pneg %p58
      $region14: #{network_forward.31} parent=11 // pred_check_branch
        %164 = sbr.rel (%p162) target = $region16
      $region15: #{network_forward.31} parent=11 // pred_region
        _
      $region16: #{network_forward.31} parent=11 // pred_fallthru
        _
      // Predicated region
      $region17: #{network_forward.31} parent=11 // pred_check
        %p165 = pneg %p79
      $region18: #{network_forward.31} parent=11 // pred_check_branch
        %167 = sbr.rel (%p165) target = $region20
      $region19: #{network_forward.31} parent=11 // pred_region
        _
      $region20: #{network_forward.31} parent=11 // pred_fallthru
        _
      // Predicated region
      $region21: #{network_forward.31} parent=11 // pred_check
        %p168 = pneg %p100
      $region22: #{network_forward.31} parent=11 // pred_check_branch
        %170 = sbr.rel (%p168) target = $region24
      $region23: #{network_forward.31} parent=11 // pred_region
        _
      $region24: #{network_forward.31} parent=11 // pred_fallthru
        _
      // Predicated region
      $region25: #{network_forward.31} parent=11 // pred_check
        %p171 = pneg %p121
      $region26: #{network_forward.31} parent=11 // pred_check_branch
        %173 = sbr.rel (%p171) target = $region28
      $region27: #{network_forward.31} parent=11 // pred_region
        _
      $region28: #{network_forward.31} parent=11 // pred_fallthru
        _
    $region12: #{network_forward.31} parent=5 // pred_fallthru
      _
    %p174 = scmp.lt.s32.totalorder %s11, 2
    // Predicated region
    $region29: #{network_forward.31} parent=5 // pred_check
      %p175 = pneg %p174
    $region30: #{network_forward.31} parent=5 // pred_check_branch
      %177 = sbr.rel (%p175) target = $region32
    $region31: #{network_forward.31} parent=5 // pred_region
      // Predicated region
      $region33: #{network_forward.31} parent=31 // pred_check
        %p178 = pneg %p31
      $region34: #{network_forward.31} parent=31 // pred_check_branch
        %180 = sbr.rel (%p178) target = $region36
      $region35: #{network_forward.31} parent=31 // pred_region
        %s181 = smul.u32 32, %s11
        %p182 = scmp.lt.s32.totalorder %s181, 63
        %s183 = scalar_select %p182, %s181, 63
        %s184 = smul.addr %s183, 4
        %s185 = scalar_lea.vmem %s0, %s184
        %s186 = smul.u32 32, %s11
      $region36: #{network_forward.31} parent=31 // pred_fallthru
        _
    $region32: #{network_forward.31} parent=5 // pred_fallthru
      _
    %p187 = scmp.le.s32.totalorder 1, %s11
    %p188 = scmp.lt.s32.totalorder %s11, 3
    %p189 = pnand %p187, %p188
    %p190 = pneg %p189
    // Predicated region
    $region37: #{network_forward.31} parent=5 // pred_check
      _
    $region38: #{network_forward.31} parent=5 // pred_check_branch
      %192 = sbr.rel (%p189) target = $region40
    $region39: #{network_forward.31} parent=5 // pred_region
      %s193 = ssub.s32 %s11, 1
      %s194 = smul.u32 32, %s16
      %p195 = scmp.lt.s32.totalorder %s194, 63
      %s196 = scalar_select %p195, %s194, 63
      %s197 = smul.addr %s196, 4
      %s198 = scalar_lea.vmem %s0, %s197
      %p199 = pneg %p37
      %p200 = pneg %p34
      %p201 = pneg %p58
      %p202 = pneg %p55
      %p203 = pneg %p79
      %p204 = pneg %p76
      %p205 = pneg %p100
      %p206 = pneg %p97
      %p207 = pneg %p121
      %p208 = pneg %p118
      %p209 = pneg %p147
      %p210 = pneg %p144
      %s211 = smul.u32 32, %s16
      %p212 = scmp.lt.s32.totalorder %s211, 63
      %s213 = scalar_select %p212, %s211, 63
      %s214 = smul.addr %s213, 8
      %s215 = scalar_lea.vmem %s5, %s214
      %s216 = smul.u32 32, %s16
      %p217 = scmp.lt.s32.totalorder %s216, 63
      %s218 = scalar_select %p217, %s216, 63
      %s219 = smul.addr %s218, 4
      %s220 = scalar_lea.vmem %s0, %s219
      %s221 = smul.u32 32, %s16
      %s222 = smul.u32 32, %s16
      %p223 = scmp.lt.s32.totalorder %s222, 63
      %s224 = scalar_select %p223, %s222, 63
      %s225 = smul.addr %s224, 8
      %s226 = scalar_lea.vmem %s5, %s225
      %s227 = smul.u32 32, %s16
      %v229 = vld [vmem:[%s220] sm:$0xf]
      %v230 = vld [vmem:[%s220 + $0x4] sm:$0xf]
      %v231 = vld [vmem:[%s220 + $0x8] sm:$0xf]
      %v232 = vld [vmem:[%s220 + $0xc] sm:$0xf]
      %v233 = vld [vmem:[%s220 + $0x10] sm:$0xf]
      %v234 = vld [vmem:[%s220 + $0x14] sm:$0xf]
      %v235 = vld [vmem:[%s220 + $0x18] sm:$0xf]
      %v236 = vld [vmem:[%s220 + $0x1c] sm:$0xf]
      %v237 = vld [vmem:[%s220 + $0x20] sm:$0xf]
      %v238 = vld [vmem:[%s220 + $0x24] sm:$0xf]
      %v239 = vld [vmem:[%s220 + $0x28] sm:$0xf]
      %v240 = vld [vmem:[%s220 + $0x2c] sm:$0xf]
      %v241 = vld [vmem:[%s220 + $0x30] sm:$0xf]
      %v242 = vld [vmem:[%s220 + $0x34] sm:$0xf]
      %v243 = vld [vmem:[%s220 + $0x38] sm:$0xf]
      %v244 = vld [vmem:[%s220 + $0x3c] sm:$0xf]
      %v245 = vld [vmem:[%s220 + $0x40] sm:$0xf]
      %v246 = vld [vmem:[%s220 + $0x44] sm:$0xf]
      %v247 = vld [vmem:[%s220 + $0x48] sm:$0xf]
      %v248 = vld [vmem:[%s220 + $0x4c] sm:$0xf]
      %v249 = vld [vmem:[%s220 + $0x50] sm:$0xf]
      %v250 = vld [vmem:[%s220 + $0x54] sm:$0xf]
      %v251 = vld [vmem:[%s220 + $0x58] sm:$0xf]
      %v252 = vld [vmem:[%s220 + $0x5c] sm:$0xf]
      %v253 = vld [vmem:[%s220 + $0x60] sm:$0xf]
      %v254 = vld [vmem:[%s220 + $0x64] sm:$0xf]
      %v255 = vld [vmem:[%s220 + $0x68] sm:$0xf]
      %v256 = vld [vmem:[%s220 + $0x6c] sm:$0xf]
      %v257 = vld [vmem:[%s220 + $0x70] sm:$0xf]
      %v258 = vld [vmem:[%s220 + $0x74] sm:$0xf]
      %v259 = vld [vmem:[%s220 + $0x78] sm:$0xf]
      %v260 = vld [vmem:[%s220 + $0x7c] sm:$0xf]
      %v261 = vld [vmem:[%s1] sm:$0xf]
      %v262 = vld [vmem:[%s1 + $0x4] sm:$0xf]
      %v263 = vld [vmem:[%s1 + $0x8] sm:$0xf]
      %v264 = vld [vmem:[%s1 + $0xc] sm:$0xf]
      %v265 = vld [vmem:[%s1 + $0x10] sm:$0xf]
      %v266 = vld [vmem:[%s1 + $0x14] sm:$0xf]
      %v267 = vld [vmem:[%s2] sm:$0x1]
      %v269 = vlaneseq
      %v270 = vshrl.u32 %v269, 7
      %v271 = vsub.s32 0, %v270
      %v272 = vrot.slane %v267, %v271
      %v306 = vunpack.c.l.b16 %v229
      %v307 = vunpack.c.l.b16 %v230
      %v308 = vunpack.c.l.b16 %v231
      %v309 = vunpack.c.l.b16 %v232
      %v310 = vunpack.c.l.b16 %v233
      %v311 = vunpack.c.l.b16 %v234
      %v312 = vunpack.c.l.b16 %v235
      %v313 = vunpack.c.l.b16 %v236
      %v314 = vunpack.c.l.b16 %v237
      %v315 = vunpack.c.l.b16 %v238
      %v316 = vunpack.c.l.b16 %v239
      %v317 = vunpack.c.l.b16 %v240
      %v318 = vunpack.c.l.b16 %v241
      %v319 = vunpack.c.l.b16 %v242
      %v320 = vunpack.c.l.b16 %v243
      %v321 = vunpack.c.l.b16 %v244
      %v322 = vunpack.c.l.b16 %v245
      %v323 = vunpack.c.l.b16 %v246
      %v324 = vunpack.c.l.b16 %v247
      %v325 = vunpack.c.l.b16 %v248
      %v326 = vunpack.c.l.b16 %v249
      %v327 = vunpack.c.l.b16 %v250
      %v328 = vunpack.c.l.b16 %v251
      %v329 = vunpack.c.l.b16 %v252
      %v330 = vunpack.c.l.b16 %v253
      %v331 = vunpack.c.l.b16 %v254
      %v332 = vunpack.c.l.b16 %v255
      %v333 = vunpack.c.l.b16 %v256
      %v334 = vunpack.c.l.b16 %v257
      %v335 = vunpack.c.l.b16 %v258
      %v336 = vunpack.c.l.b16 %v259
      %v337 = vunpack.c.l.b16 %v260
      %v338 = vpack.c.b16 %v307, %v306
      %v339 = vpack.c.b16 %v309, %v308
      %v340 = vpack.c.b16 %v311, %v310
      %v341 = vpack.c.b16 %v313, %v312
      %v342 = vpack.c.b16 %v315, %v314
      %v343 = vpack.c.b16 %v317, %v316
      %v344 = vpack.c.b16 %v319, %v318
      %v345 = vpack.c.b16 %v321, %v320
      %v346 = vpack.c.b16 %v323, %v322
      %v347 = vpack.c.b16 %v325, %v324
      %v348 = vpack.c.b16 %v327, %v326
      %v349 = vpack.c.b16 %v329, %v328
      %v350 = vpack.c.b16 %v331, %v330
      %v351 = vpack.c.b16 %v333, %v332
      %v352 = vpack.c.b16 %v335, %v334
      %v353 = vpack.c.b16 %v337, %v336
      %v360 = vunpack.c.l.b16 %v261
      %v361 = vunpack.c.l.b16 %v262
      %v362 = vunpack.c.l.b16 %v263
      %v363 = vunpack.c.l.b16 %v264
      %v364 = vunpack.c.l.b16 %v265
      %v365 = vunpack.c.l.b16 %v266
      %v366 = vpack.c.b16 %v361, %v360
      %v367 = vpack.c.b16 %v363, %v362
      %v368 = vpack.c.b16 %v365, %v364
      %vm372 = vcmask 392192
      %v374 = vsel %vm372, %v338, 0
      %v377 = vsel %vm372, %v339, 0
      %v380 = vsel %vm372, %v340, 0
      %v383 = vsel %vm372, %v341, 0
      %v386 = vsel %vm372, %v342, 0
      %v389 = vsel %vm372, %v343, 0
      %v392 = vsel %vm372, %v344, 0
      %v395 = vsel %vm372, %v345, 0
      %v398 = vsel %vm372, %v346, 0
      %v401 = vsel %vm372, %v347, 0
      %v404 = vsel %vm372, %v348, 0
      %v407 = vsel %vm372, %v349, 0
      %v410 = vsel %vm372, %v350, 0
      %v413 = vsel %vm372, %v351, 0
      %v416 = vsel %vm372, %v352, 0
      %v419 = vsel %vm372, %v353, 0
      %421 = vmatprep.subr.bf16.mxu0 0
      %422 = vmatpush1.bf16.msra.mxu0 0
      %423 = vmatprep.subr.bf16.mxu0 0
      %424 = vmatpush1.bf16.msra.mxu0 0
      %425 = vmatprep.subr.bf16.mxu0 0
      %426 = vmatpush1.bf16.msra.mxu0 0
      %427 = vmatprep.subr.bf16.mxu0 0
      %428 = vmatpush1.bf16.msra.mxu0 0
      %429 = vmatprep.subr.bf16.mxu0 0
      %430 = vmatpush1.bf16.msra.mxu0 0
      %431 = vmatprep.subr.bf16.mxu0 0
      %432 = vmatpush1.bf16.msra.mxu0 %v368
      %433 = vmatprep.subr.bf16.mxu0 0
      %434 = vmatpush1.bf16.msra.mxu0 %v367
      %435 = vmatprep.subr.bf16.mxu0 0
      %436 = vmatpush1.bf16.msra.mxu0 %v366
      %437 = vmatprep.subr.bf16.mxu0 0
      %438 = vmatpush2.bf16.msra.mxu0 0
      %439 = vmatprep.subr.bf16.mxu0 0
      %440 = vmatpush2.bf16.msra.mxu0 0
      %441 = vmatprep.subr.bf16.mxu0 0
      %442 = vmatpush2.bf16.msra.mxu0 0
      %443 = vmatprep.subr.bf16.mxu0 0
      %444 = vmatpush2.bf16.msra.mxu0 0
      %445 = vmatprep.subr.bf16.mxu0 0
      %446 = vmatpush2.bf16.msra.mxu0 0
      %447 = vmatprep.subr.bf16.mxu0 0
      %448 = vmatpush2.bf16.msra.mxu0 0
      %449 = vmatprep.subr.bf16.mxu0 0
      %450 = vmatpush2.bf16.msra.mxu0 0
      %451 = vmatprep.subr.bf16.mxu0 0
      %452 = vmatpush2.bf16.msra.mxu0 0
      %453 = vmatprep.mubr.bf16.mxu0 0
      %454 = vmatmul.mubr.bf16.gmra.mxu0 %v374
      %v455 = vpop.f32.mrf.mxu0
      %v456 = vadd.f32 %v272, %v455
      %v457 = vpop.f32.mrf.mxu0
      %v458 = vpop.f32.mrf.mxu0
      %v459 = vadd.f32 %v272, %v458
      %v460 = vpop.f32.mrf.mxu0
      %461 = vmatprep.mubr.bf16.mxu0 0
      %462 = vmatmul.mubr.bf16.gmra.mxu0 %v377
      %v463 = vpop.f32.mrf.mxu0
      %v464 = vadd.f32 %v272, %v463
      %v465 = vpop.f32.mrf.mxu0
      %v466 = vpop.f32.mrf.mxu0
      %v467 = vadd.f32 %v272, %v466
      %v468 = vpop.f32.mrf.mxu0
      %469 = vmatprep.mubr.bf16.mxu0 0
      %470 = vmatmul.mubr.bf16.gmra.mxu0 %v380
      %v471 = vpop.f32.mrf.mxu0
      %v472 = vadd.f32 %v272, %v471
      %v473 = vpop.f32.mrf.mxu0
      %v474 = vpop.f32.mrf.mxu0
      %v475 = vadd.f32 %v272, %v474
      %v476 = vpop.f32.mrf.mxu0
      %477 = vmatprep.mubr.bf16.mxu0 0
      %478 = vmatmul.mubr.bf16.gmra.mxu0 %v383
      %v479 = vpop.f32.mrf.mxu0
      %v480 = vadd.f32 %v272, %v479
      %v481 = vpop.f32.mrf.mxu0
      %v482 = vpop.f32.mrf.mxu0
      %v483 = vadd.f32 %v272, %v482
      %v484 = vpop.f32.mrf.mxu0
      %485 = vmatprep.mubr.bf16.mxu0 0
      %486 = vmatmul.mubr.bf16.gmra.mxu0 %v386
      %v487 = vpop.f32.mrf.mxu0
      %v488 = vadd.f32 %v272, %v487
      %v489 = vpop.f32.mrf.mxu0
      %v490 = vpop.f32.mrf.mxu0
      %v491 = vadd.f32 %v272, %v490
      %v492 = vpop.f32.mrf.mxu0
      %493 = vmatprep.mubr.bf16.mxu0 0
      %494 = vmatmul.mubr.bf16.gmra.mxu0 %v389
      %v495 = vpop.f32.mrf.mxu0
      %v496 = vadd.f32 %v272, %v495
      %v497 = vpop.f32.mrf.mxu0
      %v498 = vpop.f32.mrf.mxu0
      %v499 = vadd.f32 %v272, %v498
      %v500 = vpop.f32.mrf.mxu0
      %501 = vmatprep.mubr.bf16.mxu0 0
      %502 = vmatmul.mubr.bf16.gmra.mxu0 %v392
      %v503 = vpop.f32.mrf.mxu0
      %v504 = vadd.f32 %v272, %v503
      %v505 = vpop.f32.mrf.mxu0
      %v506 = vpop.f32.mrf.mxu0
      %v507 = vadd.f32 %v272, %v506
      %v508 = vpop.f32.mrf.mxu0
      %509 = vmatprep.mubr.bf16.mxu0 0
      %510 = vmatmul.mubr.bf16.gmra.mxu0 %v395
      %v511 = vpop.f32.mrf.mxu0
      %v512 = vadd.f32 %v272, %v511
      %v513 = vpop.f32.mrf.mxu0
      %v514 = vpop.f32.mrf.mxu0
      %v515 = vadd.f32 %v272, %v514
      %v516 = vpop.f32.mrf.mxu0
      %517 = vmatprep.mubr.bf16.mxu0 0
      %518 = vmatmul.mubr.bf16.gmra.mxu0 %v398
      %v519 = vpop.f32.mrf.mxu0
      %v520 = vadd.f32 %v272, %v519
      %v521 = vpop.f32.mrf.mxu0
      %v522 = vpop.f32.mrf.mxu0
      %v523 = vadd.f32 %v272, %v522
      %v524 = vpop.f32.mrf.mxu0
      %525 = vmatprep.mubr.bf16.mxu0 0
      %526 = vmatmul.mubr.bf16.gmra.mxu0 %v401
      %v527 = vpop.f32.mrf.mxu0
      %v528 = vadd.f32 %v272, %v527
      %v529 = vpop.f32.mrf.mxu0
      %v530 = vpop.f32.mrf.mxu0
      %v531 = vadd.f32 %v272, %v530
      %v532 = vpop.f32.mrf.mxu0
      %533 = vmatprep.mubr.bf16.mxu0 0
      %534 = vmatmul.mubr.bf16.gmra.mxu0 %v404
      %v535 = vpop.f32.mrf.mxu0
      %v536 = vadd.f32 %v272, %v535
      %v537 = vpop.f32.mrf.mxu0
      %v538 = vpop.f32.mrf.mxu0
      %v539 = vadd.f32 %v272, %v538
      %v540 = vpop.f32.mrf.mxu0
      %541 = vmatprep.mubr.bf16.mxu0 0
      %542 = vmatmul.mubr.bf16.gmra.mxu0 %v407
      %v543 = vpop.f32.mrf.mxu0
      %v544 = vadd.f32 %v272, %v543
      %v545 = vpop.f32.mrf.mxu0
      %v546 = vpop.f32.mrf.mxu0
      %v547 = vadd.f32 %v272, %v546
      %v548 = vpop.f32.mrf.mxu0
      %549 = vmatprep.mubr.bf16.mxu0 0
      %550 = vmatmul.mubr.bf16.gmra.mxu0 %v410
      %v551 = vpop.f32.mrf.mxu0
      %v552 = vadd.f32 %v272, %v551
      %v553 = vpop.f32.mrf.mxu0
      %v554 = vpop.f32.mrf.mxu0
      %v555 = vadd.f32 %v272, %v554
      %v556 = vpop.f32.mrf.mxu0
      %557 = vmatprep.mubr.bf16.mxu0 0
      %558 = vmatmul.mubr.bf16.gmra.mxu0 %v413
      %v559 = vpop.f32.mrf.mxu0
      %v560 = vadd.f32 %v272, %v559
      %v561 = vpop.f32.mrf.mxu0
      %v562 = vpop.f32.mrf.mxu0
      %v563 = vadd.f32 %v272, %v562
      %v564 = vpop.f32.mrf.mxu0
      %565 = vmatprep.mubr.bf16.mxu0 0
      %566 = vmatmul.mubr.bf16.gmra.mxu0 %v416
      %v567 = vpop.f32.mrf.mxu0
      %v568 = vadd.f32 %v272, %v567
      %v569 = vpop.f32.mrf.mxu0
      %v570 = vpop.f32.mrf.mxu0
      %v571 = vadd.f32 %v272, %v570
      %v572 = vpop.f32.mrf.mxu0
      %573 = vmatprep.mubr.bf16.mxu0 0
      %574 = vmatmul.mubr.bf16.gmra.mxu0 %v419
      %v575 = vpop.f32.mrf.mxu0
      %v576 = vadd.f32 %v272, %v575
      %v577 = vpop.f32.mrf.mxu0
      %v578 = vpop.f32.mrf.mxu0
      %v579 = vadd.f32 %v272, %v578
      %v580 = vpop.f32.mrf.mxu0
      %581 = vdwg.mxu0
      %v582 = vmax.f32 %v456, 0.0
      %v583 = vmax.f32 %v459, 0.0
      %v584 = vmax.f32 %v464, 0.0
      %v585 = vmax.f32 %v467, 0.0
      %v586 = vmax.f32 %v472, 0.0
      %v587 = vmax.f32 %v475, 0.0
      %v588 = vmax.f32 %v480, 0.0
      %v589 = vmax.f32 %v483, 0.0
      %v590 = vmax.f32 %v488, 0.0
      %v591 = vmax.f32 %v491, 0.0
      %v592 = vmax.f32 %v496, 0.0
      %v593 = vmax.f32 %v499, 0.0
      %v594 = vmax.f32 %v504, 0.0
      %v595 = vmax.f32 %v507, 0.0
      %v596 = vmax.f32 %v512, 0.0
      %v597 = vmax.f32 %v515, 0.0
      %v598 = vmax.f32 %v520, 0.0
      %v599 = vmax.f32 %v523, 0.0
      %v600 = vmax.f32 %v528, 0.0
      %v601 = vmax.f32 %v531, 0.0
      %v602 = vmax.f32 %v536, 0.0
      %v603 = vmax.f32 %v539, 0.0
      %v604 = vmax.f32 %v544, 0.0
      %v605 = vmax.f32 %v547, 0.0
      %v606 = vmax.f32 %v552, 0.0
      %v607 = vmax.f32 %v555, 0.0
      %v608 = vmax.f32 %v560, 0.0
      %v609 = vmax.f32 %v563, 0.0
      %v610 = vmax.f32 %v568, 0.0
      %v611 = vmax.f32 %v571, 0.0
      %v612 = vmax.f32 %v576, 0.0
      %v613 = vmax.f32 %v579, 0.0
      %v614 = vld [vmem:[%s3] sm:$0x1]
      %v616 = vlaneseq
      %v617 = vshrl.u32 %v616, 7
      %v618 = vsub.s32 0, %v617
      %v619 = vrot.slane %v614, %v618
      %v621 = vmul.f32 %v582, %v619
      %v622 = vmul.f32 %v583, %v619
      %v623 = vmul.f32 %v584, %v619
      %v624 = vmul.f32 %v585, %v619
      %v625 = vmul.f32 %v586, %v619
      %v626 = vmul.f32 %v587, %v619
      %v627 = vmul.f32 %v588, %v619
      %v628 = vmul.f32 %v589, %v619
      %v629 = vmul.f32 %v590, %v619
      %v630 = vmul.f32 %v591, %v619
      %v631 = vmul.f32 %v592, %v619
      %v632 = vmul.f32 %v593, %v619
      %v633 = vmul.f32 %v594, %v619
      %v634 = vmul.f32 %v595, %v619
      %v635 = vmul.f32 %v596, %v619
      %v636 = vmul.f32 %v597, %v619
      %v637 = vmul.f32 %v598, %v619
      %v638 = vmul.f32 %v599, %v619
      %v639 = vmul.f32 %v600, %v619
      %v640 = vmul.f32 %v601, %v619
      %v641 = vmul.f32 %v602, %v619
      %v642 = vmul.f32 %v603, %v619
      %v643 = vmul.f32 %v604, %v619
      %v644 = vmul.f32 %v605, %v619
      %v645 = vmul.f32 %v606, %v619
      %v646 = vmul.f32 %v607, %v619
      %v647 = vmul.f32 %v608, %v619
      %v648 = vmul.f32 %v609, %v619
      %v649 = vmul.f32 %v610, %v619
      %v650 = vmul.f32 %v611, %v619
      %v651 = vmul.f32 %v612, %v619
      %v652 = vmul.f32 %v613, %v619
      %v653 = vld [vmem:[%s4] sm:$0x1]
      %v655 = vlaneseq
      %v656 = vshrl.u32 %v655, 7
      %v657 = vsub.s32 0, %v656
      %v658 = vrot.slane %v653, %v657
      %v660 = vadd.f32 %v621, %v658
      %v661 = vadd.f32 %v622, %v658
      %v662 = vadd.f32 %v623, %v658
      %v663 = vadd.f32 %v624, %v658
      %v664 = vadd.f32 %v625, %v658
      %v665 = vadd.f32 %v626, %v658
      %v666 = vadd.f32 %v627, %v658
      %v667 = vadd.f32 %v628, %v658
      %v668 = vadd.f32 %v629, %v658
      %v669 = vadd.f32 %v630, %v658
      %v670 = vadd.f32 %v631, %v658
      %v671 = vadd.f32 %v632, %v658
      %v672 = vadd.f32 %v633, %v658
      %v673 = vadd.f32 %v634, %v658
      %v674 = vadd.f32 %v635, %v658
      %v675 = vadd.f32 %v636, %v658
      %v676 = vadd.f32 %v637, %v658
      %v677 = vadd.f32 %v638, %v658
      %v678 = vadd.f32 %v639, %v658
      %v679 = vadd.f32 %v640, %v658
      %v680 = vadd.f32 %v641, %v658
      %v681 = vadd.f32 %v642, %v658
      %v682 = vadd.f32 %v643, %v658
      %v683 = vadd.f32 %v644, %v658
      %v684 = vadd.f32 %v645, %v658
      %v685 = vadd.f32 %v646, %v658
      %v686 = vadd.f32 %v647, %v658
      %v687 = vadd.f32 %v648, %v658
      %v688 = vadd.f32 %v649, %v658
      %v689 = vadd.f32 %v650, %v658
      %v690 = vadd.f32 %v651, %v658
      %v691 = vadd.f32 %v652, %v658
      %692 = vst [vmem:[%s226] sm:$0xff] %v660
      %693 = vst [vmem:[%s226 + $0x8] sm:$0xff] %v661
      %694 = vst [vmem:[%s226 + $0x10] sm:$0xff] %v662
      %695 = vst [vmem:[%s226 + $0x18] sm:$0xff] %v663
      %696 = vst [vmem:[%s226 + $0x20] sm:$0xff] %v664
      %697 = vst [vmem:[%s226 + $0x28] sm:$0xff] %v665
      %698 = vst [vmem:[%s226 + $0x30] sm:$0xff] %v666
      %699 = vst [vmem:[%s226 + $0x38] sm:$0xff] %v667
      %700 = vst [vmem:[%s226 + $0x40] sm:$0xff] %v668
      %701 = vst [vmem:[%s226 + $0x48] sm:$0xff] %v669
      %702 = vst [vmem:[%s226 + $0x50] sm:$0xff] %v670
      %703 = vst [vmem:[%s226 + $0x58] sm:$0xff] %v671
      %704 = vst [vmem:[%s226 + $0x60] sm:$0xff] %v672
      %705 = vst [vmem:[%s226 + $0x68] sm:$0xff] %v673
      %706 = vst [vmem:[%s226 + $0x70] sm:$0xff] %v674
      %707 = vst [vmem:[%s226 + $0x78] sm:$0xff] %v675
      %708 = vst [vmem:[%s226 + $0x80] sm:$0xff] %v676
      %709 = vst [vmem:[%s226 + $0x88] sm:$0xff] %v677
      %710 = vst [vmem:[%s226 + $0x90] sm:$0xff] %v678
      %711 = vst [vmem:[%s226 + $0x98] sm:$0xff] %v679
      %712 = vst [vmem:[%s226 + $0xa0] sm:$0xff] %v680
      %713 = vst [vmem:[%s226 + $0xa8] sm:$0xff] %v681
      %714 = vst [vmem:[%s226 + $0xb0] sm:$0xff] %v682
      %715 = vst [vmem:[%s226 + $0xb8] sm:$0xff] %v683
      %716 = vst [vmem:[%s226 + $0xc0] sm:$0xff] %v684
      %717 = vst [vmem:[%s226 + $0xc8] sm:$0xff] %v685
      %718 = vst [vmem:[%s226 + $0xd0] sm:$0xff] %v686
      %719 = vst [vmem:[%s226 + $0xd8] sm:$0xff] %v687
      %720 = vst [vmem:[%s226 + $0xe0] sm:$0xff] %v688
      %721 = vst [vmem:[%s226 + $0xe8] sm:$0xff] %v689
      %722 = vst [vmem:[%s226 + $0xf0] sm:$0xff] %v690
      %723 = vst [vmem:[%s226 + $0xf8] sm:$0xff] %v691
      %s724 = smul.u32 32, %s16
      %p725 = scmp.lt.s32.totalorder %s724, 63
      %s726 = scalar_select %p725, %s724, 63
      %s727 = smul.addr %s726, 8
      %s728 = scalar_lea.vmem %s5, %s727
      // Predicated region
      $region41: #{network_forward.31} parent=39 // pred_check
        %p729 = pneg %p144
      $region42: #{network_forward.31} parent=39 // pred_check_branch
        %731 = sbr.rel (%p729) target = $region44
      $region43: #{network_forward.31} parent=39 // pred_region
        %s732 = smul.u32 32, %s16
      $region44: #{network_forward.31} parent=39 // pred_fallthru
        _
    $region40: #{network_forward.31} parent=5 // pred_fallthru
      _
    %p733 = scmp.le.s32.totalorder 2, %s11
    // Predicated region
    $region45: #{network_forward.31} parent=5 // pred_check
      %p734 = pneg %p733
    $region46: #{network_forward.31} parent=5 // pred_check_branch
      %736 = sbr.rel (%p734) target = $region48
    $region47: #{network_forward.31} parent=5 // pred_region
      %s737 = ssub.s32 %s11, 2
      // Predicated region
      $region49: #{network_forward.31} parent=47 // pred_check
        %p738 = pneg %p150
      $region50: #{network_forward.31} parent=47 // pred_check_branch
        %740 = sbr.rel (%p738) target = $region52
      $region51: #{network_forward.31} parent=47 // pred_region
        %s741 = smul.u32 32, %s17
        %p742 = scmp.lt.s32.totalorder %s741, 63
        %s743 = scalar_select %p742, %s741, 63
        %s744 = smul.addr %s743, 8
        %s745 = scalar_lea.vmem %s5, %s744
      $region52: #{network_forward.31} parent=47 // pred_fallthru
        _
    $region48: #{network_forward.31} parent=5 // pred_fallthru
      _
  $region6: #{network_forward.31} parent=0 // loop_footer
    %s15 = sadd.s32 1, %s11
  $region7: #{network_forward.31} parent=0 // loop_footer_branch
    %10 = sbr.rel target = $region3
  $region8: #{network_forward.31} parent=0 // loop_exit
    _

// kernel: network_forward.32
$region0: #{network_forward.32}
  #allocation0 [shape = 'u32[]', space=smem, size = 0x4, offset = 0x4, fixed_abs, tag = 'smem constant byte address 0x4 - core index']
  #allocation1 [shape = 'u32[144,128]{1,0:T(1,128)}', space=vmem, size = 0x12000, scoped, tag = 'internal scratch']
  %s0 = inlined_call_operand.vmem [shape: bf16[128,256], index: 0, kind: input, shape index: {}]
  %s1 = inlined_call_operand.vmem [shape: bf16[256,128], index: 1, kind: input, shape index: {}]
  %s2 = inlined_call_operand.vmem [shape: f32[1,128], index: 2, kind: input, shape index: {}]
  %s3 = inlined_call_operand.vmem [shape: f32[1,128], index: 3, kind: input, shape index: {}]
  %s4 = inlined_call_operand.vmem [shape: f32[1,128], index: 4, kind: input, shape index: {}]
  %s5 = inlined_call_operand.vmem [shape: f32[128,128], index: 5, kind: output, shape index: {}]
  %s6 = sld [smem:[#allocation0]]
  $region30: #{network_forward.32} parent=0
    _
  %s8 = ssub.s32 1, %s6
  %s9 = scalar_select 0, %s8, %s6
  // Predicated region
  $region2: #{network_forward.32} parent=0 // pred_check
    _
  $region3: #{network_forward.32} parent=0 // pred_check_branch
    %11 = sbr.rel (0) target = $region5
  $region4: #{network_forward.32} parent=0 // pred_region
    _
  $region5: #{network_forward.32} parent=0 // pred_fallthru
    _
  // Predicated region
  $region6: #{network_forward.32} parent=0 // pred_check
    _
  $region7: #{network_forward.32} parent=0 // pred_check_branch
    %13 = sbr.rel (0) target = $region9
  $region8: #{network_forward.32} parent=0 // pred_region
    _
  $region9: #{network_forward.32} parent=0 // pred_fallthru
    _
  // Predicated region
  $region10: #{network_forward.32} parent=0 // pred_check
    _
  $region11: #{network_forward.32} parent=0 // pred_check_branch
    %15 = sbr.rel (0) target = $region13
  $region12: #{network_forward.32} parent=0 // pred_region
    _
  $region13: #{network_forward.32} parent=0 // pred_fallthru
    _
  // Predicated region
  $region14: #{network_forward.32} parent=0 // pred_check
    _
  $region15: #{network_forward.32} parent=0 // pred_check_branch
    %17 = sbr.rel (0) target = $region17
  $region16: #{network_forward.32} parent=0 // pred_region
    _
  $region17: #{network_forward.32} parent=0 // pred_fallthru
    _
  // Predicated region
  $region18: #{network_forward.32} parent=0 // pred_check
    _
  $region19: #{network_forward.32} parent=0 // pred_check_branch
    %19 = sbr.rel (0) target = $region21
  $region20: #{network_forward.32} parent=0 // pred_region
    _
  $region21: #{network_forward.32} parent=0 // pred_fallthru
    _
  %v21 = vld [vmem:[%s0] sm:$0xff]
  %v22 = vld [vmem:[%s0 + $0x8] sm:$0xff]
  %v23 = vld [vmem:[%s0 + $0x10] sm:$0xff]
  %v24 = vld [vmem:[%s0 + $0x18] sm:$0xff]
  %v25 = vld [vmem:[%s0 + $0x20] sm:$0xff]
  %v26 = vld [vmem:[%s0 + $0x28] sm:$0xff]
  %v27 = vld [vmem:[%s0 + $0x30] sm:$0xff]
  %v28 = vld [vmem:[%s0 + $0x38] sm:$0xff]
  %v29 = vld [vmem:[%s0 + $0x40] sm:$0xff]
  %v30 = vld [vmem:[%s0 + $0x48] sm:$0xff]
  %v31 = vld [vmem:[%s0 + $0x50] sm:$0xff]
  %v32 = vld [vmem:[%s0 + $0x58] sm:$0xff]
  %v33 = vld [vmem:[%s0 + $0x60] sm:$0xff]
  %v34 = vld [vmem:[%s0 + $0x68] sm:$0xff]
  %v35 = vld [vmem:[%s0 + $0x70] sm:$0xff]
  %v36 = vld [vmem:[%s0 + $0x78] sm:$0xff]
  %v37 = vld [vmem:[%s1] sm:$0xf]
  %v38 = vld [vmem:[%s1 + $0x4] sm:$0xf]
  %v39 = vld [vmem:[%s1 + $0x8] sm:$0xf]
  %v40 = vld [vmem:[%s1 + $0xc] sm:$0xf]
  %v41 = vld [vmem:[%s1 + $0x10] sm:$0xf]
  %v42 = vld [vmem:[%s1 + $0x14] sm:$0xf]
  %v43 = vld [vmem:[%s1 + $0x18] sm:$0xf]
  %v44 = vld [vmem:[%s1 + $0x1c] sm:$0xf]
  %v45 = vld [vmem:[%s1 + $0x20] sm:$0xf]
  %v46 = vld [vmem:[%s1 + $0x24] sm:$0xf]
  %v47 = vld [vmem:[%s1 + $0x28] sm:$0xf]
  %v48 = vld [vmem:[%s1 + $0x2c] sm:$0xf]
  %v49 = vld [vmem:[%s1 + $0x30] sm:$0xf]
  %v50 = vld [vmem:[%s1 + $0x34] sm:$0xf]
  %v51 = vld [vmem:[%s1 + $0x38] sm:$0xf]
  %v52 = vld [vmem:[%s1 + $0x3c] sm:$0xf]
  %v53 = vld [vmem:[%s1 + $0x40] sm:$0xf]
  %v54 = vld [vmem:[%s1 + $0x44] sm:$0xf]
  %v55 = vld [vmem:[%s1 + $0x48] sm:$0xf]
  %v56 = vld [vmem:[%s1 + $0x4c] sm:$0xf]
  %v57 = vld [vmem:[%s1 + $0x50] sm:$0xf]
  %v58 = vld [vmem:[%s1 + $0x54] sm:$0xf]
  %v59 = vld [vmem:[%s1 + $0x58] sm:$0xf]
  %v60 = vld [vmem:[%s1 + $0x5c] sm:$0xf]
  %v61 = vld [vmem:[%s1 + $0x60] sm:$0xf]
  %v62 = vld [vmem:[%s1 + $0x64] sm:$0xf]
  %v63 = vld [vmem:[%s1 + $0x68] sm:$0xf]
  %v64 = vld [vmem:[%s1 + $0x6c] sm:$0xf]
  %v65 = vld [vmem:[%s1 + $0x70] sm:$0xf]
  %v66 = vld [vmem:[%s1 + $0x74] sm:$0xf]
  %v67 = vld [vmem:[%s1 + $0x78] sm:$0xf]
  %v68 = vld [vmem:[%s1 + $0x7c] sm:$0xf]
  %v69 = vld [vmem:[%s2] sm:$0x1]
  %v71 = vlaneseq
  %v72 = vshrl.u32 %v71, 7
  %v73 = vsub.s32 0, %v72
  %v74 = vrot.slane %v69, %v73
  %v92 = vunpack.c.l.b16 %v21
  %v93 = vunpack.c.h.b16 %v21
  %v94 = vunpack.c.l.b16 %v22
  %v95 = vunpack.c.h.b16 %v22
  %v96 = vunpack.c.l.b16 %v23
  %v97 = vunpack.c.h.b16 %v23
  %v98 = vunpack.c.l.b16 %v24
  %v99 = vunpack.c.h.b16 %v24
  %v100 = vunpack.c.l.b16 %v25
  %v101 = vunpack.c.h.b16 %v25
  %v102 = vunpack.c.l.b16 %v26
  %v103 = vunpack.c.h.b16 %v26
  %v104 = vunpack.c.l.b16 %v27
  %v105 = vunpack.c.h.b16 %v27
  %v106 = vunpack.c.l.b16 %v28
  %v107 = vunpack.c.h.b16 %v28
  %v108 = vunpack.c.l.b16 %v29
  %v109 = vunpack.c.h.b16 %v29
  %v110 = vunpack.c.l.b16 %v30
  %v111 = vunpack.c.h.b16 %v30
  %v112 = vunpack.c.l.b16 %v31
  %v113 = vunpack.c.h.b16 %v31
  %v114 = vunpack.c.l.b16 %v32
  %v115 = vunpack.c.h.b16 %v32
  %v116 = vunpack.c.l.b16 %v33
  %v117 = vunpack.c.h.b16 %v33
  %v118 = vunpack.c.l.b16 %v34
  %v119 = vunpack.c.h.b16 %v34
  %v120 = vunpack.c.l.b16 %v35
  %v121 = vunpack.c.h.b16 %v35
  %v122 = vunpack.c.l.b16 %v36
  %v123 = vunpack.c.h.b16 %v36
  %v124 = vpack.c.b16 %v94, %v92
  %v125 = vpack.c.b16 %v95, %v93
  %v126 = vpack.c.b16 %v98, %v96
  %v127 = vpack.c.b16 %v99, %v97
  %v128 = vpack.c.b16 %v102, %v100
  %v129 = vpack.c.b16 %v103, %v101
  %v130 = vpack.c.b16 %v106, %v104
  %v131 = vpack.c.b16 %v107, %v105
  %v132 = vpack.c.b16 %v110, %v108
  %v133 = vpack.c.b16 %v111, %v109
  %v134 = vpack.c.b16 %v114, %v112
  %v135 = vpack.c.b16 %v115, %v113
  %v136 = vpack.c.b16 %v118, %v116
  %v137 = vpack.c.b16 %v119, %v117
  %v138 = vpack.c.b16 %v122, %v120
  %v139 = vpack.c.b16 %v123, %v121
  %v188 = vunpack.c.l.b16 %v37
  %v189 = vunpack.c.l.b16 %v38
  %v190 = vunpack.c.l.b16 %v39
  %v191 = vunpack.c.l.b16 %v40
  %v192 = vunpack.c.l.b16 %v41
  %v193 = vunpack.c.l.b16 %v42
  %v194 = vunpack.c.l.b16 %v43
  %v195 = vunpack.c.l.b16 %v44
  %v196 = vunpack.c.l.b16 %v45
  %v197 = vunpack.c.l.b16 %v46
  %v198 = vunpack.c.l.b16 %v47
  %v199 = vunpack.c.l.b16 %v48
  %v200 = vunpack.c.l.b16 %v49
  %v201 = vunpack.c.l.b16 %v50
  %v202 = vunpack.c.l.b16 %v51
  %v203 = vunpack.c.l.b16 %v52
  %v204 = vunpack.c.l.b16 %v53
  %v205 = vunpack.c.l.b16 %v54
  %v206 = vunpack.c.l.b16 %v55
  %v207 = vunpack.c.l.b16 %v56
  %v208 = vunpack.c.l.b16 %v57
  %v209 = vunpack.c.l.b16 %v58
  %v210 = vunpack.c.l.b16 %v59
  %v211 = vunpack.c.l.b16 %v60
  %v212 = vunpack.c.l.b16 %v61
  %v213 = vunpack.c.l.b16 %v62
  %v214 = vunpack.c.l.b16 %v63
  %v215 = vunpack.c.l.b16 %v64
  %v216 = vunpack.c.l.b16 %v65
  %v217 = vunpack.c.l.b16 %v66
  %v218 = vunpack.c.l.b16 %v67
  %v219 = vunpack.c.l.b16 %v68
  %v220 = vpack.c.b16 %v189, %v188
  %v221 = vpack.c.b16 %v191, %v190
  %v222 = vpack.c.b16 %v193, %v192
  %v223 = vpack.c.b16 %v195, %v194
  %v224 = vpack.c.b16 %v197, %v196
  %v225 = vpack.c.b16 %v199, %v198
  %v226 = vpack.c.b16 %v201, %v200
  %v227 = vpack.c.b16 %v203, %v202
  %v228 = vpack.c.b16 %v205, %v204
  %v229 = vpack.c.b16 %v207, %v206
  %v230 = vpack.c.b16 %v209, %v208
  %v231 = vpack.c.b16 %v211, %v210
  %v232 = vpack.c.b16 %v213, %v212
  %v233 = vpack.c.b16 %v215, %v214
  %v234 = vpack.c.b16 %v217, %v216
  %v235 = vpack.c.b16 %v219, %v218
  %252 = vmatprep.subr.bf16.mxu0 0
  %253 = vmatpush1.bf16.msra.mxu0 %v227
  %254 = vmatprep.subr.bf16.mxu0 0
  %255 = vmatpush1.bf16.msra.mxu0 %v226
  %256 = vmatprep.subr.bf16.mxu0 0
  %257 = vmatpush1.bf16.msra.mxu0 %v225
  %258 = vmatprep.subr.bf16.mxu0 0
  %259 = vmatpush1.bf16.msra.mxu0 %v224
  %260 = vmatprep.subr.bf16.mxu0 0
  %261 = vmatpush1.bf16.msra.mxu0 %v223
  %262 = vmatprep.subr.bf16.mxu0 0
  %263 = vmatpush1.bf16.msra.mxu0 %v222
  %264 = vmatprep.subr.bf16.mxu0 0
  %265 = vmatpush1.bf16.msra.mxu0 %v221
  %266 = vmatprep.subr.bf16.mxu0 0
  %267 = vmatpush1.bf16.msra.mxu0 %v220
  %268 = vmatprep.subr.bf16.mxu0 0
  %269 = vmatpush2.bf16.msra.mxu0 %v235
  %270 = vmatprep.subr.bf16.mxu0 0
  %271 = vmatpush2.bf16.msra.mxu0 %v234
  %272 = vmatprep.subr.bf16.mxu0 0
  %273 = vmatpush2.bf16.msra.mxu0 %v233
  %274 = vmatprep.subr.bf16.mxu0 0
  %275 = vmatpush2.bf16.msra.mxu0 %v232
  %276 = vmatprep.subr.bf16.mxu0 0
  %277 = vmatpush2.bf16.msra.mxu0 %v231
  %278 = vmatprep.subr.bf16.mxu0 0
  %279 = vmatpush2.bf16.msra.mxu0 %v230
  %280 = vmatprep.subr.bf16.mxu0 0
  %281 = vmatpush2.bf16.msra.mxu0 %v229
  %282 = vmatprep.subr.bf16.mxu0 0
  %283 = vmatpush2.bf16.msra.mxu0 %v228
  %284 = vmatprep.mubr.bf16.mxu0 %v125
  %285 = vmatmul.mubr.bf16.gmra.mxu0 %v124
  %v286 = vpop.f32.mrf.mxu0
  %v287 = vadd.f32 %v74, %v286
  %v288 = vpop.f32.mrf.mxu0
  %v289 = vpop.f32.mrf.mxu0
  %v290 = vadd.f32 %v74, %v289
  %v291 = vpop.f32.mrf.mxu0
  %292 = vmatprep.mubr.bf16.mxu0 %v127
  %293 = vmatmul.mubr.bf16.gmra.mxu0 %v126
  %v294 = vpop.f32.mrf.mxu0
  %v295 = vadd.f32 %v74, %v294
  %v296 = vpop.f32.mrf.mxu0
  %v297 = vpop.f32.mrf.mxu0
  %v298 = vadd.f32 %v74, %v297
  %v299 = vpop.f32.mrf.mxu0
  %300 = vmatprep.mubr.bf16.mxu0 %v129
  %301 = vmatmul.mubr.bf16.gmra.mxu0 %v128
  %v302 = vpop.f32.mrf.mxu0
  %v303 = vadd.f32 %v74, %v302
  %v304 = vpop.f32.mrf.mxu0
  %v305 = vpop.f32.mrf.mxu0
  %v306 = vadd.f32 %v74, %v305
  %v307 = vpop.f32.mrf.mxu0
  %308 = vmatprep.mubr.bf16.mxu0 %v131
  %309 = vmatmul.mubr.bf16.gmra.mxu0 %v130
  %v310 = vpop.f32.mrf.mxu0
  %v311 = vadd.f32 %v74, %v310
  %v312 = vpop.f32.mrf.mxu0
  %v313 = vpop.f32.mrf.mxu0
  %v314 = vadd.f32 %v74, %v313
  %v315 = vpop.f32.mrf.mxu0
  %316 = vmatprep.mubr.bf16.mxu0 %v133
  %317 = vmatmul.mubr.bf16.gmra.mxu0 %v132
  %v318 = vpop.f32.mrf.mxu0
  %v319 = vadd.f32 %v74, %v318
  %v320 = vpop.f32.mrf.mxu0
  %v321 = vpop.f32.mrf.mxu0
  %v322 = vadd.f32 %v74, %v321
  %v323 = vpop.f32.mrf.mxu0
  %324 = vmatprep.mubr.bf16.mxu0 %v135
  %325 = vmatmul.mubr.bf16.gmra.mxu0 %v134
  %v326 = vpop.f32.mrf.mxu0
  %v327 = vadd.f32 %v74, %v326
  %v328 = vpop.f32.mrf.mxu0
  %v329 = vpop.f32.mrf.mxu0
  %v330 = vadd.f32 %v74, %v329
  %v331 = vpop.f32.mrf.mxu0
  %332 = vmatprep.mubr.bf16.mxu0 %v137
  %333 = vmatmul.mubr.bf16.gmra.mxu0 %v136
  %v334 = vpop.f32.mrf.mxu0
  %v335 = vadd.f32 %v74, %v334
  %v336 = vpop.f32.mrf.mxu0
  %v337 = vpop.f32.mrf.mxu0
  %v338 = vadd.f32 %v74, %v337
  %v339 = vpop.f32.mrf.mxu0
  %340 = vmatprep.mubr.bf16.mxu0 %v139
  %341 = vmatmul.mubr.bf16.gmra.mxu0 %v138
  %v342 = vpop.f32.mrf.mxu0
  %v343 = vadd.f32 %v74, %v342
  %v344 = vpop.f32.mrf.mxu0
  %v345 = vpop.f32.mrf.mxu0
  %v346 = vadd.f32 %v74, %v345
  %v347 = vpop.f32.mrf.mxu0
  %348 = vdwg.mxu0
  %v349 = vmax.f32 %v287, 0.0
  %v350 = vmax.f32 %v290, 0.0
  %v351 = vmax.f32 %v295, 0.0
  %v352 = vmax.f32 %v298, 0.0
  %v353 = vmax.f32 %v303, 0.0
  %v354 = vmax.f32 %v306, 0.0
  %v355 = vmax.f32 %v311, 0.0
  %v356 = vmax.f32 %v314, 0.0
  %v357 = vmax.f32 %v319, 0.0
  %v358 = vmax.f32 %v322, 0.0
  %v359 = vmax.f32 %v327, 0.0
  %v360 = vmax.f32 %v330, 0.0
  %v361 = vmax.f32 %v335, 0.0
  %v362 = vmax.f32 %v338, 0.0
  %v363 = vmax.f32 %v343, 0.0
  %v364 = vmax.f32 %v346, 0.0
  %v365 = vld [vmem:[%s3] sm:$0x1]
  %v367 = vlaneseq
  %v368 = vshrl.u32 %v367, 7
  %v369 = vsub.s32 0, %v368
  %v370 = vrot.slane %v365, %v369
  %v372 = vmul.f32 %v349, %v370
  %v373 = vmul.f32 %v350, %v370
  %v374 = vmul.f32 %v351, %v370
  %v375 = vmul.f32 %v352, %v370
  %v376 = vmul.f32 %v353, %v370
  %v377 = vmul.f32 %v354, %v370
  %v378 = vmul.f32 %v355, %v370
  %v379 = vmul.f32 %v356, %v370
  %v380 = vmul.f32 %v357, %v370
  %v381 = vmul.f32 %v358, %v370
  %v382 = vmul.f32 %v359, %v370
  %v383 = vmul.f32 %v360, %v370
  %v384 = vmul.f32 %v361, %v370
  %v385 = vmul.f32 %v362, %v370
  %v386 = vmul.f32 %v363, %v370
  %v387 = vmul.f32 %v364, %v370
  %v388 = vld [vmem:[%s4] sm:$0x1]
  %v390 = vlaneseq
  %v391 = vshrl.u32 %v390, 7
  %v392 = vsub.s32 0, %v391
  %v393 = vrot.slane %v388, %v392
  %v395 = vadd.f32 %v372, %v393
  %v396 = vadd.f32 %v373, %v393
  %v397 = vadd.f32 %v374, %v393
  %v398 = vadd.f32 %v375, %v393
  %v399 = vadd.f32 %v376, %v393
  %v400 = vadd.f32 %v377, %v393
  %v401 = vadd.f32 %v378, %v393
  %v402 = vadd.f32 %v379, %v393
  %v403 = vadd.f32 %v380, %v393
  %v404 = vadd.f32 %v381, %v393
  %v405 = vadd.f32 %v382, %v393
  %v406 = vadd.f32 %v383, %v393
  %v407 = vadd.f32 %v384, %v393
  %v408 = vadd.f32 %v385, %v393
  %v409 = vadd.f32 %v386, %v393
  %v410 = vadd.f32 %v387, %v393
  %411 = vst [vmem:[%s5] sm:$0xff] %v395
  %412 = vst [vmem:[%s5 + $0x8] sm:$0xff] %v396
  %413 = vst [vmem:[%s5 + $0x10] sm:$0xff] %v397
  %414 = vst [vmem:[%s5 + $0x18] sm:$0xff] %v398
  %415 = vst [vmem:[%s5 + $0x20] sm:$0xff] %v399
  %416 = vst [vmem:[%s5 + $0x28] sm:$0xff] %v400
  %417 = vst [vmem:[%s5 + $0x30] sm:$0xff] %v401
  %418 = vst [vmem:[%s5 + $0x38] sm:$0xff] %v402
  %419 = vst [vmem:[%s5 + $0x40] sm:$0xff] %v403
  %420 = vst [vmem:[%s5 + $0x48] sm:$0xff] %v404
  %421 = vst [vmem:[%s5 + $0x50] sm:$0xff] %v405
  %422 = vst [vmem:[%s5 + $0x58] sm:$0xff] %v406
  %423 = vst [vmem:[%s5 + $0x60] sm:$0xff] %v407
  %424 = vst [vmem:[%s5 + $0x68] sm:$0xff] %v408
  %425 = vst [vmem:[%s5 + $0x70] sm:$0xff] %v409
  %426 = vst [vmem:[%s5 + $0x78] sm:$0xff] %v410
  // Predicated region
  $region22: #{network_forward.32} parent=0 // pred_check
    _
  $region23: #{network_forward.32} parent=0 // pred_check_branch
    %428 = sbr.rel (0) target = $region25
  $region24: #{network_forward.32} parent=0 // pred_region
    _
  $region25: #{network_forward.32} parent=0 // pred_fallthru
    _
  // Predicated region
  $region26: #{network_forward.32} parent=0 // pred_check
    _
  $region27: #{network_forward.32} parent=0 // pred_check_branch
    %430 = sbr.rel (0) target = $region29
  $region28: #{network_forward.32} parent=0 // pred_region
    _
  $region29: #{network_forward.32} parent=0 // pred_fallthru
    _

// kernel: network_forward.33
$region0: #{network_forward.33}
  #allocation0 [shape = 'u32[]', space=smem, size = 0x4, offset = 0x4, fixed_abs, tag = 'smem constant byte address 0x4 - core index']
  #allocation1 [shape = 'u32[144,128]{1,0:T(1,128)}', space=vmem, size = 0x12000, scoped, tag = 'internal scratch']
  %s0 = inlined_call_operand.vmem [shape: bf16[128,288], index: 0, kind: input, shape index: {}]
  %s1 = inlined_call_operand.vmem [shape: bf16[288,128], index: 1, kind: input, shape index: {}]
  %s2 = inlined_call_operand.vmem [shape: f32[1,128], index: 2, kind: input, shape index: {}]
  %s3 = inlined_call_operand.vmem [shape: f32[1,128], index: 3, kind: input, shape index: {}]
  %s4 = inlined_call_operand.vmem [shape: f32[1,128], index: 4, kind: input, shape index: {}]
  %s5 = inlined_call_operand.vmem [shape: f32[128,128], index: 5, kind: output, shape index: {0}]
  %s6 = inlined_call_operand.vmem [shape: f32[128,128], index: 6, kind: output, shape index: {1}]
  %7 = xla_tuple %s5, %s6
  %s8 = sld [smem:[#allocation0]]
  $region38: #{network_forward.33} parent=0
    _
  %s10 = ssub.s32 1, %s8
  %s11 = scalar_select 0, %s10, %s8
  // Predicated region
  $region2: #{network_forward.33} parent=0 // pred_check
    _
  $region3: #{network_forward.33} parent=0 // pred_check_branch
    %13 = sbr.rel (0) target = $region5
  $region4: #{network_forward.33} parent=0 // pred_region
    _
  $region5: #{network_forward.33} parent=0 // pred_fallthru
    _
  // Predicated region
  $region6: #{network_forward.33} parent=0 // pred_check
    _
  $region7: #{network_forward.33} parent=0 // pred_check_branch
    %15 = sbr.rel (0) target = $region9
  $region8: #{network_forward.33} parent=0 // pred_region
    _
  $region9: #{network_forward.33} parent=0 // pred_fallthru
    _
  // Predicated region
  $region10: #{network_forward.33} parent=0 // pred_check
    _
  $region11: #{network_forward.33} parent=0 // pred_check_branch
    %17 = sbr.rel (0) target = $region13
  $region12: #{network_forward.33} parent=0 // pred_region
    _
  $region13: #{network_forward.33} parent=0 // pred_fallthru
    _
  // Predicated region
  $region14: #{network_forward.33} parent=0 // pred_check
    _
  $region15: #{network_forward.33} parent=0 // pred_check_branch
    %19 = sbr.rel (0) target = $region17
  $region16: #{network_forward.33} parent=0 // pred_region
    _
  $region17: #{network_forward.33} parent=0 // pred_fallthru
    _
  // Predicated region
  $region18: #{network_forward.33} parent=0 // pred_check
    _
  $region19: #{network_forward.33} parent=0 // pred_check_branch
    %21 = sbr.rel (0) target = $region21
  $region20: #{network_forward.33} parent=0 // pred_region
    _
  $region21: #{network_forward.33} parent=0 // pred_fallthru
    _
  %v23 = vld [vmem:[%s0] sm:$0xff]
  %v24 = vld [vmem:[%s0 + $0x8] sm:$0xf]
  %v25 = vld [vmem:[%s0 + $0xc] sm:$0xff]
  %v26 = vld [vmem:[%s0 + $0x14] sm:$0xf]
  %v27 = vld [vmem:[%s0 + $0x18] sm:$0xff]
  %v28 = vld [vmem:[%s0 + $0x20] sm:$0xf]
  %v29 = vld [vmem:[%s0 + $0x24] sm:$0xff]
  %v30 = vld [vmem:[%s0 + $0x2c] sm:$0xf]
  %v31 = vld [vmem:[%s0 + $0x30] sm:$0xff]
  %v32 = vld [vmem:[%s0 + $0x38] sm:$0xf]
  %v33 = vld [vmem:[%s0 + $0x3c] sm:$0xff]
  %v34 = vld [vmem:[%s0 + $0x44] sm:$0xf]
  %v35 = vld [vmem:[%s0 + $0x48] sm:$0xff]
  %v36 = vld [vmem:[%s0 + $0x50] sm:$0xf]
  %v37 = vld [vmem:[%s0 + $0x54] sm:$0xff]
  %v38 = vld [vmem:[%s0 + $0x5c] sm:$0xf]
  %v39 = vld [vmem:[%s0 + $0x60] sm:$0xff]
  %v40 = vld [vmem:[%s0 + $0x68] sm:$0xf]
  %v41 = vld [vmem:[%s0 + $0x6c] sm:$0xff]
  %v42 = vld [vmem:[%s0 + $0x74] sm:$0xf]
  %v43 = vld [vmem:[%s0 + $0x78] sm:$0xff]
  %v44 = vld [vmem:[%s0 + $0x80] sm:$0xf]
  %v45 = vld [vmem:[%s0 + $0x84] sm:$0xff]
  %v46 = vld [vmem:[%s0 + $0x8c] sm:$0xf]
  %v47 = vld [vmem:[%s0 + $0x90] sm:$0xff]
  %v48 = vld [vmem:[%s0 + $0x98] sm:$0xf]
  %v49 = vld [vmem:[%s0 + $0x9c] sm:$0xff]
  %v50 = vld [vmem:[%s0 + $0xa4] sm:$0xf]
  %v51 = vld [vmem:[%s0 + $0xa8] sm:$0xff]
  %v52 = vld [vmem:[%s0 + $0xb0] sm:$0xf]
  %v53 = vld [vmem:[%s0 + $0xb4] sm:$0xff]
  %v54 = vld [vmem:[%s0 + $0xbc] sm:$0xf]
  %v55 = vld [vmem:[%s1] sm:$0xf]
  %v56 = vld [vmem:[%s1 + $0x4] sm:$0xf]
  %v57 = vld [vmem:[%s1 + $0x8] sm:$0xf]
  %v58 = vld [vmem:[%s1 + $0xc] sm:$0xf]
  %v59 = vld [vmem:[%s1 + $0x10] sm:$0xf]
  %v60 = vld [vmem:[%s1 + $0x14] sm:$0xf]
  %v61 = vld [vmem:[%s1 + $0x18] sm:$0xf]
  %v62 = vld [vmem:[%s1 + $0x1c] sm:$0xf]
  %v63 = vld [vmem:[%s1 + $0x20] sm:$0xf]
  %v64 = vld [vmem:[%s1 + $0x24] sm:$0xf]
  %v65 = vld [vmem:[%s1 + $0x28] sm:$0xf]
  %v66 = vld [vmem:[%s1 + $0x2c] sm:$0xf]
  %v67 = vld [vmem:[%s1 + $0x30] sm:$0xf]
  %v68 = vld [vmem:[%s1 + $0x34] sm:$0xf]
  %v69 = vld [vmem:[%s1 + $0x38] sm:$0xf]
  %v70 = vld [vmem:[%s1 + $0x3c] sm:$0xf]
  %v71 = vld [vmem:[%s1 + $0x40] sm:$0xf]
  %v72 = vld [vmem:[%s1 + $0x44] sm:$0xf]
  %v73 = vld [vmem:[%s1 + $0x48] sm:$0xf]
  %v74 = vld [vmem:[%s1 + $0x4c] sm:$0xf]
  %v75 = vld [vmem:[%s1 + $0x50] sm:$0xf]
  %v76 = vld [vmem:[%s1 + $0x54] sm:$0xf]
  %v77 = vld [vmem:[%s1 + $0x58] sm:$0xf]
  %v78 = vld [vmem:[%s1 + $0x5c] sm:$0xf]
  %v79 = vld [vmem:[%s1 + $0x60] sm:$0xf]
  %v80 = vld [vmem:[%s1 + $0x64] sm:$0xf]
  %v81 = vld [vmem:[%s1 + $0x68] sm:$0xf]
  %v82 = vld [vmem:[%s1 + $0x6c] sm:$0xf]
  %v83 = vld [vmem:[%s1 + $0x70] sm:$0xf]
  %v84 = vld [vmem:[%s1 + $0x74] sm:$0xf]
  %v85 = vld [vmem:[%s1 + $0x78] sm:$0xf]
  %v86 = vld [vmem:[%s1 + $0x7c] sm:$0xf]
  %v87 = vld [vmem:[%s1 + $0x80] sm:$0xf]
  %v88 = vld [vmem:[%s1 + $0x84] sm:$0xf]
  %v89 = vld [vmem:[%s1 + $0x88] sm:$0xf]
  %v90 = vld [vmem:[%s1 + $0x8c] sm:$0xf]
  %v91 = vld [vmem:[%s2] sm:$0x1]
  %v93 = vlaneseq
  %v94 = vshrl.u32 %v93, 7
  %v95 = vsub.s32 0, %v94
  %v96 = vrot.slane %v91, %v95
  %v130 = vunpack.c.l.b16 %v23
  %v131 = vunpack.c.h.b16 %v23
  %v132 = vunpack.c.l.b16 %v24
  %v133 = vunpack.c.l.b16 %v25
  %v134 = vunpack.c.h.b16 %v25
  %v135 = vunpack.c.l.b16 %v26
  %v136 = vunpack.c.l.b16 %v27
  %v137 = vunpack.c.h.b16 %v27
  %v138 = vunpack.c.l.b16 %v28
  %v139 = vunpack.c.l.b16 %v29
  %v140 = vunpack.c.h.b16 %v29
  %v141 = vunpack.c.l.b16 %v30
  %v142 = vunpack.c.l.b16 %v31
  %v143 = vunpack.c.h.b16 %v31
  %v144 = vunpack.c.l.b16 %v32
  %v145 = vunpack.c.l.b16 %v33
  %v146 = vunpack.c.h.b16 %v33
  %v147 = vunpack.c.l.b16 %v34
  %v148 = vunpack.c.l.b16 %v35
  %v149 = vunpack.c.h.b16 %v35
  %v150 = vunpack.c.l.b16 %v36
  %v151 = vunpack.c.l.b16 %v37
  %v152 = vunpack.c.h.b16 %v37
  %v153 = vunpack.c.l.b16 %v38
  %v154 = vunpack.c.l.b16 %v39
  %v155 = vunpack.c.h.b16 %v39
  %v156 = vunpack.c.l.b16 %v40
  %v157 = vunpack.c.l.b16 %v41
  %v158 = vunpack.c.h.b16 %v41
  %v159 = vunpack.c.l.b16 %v42
  %v160 = vunpack.c.l.b16 %v43
  %v161 = vunpack.c.h.b16 %v43
  %v162 = vunpack.c.l.b16 %v44
  %v163 = vunpack.c.l.b16 %v45
  %v164 = vunpack.c.h.b16 %v45
  %v165 = vunpack.c.l.b16 %v46
  %v166 = vunpack.c.l.b16 %v47
  %v167 = vunpack.c.h.b16 %v47
  %v168 = vunpack.c.l.b16 %v48
  %v169 = vunpack.c.l.b16 %v49
  %v170 = vunpack.c.h.b16 %v49
  %v171 = vunpack.c.l.b16 %v50
  %v172 = vunpack.c.l.b16 %v51
  %v173 = vunpack.c.h.b16 %v51
  %v174 = vunpack.c.l.b16 %v52
  %v175 = vunpack.c.l.b16 %v53
  %v176 = vunpack.c.h.b16 %v53
  %v177 = vunpack.c.l.b16 %v54
  %v178 = vpack.c.b16 %v133, %v130
  %v179 = vpack.c.b16 %v134, %v131
  %v180 = vpack.c.b16 %v135, %v132
  %v181 = vpack.c.b16 %v139, %v136
  %v182 = vpack.c.b16 %v140, %v137
  %v183 = vpack.c.b16 %v141, %v138
  %v184 = vpack.c.b16 %v145, %v142
  %v185 = vpack.c.b16 %v146, %v143
  %v186 = vpack.c.b16 %v147, %v144
  %v187 = vpack.c.b16 %v151, %v148
  %v188 = vpack.c.b16 %v152, %v149
  %v189 = vpack.c.b16 %v153, %v150
  %v190 = vpack.c.b16 %v157, %v154
  %v191 = vpack.c.b16 %v158, %v155
  %v192 = vpack.c.b16 %v159, %v156
  %v193 = vpack.c.b16 %v163, %v160
  %v194 = vpack.c.b16 %v164, %v161
  %v195 = vpack.c.b16 %v165, %v162
  %v196 = vpack.c.b16 %v169, %v166
  %v197 = vpack.c.b16 %v170, %v167
  %v198 = vpack.c.b16 %v171, %v168
  %v199 = vpack.c.b16 %v175, %v172
  %v200 = vpack.c.b16 %v176, %v173
  %v201 = vpack.c.b16 %v177, %v174
  %v254 = vunpack.c.l.b16 %v55
  %v255 = vunpack.c.l.b16 %v56
  %v256 = vunpack.c.l.b16 %v57
  %v257 = vunpack.c.l.b16 %v58
  %v258 = vunpack.c.l.b16 %v59
  %v259 = vunpack.c.l.b16 %v60
  %v260 = vunpack.c.l.b16 %v61
  %v261 = vunpack.c.l.b16 %v62
  %v262 = vunpack.c.l.b16 %v63
  %v263 = vunpack.c.l.b16 %v64
  %v264 = vunpack.c.l.b16 %v65
  %v265 = vunpack.c.l.b16 %v66
  %v266 = vunpack.c.l.b16 %v67
  %v267 = vunpack.c.l.b16 %v68
  %v268 = vunpack.c.l.b16 %v69
  %v269 = vunpack.c.l.b16 %v70
  %v270 = vunpack.c.l.b16 %v71
  %v271 = vunpack.c.l.b16 %v72
  %v272 = vunpack.c.l.b16 %v73
  %v273 = vunpack.c.l.b16 %v74
  %v274 = vunpack.c.l.b16 %v75
  %v275 = vunpack.c.l.b16 %v76
  %v276 = vunpack.c.l.b16 %v77
  %v277 = vunpack.c.l.b16 %v78
  %v278 = vunpack.c.l.b16 %v79
  %v279 = vunpack.c.l.b16 %v80
  %v280 = vunpack.c.l.b16 %v81
  %v281 = vunpack.c.l.b16 %v82
  %v282 = vunpack.c.l.b16 %v83
  %v283 = vunpack.c.l.b16 %v84
  %v284 = vunpack.c.l.b16 %v85
  %v285 = vunpack.c.l.b16 %v86
  %v286 = vunpack.c.l.b16 %v87
  %v287 = vunpack.c.l.b16 %v88
  %v288 = vunpack.c.l.b16 %v89
  %v289 = vunpack.c.l.b16 %v90
  %v290 = vpack.c.b16 %v255, %v254
  %v291 = vpack.c.b16 %v257, %v256
  %v292 = vpack.c.b16 %v259, %v258
  %v293 = vpack.c.b16 %v261, %v260
  %v294 = vpack.c.b16 %v263, %v262
  %v295 = vpack.c.b16 %v265, %v264
  %v296 = vpack.c.b16 %v267, %v266
  %v297 = vpack.c.b16 %v269, %v268
  %v298 = vpack.c.b16 %v271, %v270
  %v299 = vpack.c.b16 %v273, %v272
  %v300 = vpack.c.b16 %v275, %v274
  %v301 = vpack.c.b16 %v277, %v276
  %v302 = vpack.c.b16 %v279, %v278
  %v303 = vpack.c.b16 %v281, %v280
  %v304 = vpack.c.b16 %v283, %v282
  %v305 = vpack.c.b16 %v285, %v284
  %v306 = vpack.c.b16 %v287, %v286
  %v307 = vpack.c.b16 %v289, %v288
  %vm326 = vcmask 261120
  %v328 = vsel %vm326, %v180, 0
  %v331 = vsel %vm326, %v183, 0
  %v334 = vsel %vm326, %v186, 0
  %v337 = vsel %vm326, %v189, 0
  %v340 = vsel %vm326, %v192, 0
  %v343 = vsel %vm326, %v195, 0
  %v346 = vsel %vm326, %v198, 0
  %v349 = vsel %vm326, %v201, 0
  %351 = vmatprep.subr.bf16.mxu0 0
  %352 = vmatpush1.bf16.msra.mxu0 %v297
  %353 = vmatprep.subr.bf16.mxu0 0
  %354 = vmatpush1.bf16.msra.mxu0 %v296
  %355 = vmatprep.subr.bf16.mxu0 0
  %356 = vmatpush1.bf16.msra.mxu0 %v295
  %357 = vmatprep.subr.bf16.mxu0 0
  %358 = vmatpush1.bf16.msra.mxu0 %v294
  %359 = vmatprep.subr.bf16.mxu0 0
  %360 = vmatpush1.bf16.msra.mxu0 %v293
  %361 = vmatprep.subr.bf16.mxu0 0
  %362 = vmatpush1.bf16.msra.mxu0 %v292
  %363 = vmatprep.subr.bf16.mxu0 0
  %364 = vmatpush1.bf16.msra.mxu0 %v291
  %365 = vmatprep.subr.bf16.mxu0 0
  %366 = vmatpush1.bf16.msra.mxu0 %v290
  %367 = vmatprep.subr.bf16.mxu0 0
  %368 = vmatpush2.bf16.msra.mxu0 %v305
  %369 = vmatprep.subr.bf16.mxu0 0
  %370 = vmatpush2.bf16.msra.mxu0 %v304
  %371 = vmatprep.subr.bf16.mxu0 0
  %372 = vmatpush2.bf16.msra.mxu0 %v303
  %373 = vmatprep.subr.bf16.mxu0 0
  %374 = vmatpush2.bf16.msra.mxu0 %v302
  %375 = vmatprep.subr.bf16.mxu0 0
  %376 = vmatpush2.bf16.msra.mxu0 %v301
  %377 = vmatprep.subr.bf16.mxu0 0
  %378 = vmatpush2.bf16.msra.mxu0 %v300
  %379 = vmatprep.subr.bf16.mxu0 0
  %380 = vmatpush2.bf16.msra.mxu0 %v299
  %381 = vmatprep.subr.bf16.mxu0 0
  %382 = vmatpush2.bf16.msra.mxu0 %v298
  %383 = vmatprep.mubr.bf16.mxu0 %v179
  %384 = vmatmul.mubr.bf16.gmra.mxu0 %v178
  %v385 = vpop.f32.mrf.mxu0
  %v386 = vadd.f32 %v96, %v385
  %v387 = vpop.f32.mrf.mxu0
  %v388 = vpop.f32.mrf.mxu0
  %v389 = vadd.f32 %v96, %v388
  %v390 = vpop.f32.mrf.mxu0
  %391 = vmatprep.mubr.bf16.mxu0 %v182
  %392 = vmatmul.mubr.bf16.gmra.mxu0 %v181
  %v393 = vpop.f32.mrf.mxu0
  %v394 = vadd.f32 %v96, %v393
  %v395 = vpop.f32.mrf.mxu0
  %v396 = vpop.f32.mrf.mxu0
  %v397 = vadd.f32 %v96, %v396
  %v398 = vpop.f32.mrf.mxu0
  %399 = vmatprep.mubr.bf16.mxu0 %v185
  %400 = vmatmul.mubr.bf16.gmra.mxu0 %v184
  %v401 = vpop.f32.mrf.mxu0
  %v402 = vadd.f32 %v96, %v401
  %v403 = vpop.f32.mrf.mxu0
  %v404 = vpop.f32.mrf.mxu0
  %v405 = vadd.f32 %v96, %v404
  %v406 = vpop.f32.mrf.mxu0
  %407 = vmatprep.mubr.bf16.mxu0 %v188
  %408 = vmatmul.mubr.bf16.gmra.mxu0 %v187
  %v409 = vpop.f32.mrf.mxu0
  %v410 = vadd.f32 %v96, %v409
  %v411 = vpop.f32.mrf.mxu0
  %v412 = vpop.f32.mrf.mxu0
  %v413 = vadd.f32 %v96, %v412
  %v414 = vpop.f32.mrf.mxu0
  %415 = vmatprep.mubr.bf16.mxu0 %v191
  %416 = vmatmul.mubr.bf16.gmra.mxu0 %v190
  %v417 = vpop.f32.mrf.mxu0
  %v418 = vadd.f32 %v96, %v417
  %v419 = vpop.f32.mrf.mxu0
  %v420 = vpop.f32.mrf.mxu0
  %v421 = vadd.f32 %v96, %v420
  %v422 = vpop.f32.mrf.mxu0
  %423 = vmatprep.mubr.bf16.mxu0 %v194
  %424 = vmatmul.mubr.bf16.gmra.mxu0 %v193
  %v425 = vpop.f32.mrf.mxu0
  %v426 = vadd.f32 %v96, %v425
  %v427 = vpop.f32.mrf.mxu0
  %v428 = vpop.f32.mrf.mxu0
  %v429 = vadd.f32 %v96, %v428
  %v430 = vpop.f32.mrf.mxu0
  %431 = vmatprep.mubr.bf16.mxu0 %v197
  %432 = vmatmul.mubr.bf16.gmra.mxu0 %v196
  %v433 = vpop.f32.mrf.mxu0
  %v434 = vadd.f32 %v96, %v433
  %v435 = vpop.f32.mrf.mxu0
  %v436 = vpop.f32.mrf.mxu0
  %v437 = vadd.f32 %v96, %v436
  %v438 = vpop.f32.mrf.mxu0
  %439 = vmatprep.mubr.bf16.mxu0 %v200
  %440 = vmatmul.mubr.bf16.gmra.mxu0 %v199
  %v441 = vpop.f32.mrf.mxu0
  %v442 = vadd.f32 %v96, %v441
  %v443 = vpop.f32.mrf.mxu0
  %v444 = vpop.f32.mrf.mxu0
  %v445 = vadd.f32 %v96, %v444
  %v446 = vpop.f32.mrf.mxu0
  %447 = vdwg.mxu0
  %448 = vmatprep.subr.bf16.mxu0 0
  %449 = vmatpush1.bf16.msra.mxu0 0
  %450 = vmatprep.subr.bf16.mxu0 0
  %451 = vmatpush1.bf16.msra.mxu0 0
  %452 = vmatprep.subr.bf16.mxu0 0
  %453 = vmatpush1.bf16.msra.mxu0 0
  %454 = vmatprep.subr.bf16.mxu0 0
  %455 = vmatpush1.bf16.msra.mxu0 0
  %456 = vmatprep.subr.bf16.mxu0 0
  %457 = vmatpush1.bf16.msra.mxu0 0
  %458 = vmatprep.subr.bf16.mxu0 0
  %459 = vmatpush1.bf16.msra.mxu0 0
  %460 = vmatprep.subr.bf16.mxu0 0
  %461 = vmatpush1.bf16.msra.mxu0 %v307
  %462 = vmatprep.subr.bf16.mxu0 0
  %463 = vmatpush1.bf16.msra.mxu0 %v306
  %464 = vmatprep.subr.bf16.mxu0 0
  %465 = vmatpush2.bf16.msra.mxu0 0
  %466 = vmatprep.subr.bf16.mxu0 0
  %467 = vmatpush2.bf16.msra.mxu0 0
  %468 = vmatprep.subr.bf16.mxu0 0
  %469 = vmatpush2.bf16.msra.mxu0 0
  %470 = vmatprep.subr.bf16.mxu0 0
  %471 = vmatpush2.bf16.msra.mxu0 0
  %472 = vmatprep.subr.bf16.mxu0 0
  %473 = vmatpush2.bf16.msra.mxu0 0
  %474 = vmatprep.subr.bf16.mxu0 0
  %475 = vmatpush2.bf16.msra.mxu0 0
  %476 = vmatprep.subr.bf16.mxu0 0
  %477 = vmatpush2.bf16.msra.mxu0 0
  %478 = vmatprep.subr.bf16.mxu0 0
  %479 = vmatpush2.bf16.msra.mxu0 0
  %480 = vmatprep.mubr.bf16.mxu0 0
  %481 = vmatmul.mubr.bf16.gmra.mxu0 %v328
  %v482 = vpop.f32.mrf.mxu0
  %v483 = vadd.f32 %v386, %v482
  %v484 = vpop.f32.mrf.mxu0
  %v485 = vpop.f32.mrf.mxu0
  %v486 = vadd.f32 %v389, %v485
  %v487 = vpop.f32.mrf.mxu0
  %488 = vmatprep.mubr.bf16.mxu0 0
  %489 = vmatmul.mubr.bf16.gmra.mxu0 %v331
  %v490 = vpop.f32.mrf.mxu0
  %v491 = vadd.f32 %v394, %v490
  %v492 = vpop.f32.mrf.mxu0
  %v493 = vpop.f32.mrf.mxu0
  %v494 = vadd.f32 %v397, %v493
  %v495 = vpop.f32.mrf.mxu0
  %496 = vmatprep.mubr.bf16.mxu0 0
  %497 = vmatmul.mubr.bf16.gmra.mxu0 %v334
  %v498 = vpop.f32.mrf.mxu0
  %v499 = vadd.f32 %v402, %v498
  %v500 = vpop.f32.mrf.mxu0
  %v501 = vpop.f32.mrf.mxu0
  %v502 = vadd.f32 %v405, %v501
  %v503 = vpop.f32.mrf.mxu0
  %504 = vmatprep.mubr.bf16.mxu0 0
  %505 = vmatmul.mubr.bf16.gmra.mxu0 %v337
  %v506 = vpop.f32.mrf.mxu0
  %v507 = vadd.f32 %v410, %v506
  %v508 = vpop.f32.mrf.mxu0
  %v509 = vpop.f32.mrf.mxu0
  %v510 = vadd.f32 %v413, %v509
  %v511 = vpop.f32.mrf.mxu0
  %512 = vmatprep.mubr.bf16.mxu0 0
  %513 = vmatmul.mubr.bf16.gmra.mxu0 %v340
  %v514 = vpop.f32.mrf.mxu0
  %v515 = vadd.f32 %v418, %v514
  %v516 = vpop.f32.mrf.mxu0
  %v517 = vpop.f32.mrf.mxu0
  %v518 = vadd.f32 %v421, %v517
  %v519 = vpop.f32.mrf.mxu0
  %520 = vmatprep.mubr.bf16.mxu0 0
  %521 = vmatmul.mubr.bf16.gmra.mxu0 %v343
  %v522 = vpop.f32.mrf.mxu0
  %v523 = vadd.f32 %v426, %v522
  %v524 = vpop.f32.mrf.mxu0
  %v525 = vpop.f32.mrf.mxu0
  %v526 = vadd.f32 %v429, %v525
  %v527 = vpop.f32.mrf.mxu0
  %528 = vmatprep.mubr.bf16.mxu0 0
  %529 = vmatmul.mubr.bf16.gmra.mxu0 %v346
  %v530 = vpop.f32.mrf.mxu0
  %v531 = vadd.f32 %v434, %v530
  %v532 = vpop.f32.mrf.mxu0
  %v533 = vpop.f32.mrf.mxu0
  %v534 = vadd.f32 %v437, %v533
  %v535 = vpop.f32.mrf.mxu0
  %536 = vmatprep.mubr.bf16.mxu0 0
  %537 = vmatmul.mubr.bf16.gmra.mxu0 %v349
  %v538 = vpop.f32.mrf.mxu0
  %v539 = vadd.f32 %v442, %v538
  %v540 = vpop.f32.mrf.mxu0
  %v541 = vpop.f32.mrf.mxu0
  %v542 = vadd.f32 %v445, %v541
  %v543 = vpop.f32.mrf.mxu0
  %544 = vdwg.mxu0
  %545 = vst [vmem:[%s5] sm:$0xff] %v483
  %546 = vst [vmem:[%s5 + $0x8] sm:$0xff] %v486
  %547 = vst [vmem:[%s5 + $0x10] sm:$0xff] %v491
  %548 = vst [vmem:[%s5 + $0x18] sm:$0xff] %v494
  %549 = vst [vmem:[%s5 + $0x20] sm:$0xff] %v499
  %550 = vst [vmem:[%s5 + $0x28] sm:$0xff] %v502
  %551 = vst [vmem:[%s5 + $0x30] sm:$0xff] %v507
  %552 = vst [vmem:[%s5 + $0x38] sm:$0xff] %v510
  %553 = vst [vmem:[%s5 + $0x40] sm:$0xff] %v515
  %554 = vst [vmem:[%s5 + $0x48] sm:$0xff] %v518
  %555 = vst [vmem:[%s5 + $0x50] sm:$0xff] %v523
  %556 = vst [vmem:[%s5 + $0x58] sm:$0xff] %v526
  %557 = vst [vmem:[%s5 + $0x60] sm:$0xff] %v531
  %558 = vst [vmem:[%s5 + $0x68] sm:$0xff] %v534
  %559 = vst [vmem:[%s5 + $0x70] sm:$0xff] %v539
  %560 = vst [vmem:[%s5 + $0x78] sm:$0xff] %v542
  %v561 = vmax.f32 %v483, 0.0
  %v562 = vmax.f32 %v486, 0.0
  %v563 = vmax.f32 %v491, 0.0
  %v564 = vmax.f32 %v494, 0.0
  %v565 = vmax.f32 %v499, 0.0
  %v566 = vmax.f32 %v502, 0.0
  %v567 = vmax.f32 %v507, 0.0
  %v568 = vmax.f32 %v510, 0.0
  %v569 = vmax.f32 %v515, 0.0
  %v570 = vmax.f32 %v518, 0.0
  %v571 = vmax.f32 %v523, 0.0
  %v572 = vmax.f32 %v526, 0.0
  %v573 = vmax.f32 %v531, 0.0
  %v574 = vmax.f32 %v534, 0.0
  %v575 = vmax.f32 %v539, 0.0
  %v576 = vmax.f32 %v542, 0.0
  %v577 = vld [vmem:[%s3] sm:$0x1]
  %v579 = vlaneseq
  %v580 = vshrl.u32 %v579, 7
  %v581 = vsub.s32 0, %v580
  %v582 = vrot.slane %v577, %v581
  %v584 = vmul.f32 %v561, %v582
  %v585 = vmul.f32 %v562, %v582
  %v586 = vmul.f32 %v563, %v582
  %v587 = vmul.f32 %v564, %v582
  %v588 = vmul.f32 %v565, %v582
  %v589 = vmul.f32 %v566, %v582
  %v590 = vmul.f32 %v567, %v582
  %v591 = vmul.f32 %v568, %v582
  %v592 = vmul.f32 %v569, %v582
  %v593 = vmul.f32 %v570, %v582
  %v594 = vmul.f32 %v571, %v582
  %v595 = vmul.f32 %v572, %v582
  %v596 = vmul.f32 %v573, %v582
  %v597 = vmul.f32 %v574, %v582
  %v598 = vmul.f32 %v575, %v582
  %v599 = vmul.f32 %v576, %v582
  %v600 = vld [vmem:[%s4] sm:$0x1]
  %v602 = vlaneseq
  %v603 = vshrl.u32 %v602, 7
  %v604 = vsub.s32 0, %v603
  %v605 = vrot.slane %v600, %v604
  %v607 = vadd.f32 %v584, %v605
  %v608 = vadd.f32 %v585, %v605
  %v609 = vadd.f32 %v586, %v605
  %v610 = vadd.f32 %v587, %v605
  %v611 = vadd.f32 %v588, %v605
  %v612 = vadd.f32 %v589, %v605
  %v613 = vadd.f32 %v590, %v605
  %v614 = vadd.f32 %v591, %v605
  %v615 = vadd.f32 %v592, %v605
  %v616 = vadd.f32 %v593, %v605
  %v617 = vadd.f32 %v594, %v605
  %v618 = vadd.f32 %v595, %v605
  %v619 = vadd.f32 %v596, %v605
  %v620 = vadd.f32 %v597, %v605
  %v621 = vadd.f32 %v598, %v605
  %v622 = vadd.f32 %v599, %v605
  %623 = vst [vmem:[%s6] sm:$0xff] %v607
  %624 = vst [vmem:[%s6 + $0x8] sm:$0xff] %v608
  %625 = vst [vmem:[%s6 + $0x10] sm:$0xff] %v609
  %626 = vst [vmem:[%s6 + $0x18] sm:$0xff] %v610
  %627 = vst [vmem:[%s6 + $0x20] sm:$0xff] %v611
  %628 = vst [vmem:[%s6 + $0x28] sm:$0xff] %v612
  %629 = vst [vmem:[%s6 + $0x30] sm:$0xff] %v613
  %630 = vst [vmem:[%s6 + $0x38] sm:$0xff] %v614
  %631 = vst [vmem:[%s6 + $0x40] sm:$0xff] %v615
  %632 = vst [vmem:[%s6 + $0x48] sm:$0xff] %v616
  %633 = vst [vmem:[%s6 + $0x50] sm:$0xff] %v617
  %634 = vst [vmem:[%s6 + $0x58] sm:$0xff] %v618
  %635 = vst [vmem:[%s6 + $0x60] sm:$0xff] %v619
  %636 = vst [vmem:[%s6 + $0x68] sm:$0xff] %v620
  %637 = vst [vmem:[%s6 + $0x70] sm:$0xff] %v621
  %638 = vst [vmem:[%s6 + $0x78] sm:$0xff] %v622
  // Predicated region
  $region22: #{network_forward.33} parent=0 // pred_check
    _
  $region23: #{network_forward.33} parent=0 // pred_check_branch
    %640 = sbr.rel (0) target = $region25
  $region24: #{network_forward.33} parent=0 // pred_region
    _
  $region25: #{network_forward.33} parent=0 // pred_fallthru
    _
  // Predicated region
  $region26: #{network_forward.33} parent=0 // pred_check
    _
  $region27: #{network_forward.33} parent=0 // pred_check_branch
    %642 = sbr.rel (0) target = $region29
  $region28: #{network_forward.33} parent=0 // pred_region
    _
  $region29: #{network_forward.33} parent=0 // pred_fallthru
    _
  // Predicated region
  $region30: #{network_forward.33} parent=0 // pred_check
    _
  $region31: #{network_forward.33} parent=0 // pred_check_branch
    %644 = sbr.rel (0) target = $region33
  $region32: #{network_forward.33} parent=0 // pred_region
    _
  $region33: #{network_forward.33} parent=0 // pred_fallthru
    _
  // Predicated region
  $region34: #{network_forward.33} parent=0 // pred_check
    _
  $region35: #{network_forward.33} parent=0 // pred_check_branch
    %646 = sbr.rel (0) target = $region37
  $region36: #{network_forward.33} parent=0 // pred_region
    _
  $region37: #{network_forward.33} parent=0 // pred_fallthru
    _

// kernel: network_forward.35
$region0: #{network_forward.35}
  #allocation0 [shape = 'u32[]', space=smem, size = 0x4, offset = 0x4, fixed_abs, tag = 'smem constant byte address 0x4 - core index']
  #allocation1 [shape = 'u32[144,128]{1,0:T(1,128)}', space=vmem, size = 0x12000, scoped, tag = 'internal scratch']
  %s0 = inlined_call_operand.vmem [shape: bf16[128,16], index: 0, kind: input, shape index: {}]
  %s1 = inlined_call_operand.vmem [shape: bf16[16,128], index: 1, kind: input, shape index: {}]
  %s2 = inlined_call_operand.vmem [shape: f32[1,128], index: 2, kind: input, shape index: {}]
  %s3 = inlined_call_operand.vmem [shape: f32[128,128], index: 3, kind: input, shape index: {}]
  %s4 = inlined_call_operand.vmem [shape: f32[1,128], index: 4, kind: input, shape index: {}]
  %s5 = inlined_call_operand.vmem [shape: f32[1,128], index: 5, kind: input, shape index: {}]
  %s6 = inlined_call_operand.vmem [shape: f32[128,128], index: 6, kind: output, shape index: {0}]
  %s7 = inlined_call_operand.vmem [shape: f32[128,128], index: 7, kind: output, shape index: {1}]
  %8 = xla_tuple %s6, %s7
  %s9 = sld [smem:[#allocation0]]
  $region42: #{network_forward.35} parent=0
    _
  %s11 = ssub.s32 1, %s9
  %s12 = scalar_select 0, %s11, %s9
  // Predicated region
  $region2: #{network_forward.35} parent=0 // pred_check
    _
  $region3: #{network_forward.35} parent=0 // pred_check_branch
    %14 = sbr.rel (0) target = $region5
  $region4: #{network_forward.35} parent=0 // pred_region
    _
  $region5: #{network_forward.35} parent=0 // pred_fallthru
    _
  // Predicated region
  $region6: #{network_forward.35} parent=0 // pred_check
    _
  $region7: #{network_forward.35} parent=0 // pred_check_branch
    %16 = sbr.rel (0) target = $region9
  $region8: #{network_forward.35} parent=0 // pred_region
    _
  $region9: #{network_forward.35} parent=0 // pred_fallthru
    _
  // Predicated region
  $region10: #{network_forward.35} parent=0 // pred_check
    _
  $region11: #{network_forward.35} parent=0 // pred_check_branch
    %18 = sbr.rel (0) target = $region13
  $region12: #{network_forward.35} parent=0 // pred_region
    _
  $region13: #{network_forward.35} parent=0 // pred_fallthru
    _
  // Predicated region
  $region14: #{network_forward.35} parent=0 // pred_check
    _
  $region15: #{network_forward.35} parent=0 // pred_check_branch
    %20 = sbr.rel (0) target = $region17
  $region16: #{network_forward.35} parent=0 // pred_region
    _
  $region17: #{network_forward.35} parent=0 // pred_fallthru
    _
  // Predicated region
  $region18: #{network_forward.35} parent=0 // pred_check
    _
  $region19: #{network_forward.35} parent=0 // pred_check_branch
    %22 = sbr.rel (0) target = $region21
  $region20: #{network_forward.35} parent=0 // pred_region
    _
  $region21: #{network_forward.35} parent=0 // pred_fallthru
    _
  // Predicated region
  $region22: #{network_forward.35} parent=0 // pred_check
    _
  $region23: #{network_forward.35} parent=0 // pred_check_branch
    %24 = sbr.rel (0) target = $region25
  $region24: #{network_forward.35} parent=0 // pred_region
    _
  $region25: #{network_forward.35} parent=0 // pred_fallthru
    _
  %v26 = vld [vmem:[%s0] sm:$0xf]
  %v27 = vld [vmem:[%s0 + $0x4] sm:$0xf]
  %v28 = vld [vmem:[%s0 + $0x8] sm:$0xf]
  %v29 = vld [vmem:[%s0 + $0xc] sm:$0xf]
  %v30 = vld [vmem:[%s0 + $0x10] sm:$0xf]
  %v31 = vld [vmem:[%s0 + $0x14] sm:$0xf]
  %v32 = vld [vmem:[%s0 + $0x18] sm:$0xf]
  %v33 = vld [vmem:[%s0 + $0x1c] sm:$0xf]
  %v34 = vld [vmem:[%s0 + $0x20] sm:$0xf]
  %v35 = vld [vmem:[%s0 + $0x24] sm:$0xf]
  %v36 = vld [vmem:[%s0 + $0x28] sm:$0xf]
  %v37 = vld [vmem:[%s0 + $0x2c] sm:$0xf]
  %v38 = vld [vmem:[%s0 + $0x30] sm:$0xf]
  %v39 = vld [vmem:[%s0 + $0x34] sm:$0xf]
  %v40 = vld [vmem:[%s0 + $0x38] sm:$0xf]
  %v41 = vld [vmem:[%s0 + $0x3c] sm:$0xf]
  %v42 = vld [vmem:[%s1] sm:$0xf]
  %v43 = vld [vmem:[%s1 + $0x4] sm:$0xf]
  %v44 = vld [vmem:[%s2] sm:$0x1]
  %v46 = vlaneseq
  %v47 = vshrl.u32 %v46, 7
  %v48 = vsub.s32 0, %v47
  %v49 = vrot.slane %v44, %v48
  %v67 = vunpack.c.l.b16 %v26
  %v68 = vunpack.c.l.b16 %v27
  %v69 = vunpack.c.l.b16 %v28
  %v70 = vunpack.c.l.b16 %v29
  %v71 = vunpack.c.l.b16 %v30
  %v72 = vunpack.c.l.b16 %v31
  %v73 = vunpack.c.l.b16 %v32
  %v74 = vunpack.c.l.b16 %v33
  %v75 = vunpack.c.l.b16 %v34
  %v76 = vunpack.c.l.b16 %v35
  %v77 = vunpack.c.l.b16 %v36
  %v78 = vunpack.c.l.b16 %v37
  %v79 = vunpack.c.l.b16 %v38
  %v80 = vunpack.c.l.b16 %v39
  %v81 = vunpack.c.l.b16 %v40
  %v82 = vunpack.c.l.b16 %v41
  %v83 = vpack.c.b16 %v68, %v67
  %v84 = vpack.c.b16 %v70, %v69
  %v85 = vpack.c.b16 %v72, %v71
  %v86 = vpack.c.b16 %v74, %v73
  %v87 = vpack.c.b16 %v76, %v75
  %v88 = vpack.c.b16 %v78, %v77
  %v89 = vpack.c.b16 %v80, %v79
  %v90 = vpack.c.b16 %v82, %v81
  %v93 = vunpack.c.l.b16 %v42
  %v94 = vunpack.c.l.b16 %v43
  %v95 = vpack.c.b16 %v94, %v93
  %vm97 = vcmask 130048
  %v99 = vsel %vm97, %v83, 0
  %v102 = vsel %vm97, %v84, 0
  %v105 = vsel %vm97, %v85, 0
  %v108 = vsel %vm97, %v86, 0
  %v111 = vsel %vm97, %v87, 0
  %v114 = vsel %vm97, %v88, 0
  %v117 = vsel %vm97, %v89, 0
  %v120 = vsel %vm97, %v90, 0
  %122 = vmatprep.subr.bf16.mxu0 0
  %123 = vmatpush1.bf16.msra.mxu0 0
  %124 = vmatprep.subr.bf16.mxu0 0
  %125 = vmatpush1.bf16.msra.mxu0 0
  %126 = vmatprep.subr.bf16.mxu0 0
  %127 = vmatpush1.bf16.msra.mxu0 0
  %128 = vmatprep.subr.bf16.mxu0 0
  %129 = vmatpush1.bf16.msra.mxu0 0
  %130 = vmatprep.subr.bf16.mxu0 0
  %131 = vmatpush1.bf16.msra.mxu0 0
  %132 = vmatprep.subr.bf16.mxu0 0
  %133 = vmatpush1.bf16.msra.mxu0 0
  %134 = vmatprep.subr.bf16.mxu0 0
  %135 = vmatpush1.bf16.msra.mxu0 0
  %136 = vmatprep.subr.bf16.mxu0 0
  %137 = vmatpush1.bf16.msra.mxu0 %v95
  %138 = vmatprep.subr.bf16.mxu0 0
  %139 = vmatpush2.bf16.msra.mxu0 0
  %140 = vmatprep.subr.bf16.mxu0 0
  %141 = vmatpush2.bf16.msra.mxu0 0
  %142 = vmatprep.subr.bf16.mxu0 0
  %143 = vmatpush2.bf16.msra.mxu0 0
  %144 = vmatprep.subr.bf16.mxu0 0
  %145 = vmatpush2.bf16.msra.mxu0 0
  %146 = vmatprep.subr.bf16.mxu0 0
  %147 = vmatpush2.bf16.msra.mxu0 0
  %148 = vmatprep.subr.bf16.mxu0 0
  %149 = vmatpush2.bf16.msra.mxu0 0
  %150 = vmatprep.subr.bf16.mxu0 0
  %151 = vmatpush2.bf16.msra.mxu0 0
  %152 = vmatprep.subr.bf16.mxu0 0
  %153 = vmatpush2.bf16.msra.mxu0 0
  %154 = vmatprep.mubr.bf16.mxu0 0
  %155 = vmatmul.mubr.bf16.gmra.mxu0 %v99
  %v156 = vpop.f32.mrf.mxu0
  %v157 = vadd.f32 %v49, %v156
  %v158 = vpop.f32.mrf.mxu0
  %v159 = vpop.f32.mrf.mxu0
  %v160 = vadd.f32 %v49, %v159
  %v161 = vpop.f32.mrf.mxu0
  %162 = vmatprep.mubr.bf16.mxu0 0
  %163 = vmatmul.mubr.bf16.gmra.mxu0 %v102
  %v164 = vpop.f32.mrf.mxu0
  %v165 = vadd.f32 %v49, %v164
  %v166 = vpop.f32.mrf.mxu0
  %v167 = vpop.f32.mrf.mxu0
  %v168 = vadd.f32 %v49, %v167
  %v169 = vpop.f32.mrf.mxu0
  %170 = vmatprep.mubr.bf16.mxu0 0
  %171 = vmatmul.mubr.bf16.gmra.mxu0 %v105
  %v172 = vpop.f32.mrf.mxu0
  %v173 = vadd.f32 %v49, %v172
  %v174 = vpop.f32.mrf.mxu0
  %v175 = vpop.f32.mrf.mxu0
  %v176 = vadd.f32 %v49, %v175
  %v177 = vpop.f32.mrf.mxu0
  %178 = vmatprep.mubr.bf16.mxu0 0
  %179 = vmatmul.mubr.bf16.gmra.mxu0 %v108
  %v180 = vpop.f32.mrf.mxu0
  %v181 = vadd.f32 %v49, %v180
  %v182 = vpop.f32.mrf.mxu0
  %v183 = vpop.f32.mrf.mxu0
  %v184 = vadd.f32 %v49, %v183
  %v185 = vpop.f32.mrf.mxu0
  %186 = vmatprep.mubr.bf16.mxu0 0
  %187 = vmatmul.mubr.bf16.gmra.mxu0 %v111
  %v188 = vpop.f32.mrf.mxu0
  %v189 = vadd.f32 %v49, %v188
  %v190 = vpop.f32.mrf.mxu0
  %v191 = vpop.f32.mrf.mxu0
  %v192 = vadd.f32 %v49, %v191
  %v193 = vpop.f32.mrf.mxu0
  %194 = vmatprep.mubr.bf16.mxu0 0
  %195 = vmatmul.mubr.bf16.gmra.mxu0 %v114
  %v196 = vpop.f32.mrf.mxu0
  %v197 = vadd.f32 %v49, %v196
  %v198 = vpop.f32.mrf.mxu0
  %v199 = vpop.f32.mrf.mxu0
  %v200 = vadd.f32 %v49, %v199
  %v201 = vpop.f32.mrf.mxu0
  %202 = vmatprep.mubr.bf16.mxu0 0
  %203 = vmatmul.mubr.bf16.gmra.mxu0 %v117
  %v204 = vpop.f32.mrf.mxu0
  %v205 = vadd.f32 %v49, %v204
  %v206 = vpop.f32.mrf.mxu0
  %v207 = vpop.f32.mrf.mxu0
  %v208 = vadd.f32 %v49, %v207
  %v209 = vpop.f32.mrf.mxu0
  %210 = vmatprep.mubr.bf16.mxu0 0
  %211 = vmatmul.mubr.bf16.gmra.mxu0 %v120
  %v212 = vpop.f32.mrf.mxu0
  %v213 = vadd.f32 %v49, %v212
  %v214 = vpop.f32.mrf.mxu0
  %v215 = vpop.f32.mrf.mxu0
  %v216 = vadd.f32 %v49, %v215
  %v217 = vpop.f32.mrf.mxu0
  %218 = vdwg.mxu0
  %v219 = vld [vmem:[%s3] sm:$0xff]
  %v220 = vld [vmem:[%s3 + $0x8] sm:$0xff]
  %v221 = vld [vmem:[%s3 + $0x10] sm:$0xff]
  %v222 = vld [vmem:[%s3 + $0x18] sm:$0xff]
  %v223 = vld [vmem:[%s3 + $0x20] sm:$0xff]
  %v224 = vld [vmem:[%s3 + $0x28] sm:$0xff]
  %v225 = vld [vmem:[%s3 + $0x30] sm:$0xff]
  %v226 = vld [vmem:[%s3 + $0x38] sm:$0xff]
  %v227 = vld [vmem:[%s3 + $0x40] sm:$0xff]
  %v228 = vld [vmem:[%s3 + $0x48] sm:$0xff]
  %v229 = vld [vmem:[%s3 + $0x50] sm:$0xff]
  %v230 = vld [vmem:[%s3 + $0x58] sm:$0xff]
  %v231 = vld [vmem:[%s3 + $0x60] sm:$0xff]
  %v232 = vld [vmem:[%s3 + $0x68] sm:$0xff]
  %v233 = vld [vmem:[%s3 + $0x70] sm:$0xff]
  %v234 = vld [vmem:[%s3 + $0x78] sm:$0xff]
  %v235 = vadd.f32 %v157, %v219
  %v236 = vadd.f32 %v160, %v220
  %v237 = vadd.f32 %v165, %v221
  %v238 = vadd.f32 %v168, %v222
  %v239 = vadd.f32 %v173, %v223
  %v240 = vadd.f32 %v176, %v224
  %v241 = vadd.f32 %v181, %v225
  %v242 = vadd.f32 %v184, %v226
  %v243 = vadd.f32 %v189, %v227
  %v244 = vadd.f32 %v192, %v228
  %v245 = vadd.f32 %v197, %v229
  %v246 = vadd.f32 %v200, %v230
  %v247 = vadd.f32 %v205, %v231
  %v248 = vadd.f32 %v208, %v232
  %v249 = vadd.f32 %v213, %v233
  %v250 = vadd.f32 %v216, %v234
  %251 = vst [vmem:[%s6] sm:$0xff] %v235
  %252 = vst [vmem:[%s6 + $0x8] sm:$0xff] %v236
  %253 = vst [vmem:[%s6 + $0x10] sm:$0xff] %v237
  %254 = vst [vmem:[%s6 + $0x18] sm:$0xff] %v238
  %255 = vst [vmem:[%s6 + $0x20] sm:$0xff] %v239
  %256 = vst [vmem:[%s6 + $0x28] sm:$0xff] %v240
  %257 = vst [vmem:[%s6 + $0x30] sm:$0xff] %v241
  %258 = vst [vmem:[%s6 + $0x38] sm:$0xff] %v242
  %259 = vst [vmem:[%s6 + $0x40] sm:$0xff] %v243
  %260 = vst [vmem:[%s6 + $0x48] sm:$0xff] %v244
  %261 = vst [vmem:[%s6 + $0x50] sm:$0xff] %v245
  %262 = vst [vmem:[%s6 + $0x58] sm:$0xff] %v246
  %263 = vst [vmem:[%s6 + $0x60] sm:$0xff] %v247
  %264 = vst [vmem:[%s6 + $0x68] sm:$0xff] %v248
  %265 = vst [vmem:[%s6 + $0x70] sm:$0xff] %v249
  %266 = vst [vmem:[%s6 + $0x78] sm:$0xff] %v250
  %v267 = vmax.f32 %v235, 0.0
  %v268 = vmax.f32 %v236, 0.0
  %v269 = vmax.f32 %v237, 0.0
  %v270 = vmax.f32 %v238, 0.0
  %v271 = vmax.f32 %v239, 0.0
  %v272 = vmax.f32 %v240, 0.0
  %v273 = vmax.f32 %v241, 0.0
  %v274 = vmax.f32 %v242, 0.0
  %v275 = vmax.f32 %v243, 0.0
  %v276 = vmax.f32 %v244, 0.0
  %v277 = vmax.f32 %v245, 0.0
  %v278 = vmax.f32 %v246, 0.0
  %v279 = vmax.f32 %v247, 0.0
  %v280 = vmax.f32 %v248, 0.0
  %v281 = vmax.f32 %v249, 0.0
  %v282 = vmax.f32 %v250, 0.0
  %v283 = vld [vmem:[%s4] sm:$0x1]
  %v285 = vlaneseq
  %v286 = vshrl.u32 %v285, 7
  %v287 = vsub.s32 0, %v286
  %v288 = vrot.slane %v283, %v287
  %v290 = vmul.f32 %v267, %v288
  %v291 = vmul.f32 %v268, %v288
  %v292 = vmul.f32 %v269, %v288
  %v293 = vmul.f32 %v270, %v288
  %v294 = vmul.f32 %v271, %v288
  %v295 = vmul.f32 %v272, %v288
  %v296 = vmul.f32 %v273, %v288
  %v297 = vmul.f32 %v274, %v288
  %v298 = vmul.f32 %v275, %v288
  %v299 = vmul.f32 %v276, %v288
  %v300 = vmul.f32 %v277, %v288
  %v301 = vmul.f32 %v278, %v288
  %v302 = vmul.f32 %v279, %v288
  %v303 = vmul.f32 %v280, %v288
  %v304 = vmul.f32 %v281, %v288
  %v305 = vmul.f32 %v282, %v288
  %v306 = vld [vmem:[%s5] sm:$0x1]
  %v308 = vlaneseq
  %v309 = vshrl.u32 %v308, 7
  %v310 = vsub.s32 0, %v309
  %v311 = vrot.slane %v306, %v310
  %v313 = vadd.f32 %v290, %v311
  %v314 = vadd.f32 %v291, %v311
  %v315 = vadd.f32 %v292, %v311
  %v316 = vadd.f32 %v293, %v311
  %v317 = vadd.f32 %v294, %v311
  %v318 = vadd.f32 %v295, %v311
  %v319 = vadd.f32 %v296, %v311
  %v320 = vadd.f32 %v297, %v311
  %v321 = vadd.f32 %v298, %v311
  %v322 = vadd.f32 %v299, %v311
  %v323 = vadd.f32 %v300, %v311
  %v324 = vadd.f32 %v301, %v311
  %v325 = vadd.f32 %v302, %v311
  %v326 = vadd.f32 %v303, %v311
  %v327 = vadd.f32 %v304, %v311
  %v328 = vadd.f32 %v305, %v311
  %329 = vst [vmem:[%s7] sm:$0xff] %v313
  %330 = vst [vmem:[%s7 + $0x8] sm:$0xff] %v314
  %331 = vst [vmem:[%s7 + $0x10] sm:$0xff] %v315
  %332 = vst [vmem:[%s7 + $0x18] sm:$0xff] %v316
  %333 = vst [vmem:[%s7 + $0x20] sm:$0xff] %v317
  %334 = vst [vmem:[%s7 + $0x28] sm:$0xff] %v318
  %335 = vst [vmem:[%s7 + $0x30] sm:$0xff] %v319
  %336 = vst [vmem:[%s7 + $0x38] sm:$0xff] %v320
  %337 = vst [vmem:[%s7 + $0x40] sm:$0xff] %v321
  %338 = vst [vmem:[%s7 + $0x48] sm:$0xff] %v322
  %339 = vst [vmem:[%s7 + $0x50] sm:$0xff] %v323
  %340 = vst [vmem:[%s7 + $0x58] sm:$0xff] %v324
  %341 = vst [vmem:[%s7 + $0x60] sm:$0xff] %v325
  %342 = vst [vmem:[%s7 + $0x68] sm:$0xff] %v326
  %343 = vst [vmem:[%s7 + $0x70] sm:$0xff] %v327
  %344 = vst [vmem:[%s7 + $0x78] sm:$0xff] %v328
  // Predicated region
  $region26: #{network_forward.35} parent=0 // pred_check
    _
  $region27: #{network_forward.35} parent=0 // pred_check_branch
    %346 = sbr.rel (0) target = $region29
  $region28: #{network_forward.35} parent=0 // pred_region
    _
  $region29: #{network_forward.35} parent=0 // pred_fallthru
    _
  // Predicated region
  $region30: #{network_forward.35} parent=0 // pred_check
    _
  $region31: #{network_forward.35} parent=0 // pred_check_branch
    %348 = sbr.rel (0) target = $region33
  $region32: #{network_forward.35} parent=0 // pred_region
    _
  $region33: #{network_forward.35} parent=0 // pred_fallthru
    _
  // Predicated region
  $region34: #{network_forward.35} parent=0 // pred_check
    _
  $region35: #{network_forward.35} parent=0 // pred_check_branch
    %350 = sbr.rel (0) target = $region37
  $region36: #{network_forward.35} parent=0 // pred_region
    _
  $region37: #{network_forward.35} parent=0 // pred_fallthru
    _
  // Predicated region
  $region38: #{network_forward.35} parent=0 // pred_check
    _
  $region39: #{network_forward.35} parent=0 // pred_check_branch
    %352 = sbr.rel (0) target = $region41
  $region40: #{network_forward.35} parent=0 // pred_region
    _
  $region41: #{network_forward.35} parent=0 // pred_fallthru
    _

// kernel: network_forward.34
$region0: #{network_forward.34}
  #allocation0 [shape = 'u32[]', space=smem, size = 0x4, offset = 0x4, fixed_abs, tag = 'smem constant byte address 0x4 - core index']
  #allocation1 [shape = 'u32[144,128]{1,0:T(1,128)}', space=vmem, size = 0x12000, scoped, tag = 'internal scratch']
  %s0 = inlined_call_operand.vmem [shape: bf16[128,288], index: 0, kind: input, shape index: {}]
  %s1 = inlined_call_operand.vmem [shape: bf16[288,128], index: 1, kind: input, shape index: {}]
  %s2 = inlined_call_operand.vmem [shape: f32[1,128], index: 2, kind: input, shape index: {}]
  %s3 = inlined_call_operand.vmem [shape: f32[1,128], index: 3, kind: input, shape index: {}]
  %s4 = inlined_call_operand.vmem [shape: f32[1,128], index: 4, kind: input, shape index: {}]
  %s5 = inlined_call_operand.vmem [shape: f32[128,128], index: 5, kind: output, shape index: {}]
  %s6 = sld [smem:[#allocation0]]
  $region30: #{network_forward.34} parent=0
    _
  %s8 = ssub.s32 1, %s6
  %s9 = scalar_select 0, %s8, %s6
  // Predicated region
  $region2: #{network_forward.34} parent=0 // pred_check
    _
  $region3: #{network_forward.34} parent=0 // pred_check_branch
    %11 = sbr.rel (0) target = $region5
  $region4: #{network_forward.34} parent=0 // pred_region
    _
  $region5: #{network_forward.34} parent=0 // pred_fallthru
    _
  // Predicated region
  $region6: #{network_forward.34} parent=0 // pred_check
    _
  $region7: #{network_forward.34} parent=0 // pred_check_branch
    %13 = sbr.rel (0) target = $region9
  $region8: #{network_forward.34} parent=0 // pred_region
    _
  $region9: #{network_forward.34} parent=0 // pred_fallthru
    _
  // Predicated region
  $region10: #{network_forward.34} parent=0 // pred_check
    _
  $region11: #{network_forward.34} parent=0 // pred_check_branch
    %15 = sbr.rel (0) target = $region13
  $region12: #{network_forward.34} parent=0 // pred_region
    _
  $region13: #{network_forward.34} parent=0 // pred_fallthru
    _
  // Predicated region
  $region14: #{network_forward.34} parent=0 // pred_check
    _
  $region15: #{network_forward.34} parent=0 // pred_check_branch
    %17 = sbr.rel (0) target = $region17
  $region16: #{network_forward.34} parent=0 // pred_region
    _
  $region17: #{network_forward.34} parent=0 // pred_fallthru
    _
  // Predicated region
  $region18: #{network_forward.34} parent=0 // pred_check
    _
  $region19: #{network_forward.34} parent=0 // pred_check_branch
    %19 = sbr.rel (0) target = $region21
  $region20: #{network_forward.34} parent=0 // pred_region
    _
  $region21: #{network_forward.34} parent=0 // pred_fallthru
    _
  %v21 = vld [vmem:[%s0] sm:$0xff]
  %v22 = vld [vmem:[%s0 + $0x8] sm:$0xf]
  %v23 = vld [vmem:[%s0 + $0xc] sm:$0xff]
  %v24 = vld [vmem:[%s0 + $0x14] sm:$0xf]
  %v25 = vld [vmem:[%s0 + $0x18] sm:$0xff]
  %v26 = vld [vmem:[%s0 + $0x20] sm:$0xf]
  %v27 = vld [vmem:[%s0 + $0x24] sm:$0xff]
  %v28 = vld [vmem:[%s0 + $0x2c] sm:$0xf]
  %v29 = vld [vmem:[%s0 + $0x30] sm:$0xff]
  %v30 = vld [vmem:[%s0 + $0x38] sm:$0xf]
  %v31 = vld [vmem:[%s0 + $0x3c] sm:$0xff]
  %v32 = vld [vmem:[%s0 + $0x44] sm:$0xf]
  %v33 = vld [vmem:[%s0 + $0x48] sm:$0xff]
  %v34 = vld [vmem:[%s0 + $0x50] sm:$0xf]
  %v35 = vld [vmem:[%s0 + $0x54] sm:$0xff]
  %v36 = vld [vmem:[%s0 + $0x5c] sm:$0xf]
  %v37 = vld [vmem:[%s0 + $0x60] sm:$0xff]
  %v38 = vld [vmem:[%s0 + $0x68] sm:$0xf]
  %v39 = vld [vmem:[%s0 + $0x6c] sm:$0xff]
  %v40 = vld [vmem:[%s0 + $0x74] sm:$0xf]
  %v41 = vld [vmem:[%s0 + $0x78] sm:$0xff]
  %v42 = vld [vmem:[%s0 + $0x80] sm:$0xf]
  %v43 = vld [vmem:[%s0 + $0x84] sm:$0xff]
  %v44 = vld [vmem:[%s0 + $0x8c] sm:$0xf]
  %v45 = vld [vmem:[%s0 + $0x90] sm:$0xff]
  %v46 = vld [vmem:[%s0 + $0x98] sm:$0xf]
  %v47 = vld [vmem:[%s0 + $0x9c] sm:$0xff]
  %v48 = vld [vmem:[%s0 + $0xa4] sm:$0xf]
  %v49 = vld [vmem:[%s0 + $0xa8] sm:$0xff]
  %v50 = vld [vmem:[%s0 + $0xb0] sm:$0xf]
  %v51 = vld [vmem:[%s0 + $0xb4] sm:$0xff]
  %v52 = vld [vmem:[%s0 + $0xbc] sm:$0xf]
  %v53 = vld [vmem:[%s1] sm:$0xf]
  %v54 = vld [vmem:[%s1 + $0x4] sm:$0xf]
  %v55 = vld [vmem:[%s1 + $0x8] sm:$0xf]
  %v56 = vld [vmem:[%s1 + $0xc] sm:$0xf]
  %v57 = vld [vmem:[%s1 + $0x10] sm:$0xf]
  %v58 = vld [vmem:[%s1 + $0x14] sm:$0xf]
  %v59 = vld [vmem:[%s1 + $0x18] sm:$0xf]
  %v60 = vld [vmem:[%s1 + $0x1c] sm:$0xf]
  %v61 = vld [vmem:[%s1 + $0x20] sm:$0xf]
  %v62 = vld [vmem:[%s1 + $0x24] sm:$0xf]
  %v63 = vld [vmem:[%s1 + $0x28] sm:$0xf]
  %v64 = vld [vmem:[%s1 + $0x2c] sm:$0xf]
  %v65 = vld [vmem:[%s1 + $0x30] sm:$0xf]
  %v66 = vld [vmem:[%s1 + $0x34] sm:$0xf]
  %v67 = vld [vmem:[%s1 + $0x38] sm:$0xf]
  %v68 = vld [vmem:[%s1 + $0x3c] sm:$0xf]
  %v69 = vld [vmem:[%s1 + $0x40] sm:$0xf]
  %v70 = vld [vmem:[%s1 + $0x44] sm:$0xf]
  %v71 = vld [vmem:[%s1 + $0x48] sm:$0xf]
  %v72 = vld [vmem:[%s1 + $0x4c] sm:$0xf]
  %v73 = vld [vmem:[%s1 + $0x50] sm:$0xf]
  %v74 = vld [vmem:[%s1 + $0x54] sm:$0xf]
  %v75 = vld [vmem:[%s1 + $0x58] sm:$0xf]
  %v76 = vld [vmem:[%s1 + $0x5c] sm:$0xf]
  %v77 = vld [vmem:[%s1 + $0x60] sm:$0xf]
  %v78 = vld [vmem:[%s1 + $0x64] sm:$0xf]
  %v79 = vld [vmem:[%s1 + $0x68] sm:$0xf]
  %v80 = vld [vmem:[%s1 + $0x6c] sm:$0xf]
  %v81 = vld [vmem:[%s1 + $0x70] sm:$0xf]
  %v82 = vld [vmem:[%s1 + $0x74] sm:$0xf]
  %v83 = vld [vmem:[%s1 + $0x78] sm:$0xf]
  %v84 = vld [vmem:[%s1 + $0x7c] sm:$0xf]
  %v85 = vld [vmem:[%s1 + $0x80] sm:$0xf]
  %v86 = vld [vmem:[%s1 + $0x84] sm:$0xf]
  %v87 = vld [vmem:[%s1 + $0x88] sm:$0xf]
  %v88 = vld [vmem:[%s1 + $0x8c] sm:$0xf]
  %v89 = vld [vmem:[%s2] sm:$0x1]
  %v91 = vlaneseq
  %v92 = vshrl.u32 %v91, 7
  %v93 = vsub.s32 0, %v92
  %v94 = vrot.slane %v89, %v93
  %v128 = vunpack.c.l.b16 %v21
  %v129 = vunpack.c.h.b16 %v21
  %v130 = vunpack.c.l.b16 %v22
  %v131 = vunpack.c.l.b16 %v23
  %v132 = vunpack.c.h.b16 %v23
  %v133 = vunpack.c.l.b16 %v24
  %v134 = vunpack.c.l.b16 %v25
  %v135 = vunpack.c.h.b16 %v25
  %v136 = vunpack.c.l.b16 %v26
  %v137 = vunpack.c.l.b16 %v27
  %v138 = vunpack.c.h.b16 %v27
  %v139 = vunpack.c.l.b16 %v28
  %v140 = vunpack.c.l.b16 %v29
  %v141 = vunpack.c.h.b16 %v29
  %v142 = vunpack.c.l.b16 %v30
  %v143 = vunpack.c.l.b16 %v31
  %v144 = vunpack.c.h.b16 %v31
  %v145 = vunpack.c.l.b16 %v32
  %v146 = vunpack.c.l.b16 %v33
  %v147 = vunpack.c.h.b16 %v33
  %v148 = vunpack.c.l.b16 %v34
  %v149 = vunpack.c.l.b16 %v35
  %v150 = vunpack.c.h.b16 %v35
  %v151 = vunpack.c.l.b16 %v36
  %v152 = vunpack.c.l.b16 %v37
  %v153 = vunpack.c.h.b16 %v37
  %v154 = vunpack.c.l.b16 %v38
  %v155 = vunpack.c.l.b16 %v39
  %v156 = vunpack.c.h.b16 %v39
  %v157 = vunpack.c.l.b16 %v40
  %v158 = vunpack.c.l.b16 %v41
  %v159 = vunpack.c.h.b16 %v41
  %v160 = vunpack.c.l.b16 %v42
  %v161 = vunpack.c.l.b16 %v43
  %v162 = vunpack.c.h.b16 %v43
  %v163 = vunpack.c.l.b16 %v44
  %v164 = vunpack.c.l.b16 %v45
  %v165 = vunpack.c.h.b16 %v45
  %v166 = vunpack.c.l.b16 %v46
  %v167 = vunpack.c.l.b16 %v47
  %v168 = vunpack.c.h.b16 %v47
  %v169 = vunpack.c.l.b16 %v48
  %v170 = vunpack.c.l.b16 %v49
  %v171 = vunpack.c.h.b16 %v49
  %v172 = vunpack.c.l.b16 %v50
  %v173 = vunpack.c.l.b16 %v51
  %v174 = vunpack.c.h.b16 %v51
  %v175 = vunpack.c.l.b16 %v52
  %v176 = vpack.c.b16 %v131, %v128
  %v177 = vpack.c.b16 %v132, %v129
  %v178 = vpack.c.b16 %v133, %v130
  %v179 = vpack.c.b16 %v137, %v134
  %v180 = vpack.c.b16 %v138, %v135
  %v181 = vpack.c.b16 %v139, %v136
  %v182 = vpack.c.b16 %v143, %v140
  %v183 = vpack.c.b16 %v144, %v141
  %v184 = vpack.c.b16 %v145, %v142
  %v185 = vpack.c.b16 %v149, %v146
  %v186 = vpack.c.b16 %v150, %v147
  %v187 = vpack.c.b16 %v151, %v148
  %v188 = vpack.c.b16 %v155, %v152
  %v189 = vpack.c.b16 %v156, %v153
  %v190 = vpack.c.b16 %v157, %v154
  %v191 = vpack.c.b16 %v161, %v158
  %v192 = vpack.c.b16 %v162, %v159
  %v193 = vpack.c.b16 %v163, %v160
  %v194 = vpack.c.b16 %v167, %v164
  %v195 = vpack.c.b16 %v168, %v165
  %v196 = vpack.c.b16 %v169, %v166
  %v197 = vpack.c.b16 %v173, %v170
  %v198 = vpack.c.b16 %v174, %v171
  %v199 = vpack.c.b16 %v175, %v172
  %v252 = vunpack.c.l.b16 %v53
  %v253 = vunpack.c.l.b16 %v54
  %v254 = vunpack.c.l.b16 %v55
  %v255 = vunpack.c.l.b16 %v56
  %v256 = vunpack.c.l.b16 %v57
  %v257 = vunpack.c.l.b16 %v58
  %v258 = vunpack.c.l.b16 %v59
  %v259 = vunpack.c.l.b16 %v60
  %v260 = vunpack.c.l.b16 %v61
  %v261 = vunpack.c.l.b16 %v62
  %v262 = vunpack.c.l.b16 %v63
  %v263 = vunpack.c.l.b16 %v64
  %v264 = vunpack.c.l.b16 %v65
  %v265 = vunpack.c.l.b16 %v66
  %v266 = vunpack.c.l.b16 %v67
  %v267 = vunpack.c.l.b16 %v68
  %v268 = vunpack.c.l.b16 %v69
  %v269 = vunpack.c.l.b16 %v70
  %v270 = vunpack.c.l.b16 %v71
  %v271 = vunpack.c.l.b16 %v72
  %v272 = vunpack.c.l.b16 %v73
  %v273 = vunpack.c.l.b16 %v74
  %v274 = vunpack.c.l.b16 %v75
  %v275 = vunpack.c.l.b16 %v76
  %v276 = vunpack.c.l.b16 %v77
  %v277 = vunpack.c.l.b16 %v78
  %v278 = vunpack.c.l.b16 %v79
  %v279 = vunpack.c.l.b16 %v80
  %v280 = vunpack.c.l.b16 %v81
  %v281 = vunpack.c.l.b16 %v82
  %v282 = vunpack.c.l.b16 %v83
  %v283 = vunpack.c.l.b16 %v84
  %v284 = vunpack.c.l.b16 %v85
  %v285 = vunpack.c.l.b16 %v86
  %v286 = vunpack.c.l.b16 %v87
  %v287 = vunpack.c.l.b16 %v88
  %v288 = vpack.c.b16 %v253, %v252
  %v289 = vpack.c.b16 %v255, %v254
  %v290 = vpack.c.b16 %v257, %v256
  %v291 = vpack.c.b16 %v259, %v258
  %v292 = vpack.c.b16 %v261, %v260
  %v293 = vpack.c.b16 %v263, %v262
  %v294 = vpack.c.b16 %v265, %v264
  %v295 = vpack.c.b16 %v267, %v266
  %v296 = vpack.c.b16 %v269, %v268
  %v297 = vpack.c.b16 %v271, %v270
  %v298 = vpack.c.b16 %v273, %v272
  %v299 = vpack.c.b16 %v275, %v274
  %v300 = vpack.c.b16 %v277, %v276
  %v301 = vpack.c.b16 %v279, %v278
  %v302 = vpack.c.b16 %v281, %v280
  %v303 = vpack.c.b16 %v283, %v282
  %v304 = vpack.c.b16 %v285, %v284
  %v305 = vpack.c.b16 %v287, %v286
  %vm324 = vcmask 261120
  %v326 = vsel %vm324, %v178, 0
  %v329 = vsel %vm324, %v181, 0
  %v332 = vsel %vm324, %v184, 0
  %v335 = vsel %vm324, %v187, 0
  %v338 = vsel %vm324, %v190, 0
  %v341 = vsel %vm324, %v193, 0
  %v344 = vsel %vm324, %v196, 0
  %v347 = vsel %vm324, %v199, 0
  %349 = vmatprep.subr.bf16.mxu0 0
  %350 = vmatpush1.bf16.msra.mxu0 %v295
  %351 = vmatprep.subr.bf16.mxu0 0
  %352 = vmatpush1.bf16.msra.mxu0 %v294
  %353 = vmatprep.subr.bf16.mxu0 0
  %354 = vmatpush1.bf16.msra.mxu0 %v293
  %355 = vmatprep.subr.bf16.mxu0 0
  %356 = vmatpush1.bf16.msra.mxu0 %v292
  %357 = vmatprep.subr.bf16.mxu0 0
  %358 = vmatpush1.bf16.msra.mxu0 %v291
  %359 = vmatprep.subr.bf16.mxu0 0
  %360 = vmatpush1.bf16.msra.mxu0 %v290
  %361 = vmatprep.subr.bf16.mxu0 0
  %362 = vmatpush1.bf16.msra.mxu0 %v289
  %363 = vmatprep.subr.bf16.mxu0 0
  %364 = vmatpush1.bf16.msra.mxu0 %v288
  %365 = vmatprep.subr.bf16.mxu0 0
  %366 = vmatpush2.bf16.msra.mxu0 %v303
  %367 = vmatprep.subr.bf16.mxu0 0
  %368 = vmatpush2.bf16.msra.mxu0 %v302
  %369 = vmatprep.subr.bf16.mxu0 0
  %370 = vmatpush2.bf16.msra.mxu0 %v301
  %371 = vmatprep.subr.bf16.mxu0 0
  %372 = vmatpush2.bf16.msra.mxu0 %v300
  %373 = vmatprep.subr.bf16.mxu0 0
  %374 = vmatpush2.bf16.msra.mxu0 %v299
  %375 = vmatprep.subr.bf16.mxu0 0
  %376 = vmatpush2.bf16.msra.mxu0 %v298
  %377 = vmatprep.subr.bf16.mxu0 0
  %378 = vmatpush2.bf16.msra.mxu0 %v297
  %379 = vmatprep.subr.bf16.mxu0 0
  %380 = vmatpush2.bf16.msra.mxu0 %v296
  %381 = vmatprep.mubr.bf16.mxu0 %v177
  %382 = vmatmul.mubr.bf16.gmra.mxu0 %v176
  %v383 = vpop.f32.mrf.mxu0
  %v384 = vadd.f32 %v94, %v383
  %v385 = vpop.f32.mrf.mxu0
  %v386 = vpop.f32.mrf.mxu0
  %v387 = vadd.f32 %v94, %v386
  %v388 = vpop.f32.mrf.mxu0
  %389 = vmatprep.mubr.bf16.mxu0 %v180
  %390 = vmatmul.mubr.bf16.gmra.mxu0 %v179
  %v391 = vpop.f32.mrf.mxu0
  %v392 = vadd.f32 %v94, %v391
  %v393 = vpop.f32.mrf.mxu0
  %v394 = vpop.f32.mrf.mxu0
  %v395 = vadd.f32 %v94, %v394
  %v396 = vpop.f32.mrf.mxu0
  %397 = vmatprep.mubr.bf16.mxu0 %v183
  %398 = vmatmul.mubr.bf16.gmra.mxu0 %v182
  %v399 = vpop.f32.mrf.mxu0
  %v400 = vadd.f32 %v94, %v399
  %v401 = vpop.f32.mrf.mxu0
  %v402 = vpop.f32.mrf.mxu0
  %v403 = vadd.f32 %v94, %v402
  %v404 = vpop.f32.mrf.mxu0
  %405 = vmatprep.mubr.bf16.mxu0 %v186
  %406 = vmatmul.mubr.bf16.gmra.mxu0 %v185
  %v407 = vpop.f32.mrf.mxu0
  %v408 = vadd.f32 %v94, %v407
  %v409 = vpop.f32.mrf.mxu0
  %v410 = vpop.f32.mrf.mxu0
  %v411 = vadd.f32 %v94, %v410
  %v412 = vpop.f32.mrf.mxu0
  %413 = vmatprep.mubr.bf16.mxu0 %v189
  %414 = vmatmul.mubr.bf16.gmra.mxu0 %v188
  %v415 = vpop.f32.mrf.mxu0
  %v416 = vadd.f32 %v94, %v415
  %v417 = vpop.f32.mrf.mxu0
  %v418 = vpop.f32.mrf.mxu0
  %v419 = vadd.f32 %v94, %v418
  %v420 = vpop.f32.mrf.mxu0
  %421 = vmatprep.mubr.bf16.mxu0 %v192
  %422 = vmatmul.mubr.bf16.gmra.mxu0 %v191
  %v423 = vpop.f32.mrf.mxu0
  %v424 = vadd.f32 %v94, %v423
  %v425 = vpop.f32.mrf.mxu0
  %v426 = vpop.f32.mrf.mxu0
  %v427 = vadd.f32 %v94, %v426
  %v428 = vpop.f32.mrf.mxu0
  %429 = vmatprep.mubr.bf16.mxu0 %v195
  %430 = vmatmul.mubr.bf16.gmra.mxu0 %v194
  %v431 = vpop.f32.mrf.mxu0
  %v432 = vadd.f32 %v94, %v431
  %v433 = vpop.f32.mrf.mxu0
  %v434 = vpop.f32.mrf.mxu0
  %v435 = vadd.f32 %v94, %v434
  %v436 = vpop.f32.mrf.mxu0
  %437 = vmatprep.mubr.bf16.mxu0 %v198
  %438 = vmatmul.mubr.bf16.gmra.mxu0 %v197
  %v439 = vpop.f32.mrf.mxu0
  %v440 = vadd.f32 %v94, %v439
  %v441 = vpop.f32.mrf.mxu0
  %v442 = vpop.f32.mrf.mxu0
  %v443 = vadd.f32 %v94, %v442
  %v444 = vpop.f32.mrf.mxu0
  %445 = vdwg.mxu0
  %446 = vmatprep.subr.bf16.mxu0 0
  %447 = vmatpush1.bf16.msra.mxu0 0
  %448 = vmatprep.subr.bf16.mxu0 0
  %449 = vmatpush1.bf16.msra.mxu0 0
  %450 = vmatprep.subr.bf16.mxu0 0
  %451 = vmatpush1.bf16.msra.mxu0 0
  %452 = vmatprep.subr.bf16.mxu0 0
  %453 = vmatpush1.bf16.msra.mxu0 0
  %454 = vmatprep.subr.bf16.mxu0 0
  %455 = vmatpush1.bf16.msra.mxu0 0
  %456 = vmatprep.subr.bf16.mxu0 0
  %457 = vmatpush1.bf16.msra.mxu0 0
  %458 = vmatprep.subr.bf16.mxu0 0
  %459 = vmatpush1.bf16.msra.mxu0 %v305
  %460 = vmatprep.subr.bf16.mxu0 0
  %461 = vmatpush1.bf16.msra.mxu0 %v304
  %462 = vmatprep.subr.bf16.mxu0 0
  %463 = vmatpush2.bf16.msra.mxu0 0
  %464 = vmatprep.subr.bf16.mxu0 0
  %465 = vmatpush2.bf16.msra.mxu0 0
  %466 = vmatprep.subr.bf16.mxu0 0
  %467 = vmatpush2.bf16.msra.mxu0 0
  %468 = vmatprep.subr.bf16.mxu0 0
  %469 = vmatpush2.bf16.msra.mxu0 0
  %470 = vmatprep.subr.bf16.mxu0 0
  %471 = vmatpush2.bf16.msra.mxu0 0
  %472 = vmatprep.subr.bf16.mxu0 0
  %473 = vmatpush2.bf16.msra.mxu0 0
  %474 = vmatprep.subr.bf16.mxu0 0
  %475 = vmatpush2.bf16.msra.mxu0 0
  %476 = vmatprep.subr.bf16.mxu0 0
  %477 = vmatpush2.bf16.msra.mxu0 0
  %478 = vmatprep.mubr.bf16.mxu0 0
  %479 = vmatmul.mubr.bf16.gmra.mxu0 %v326
  %v480 = vpop.f32.mrf.mxu0
  %v481 = vadd.f32 %v384, %v480
  %v482 = vpop.f32.mrf.mxu0
  %v483 = vpop.f32.mrf.mxu0
  %v484 = vadd.f32 %v387, %v483
  %v485 = vpop.f32.mrf.mxu0
  %486 = vmatprep.mubr.bf16.mxu0 0
  %487 = vmatmul.mubr.bf16.gmra.mxu0 %v329
  %v488 = vpop.f32.mrf.mxu0
  %v489 = vadd.f32 %v392, %v488
  %v490 = vpop.f32.mrf.mxu0
  %v491 = vpop.f32.mrf.mxu0
  %v492 = vadd.f32 %v395, %v491
  %v493 = vpop.f32.mrf.mxu0
  %494 = vmatprep.mubr.bf16.mxu0 0
  %495 = vmatmul.mubr.bf16.gmra.mxu0 %v332
  %v496 = vpop.f32.mrf.mxu0
  %v497 = vadd.f32 %v400, %v496
  %v498 = vpop.f32.mrf.mxu0
  %v499 = vpop.f32.mrf.mxu0
  %v500 = vadd.f32 %v403, %v499
  %v501 = vpop.f32.mrf.mxu0
  %502 = vmatprep.mubr.bf16.mxu0 0
  %503 = vmatmul.mubr.bf16.gmra.mxu0 %v335
  %v504 = vpop.f32.mrf.mxu0
  %v505 = vadd.f32 %v408, %v504
  %v506 = vpop.f32.mrf.mxu0
  %v507 = vpop.f32.mrf.mxu0
  %v508 = vadd.f32 %v411, %v507
  %v509 = vpop.f32.mrf.mxu0
  %510 = vmatprep.mubr.bf16.mxu0 0
  %511 = vmatmul.mubr.bf16.gmra.mxu0 %v338
  %v512 = vpop.f32.mrf.mxu0
  %v513 = vadd.f32 %v416, %v512
  %v514 = vpop.f32.mrf.mxu0
  %v515 = vpop.f32.mrf.mxu0
  %v516 = vadd.f32 %v419, %v515
  %v517 = vpop.f32.mrf.mxu0
  %518 = vmatprep.mubr.bf16.mxu0 0
  %519 = vmatmul.mubr.bf16.gmra.mxu0 %v341
  %v520 = vpop.f32.mrf.mxu0
  %v521 = vadd.f32 %v424, %v520
  %v522 = vpop.f32.mrf.mxu0
  %v523 = vpop.f32.mrf.mxu0
  %v524 = vadd.f32 %v427, %v523
  %v525 = vpop.f32.mrf.mxu0
  %526 = vmatprep.mubr.bf16.mxu0 0
  %527 = vmatmul.mubr.bf16.gmra.mxu0 %v344
  %v528 = vpop.f32.mrf.mxu0
  %v529 = vadd.f32 %v432, %v528
  %v530 = vpop.f32.mrf.mxu0
  %v531 = vpop.f32.mrf.mxu0
  %v532 = vadd.f32 %v435, %v531
  %v533 = vpop.f32.mrf.mxu0
  %534 = vmatprep.mubr.bf16.mxu0 0
  %535 = vmatmul.mubr.bf16.gmra.mxu0 %v347
  %v536 = vpop.f32.mrf.mxu0
  %v537 = vadd.f32 %v440, %v536
  %v538 = vpop.f32.mrf.mxu0
  %v539 = vpop.f32.mrf.mxu0
  %v540 = vadd.f32 %v443, %v539
  %v541 = vpop.f32.mrf.mxu0
  %542 = vdwg.mxu0
  %v543 = vmax.f32 %v481, 0.0
  %v544 = vmax.f32 %v484, 0.0
  %v545 = vmax.f32 %v489, 0.0
  %v546 = vmax.f32 %v492, 0.0
  %v547 = vmax.f32 %v497, 0.0
  %v548 = vmax.f32 %v500, 0.0
  %v549 = vmax.f32 %v505, 0.0
  %v550 = vmax.f32 %v508, 0.0
  %v551 = vmax.f32 %v513, 0.0
  %v552 = vmax.f32 %v516, 0.0
  %v553 = vmax.f32 %v521, 0.0
  %v554 = vmax.f32 %v524, 0.0
  %v555 = vmax.f32 %v529, 0.0
  %v556 = vmax.f32 %v532, 0.0
  %v557 = vmax.f32 %v537, 0.0
  %v558 = vmax.f32 %v540, 0.0
  %v559 = vld [vmem:[%s3] sm:$0x1]
  %v561 = vlaneseq
  %v562 = vshrl.u32 %v561, 7
  %v563 = vsub.s32 0, %v562
  %v564 = vrot.slane %v559, %v563
  %v566 = vmul.f32 %v543, %v564
  %v567 = vmul.f32 %v544, %v564
  %v568 = vmul.f32 %v545, %v564
  %v569 = vmul.f32 %v546, %v564
  %v570 = vmul.f32 %v547, %v564
  %v571 = vmul.f32 %v548, %v564
  %v572 = vmul.f32 %v549, %v564
  %v573 = vmul.f32 %v550, %v564
  %v574 = vmul.f32 %v551, %v564
  %v575 = vmul.f32 %v552, %v564
  %v576 = vmul.f32 %v553, %v564
  %v577 = vmul.f32 %v554, %v564
  %v578 = vmul.f32 %v555, %v564
  %v579 = vmul.f32 %v556, %v564
  %v580 = vmul.f32 %v557, %v564
  %v581 = vmul.f32 %v558, %v564
  %v582 = vld [vmem:[%s4] sm:$0x1]
  %v584 = vlaneseq
  %v585 = vshrl.u32 %v584, 7
  %v586 = vsub.s32 0, %v585
  %v587 = vrot.slane %v582, %v586
  %v589 = vadd.f32 %v566, %v587
  %v590 = vadd.f32 %v567, %v587
  %v591 = vadd.f32 %v568, %v587
  %v592 = vadd.f32 %v569, %v587
  %v593 = vadd.f32 %v570, %v587
  %v594 = vadd.f32 %v571, %v587
  %v595 = vadd.f32 %v572, %v587
  %v596 = vadd.f32 %v573, %v587
  %v597 = vadd.f32 %v574, %v587
  %v598 = vadd.f32 %v575, %v587
  %v599 = vadd.f32 %v576, %v587
  %v600 = vadd.f32 %v577, %v587
  %v601 = vadd.f32 %v578, %v587
  %v602 = vadd.f32 %v579, %v587
  %v603 = vadd.f32 %v580, %v587
  %v604 = vadd.f32 %v581, %v587
  %605 = vst [vmem:[%s5] sm:$0xff] %v589
  %606 = vst [vmem:[%s5 + $0x8] sm:$0xff] %v590
  %607 = vst [vmem:[%s5 + $0x10] sm:$0xff] %v591
  %608 = vst [vmem:[%s5 + $0x18] sm:$0xff] %v592
  %609 = vst [vmem:[%s5 + $0x20] sm:$0xff] %v593
  %610 = vst [vmem:[%s5 + $0x28] sm:$0xff] %v594
  %611 = vst [vmem:[%s5 + $0x30] sm:$0xff] %v595
  %612 = vst [vmem:[%s5 + $0x38] sm:$0xff] %v596
  %613 = vst [vmem:[%s5 + $0x40] sm:$0xff] %v597
  %614 = vst [vmem:[%s5 + $0x48] sm:$0xff] %v598
  %615 = vst [vmem:[%s5 + $0x50] sm:$0xff] %v599
  %616 = vst [vmem:[%s5 + $0x58] sm:$0xff] %v600
  %617 = vst [vmem:[%s5 + $0x60] sm:$0xff] %v601
  %618 = vst [vmem:[%s5 + $0x68] sm:$0xff] %v602
  %619 = vst [vmem:[%s5 + $0x70] sm:$0xff] %v603
  %620 = vst [vmem:[%s5 + $0x78] sm:$0xff] %v604
  // Predicated region
  $region22: #{network_forward.34} parent=0 // pred_check
    _
  $region23: #{network_forward.34} parent=0 // pred_check_branch
    %622 = sbr.rel (0) target = $region25
  $region24: #{network_forward.34} parent=0 // pred_region
    _
  $region25: #{network_forward.34} parent=0 // pred_fallthru
    _
  // Predicated region
  $region26: #{network_forward.34} parent=0 // pred_check
    _
  $region27: #{network_forward.34} parent=0 // pred_check_branch
    %624 = sbr.rel (0) target = $region29
  $region28: #{network_forward.34} parent=0 // pred_region
    _
  $region29: #{network_forward.34} parent=0 // pred_fallthru
    _

// kernel: network_forward.37
$region0: #{network_forward.37}
  #allocation0 [shape = 'u32[]', space=smem, size = 0x4, offset = 0x4, fixed_abs, tag = 'smem constant byte address 0x4 - core index']
  #allocation1 [shape = 'u32[144,128]{1,0:T(1,128)}', space=vmem, size = 0x12000, scoped, tag = 'internal scratch']
  %s0 = inlined_call_operand.vmem [shape: bf16[128,16], index: 0, kind: input, shape index: {}]
  %s1 = inlined_call_operand.vmem [shape: bf16[16,128], index: 1, kind: input, shape index: {}]
  %s2 = inlined_call_operand.vmem [shape: f32[1,128], index: 2, kind: input, shape index: {}]
  %s3 = inlined_call_operand.vmem [shape: f32[128,128], index: 3, kind: input, shape index: {}]
  %s4 = inlined_call_operand.vmem [shape: f32[1,128], index: 4, kind: input, shape index: {}]
  %s5 = inlined_call_operand.vmem [shape: f32[1,128], index: 5, kind: input, shape index: {}]
  %s6 = inlined_call_operand.hbm [shape: f32[128,128], index: 6, kind: output, shape index: {0}]
  %s7 = inlined_call_operand.vmem [shape: f32[128,128], index: 7, kind: output, shape index: {1}]
  %8 = xla_tuple %s6, %s7
  %s9 = sld [smem:[#allocation0]]
  $region42: #{network_forward.37} parent=0
    _
  %s11 = ssub.s32 1, %s9
  %s12 = scalar_select 0, %s11, %s9
  $region1: #{network_forward.37} parent=0
    #allocation2 [shape = 'u8[65536]{0}', space=vmem, size = 0x10000, scoped, tag = 'output window, operand 0, single buffered']
    #allocation3 [shape = 's32[1]{0}', space=sflag, size = 0x4, scoped, tag = 'scoped memory for network_forward.37']
    %13 = vsyncpa [#allocation3], 0
    // Predicated region
    $region2: #{network_forward.37} parent=1 // pred_check
      _
    $region3: #{network_forward.37} parent=1 // pred_check_branch
      %15 = sbr.rel (0) target = $region5
    $region4: #{network_forward.37} parent=1 // pred_region
      _
    $region5: #{network_forward.37} parent=1 // pred_fallthru
      _
    // Predicated region
    $region6: #{network_forward.37} parent=1 // pred_check
      _
    $region7: #{network_forward.37} parent=1 // pred_check_branch
      %17 = sbr.rel (0) target = $region9
    $region8: #{network_forward.37} parent=1 // pred_region
      _
    $region9: #{network_forward.37} parent=1 // pred_fallthru
      _
    // Predicated region
    $region10: #{network_forward.37} parent=1 // pred_check
      _
    $region11: #{network_forward.37} parent=1 // pred_check_branch
      %19 = sbr.rel (0) target = $region13
    $region12: #{network_forward.37} parent=1 // pred_region
      _
    $region13: #{network_forward.37} parent=1 // pred_fallthru
      _
    // Predicated region
    $region14: #{network_forward.37} parent=1 // pred_check
      _
    $region15: #{network_forward.37} parent=1 // pred_check_branch
      %21 = sbr.rel (0) target = $region17
    $region16: #{network_forward.37} parent=1 // pred_region
      _
    $region17: #{network_forward.37} parent=1 // pred_fallthru
      _
    // Predicated region
    $region18: #{network_forward.37} parent=1 // pred_check
      _
    $region19: #{network_forward.37} parent=1 // pred_check_branch
      %23 = sbr.rel (0) target = $region21
    $region20: #{network_forward.37} parent=1 // pred_region
      _
    $region21: #{network_forward.37} parent=1 // pred_fallthru
      _
    // Predicated region
    $region22: #{network_forward.37} parent=1 // pred_check
      _
    $region23: #{network_forward.37} parent=1 // pred_check_branch
      %25 = sbr.rel (0) target = $region25
    $region24: #{network_forward.37} parent=1 // pred_region
      _
    $region25: #{network_forward.37} parent=1 // pred_fallthru
      _
    %v27 = vld [vmem:[%s0] sm:$0xf]
    %v28 = vld [vmem:[%s0 + $0x4] sm:$0xf]
    %v29 = vld [vmem:[%s0 + $0x8] sm:$0xf]
    %v30 = vld [vmem:[%s0 + $0xc] sm:$0xf]
    %v31 = vld [vmem:[%s0 + $0x10] sm:$0xf]
    %v32 = vld [vmem:[%s0 + $0x14] sm:$0xf]
    %v33 = vld [vmem:[%s0 + $0x18] sm:$0xf]
    %v34 = vld [vmem:[%s0 + $0x1c] sm:$0xf]
    %v35 = vld [vmem:[%s0 + $0x20] sm:$0xf]
    %v36 = vld [vmem:[%s0 + $0x24] sm:$0xf]
    %v37 = vld [vmem:[%s0 + $0x28] sm:$0xf]
    %v38 = vld [vmem:[%s0 + $0x2c] sm:$0xf]
    %v39 = vld [vmem:[%s0 + $0x30] sm:$0xf]
    %v40 = vld [vmem:[%s0 + $0x34] sm:$0xf]
    %v41 = vld [vmem:[%s0 + $0x38] sm:$0xf]
    %v42 = vld [vmem:[%s0 + $0x3c] sm:$0xf]
    %v43 = vld [vmem:[%s1] sm:$0xf]
    %v44 = vld [vmem:[%s1 + $0x4] sm:$0xf]
    %v45 = vld [vmem:[%s2] sm:$0x1]
    %v47 = vlaneseq
    %v48 = vshrl.u32 %v47, 7
    %v49 = vsub.s32 0, %v48
    %v50 = vrot.slane %v45, %v49
    %v68 = vunpack.c.l.b16 %v27
    %v69 = vunpack.c.l.b16 %v28
    %v70 = vunpack.c.l.b16 %v29
    %v71 = vunpack.c.l.b16 %v30
    %v72 = vunpack.c.l.b16 %v31
    %v73 = vunpack.c.l.b16 %v32
    %v74 = vunpack.c.l.b16 %v33
    %v75 = vunpack.c.l.b16 %v34
    %v76 = vunpack.c.l.b16 %v35
    %v77 = vunpack.c.l.b16 %v36
    %v78 = vunpack.c.l.b16 %v37
    %v79 = vunpack.c.l.b16 %v38
    %v80 = vunpack.c.l.b16 %v39
    %v81 = vunpack.c.l.b16 %v40
    %v82 = vunpack.c.l.b16 %v41
    %v83 = vunpack.c.l.b16 %v42
    %v84 = vpack.c.b16 %v69, %v68
    %v85 = vpack.c.b16 %v71, %v70
    %v86 = vpack.c.b16 %v73, %v72
    %v87 = vpack.c.b16 %v75, %v74
    %v88 = vpack.c.b16 %v77, %v76
    %v89 = vpack.c.b16 %v79, %v78
    %v90 = vpack.c.b16 %v81, %v80
    %v91 = vpack.c.b16 %v83, %v82
    %v94 = vunpack.c.l.b16 %v43
    %v95 = vunpack.c.l.b16 %v44
    %v96 = vpack.c.b16 %v95, %v94
    %vm98 = vcmask 130048
    %v100 = vsel %vm98, %v84, 0
    %v103 = vsel %vm98, %v85, 0
    %v106 = vsel %vm98, %v86, 0
    %v109 = vsel %vm98, %v87, 0
    %v112 = vsel %vm98, %v88, 0
    %v115 = vsel %vm98, %v89, 0
    %v118 = vsel %vm98, %v90, 0
    %v121 = vsel %vm98, %v91, 0
    %123 = vmatprep.subr.bf16.mxu0 0
    %124 = vmatpush1.bf16.msra.mxu0 0
    %125 = vmatprep.subr.bf16.mxu0 0
    %126 = vmatpush1.bf16.msra.mxu0 0
    %127 = vmatprep.subr.bf16.mxu0 0
    %128 = vmatpush1.bf16.msra.mxu0 0
    %129 = vmatprep.subr.bf16.mxu0 0
    %130 = vmatpush1.bf16.msra.mxu0 0
    %131 = vmatprep.subr.bf16.mxu0 0
    %132 = vmatpush1.bf16.msra.mxu0 0
    %133 = vmatprep.subr.bf16.mxu0 0
    %134 = vmatpush1.bf16.msra.mxu0 0
    %135 = vmatprep.subr.bf16.mxu0 0
    %136 = vmatpush1.bf16.msra.mxu0 0
    %137 = vmatprep.subr.bf16.mxu0 0
    %138 = vmatpush1.bf16.msra.mxu0 %v96
    %139 = vmatprep.subr.bf16.mxu0 0
    %140 = vmatpush2.bf16.msra.mxu0 0
    %141 = vmatprep.subr.bf16.mxu0 0
    %142 = vmatpush2.bf16.msra.mxu0 0
    %143 = vmatprep.subr.bf16.mxu0 0
    %144 = vmatpush2.bf16.msra.mxu0 0
    %145 = vmatprep.subr.bf16.mxu0 0
    %146 = vmatpush2.bf16.msra.mxu0 0
    %147 = vmatprep.subr.bf16.mxu0 0
    %148 = vmatpush2.bf16.msra.mxu0 0
    %149 = vmatprep.subr.bf16.mxu0 0
    %150 = vmatpush2.bf16.msra.mxu0 0
    %151 = vmatprep.subr.bf16.mxu0 0
    %152 = vmatpush2.bf16.msra.mxu0 0
    %153 = vmatprep.subr.bf16.mxu0 0
    %154 = vmatpush2.bf16.msra.mxu0 0
    %155 = vmatprep.mubr.bf16.mxu0 0
    %156 = vmatmul.mubr.bf16.gmra.mxu0 %v100
    %v157 = vpop.f32.mrf.mxu0
    %v158 = vadd.f32 %v50, %v157
    %v159 = vpop.f32.mrf.mxu0
    %v160 = vpop.f32.mrf.mxu0
    %v161 = vadd.f32 %v50, %v160
    %v162 = vpop.f32.mrf.mxu0
    %163 = vmatprep.mubr.bf16.mxu0 0
    %164 = vmatmul.mubr.bf16.gmra.mxu0 %v103
    %v165 = vpop.f32.mrf.mxu0
    %v166 = vadd.f32 %v50, %v165
    %v167 = vpop.f32.mrf.mxu0
    %v168 = vpop.f32.mrf.mxu0
    %v169 = vadd.f32 %v50, %v168
    %v170 = vpop.f32.mrf.mxu0
    %171 = vmatprep.mubr.bf16.mxu0 0
    %172 = vmatmul.mubr.bf16.gmra.mxu0 %v106
    %v173 = vpop.f32.mrf.mxu0
    %v174 = vadd.f32 %v50, %v173
    %v175 = vpop.f32.mrf.mxu0
    %v176 = vpop.f32.mrf.mxu0
    %v177 = vadd.f32 %v50, %v176
    %v178 = vpop.f32.mrf.mxu0
    %179 = vmatprep.mubr.bf16.mxu0 0
    %180 = vmatmul.mubr.bf16.gmra.mxu0 %v109
    %v181 = vpop.f32.mrf.mxu0
    %v182 = vadd.f32 %v50, %v181
    %v183 = vpop.f32.mrf.mxu0
    %v184 = vpop.f32.mrf.mxu0
    %v185 = vadd.f32 %v50, %v184
    %v186 = vpop.f32.mrf.mxu0
    %187 = vmatprep.mubr.bf16.mxu0 0
    %188 = vmatmul.mubr.bf16.gmra.mxu0 %v112
    %v189 = vpop.f32.mrf.mxu0
    %v190 = vadd.f32 %v50, %v189
    %v191 = vpop.f32.mrf.mxu0
    %v192 = vpop.f32.mrf.mxu0
    %v193 = vadd.f32 %v50, %v192
    %v194 = vpop.f32.mrf.mxu0
    %195 = vmatprep.mubr.bf16.mxu0 0
    %196 = vmatmul.mubr.bf16.gmra.mxu0 %v115
    %v197 = vpop.f32.mrf.mxu0
    %v198 = vadd.f32 %v50, %v197
    %v199 = vpop.f32.mrf.mxu0
    %v200 = vpop.f32.mrf.mxu0
    %v201 = vadd.f32 %v50, %v200
    %v202 = vpop.f32.mrf.mxu0
    %203 = vmatprep.mubr.bf16.mxu0 0
    %204 = vmatmul.mubr.bf16.gmra.mxu0 %v118
    %v205 = vpop.f32.mrf.mxu0
    %v206 = vadd.f32 %v50, %v205
    %v207 = vpop.f32.mrf.mxu0
    %v208 = vpop.f32.mrf.mxu0
    %v209 = vadd.f32 %v50, %v208
    %v210 = vpop.f32.mrf.mxu0
    %211 = vmatprep.mubr.bf16.mxu0 0
    %212 = vmatmul.mubr.bf16.gmra.mxu0 %v121
    %v213 = vpop.f32.mrf.mxu0
    %v214 = vadd.f32 %v50, %v213
    %v215 = vpop.f32.mrf.mxu0
    %v216 = vpop.f32.mrf.mxu0
    %v217 = vadd.f32 %v50, %v216
    %v218 = vpop.f32.mrf.mxu0
    %219 = vdwg.mxu0
    %v220 = vld [vmem:[%s3] sm:$0xff]
    %v221 = vld [vmem:[%s3 + $0x8] sm:$0xff]
    %v222 = vld [vmem:[%s3 + $0x10] sm:$0xff]
    %v223 = vld [vmem:[%s3 + $0x18] sm:$0xff]
    %v224 = vld [vmem:[%s3 + $0x20] sm:$0xff]
    %v225 = vld [vmem:[%s3 + $0x28] sm:$0xff]
    %v226 = vld [vmem:[%s3 + $0x30] sm:$0xff]
    %v227 = vld [vmem:[%s3 + $0x38] sm:$0xff]
    %v228 = vld [vmem:[%s3 + $0x40] sm:$0xff]
    %v229 = vld [vmem:[%s3 + $0x48] sm:$0xff]
    %v230 = vld [vmem:[%s3 + $0x50] sm:$0xff]
    %v231 = vld [vmem:[%s3 + $0x58] sm:$0xff]
    %v232 = vld [vmem:[%s3 + $0x60] sm:$0xff]
    %v233 = vld [vmem:[%s3 + $0x68] sm:$0xff]
    %v234 = vld [vmem:[%s3 + $0x70] sm:$0xff]
    %v235 = vld [vmem:[%s3 + $0x78] sm:$0xff]
    %v236 = vadd.f32 %v158, %v220
    %v237 = vadd.f32 %v161, %v221
    %v238 = vadd.f32 %v166, %v222
    %v239 = vadd.f32 %v169, %v223
    %v240 = vadd.f32 %v174, %v224
    %v241 = vadd.f32 %v177, %v225
    %v242 = vadd.f32 %v182, %v226
    %v243 = vadd.f32 %v185, %v227
    %v244 = vadd.f32 %v190, %v228
    %v245 = vadd.f32 %v193, %v229
    %v246 = vadd.f32 %v198, %v230
    %v247 = vadd.f32 %v201, %v231
    %v248 = vadd.f32 %v206, %v232
    %v249 = vadd.f32 %v209, %v233
    %v250 = vadd.f32 %v214, %v234
    %v251 = vadd.f32 %v217, %v235
    %252 = vst [vmem:[#allocation2] sm:$0xff] %v236
    %253 = vst [vmem:[#allocation2 + $0x8] sm:$0xff] %v237
    %254 = vst [vmem:[#allocation2 + $0x10] sm:$0xff] %v238
    %255 = vst [vmem:[#allocation2 + $0x18] sm:$0xff] %v239
    %256 = vst [vmem:[#allocation2 + $0x20] sm:$0xff] %v240
    %257 = vst [vmem:[#allocation2 + $0x28] sm:$0xff] %v241
    %258 = vst [vmem:[#allocation2 + $0x30] sm:$0xff] %v242
    %259 = vst [vmem:[#allocation2 + $0x38] sm:$0xff] %v243
    %260 = vst [vmem:[#allocation2 + $0x40] sm:$0xff] %v244
    %261 = vst [vmem:[#allocation2 + $0x48] sm:$0xff] %v245
    %262 = vst [vmem:[#allocation2 + $0x50] sm:$0xff] %v246
    %263 = vst [vmem:[#allocation2 + $0x58] sm:$0xff] %v247
    %264 = vst [vmem:[#allocation2 + $0x60] sm:$0xff] %v248
    %265 = vst [vmem:[#allocation2 + $0x68] sm:$0xff] %v249
    %266 = vst [vmem:[#allocation2 + $0x70] sm:$0xff] %v250
    %267 = vst [vmem:[#allocation2 + $0x78] sm:$0xff] %v251
    %v268 = vmax.f32 %v236, 0.0
    %v269 = vmax.f32 %v237, 0.0
    %v270 = vmax.f32 %v238, 0.0
    %v271 = vmax.f32 %v239, 0.0
    %v272 = vmax.f32 %v240, 0.0
    %v273 = vmax.f32 %v241, 0.0
    %v274 = vmax.f32 %v242, 0.0
    %v275 = vmax.f32 %v243, 0.0
    %v276 = vmax.f32 %v244, 0.0
    %v277 = vmax.f32 %v245, 0.0
    %v278 = vmax.f32 %v246, 0.0
    %v279 = vmax.f32 %v247, 0.0
    %v280 = vmax.f32 %v248, 0.0
    %v281 = vmax.f32 %v249, 0.0
    %v282 = vmax.f32 %v250, 0.0
    %v283 = vmax.f32 %v251, 0.0
    %v284 = vld [vmem:[%s4] sm:$0x1]
    %v286 = vlaneseq
    %v287 = vshrl.u32 %v286, 7
    %v288 = vsub.s32 0, %v287
    %v289 = vrot.slane %v284, %v288
    %v291 = vmul.f32 %v268, %v289
    %v292 = vmul.f32 %v269, %v289
    %v293 = vmul.f32 %v270, %v289
    %v294 = vmul.f32 %v271, %v289
    %v295 = vmul.f32 %v272, %v289
    %v296 = vmul.f32 %v273, %v289
    %v297 = vmul.f32 %v274, %v289
    %v298 = vmul.f32 %v275, %v289
    %v299 = vmul.f32 %v276, %v289
    %v300 = vmul.f32 %v277, %v289
    %v301 = vmul.f32 %v278, %v289
    %v302 = vmul.f32 %v279, %v289
    %v303 = vmul.f32 %v280, %v289
    %v304 = vmul.f32 %v281, %v289
    %v305 = vmul.f32 %v282, %v289
    %v306 = vmul.f32 %v283, %v289
    %v307 = vld [vmem:[%s5] sm:$0x1]
    %v309 = vlaneseq
    %v310 = vshrl.u32 %v309, 7
    %v311 = vsub.s32 0, %v310
    %v312 = vrot.slane %v307, %v311
    %v314 = vadd.f32 %v291, %v312
    %v315 = vadd.f32 %v292, %v312
    %v316 = vadd.f32 %v293, %v312
    %v317 = vadd.f32 %v294, %v312
    %v318 = vadd.f32 %v295, %v312
    %v319 = vadd.f32 %v296, %v312
    %v320 = vadd.f32 %v297, %v312
    %v321 = vadd.f32 %v298, %v312
    %v322 = vadd.f32 %v299, %v312
    %v323 = vadd.f32 %v300, %v312
    %v324 = vadd.f32 %v301, %v312
    %v325 = vadd.f32 %v302, %v312
    %v326 = vadd.f32 %v303, %v312
    %v327 = vadd.f32 %v304, %v312
    %v328 = vadd.f32 %v305, %v312
    %v329 = vadd.f32 %v306, %v312
    %330 = vst [vmem:[%s7] sm:$0xff] %v314
    %331 = vst [vmem:[%s7 + $0x8] sm:$0xff] %v315
    %332 = vst [vmem:[%s7 + $0x10] sm:$0xff] %v316
    %333 = vst [vmem:[%s7 + $0x18] sm:$0xff] %v317
    %334 = vst [vmem:[%s7 + $0x20] sm:$0xff] %v318
    %335 = vst [vmem:[%s7 + $0x28] sm:$0xff] %v319
    %336 = vst [vmem:[%s7 + $0x30] sm:$0xff] %v320
    %337 = vst [vmem:[%s7 + $0x38] sm:$0xff] %v321
    %338 = vst [vmem:[%s7 + $0x40] sm:$0xff] %v322
    %339 = vst [vmem:[%s7 + $0x48] sm:$0xff] %v323
    %340 = vst [vmem:[%s7 + $0x50] sm:$0xff] %v324
    %341 = vst [vmem:[%s7 + $0x58] sm:$0xff] %v325
    %342 = vst [vmem:[%s7 + $0x60] sm:$0xff] %v326
    %343 = vst [vmem:[%s7 + $0x68] sm:$0xff] %v327
    %344 = vst [vmem:[%s7 + $0x70] sm:$0xff] %v328
    %345 = vst [vmem:[%s7 + $0x78] sm:$0xff] %v329
    // Predicated region
    $region26: #{network_forward.37} parent=1 // pred_check
      _
    $region27: #{network_forward.37} parent=1 // pred_check_branch
      %347 = sbr.rel (0) target = $region29
    $region28: #{network_forward.37} parent=1 // pred_region
      %s349 = ssub.s32 2048, 2048
      %350 = vsyncadd [#allocation3], %s349
      %s351 = sshll.u32 [#allocation2], 4
      %s352 = int_to_ptr.vmem [resolvable:$true] %s351
      %357 = dma.vmem_to_hbm [thread:$0]  %s352, 2048, %s6, [#allocation3], 128, 128, 8
    $region29: #{network_forward.37} parent=1 // pred_fallthru
      _
    // Predicated region
    $region30: #{network_forward.37} parent=1 // pred_check
      _
    $region31: #{network_forward.37} parent=1 // pred_check_branch
      %359 = sbr.rel (0) target = $region33
    $region32: #{network_forward.37} parent=1 // pred_region
      _
    $region33: #{network_forward.37} parent=1 // pred_fallthru
      _
    // Predicated region
    $region34: #{network_forward.37} parent=1 // pred_check
      _
    $region35: #{network_forward.37} parent=1 // pred_check_branch
      %361 = sbr.rel (0) target = $region37
    $region36: #{network_forward.37} parent=1 // pred_region
      %362 = dma.done [#allocation3], 2048
    $region37: #{network_forward.37} parent=1 // pred_fallthru
      _
    // Predicated region
    $region38: #{network_forward.37} parent=1 // pred_check
      _
    $region39: #{network_forward.37} parent=1 // pred_check_branch
      %364 = sbr.rel (0) target = $region41
    $region40: #{network_forward.37} parent=1 // pred_region
      _
    $region41: #{network_forward.37} parent=1 // pred_fallthru
      _
    %365 = vsyncpa [#allocation3], 1

// kernel: network_forward.38
$region0: #{network_forward.38}
  #allocation0 [shape = 'u32[]', space=smem, size = 0x4, offset = 0x4, fixed_abs, tag = 'smem constant byte address 0x4 - core index']
  #allocation1 [shape = 'u32[144,128]{1,0:T(1,128)}', space=vmem, size = 0x12000, scoped, tag = 'internal scratch']
  %s0 = inlined_call_operand.vmem [shape: bf16[32,512], index: 0, kind: input, shape index: {}]
  %s1 = inlined_call_operand.vmem [shape: bf16[512,128], index: 1, kind: input, shape index: {}]
  %s2 = inlined_call_operand.vmem [shape: f32[1,128], index: 2, kind: input, shape index: {}]
  %s3 = inlined_call_operand.vmem [shape: f32[1,128], index: 3, kind: input, shape index: {}]
  %s4 = inlined_call_operand.vmem [shape: f32[1,128], index: 4, kind: input, shape index: {}]
  %s5 = inlined_call_operand.vmem [shape: f32[32,128], index: 5, kind: output, shape index: {}]
  %s6 = sld [smem:[#allocation0]]
  $region30: #{network_forward.38} parent=0
    _
  %s8 = ssub.s32 1, %s6
  %s9 = scalar_select 0, %s8, %s6
  // Predicated region
  $region2: #{network_forward.38} parent=0 // pred_check
    _
  $region3: #{network_forward.38} parent=0 // pred_check_branch
    %11 = sbr.rel (0) target = $region5
  $region4: #{network_forward.38} parent=0 // pred_region
    _
  $region5: #{network_forward.38} parent=0 // pred_fallthru
    _
  // Predicated region
  $region6: #{network_forward.38} parent=0 // pred_check
    _
  $region7: #{network_forward.38} parent=0 // pred_check_branch
    %13 = sbr.rel (0) target = $region9
  $region8: #{network_forward.38} parent=0 // pred_region
    _
  $region9: #{network_forward.38} parent=0 // pred_fallthru
    _
  // Predicated region
  $region10: #{network_forward.38} parent=0 // pred_check
    _
  $region11: #{network_forward.38} parent=0 // pred_check_branch
    %15 = sbr.rel (0) target = $region13
  $region12: #{network_forward.38} parent=0 // pred_region
    _
  $region13: #{network_forward.38} parent=0 // pred_fallthru
    _
  // Predicated region
  $region14: #{network_forward.38} parent=0 // pred_check
    _
  $region15: #{network_forward.38} parent=0 // pred_check_branch
    %17 = sbr.rel (0) target = $region17
  $region16: #{network_forward.38} parent=0 // pred_region
    _
  $region17: #{network_forward.38} parent=0 // pred_fallthru
    _
  // Predicated region
  $region18: #{network_forward.38} parent=0 // pred_check
    _
  $region19: #{network_forward.38} parent=0 // pred_check_branch
    %19 = sbr.rel (0) target = $region21
  $region20: #{network_forward.38} parent=0 // pred_region
    _
  $region21: #{network_forward.38} parent=0 // pred_fallthru
    _
  %v21 = vld [vmem:[%s0] sm:$0xff]
  %v22 = vld [vmem:[%s0 + $0x8] sm:$0xff]
  %v23 = vld [vmem:[%s0 + $0x10] sm:$0xff]
  %v24 = vld [vmem:[%s0 + $0x18] sm:$0xff]
  %v25 = vld [vmem:[%s0 + $0x20] sm:$0xff]
  %v26 = vld [vmem:[%s0 + $0x28] sm:$0xff]
  %v27 = vld [vmem:[%s0 + $0x30] sm:$0xff]
  %v28 = vld [vmem:[%s0 + $0x38] sm:$0xff]
  %v29 = vld [vmem:[%s1] sm:$0xf]
  %v30 = vld [vmem:[%s1 + $0x4] sm:$0xf]
  %v31 = vld [vmem:[%s1 + $0x8] sm:$0xf]
  %v32 = vld [vmem:[%s1 + $0xc] sm:$0xf]
  %v33 = vld [vmem:[%s1 + $0x10] sm:$0xf]
  %v34 = vld [vmem:[%s1 + $0x14] sm:$0xf]
  %v35 = vld [vmem:[%s1 + $0x18] sm:$0xf]
  %v36 = vld [vmem:[%s1 + $0x1c] sm:$0xf]
  %v37 = vld [vmem:[%s1 + $0x20] sm:$0xf]
  %v38 = vld [vmem:[%s1 + $0x24] sm:$0xf]
  %v39 = vld [vmem:[%s1 + $0x28] sm:$0xf]
  %v40 = vld [vmem:[%s1 + $0x2c] sm:$0xf]
  %v41 = vld [vmem:[%s1 + $0x30] sm:$0xf]
  %v42 = vld [vmem:[%s1 + $0x34] sm:$0xf]
  %v43 = vld [vmem:[%s1 + $0x38] sm:$0xf]
  %v44 = vld [vmem:[%s1 + $0x3c] sm:$0xf]
  %v45 = vld [vmem:[%s1 + $0x40] sm:$0xf]
  %v46 = vld [vmem:[%s1 + $0x44] sm:$0xf]
  %v47 = vld [vmem:[%s1 + $0x48] sm:$0xf]
  %v48 = vld [vmem:[%s1 + $0x4c] sm:$0xf]
  %v49 = vld [vmem:[%s1 + $0x50] sm:$0xf]
  %v50 = vld [vmem:[%s1 + $0x54] sm:$0xf]
  %v51 = vld [vmem:[%s1 + $0x58] sm:$0xf]
  %v52 = vld [vmem:[%s1 + $0x5c] sm:$0xf]
  %v53 = vld [vmem:[%s1 + $0x60] sm:$0xf]
  %v54 = vld [vmem:[%s1 + $0x64] sm:$0xf]
  %v55 = vld [vmem:[%s1 + $0x68] sm:$0xf]
  %v56 = vld [vmem:[%s1 + $0x6c] sm:$0xf]
  %v57 = vld [vmem:[%s1 + $0x70] sm:$0xf]
  %v58 = vld [vmem:[%s1 + $0x74] sm:$0xf]
  %v59 = vld [vmem:[%s1 + $0x78] sm:$0xf]
  %v60 = vld [vmem:[%s1 + $0x7c] sm:$0xf]
  %v61 = vld [vmem:[%s1 + $0x80] sm:$0xf]
  %v62 = vld [vmem:[%s1 + $0x84] sm:$0xf]
  %v63 = vld [vmem:[%s1 + $0x88] sm:$0xf]
  %v64 = vld [vmem:[%s1 + $0x8c] sm:$0xf]
  %v65 = vld [vmem:[%s1 + $0x90] sm:$0xf]
  %v66 = vld [vmem:[%s1 + $0x94] sm:$0xf]
  %v67 = vld [vmem:[%s1 + $0x98] sm:$0xf]
  %v68 = vld [vmem:[%s1 + $0x9c] sm:$0xf]
  %v69 = vld [vmem:[%s1 + $0xa0] sm:$0xf]
  %v70 = vld [vmem:[%s1 + $0xa4] sm:$0xf]
  %v71 = vld [vmem:[%s1 + $0xa8] sm:$0xf]
  %v72 = vld [vmem:[%s1 + $0xac] sm:$0xf]
  %v73 = vld [vmem:[%s1 + $0xb0] sm:$0xf]
  %v74 = vld [vmem:[%s1 + $0xb4] sm:$0xf]
  %v75 = vld [vmem:[%s1 + $0xb8] sm:$0xf]
  %v76 = vld [vmem:[%s1 + $0xbc] sm:$0xf]
  %v77 = vld [vmem:[%s1 + $0xc0] sm:$0xf]
  %v78 = vld [vmem:[%s1 + $0xc4] sm:$0xf]
  %v79 = vld [vmem:[%s1 + $0xc8] sm:$0xf]
  %v80 = vld [vmem:[%s1 + $0xcc] sm:$0xf]
  %v81 = vld [vmem:[%s1 + $0xd0] sm:$0xf]
  %v82 = vld [vmem:[%s1 + $0xd4] sm:$0xf]
  %v83 = vld [vmem:[%s1 + $0xd8] sm:$0xf]
  %v84 = vld [vmem:[%s1 + $0xdc] sm:$0xf]
  %v85 = vld [vmem:[%s1 + $0xe0] sm:$0xf]
  %v86 = vld [vmem:[%s1 + $0xe4] sm:$0xf]
  %v87 = vld [vmem:[%s1 + $0xe8] sm:$0xf]
  %v88 = vld [vmem:[%s1 + $0xec] sm:$0xf]
  %v89 = vld [vmem:[%s1 + $0xf0] sm:$0xf]
  %v90 = vld [vmem:[%s1 + $0xf4] sm:$0xf]
  %v91 = vld [vmem:[%s1 + $0xf8] sm:$0xf]
  %v92 = vld [vmem:[%s1 + $0xfc] sm:$0xf]
  %v93 = vld [vmem:[%s2] sm:$0x1]
  %v95 = vlaneseq
  %v96 = vshrl.u32 %v95, 7
  %v97 = vsub.s32 0, %v96
  %v98 = vrot.slane %v93, %v97
  %v108 = vunpack.c.l.b16 %v21
  %v109 = vunpack.c.h.b16 %v21
  %v110 = vunpack.c.l.b16 %v22
  %v111 = vunpack.c.h.b16 %v22
  %v112 = vunpack.c.l.b16 %v23
  %v113 = vunpack.c.h.b16 %v23
  %v114 = vunpack.c.l.b16 %v24
  %v115 = vunpack.c.h.b16 %v24
  %v116 = vunpack.c.l.b16 %v25
  %v117 = vunpack.c.h.b16 %v25
  %v118 = vunpack.c.l.b16 %v26
  %v119 = vunpack.c.h.b16 %v26
  %v120 = vunpack.c.l.b16 %v27
  %v121 = vunpack.c.h.b16 %v27
  %v122 = vunpack.c.l.b16 %v28
  %v123 = vunpack.c.h.b16 %v28
  %v124 = vpack.c.b16 %v112, %v108
  %v125 = vpack.c.b16 %v113, %v109
  %v126 = vpack.c.b16 %v114, %v110
  %v127 = vpack.c.b16 %v115, %v111
  %v128 = vpack.c.b16 %v120, %v116
  %v129 = vpack.c.b16 %v121, %v117
  %v130 = vpack.c.b16 %v122, %v118
  %v131 = vpack.c.b16 %v123, %v119
  %v204 = vunpack.c.l.b16 %v29
  %v205 = vunpack.c.l.b16 %v30
  %v206 = vunpack.c.l.b16 %v31
  %v207 = vunpack.c.l.b16 %v32
  %v208 = vunpack.c.l.b16 %v33
  %v209 = vunpack.c.l.b16 %v34
  %v210 = vunpack.c.l.b16 %v35
  %v211 = vunpack.c.l.b16 %v36
  %v212 = vunpack.c.l.b16 %v37
  %v213 = vunpack.c.l.b16 %v38
  %v214 = vunpack.c.l.b16 %v39
  %v215 = vunpack.c.l.b16 %v40
  %v216 = vunpack.c.l.b16 %v41
  %v217 = vunpack.c.l.b16 %v42
  %v218 = vunpack.c.l.b16 %v43
  %v219 = vunpack.c.l.b16 %v44
  %v220 = vunpack.c.l.b16 %v45
  %v221 = vunpack.c.l.b16 %v46
  %v222 = vunpack.c.l.b16 %v47
  %v223 = vunpack.c.l.b16 %v48
  %v224 = vunpack.c.l.b16 %v49
  %v225 = vunpack.c.l.b16 %v50
  %v226 = vunpack.c.l.b16 %v51
  %v227 = vunpack.c.l.b16 %v52
  %v228 = vunpack.c.l.b16 %v53
  %v229 = vunpack.c.l.b16 %v54
  %v230 = vunpack.c.l.b16 %v55
  %v231 = vunpack.c.l.b16 %v56
  %v232 = vunpack.c.l.b16 %v57
  %v233 = vunpack.c.l.b16 %v58
  %v234 = vunpack.c.l.b16 %v59
  %v235 = vunpack.c.l.b16 %v60
  %v236 = vunpack.c.l.b16 %v61
  %v237 = vunpack.c.l.b16 %v62
  %v238 = vunpack.c.l.b16 %v63
  %v239 = vunpack.c.l.b16 %v64
  %v240 = vunpack.c.l.b16 %v65
  %v241 = vunpack.c.l.b16 %v66
  %v242 = vunpack.c.l.b16 %v67
  %v243 = vunpack.c.l.b16 %v68
  %v244 = vunpack.c.l.b16 %v69
  %v245 = vunpack.c.l.b16 %v70
  %v246 = vunpack.c.l.b16 %v71
  %v247 = vunpack.c.l.b16 %v72
  %v248 = vunpack.c.l.b16 %v73
  %v249 = vunpack.c.l.b16 %v74
  %v250 = vunpack.c.l.b16 %v75
  %v251 = vunpack.c.l.b16 %v76
  %v252 = vunpack.c.l.b16 %v77
  %v253 = vunpack.c.l.b16 %v78
  %v254 = vunpack.c.l.b16 %v79
  %v255 = vunpack.c.l.b16 %v80
  %v256 = vunpack.c.l.b16 %v81
  %v257 = vunpack.c.l.b16 %v82
  %v258 = vunpack.c.l.b16 %v83
  %v259 = vunpack.c.l.b16 %v84
  %v260 = vunpack.c.l.b16 %v85
  %v261 = vunpack.c.l.b16 %v86
  %v262 = vunpack.c.l.b16 %v87
  %v263 = vunpack.c.l.b16 %v88
  %v264 = vunpack.c.l.b16 %v89
  %v265 = vunpack.c.l.b16 %v90
  %v266 = vunpack.c.l.b16 %v91
  %v267 = vunpack.c.l.b16 %v92
  %v268 = vpack.c.b16 %v205, %v204
  %v269 = vpack.c.b16 %v207, %v206
  %v270 = vpack.c.b16 %v209, %v208
  %v271 = vpack.c.b16 %v211, %v210
  %v272 = vpack.c.b16 %v213, %v212
  %v273 = vpack.c.b16 %v215, %v214
  %v274 = vpack.c.b16 %v217, %v216
  %v275 = vpack.c.b16 %v219, %v218
  %v276 = vpack.c.b16 %v221, %v220
  %v277 = vpack.c.b16 %v223, %v222
  %v278 = vpack.c.b16 %v225, %v224
  %v279 = vpack.c.b16 %v227, %v226
  %v280 = vpack.c.b16 %v229, %v228
  %v281 = vpack.c.b16 %v231, %v230
  %v282 = vpack.c.b16 %v233, %v232
  %v283 = vpack.c.b16 %v235, %v234
  %v284 = vpack.c.b16 %v237, %v236
  %v285 = vpack.c.b16 %v239, %v238
  %v286 = vpack.c.b16 %v241, %v240
  %v287 = vpack.c.b16 %v243, %v242
  %v288 = vpack.c.b16 %v245, %v244
  %v289 = vpack.c.b16 %v247, %v246
  %v290 = vpack.c.b16 %v249, %v248
  %v291 = vpack.c.b16 %v251, %v250
  %v292 = vpack.c.b16 %v253, %v252
  %v293 = vpack.c.b16 %v255, %v254
  %v294 = vpack.c.b16 %v257, %v256
  %v295 = vpack.c.b16 %v259, %v258
  %v296 = vpack.c.b16 %v261, %v260
  %v297 = vpack.c.b16 %v263, %v262
  %v298 = vpack.c.b16 %v265, %v264
  %v299 = vpack.c.b16 %v267, %v266
  %332 = vmatprep.subr.bf16.mxu0 0
  %333 = vmatpush1.bf16.msra.mxu0 %v275
  %334 = vmatprep.subr.bf16.mxu0 0
  %335 = vmatpush1.bf16.msra.mxu0 %v274
  %336 = vmatprep.subr.bf16.mxu0 0
  %337 = vmatpush1.bf16.msra.mxu0 %v273
  %338 = vmatprep.subr.bf16.mxu0 0
  %339 = vmatpush1.bf16.msra.mxu0 %v272
  %340 = vmatprep.subr.bf16.mxu0 0
  %341 = vmatpush1.bf16.msra.mxu0 %v271
  %342 = vmatprep.subr.bf16.mxu0 0
  %343 = vmatpush1.bf16.msra.mxu0 %v270
  %344 = vmatprep.subr.bf16.mxu0 0
  %345 = vmatpush1.bf16.msra.mxu0 %v269
  %346 = vmatprep.subr.bf16.mxu0 0
  %347 = vmatpush1.bf16.msra.mxu0 %v268
  %348 = vmatprep.subr.bf16.mxu0 0
  %349 = vmatpush2.bf16.msra.mxu0 %v283
  %350 = vmatprep.subr.bf16.mxu0 0
  %351 = vmatpush2.bf16.msra.mxu0 %v282
  %352 = vmatprep.subr.bf16.mxu0 0
  %353 = vmatpush2.bf16.msra.mxu0 %v281
  %354 = vmatprep.subr.bf16.mxu0 0
  %355 = vmatpush2.bf16.msra.mxu0 %v280
  %356 = vmatprep.subr.bf16.mxu0 0
  %357 = vmatpush2.bf16.msra.mxu0 %v279
  %358 = vmatprep.subr.bf16.mxu0 0
  %359 = vmatpush2.bf16.msra.mxu0 %v278
  %360 = vmatprep.subr.bf16.mxu0 0
  %361 = vmatpush2.bf16.msra.mxu0 %v277
  %362 = vmatprep.subr.bf16.mxu0 0
  %363 = vmatpush2.bf16.msra.mxu0 %v276
  %364 = vmatprep.mubr.bf16.mxu0 %v125
  %365 = vmatmul.mubr.bf16.gmra.mxu0 %v124
  %v366 = vpop.f32.mrf.mxu0
  %v367 = vadd.f32 %v98, %v366
  %v368 = vpop.f32.mrf.mxu0
  %v369 = vpop.f32.mrf.mxu0
  %v370 = vadd.f32 %v98, %v369
  %v371 = vpop.f32.mrf.mxu0
  %372 = vmatprep.mubr.bf16.mxu0 %v129
  %373 = vmatmul.mubr.bf16.gmra.mxu0 %v128
  %v374 = vpop.f32.mrf.mxu0
  %v375 = vadd.f32 %v98, %v374
  %v376 = vpop.f32.mrf.mxu0
  %v377 = vpop.f32.mrf.mxu0
  %v378 = vadd.f32 %v98, %v377
  %v379 = vpop.f32.mrf.mxu0
  %380 = vdwg.mxu0
  %381 = vmatprep.subr.bf16.mxu0 0
  %382 = vmatpush1.bf16.msra.mxu0 %v291
  %383 = vmatprep.subr.bf16.mxu0 0
  %384 = vmatpush1.bf16.msra.mxu0 %v290
  %385 = vmatprep.subr.bf16.mxu0 0
  %386 = vmatpush1.bf16.msra.mxu0 %v289
  %387 = vmatprep.subr.bf16.mxu0 0
  %388 = vmatpush1.bf16.msra.mxu0 %v288
  %389 = vmatprep.subr.bf16.mxu0 0
  %390 = vmatpush1.bf16.msra.mxu0 %v287
  %391 = vmatprep.subr.bf16.mxu0 0
  %392 = vmatpush1.bf16.msra.mxu0 %v286
  %393 = vmatprep.subr.bf16.mxu0 0
  %394 = vmatpush1.bf16.msra.mxu0 %v285
  %395 = vmatprep.subr.bf16.mxu0 0
  %396 = vmatpush1.bf16.msra.mxu0 %v284
  %397 = vmatprep.subr.bf16.mxu0 0
  %398 = vmatpush2.bf16.msra.mxu0 %v299
  %399 = vmatprep.subr.bf16.mxu0 0
  %400 = vmatpush2.bf16.msra.mxu0 %v298
  %401 = vmatprep.subr.bf16.mxu0 0
  %402 = vmatpush2.bf16.msra.mxu0 %v297
  %403 = vmatprep.subr.bf16.mxu0 0
  %404 = vmatpush2.bf16.msra.mxu0 %v296
  %405 = vmatprep.subr.bf16.mxu0 0
  %406 = vmatpush2.bf16.msra.mxu0 %v295
  %407 = vmatprep.subr.bf16.mxu0 0
  %408 = vmatpush2.bf16.msra.mxu0 %v294
  %409 = vmatprep.subr.bf16.mxu0 0
  %410 = vmatpush2.bf16.msra.mxu0 %v293
  %411 = vmatprep.subr.bf16.mxu0 0
  %412 = vmatpush2.bf16.msra.mxu0 %v292
  %413 = vmatprep.mubr.bf16.mxu0 %v127
  %414 = vmatmul.mubr.bf16.gmra.mxu0 %v126
  %v415 = vpop.f32.mrf.mxu0
  %v416 = vadd.f32 %v367, %v415
  %v417 = vpop.f32.mrf.mxu0
  %v418 = vpop.f32.mrf.mxu0
  %v419 = vadd.f32 %v370, %v418
  %v420 = vpop.f32.mrf.mxu0
  %421 = vmatprep.mubr.bf16.mxu0 %v131
  %422 = vmatmul.mubr.bf16.gmra.mxu0 %v130
  %v423 = vpop.f32.mrf.mxu0
  %v424 = vadd.f32 %v375, %v423
  %v425 = vpop.f32.mrf.mxu0
  %v426 = vpop.f32.mrf.mxu0
  %v427 = vadd.f32 %v378, %v426
  %v428 = vpop.f32.mrf.mxu0
  %429 = vdwg.mxu0
  %v430 = vmax.f32 %v416, 0.0
  %v431 = vmax.f32 %v419, 0.0
  %v432 = vmax.f32 %v424, 0.0
  %v433 = vmax.f32 %v427, 0.0
  %v434 = vld [vmem:[%s3] sm:$0x1]
  %v436 = vlaneseq
  %v437 = vshrl.u32 %v436, 7
  %v438 = vsub.s32 0, %v437
  %v439 = vrot.slane %v434, %v438
  %v441 = vmul.f32 %v430, %v439
  %v442 = vmul.f32 %v431, %v439
  %v443 = vmul.f32 %v432, %v439
  %v444 = vmul.f32 %v433, %v439
  %v445 = vld [vmem:[%s4] sm:$0x1]
  %v447 = vlaneseq
  %v448 = vshrl.u32 %v447, 7
  %v449 = vsub.s32 0, %v448
  %v450 = vrot.slane %v445, %v449
  %v452 = vadd.f32 %v441, %v450
  %v453 = vadd.f32 %v442, %v450
  %v454 = vadd.f32 %v443, %v450
  %v455 = vadd.f32 %v444, %v450
  %456 = vst [vmem:[%s5] sm:$0xff] %v452
  %457 = vst [vmem:[%s5 + $0x8] sm:$0xff] %v453
  %458 = vst [vmem:[%s5 + $0x10] sm:$0xff] %v454
  %459 = vst [vmem:[%s5 + $0x18] sm:$0xff] %v455
  // Predicated region
  $region22: #{network_forward.38} parent=0 // pred_check
    _
  $region23: #{network_forward.38} parent=0 // pred_check_branch
    %461 = sbr.rel (0) target = $region25
  $region24: #{network_forward.38} parent=0 // pred_region
    _
  $region25: #{network_forward.38} parent=0 // pred_fallthru
    _
  // Predicated region
  $region26: #{network_forward.38} parent=0 // pred_check
    _
  $region27: #{network_forward.38} parent=0 // pred_check_branch
    %463 = sbr.rel (0) target = $region29
  $region28: #{network_forward.38} parent=0 // pred_region
    _
  $region29: #{network_forward.38} parent=0 // pred_fallthru
    _

// kernel: network_forward.39
$region0: #{network_forward.39}
  #allocation0 [shape = 'u32[]', space=smem, size = 0x4, offset = 0x4, fixed_abs, tag = 'smem constant byte address 0x4 - core index']
  #allocation1 [shape = 'u32[144,128]{1,0:T(1,128)}', space=vmem, size = 0x12000, scoped, tag = 'internal scratch']
  %s0 = inlined_call_operand.vmem [shape: bf16[32,144], index: 0, kind: input, shape index: {}]
  %s1 = inlined_call_operand.vmem [shape: bf16[144,128], index: 1, kind: input, shape index: {}]
  %s2 = inlined_call_operand.vmem [shape: f32[1,128], index: 2, kind: input, shape index: {}]
  %s3 = inlined_call_operand.vmem [shape: f32[1,128], index: 3, kind: input, shape index: {}]
  %s4 = inlined_call_operand.vmem [shape: f32[1,128], index: 4, kind: input, shape index: {}]
  %s5 = inlined_call_operand.vmem [shape: f32[32,128], index: 5, kind: output, shape index: {0}]
  %s6 = inlined_call_operand.vmem [shape: f32[32,128], index: 6, kind: output, shape index: {1}]
  %7 = xla_tuple %s5, %s6
  %s8 = sld [smem:[#allocation0]]
  $region38: #{network_forward.39} parent=0
    _
  %s10 = ssub.s32 1, %s8
  %s11 = scalar_select 0, %s10, %s8
  // Predicated region
  $region2: #{network_forward.39} parent=0 // pred_check
    _
  $region3: #{network_forward.39} parent=0 // pred_check_branch
    %13 = sbr.rel (0) target = $region5
  $region4: #{network_forward.39} parent=0 // pred_region
    _
  $region5: #{network_forward.39} parent=0 // pred_fallthru
    _
  // Predicated region
  $region6: #{network_forward.39} parent=0 // pred_check
    _
  $region7: #{network_forward.39} parent=0 // pred_check_branch
    %15 = sbr.rel (0) target = $region9
  $region8: #{network_forward.39} parent=0 // pred_region
    _
  $region9: #{network_forward.39} parent=0 // pred_fallthru
    _
  // Predicated region
  $region10: #{network_forward.39} parent=0 // pred_check
    _
  $region11: #{network_forward.39} parent=0 // pred_check_branch
    %17 = sbr.rel (0) target = $region13
  $region12: #{network_forward.39} parent=0 // pred_region
    _
  $region13: #{network_forward.39} parent=0 // pred_fallthru
    _
  // Predicated region
  $region14: #{network_forward.39} parent=0 // pred_check
    _
  $region15: #{network_forward.39} parent=0 // pred_check_branch
    %19 = sbr.rel (0) target = $region17
  $region16: #{network_forward.39} parent=0 // pred_region
    _
  $region17: #{network_forward.39} parent=0 // pred_fallthru
    _
  // Predicated region
  $region18: #{network_forward.39} parent=0 // pred_check
    _
  $region19: #{network_forward.39} parent=0 // pred_check_branch
    %21 = sbr.rel (0) target = $region21
  $region20: #{network_forward.39} parent=0 // pred_region
    _
  $region21: #{network_forward.39} parent=0 // pred_fallthru
    _
  %v23 = vld [vmem:[%s0] sm:$0xff]
  %v24 = vld [vmem:[%s0 + $0x8] sm:$0xff]
  %v25 = vld [vmem:[%s0 + $0x10] sm:$0xff]
  %v26 = vld [vmem:[%s0 + $0x18] sm:$0xff]
  %v27 = vld [vmem:[%s1] sm:$0xf]
  %v28 = vld [vmem:[%s1 + $0x4] sm:$0xf]
  %v29 = vld [vmem:[%s1 + $0x8] sm:$0xf]
  %v30 = vld [vmem:[%s1 + $0xc] sm:$0xf]
  %v31 = vld [vmem:[%s1 + $0x10] sm:$0xf]
  %v32 = vld [vmem:[%s1 + $0x14] sm:$0xf]
  %v33 = vld [vmem:[%s1 + $0x18] sm:$0xf]
  %v34 = vld [vmem:[%s1 + $0x1c] sm:$0xf]
  %v35 = vld [vmem:[%s1 + $0x20] sm:$0xf]
  %v36 = vld [vmem:[%s1 + $0x24] sm:$0xf]
  %v37 = vld [vmem:[%s1 + $0x28] sm:$0xf]
  %v38 = vld [vmem:[%s1 + $0x2c] sm:$0xf]
  %v39 = vld [vmem:[%s1 + $0x30] sm:$0xf]
  %v40 = vld [vmem:[%s1 + $0x34] sm:$0xf]
  %v41 = vld [vmem:[%s1 + $0x38] sm:$0xf]
  %v42 = vld [vmem:[%s1 + $0x3c] sm:$0xf]
  %v43 = vld [vmem:[%s1 + $0x40] sm:$0xf]
  %v44 = vld [vmem:[%s1 + $0x44] sm:$0xf]
  %v45 = vld [vmem:[%s2] sm:$0x1]
  %v47 = vlaneseq
  %v48 = vshrl.u32 %v47, 7
  %v49 = vsub.s32 0, %v48
  %v50 = vrot.slane %v45, %v49
  %v56 = vunpack.c.l.b16 %v23
  %v57 = vunpack.c.h.b16 %v23
  %v58 = vunpack.c.l.b16 %v24
  %v59 = vunpack.c.h.b16 %v24
  %v60 = vunpack.c.l.b16 %v25
  %v61 = vunpack.c.h.b16 %v25
  %v62 = vunpack.c.l.b16 %v26
  %v63 = vunpack.c.h.b16 %v26
  %v64 = vpack.c.b16 %v58, %v56
  %v65 = vpack.c.b16 %v59, %v57
  %v66 = vpack.c.b16 %v62, %v60
  %v67 = vpack.c.b16 %v63, %v61
  %v88 = vunpack.c.l.b16 %v27
  %v89 = vunpack.c.l.b16 %v28
  %v90 = vunpack.c.l.b16 %v29
  %v91 = vunpack.c.l.b16 %v30
  %v92 = vunpack.c.l.b16 %v31
  %v93 = vunpack.c.l.b16 %v32
  %v94 = vunpack.c.l.b16 %v33
  %v95 = vunpack.c.l.b16 %v34
  %v96 = vunpack.c.l.b16 %v35
  %v97 = vunpack.c.l.b16 %v36
  %v98 = vunpack.c.l.b16 %v37
  %v99 = vunpack.c.l.b16 %v38
  %v100 = vunpack.c.l.b16 %v39
  %v101 = vunpack.c.l.b16 %v40
  %v102 = vunpack.c.l.b16 %v41
  %v103 = vunpack.c.l.b16 %v42
  %v104 = vunpack.c.l.b16 %v43
  %v105 = vunpack.c.l.b16 %v44
  %v106 = vpack.c.b16 %v89, %v88
  %v107 = vpack.c.b16 %v91, %v90
  %v108 = vpack.c.b16 %v93, %v92
  %v109 = vpack.c.b16 %v95, %v94
  %v110 = vpack.c.b16 %v97, %v96
  %v111 = vpack.c.b16 %v99, %v98
  %v112 = vpack.c.b16 %v101, %v100
  %v113 = vpack.c.b16 %v103, %v102
  %v114 = vpack.c.b16 %v105, %v104
  %vm124 = vcmask 130048
  %v126 = vsel %vm124, %v65, 0
  %v129 = vsel %vm124, %v67, 0
  %131 = vmatprep.subr.bf16.mxu0 0
  %132 = vmatpush1.bf16.msra.mxu0 %v113
  %133 = vmatprep.subr.bf16.mxu0 0
  %134 = vmatpush1.bf16.msra.mxu0 %v112
  %135 = vmatprep.subr.bf16.mxu0 0
  %136 = vmatpush1.bf16.msra.mxu0 %v111
  %137 = vmatprep.subr.bf16.mxu0 0
  %138 = vmatpush1.bf16.msra.mxu0 %v110
  %139 = vmatprep.subr.bf16.mxu0 0
  %140 = vmatpush1.bf16.msra.mxu0 %v109
  %141 = vmatprep.subr.bf16.mxu0 0
  %142 = vmatpush1.bf16.msra.mxu0 %v108
  %143 = vmatprep.subr.bf16.mxu0 0
  %144 = vmatpush1.bf16.msra.mxu0 %v107
  %145 = vmatprep.subr.bf16.mxu0 0
  %146 = vmatpush1.bf16.msra.mxu0 %v106
  %147 = vmatprep.subr.bf16.mxu0 0
  %148 = vmatpush2.bf16.msra.mxu0 0
  %149 = vmatprep.subr.bf16.mxu0 0
  %150 = vmatpush2.bf16.msra.mxu0 0
  %151 = vmatprep.subr.bf16.mxu0 0
  %152 = vmatpush2.bf16.msra.mxu0 0
  %153 = vmatprep.subr.bf16.mxu0 0
  %154 = vmatpush2.bf16.msra.mxu0 0
  %155 = vmatprep.subr.bf16.mxu0 0
  %156 = vmatpush2.bf16.msra.mxu0 0
  %157 = vmatprep.subr.bf16.mxu0 0
  %158 = vmatpush2.bf16.msra.mxu0 0
  %159 = vmatprep.subr.bf16.mxu0 0
  %160 = vmatpush2.bf16.msra.mxu0 0
  %161 = vmatprep.subr.bf16.mxu0 0
  %162 = vmatpush2.bf16.msra.mxu0 %v114
  %163 = vmatprep.mubr.bf16.mxu0 %v126
  %164 = vmatmul.mubr.bf16.gmra.mxu0 %v64
  %v165 = vpop.f32.mrf.mxu0
  %v166 = vadd.f32 %v50, %v165
  %v167 = vpop.f32.mrf.mxu0
  %v168 = vpop.f32.mrf.mxu0
  %v169 = vadd.f32 %v50, %v168
  %v170 = vpop.f32.mrf.mxu0
  %171 = vmatprep.mubr.bf16.mxu0 %v129
  %172 = vmatmul.mubr.bf16.gmra.mxu0 %v66
  %v173 = vpop.f32.mrf.mxu0
  %v174 = vadd.f32 %v50, %v173
  %v175 = vpop.f32.mrf.mxu0
  %v176 = vpop.f32.mrf.mxu0
  %v177 = vadd.f32 %v50, %v176
  %v178 = vpop.f32.mrf.mxu0
  %179 = vdwg.mxu0
  %180 = vst [vmem:[%s5] sm:$0xff] %v166
  %181 = vst [vmem:[%s5 + $0x8] sm:$0xff] %v169
  %182 = vst [vmem:[%s5 + $0x10] sm:$0xff] %v174
  %183 = vst [vmem:[%s5 + $0x18] sm:$0xff] %v177
  %v184 = vmax.f32 %v166, 0.0
  %v185 = vmax.f32 %v169, 0.0
  %v186 = vmax.f32 %v174, 0.0
  %v187 = vmax.f32 %v177, 0.0
  %v188 = vld [vmem:[%s3] sm:$0x1]
  %v190 = vlaneseq
  %v191 = vshrl.u32 %v190, 7
  %v192 = vsub.s32 0, %v191
  %v193 = vrot.slane %v188, %v192
  %v195 = vmul.f32 %v184, %v193
  %v196 = vmul.f32 %v185, %v193
  %v197 = vmul.f32 %v186, %v193
  %v198 = vmul.f32 %v187, %v193
  %v199 = vld [vmem:[%s4] sm:$0x1]
  %v201 = vlaneseq
  %v202 = vshrl.u32 %v201, 7
  %v203 = vsub.s32 0, %v202
  %v204 = vrot.slane %v199, %v203
  %v206 = vadd.f32 %v195, %v204
  %v207 = vadd.f32 %v196, %v204
  %v208 = vadd.f32 %v197, %v204
  %v209 = vadd.f32 %v198, %v204
  %210 = vst [vmem:[%s6] sm:$0xff] %v206
  %211 = vst [vmem:[%s6 + $0x8] sm:$0xff] %v207
  %212 = vst [vmem:[%s6 + $0x10] sm:$0xff] %v208
  %213 = vst [vmem:[%s6 + $0x18] sm:$0xff] %v209
  // Predicated region
  $region22: #{network_forward.39} parent=0 // pred_check
    _
  $region23: #{network_forward.39} parent=0 // pred_check_branch
    %215 = sbr.rel (0) target = $region25
  $region24: #{network_forward.39} parent=0 // pred_region
    _
  $region25: #{network_forward.39} parent=0 // pred_fallthru
    _
  // Predicated region
  $region26: #{network_forward.39} parent=0 // pred_check
    _
  $region27: #{network_forward.39} parent=0 // pred_check_branch
    %217 = sbr.rel (0) target = $region29
  $region28: #{network_forward.39} parent=0 // pred_region
    _
  $region29: #{network_forward.39} parent=0 // pred_fallthru
    _
  // Predicated region
  $region30: #{network_forward.39} parent=0 // pred_check
    _
  $region31: #{network_forward.39} parent=0 // pred_check_branch
    %219 = sbr.rel (0) target = $region33
  $region32: #{network_forward.39} parent=0 // pred_region
    _
  $region33: #{network_forward.39} parent=0 // pred_fallthru
    _
  // Predicated region
  $region34: #{network_forward.39} parent=0 // pred_check
    _
  $region35: #{network_forward.39} parent=0 // pred_check_branch
    %221 = sbr.rel (0) target = $region37
  $region36: #{network_forward.39} parent=0 // pred_region
    _
  $region37: #{network_forward.39} parent=0 // pred_fallthru
    _

// kernel: network_forward.41
$region0: #{network_forward.41}
  #allocation0 [shape = 'u32[]', space=smem, size = 0x4, offset = 0x4, fixed_abs, tag = 'smem constant byte address 0x4 - core index']
  #allocation1 [shape = 'u32[144,128]{1,0:T(1,128)}', space=vmem, size = 0x12000, scoped, tag = 'internal scratch']
  %s0 = inlined_call_operand.vmem [shape: bf16[32,16], index: 0, kind: input, shape index: {}]
  %s1 = inlined_call_operand.vmem [shape: bf16[16,128], index: 1, kind: input, shape index: {}]
  %s2 = inlined_call_operand.vmem [shape: f32[1,128], index: 2, kind: input, shape index: {}]
  %s3 = inlined_call_operand.vmem [shape: f32[32,128], index: 3, kind: input, shape index: {}]
  %s4 = inlined_call_operand.vmem [shape: f32[1,128], index: 4, kind: input, shape index: {}]
  %s5 = inlined_call_operand.vmem [shape: f32[1,128], index: 5, kind: input, shape index: {}]
  %s6 = inlined_call_operand.vmem [shape: f32[32,128], index: 6, kind: output, shape index: {0}]
  %s7 = inlined_call_operand.vmem [shape: f32[32,128], index: 7, kind: output, shape index: {1}]
  %8 = xla_tuple %s6, %s7
  %s9 = sld [smem:[#allocation0]]
  $region42: #{network_forward.41} parent=0
    _
  %s11 = ssub.s32 1, %s9
  %s12 = scalar_select 0, %s11, %s9
  // Predicated region
  $region2: #{network_forward.41} parent=0 // pred_check
    _
  $region3: #{network_forward.41} parent=0 // pred_check_branch
    %14 = sbr.rel (0) target = $region5
  $region4: #{network_forward.41} parent=0 // pred_region
    _
  $region5: #{network_forward.41} parent=0 // pred_fallthru
    _
  // Predicated region
  $region6: #{network_forward.41} parent=0 // pred_check
    _
  $region7: #{network_forward.41} parent=0 // pred_check_branch
    %16 = sbr.rel (0) target = $region9
  $region8: #{network_forward.41} parent=0 // pred_region
    _
  $region9: #{network_forward.41} parent=0 // pred_fallthru
    _
  // Predicated region
  $region10: #{network_forward.41} parent=0 // pred_check
    _
  $region11: #{network_forward.41} parent=0 // pred_check_branch
    %18 = sbr.rel (0) target = $region13
  $region12: #{network_forward.41} parent=0 // pred_region
    _
  $region13: #{network_forward.41} parent=0 // pred_fallthru
    _
  // Predicated region
  $region14: #{network_forward.41} parent=0 // pred_check
    _
  $region15: #{network_forward.41} parent=0 // pred_check_branch
    %20 = sbr.rel (0) target = $region17
  $region16: #{network_forward.41} parent=0 // pred_region
    _
  $region17: #{network_forward.41} parent=0 // pred_fallthru
    _
  // Predicated region
  $region18: #{network_forward.41} parent=0 // pred_check
    _
  $region19: #{network_forward.41} parent=0 // pred_check_branch
    %22 = sbr.rel (0) target = $region21
  $region20: #{network_forward.41} parent=0 // pred_region
    _
  $region21: #{network_forward.41} parent=0 // pred_fallthru
    _
  // Predicated region
  $region22: #{network_forward.41} parent=0 // pred_check
    _
  $region23: #{network_forward.41} parent=0 // pred_check_branch
    %24 = sbr.rel (0) target = $region25
  $region24: #{network_forward.41} parent=0 // pred_region
    _
  $region25: #{network_forward.41} parent=0 // pred_fallthru
    _
  %v26 = vld [vmem:[%s0] sm:$0xf]
  %v27 = vld [vmem:[%s0 + $0x4] sm:$0xf]
  %v28 = vld [vmem:[%s0 + $0x8] sm:$0xf]
  %v29 = vld [vmem:[%s0 + $0xc] sm:$0xf]
  %v30 = vld [vmem:[%s1] sm:$0xf]
  %v31 = vld [vmem:[%s1 + $0x4] sm:$0xf]
  %v32 = vld [vmem:[%s2] sm:$0x1]
  %v34 = vlaneseq
  %v35 = vshrl.u32 %v34, 7
  %v36 = vsub.s32 0, %v35
  %v37 = vrot.slane %v32, %v36
  %v43 = vunpack.c.l.b16 %v26
  %v44 = vunpack.c.l.b16 %v27
  %v45 = vunpack.c.l.b16 %v28
  %v46 = vunpack.c.l.b16 %v29
  %v47 = vpack.c.b16 %v44, %v43
  %v48 = vpack.c.b16 %v46, %v45
  %v51 = vunpack.c.l.b16 %v30
  %v52 = vunpack.c.l.b16 %v31
  %v53 = vpack.c.b16 %v52, %v51
  %vm55 = vcmask 130048
  %v57 = vsel %vm55, %v47, 0
  %v60 = vsel %vm55, %v48, 0
  %62 = vmatprep.subr.bf16.mxu0 0
  %63 = vmatpush1.bf16.msra.mxu0 0
  %64 = vmatprep.subr.bf16.mxu0 0
  %65 = vmatpush1.bf16.msra.mxu0 0
  %66 = vmatprep.subr.bf16.mxu0 0
  %67 = vmatpush1.bf16.msra.mxu0 0
  %68 = vmatprep.subr.bf16.mxu0 0
  %69 = vmatpush1.bf16.msra.mxu0 0
  %70 = vmatprep.subr.bf16.mxu0 0
  %71 = vmatpush1.bf16.msra.mxu0 0
  %72 = vmatprep.subr.bf16.mxu0 0
  %73 = vmatpush1.bf16.msra.mxu0 0
  %74 = vmatprep.subr.bf16.mxu0 0
  %75 = vmatpush1.bf16.msra.mxu0 0
  %76 = vmatprep.subr.bf16.mxu0 0
  %77 = vmatpush1.bf16.msra.mxu0 %v53
  %78 = vmatprep.subr.bf16.mxu0 0
  %79 = vmatpush2.bf16.msra.mxu0 0
  %80 = vmatprep.subr.bf16.mxu0 0
  %81 = vmatpush2.bf16.msra.mxu0 0
  %82 = vmatprep.subr.bf16.mxu0 0
  %83 = vmatpush2.bf16.msra.mxu0 0
  %84 = vmatprep.subr.bf16.mxu0 0
  %85 = vmatpush2.bf16.msra.mxu0 0
  %86 = vmatprep.subr.bf16.mxu0 0
  %87 = vmatpush2.bf16.msra.mxu0 0
  %88 = vmatprep.subr.bf16.mxu0 0
  %89 = vmatpush2.bf16.msra.mxu0 0
  %90 = vmatprep.subr.bf16.mxu0 0
  %91 = vmatpush2.bf16.msra.mxu0 0
  %92 = vmatprep.subr.bf16.mxu0 0
  %93 = vmatpush2.bf16.msra.mxu0 0
  %94 = vmatprep.mubr.bf16.mxu0 0
  %95 = vmatmul.mubr.bf16.gmra.mxu0 %v57
  %v96 = vpop.f32.mrf.mxu0
  %v97 = vadd.f32 %v37, %v96
  %v98 = vpop.f32.mrf.mxu0
  %v99 = vpop.f32.mrf.mxu0
  %v100 = vadd.f32 %v37, %v99
  %v101 = vpop.f32.mrf.mxu0
  %102 = vmatprep.mubr.bf16.mxu0 0
  %103 = vmatmul.mubr.bf16.gmra.mxu0 %v60
  %v104 = vpop.f32.mrf.mxu0
  %v105 = vadd.f32 %v37, %v104
  %v106 = vpop.f32.mrf.mxu0
  %v107 = vpop.f32.mrf.mxu0
  %v108 = vadd.f32 %v37, %v107
  %v109 = vpop.f32.mrf.mxu0
  %110 = vdwg.mxu0
  %v111 = vld [vmem:[%s3] sm:$0xff]
  %v112 = vld [vmem:[%s3 + $0x8] sm:$0xff]
  %v113 = vld [vmem:[%s3 + $0x10] sm:$0xff]
  %v114 = vld [vmem:[%s3 + $0x18] sm:$0xff]
  %v115 = vadd.f32 %v97, %v111
  %v116 = vadd.f32 %v100, %v112
  %v117 = vadd.f32 %v105, %v113
  %v118 = vadd.f32 %v108, %v114
  %119 = vst [vmem:[%s6] sm:$0xff] %v115
  %120 = vst [vmem:[%s6 + $0x8] sm:$0xff] %v116
  %121 = vst [vmem:[%s6 + $0x10] sm:$0xff] %v117
  %122 = vst [vmem:[%s6 + $0x18] sm:$0xff] %v118
  %v123 = vmax.f32 %v115, 0.0
  %v124 = vmax.f32 %v116, 0.0
  %v125 = vmax.f32 %v117, 0.0
  %v126 = vmax.f32 %v118, 0.0
  %v127 = vld [vmem:[%s4] sm:$0x1]
  %v129 = vlaneseq
  %v130 = vshrl.u32 %v129, 7
  %v131 = vsub.s32 0, %v130
  %v132 = vrot.slane %v127, %v131
  %v134 = vmul.f32 %v123, %v132
  %v135 = vmul.f32 %v124, %v132
  %v136 = vmul.f32 %v125, %v132
  %v137 = vmul.f32 %v126, %v132
  %v138 = vld [vmem:[%s5] sm:$0x1]
  %v140 = vlaneseq
  %v141 = vshrl.u32 %v140, 7
  %v142 = vsub.s32 0, %v141
  %v143 = vrot.slane %v138, %v142
  %v145 = vadd.f32 %v134, %v143
  %v146 = vadd.f32 %v135, %v143
  %v147 = vadd.f32 %v136, %v143
  %v148 = vadd.f32 %v137, %v143
  %149 = vst [vmem:[%s7] sm:$0xff] %v145
  %150 = vst [vmem:[%s7 + $0x8] sm:$0xff] %v146
  %151 = vst [vmem:[%s7 + $0x10] sm:$0xff] %v147
  %152 = vst [vmem:[%s7 + $0x18] sm:$0xff] %v148
  // Predicated region
  $region26: #{network_forward.41} parent=0 // pred_check
    _
  $region27: #{network_forward.41} parent=0 // pred_check_branch
    %154 = sbr.rel (0) target = $region29
  $region28: #{network_forward.41} parent=0 // pred_region
    _
  $region29: #{network_forward.41} parent=0 // pred_fallthru
    _
  // Predicated region
  $region30: #{network_forward.41} parent=0 // pred_check
    _
  $region31: #{network_forward.41} parent=0 // pred_check_branch
    %156 = sbr.rel (0) target = $region33
  $region32: #{network_forward.41} parent=0 // pred_region
    _
  $region33: #{network_forward.41} parent=0 // pred_fallthru
    _
  // Predicated region
  $region34: #{network_forward.41} parent=0 // pred_check
    _
  $region35: #{network_forward.41} parent=0 // pred_check_branch
    %158 = sbr.rel (0) target = $region37
  $region36: #{network_forward.41} parent=0 // pred_region
    _
  $region37: #{network_forward.41} parent=0 // pred_fallthru
    _
  // Predicated region
  $region38: #{network_forward.41} parent=0 // pred_check
    _
  $region39: #{network_forward.41} parent=0 // pred_check_branch
    %160 = sbr.rel (0) target = $region41
  $region40: #{network_forward.41} parent=0 // pred_region
    _
  $region41: #{network_forward.41} parent=0 // pred_fallthru
    _

// kernel: network_forward.40
$region0: #{network_forward.40}
  #allocation0 [shape = 'u32[]', space=smem, size = 0x4, offset = 0x4, fixed_abs, tag = 'smem constant byte address 0x4 - core index']
  #allocation1 [shape = 'u32[144,128]{1,0:T(1,128)}', space=vmem, size = 0x12000, scoped, tag = 'internal scratch']
  %s0 = inlined_call_operand.vmem [shape: bf16[32,288], index: 0, kind: input, shape index: {}]
  %s1 = inlined_call_operand.vmem [shape: bf16[288,128], index: 1, kind: input, shape index: {}]
  %s2 = inlined_call_operand.vmem [shape: f32[1,128], index: 2, kind: input, shape index: {}]
  %s3 = inlined_call_operand.vmem [shape: f32[1,128], index: 3, kind: input, shape index: {}]
  %s4 = inlined_call_operand.vmem [shape: f32[1,128], index: 4, kind: input, shape index: {}]
  %s5 = inlined_call_operand.vmem [shape: f32[32,128], index: 5, kind: output, shape index: {}]
  %s6 = sld [smem:[#allocation0]]
  $region30: #{network_forward.40} parent=0
    _
  %s8 = ssub.s32 1, %s6
  %s9 = scalar_select 0, %s8, %s6
  // Predicated region
  $region2: #{network_forward.40} parent=0 // pred_check
    _
  $region3: #{network_forward.40} parent=0 // pred_check_branch
    %11 = sbr.rel (0) target = $region5
  $region4: #{network_forward.40} parent=0 // pred_region
    _
  $region5: #{network_forward.40} parent=0 // pred_fallthru
    _
  // Predicated region
  $region6: #{network_forward.40} parent=0 // pred_check
    _
  $region7: #{network_forward.40} parent=0 // pred_check_branch
    %13 = sbr.rel (0) target = $region9
  $region8: #{network_forward.40} parent=0 // pred_region
    _
  $region9: #{network_forward.40} parent=0 // pred_fallthru
    _
  // Predicated region
  $region10: #{network_forward.40} parent=0 // pred_check
    _
  $region11: #{network_forward.40} parent=0 // pred_check_branch
    %15 = sbr.rel (0) target = $region13
  $region12: #{network_forward.40} parent=0 // pred_region
    _
  $region13: #{network_forward.40} parent=0 // pred_fallthru
    _
  // Predicated region
  $region14: #{network_forward.40} parent=0 // pred_check
    _
  $region15: #{network_forward.40} parent=0 // pred_check_branch
    %17 = sbr.rel (0) target = $region17
  $region16: #{network_forward.40} parent=0 // pred_region
    _
  $region17: #{network_forward.40} parent=0 // pred_fallthru
    _
  // Predicated region
  $region18: #{network_forward.40} parent=0 // pred_check
    _
  $region19: #{network_forward.40} parent=0 // pred_check_branch
    %19 = sbr.rel (0) target = $region21
  $region20: #{network_forward.40} parent=0 // pred_region
    _
  $region21: #{network_forward.40} parent=0 // pred_fallthru
    _
  %v21 = vld [vmem:[%s0] sm:$0xff]
  %v22 = vld [vmem:[%s0 + $0x8] sm:$0xf]
  %v23 = vld [vmem:[%s0 + $0xc] sm:$0xff]
  %v24 = vld [vmem:[%s0 + $0x14] sm:$0xf]
  %v25 = vld [vmem:[%s0 + $0x18] sm:$0xff]
  %v26 = vld [vmem:[%s0 + $0x20] sm:$0xf]
  %v27 = vld [vmem:[%s0 + $0x24] sm:$0xff]
  %v28 = vld [vmem:[%s0 + $0x2c] sm:$0xf]
  %v29 = vld [vmem:[%s1] sm:$0xf]
  %v30 = vld [vmem:[%s1 + $0x4] sm:$0xf]
  %v31 = vld [vmem:[%s1 + $0x8] sm:$0xf]
  %v32 = vld [vmem:[%s1 + $0xc] sm:$0xf]
  %v33 = vld [vmem:[%s1 + $0x10] sm:$0xf]
  %v34 = vld [vmem:[%s1 + $0x14] sm:$0xf]
  %v35 = vld [vmem:[%s1 + $0x18] sm:$0xf]
  %v36 = vld [vmem:[%s1 + $0x1c] sm:$0xf]
  %v37 = vld [vmem:[%s1 + $0x20] sm:$0xf]
  %v38 = vld [vmem:[%s1 + $0x24] sm:$0xf]
  %v39 = vld [vmem:[%s1 + $0x28] sm:$0xf]
  %v40 = vld [vmem:[%s1 + $0x2c] sm:$0xf]
  %v41 = vld [vmem:[%s1 + $0x30] sm:$0xf]
  %v42 = vld [vmem:[%s1 + $0x34] sm:$0xf]
  %v43 = vld [vmem:[%s1 + $0x38] sm:$0xf]
  %v44 = vld [vmem:[%s1 + $0x3c] sm:$0xf]
  %v45 = vld [vmem:[%s1 + $0x40] sm:$0xf]
  %v46 = vld [vmem:[%s1 + $0x44] sm:$0xf]
  %v47 = vld [vmem:[%s1 + $0x48] sm:$0xf]
  %v48 = vld [vmem:[%s1 + $0x4c] sm:$0xf]
  %v49 = vld [vmem:[%s1 + $0x50] sm:$0xf]
  %v50 = vld [vmem:[%s1 + $0x54] sm:$0xf]
  %v51 = vld [vmem:[%s1 + $0x58] sm:$0xf]
  %v52 = vld [vmem:[%s1 + $0x5c] sm:$0xf]
  %v53 = vld [vmem:[%s1 + $0x60] sm:$0xf]
  %v54 = vld [vmem:[%s1 + $0x64] sm:$0xf]
  %v55 = vld [vmem:[%s1 + $0x68] sm:$0xf]
  %v56 = vld [vmem:[%s1 + $0x6c] sm:$0xf]
  %v57 = vld [vmem:[%s1 + $0x70] sm:$0xf]
  %v58 = vld [vmem:[%s1 + $0x74] sm:$0xf]
  %v59 = vld [vmem:[%s1 + $0x78] sm:$0xf]
  %v60 = vld [vmem:[%s1 + $0x7c] sm:$0xf]
  %v61 = vld [vmem:[%s1 + $0x80] sm:$0xf]
  %v62 = vld [vmem:[%s1 + $0x84] sm:$0xf]
  %v63 = vld [vmem:[%s1 + $0x88] sm:$0xf]
  %v64 = vld [vmem:[%s1 + $0x8c] sm:$0xf]
  %v65 = vld [vmem:[%s2] sm:$0x1]
  %v67 = vlaneseq
  %v68 = vshrl.u32 %v67, 7
  %v69 = vsub.s32 0, %v68
  %v70 = vrot.slane %v65, %v69
  %v80 = vunpack.c.l.b16 %v21
  %v81 = vunpack.c.h.b16 %v21
  %v82 = vunpack.c.l.b16 %v22
  %v83 = vunpack.c.l.b16 %v23
  %v84 = vunpack.c.h.b16 %v23
  %v85 = vunpack.c.l.b16 %v24
  %v86 = vunpack.c.l.b16 %v25
  %v87 = vunpack.c.h.b16 %v25
  %v88 = vunpack.c.l.b16 %v26
  %v89 = vunpack.c.l.b16 %v27
  %v90 = vunpack.c.h.b16 %v27
  %v91 = vunpack.c.l.b16 %v28
  %v92 = vpack.c.b16 %v83, %v80
  %v93 = vpack.c.b16 %v84, %v81
  %v94 = vpack.c.b16 %v85, %v82
  %v95 = vpack.c.b16 %v89, %v86
  %v96 = vpack.c.b16 %v90, %v87
  %v97 = vpack.c.b16 %v91, %v88
  %v138 = vunpack.c.l.b16 %v29
  %v139 = vunpack.c.l.b16 %v30
  %v140 = vunpack.c.l.b16 %v31
  %v141 = vunpack.c.l.b16 %v32
  %v142 = vunpack.c.l.b16 %v33
  %v143 = vunpack.c.l.b16 %v34
  %v144 = vunpack.c.l.b16 %v35
  %v145 = vunpack.c.l.b16 %v36
  %v146 = vunpack.c.l.b16 %v37
  %v147 = vunpack.c.l.b16 %v38
  %v148 = vunpack.c.l.b16 %v39
  %v149 = vunpack.c.l.b16 %v40
  %v150 = vunpack.c.l.b16 %v41
  %v151 = vunpack.c.l.b16 %v42
  %v152 = vunpack.c.l.b16 %v43
  %v153 = vunpack.c.l.b16 %v44
  %v154 = vunpack.c.l.b16 %v45
  %v155 = vunpack.c.l.b16 %v46
  %v156 = vunpack.c.l.b16 %v47
  %v157 = vunpack.c.l.b16 %v48
  %v158 = vunpack.c.l.b16 %v49
  %v159 = vunpack.c.l.b16 %v50
  %v160 = vunpack.c.l.b16 %v51
  %v161 = vunpack.c.l.b16 %v52
  %v162 = vunpack.c.l.b16 %v53
  %v163 = vunpack.c.l.b16 %v54
  %v164 = vunpack.c.l.b16 %v55
  %v165 = vunpack.c.l.b16 %v56
  %v166 = vunpack.c.l.b16 %v57
  %v167 = vunpack.c.l.b16 %v58
  %v168 = vunpack.c.l.b16 %v59
  %v169 = vunpack.c.l.b16 %v60
  %v170 = vunpack.c.l.b16 %v61
  %v171 = vunpack.c.l.b16 %v62
  %v172 = vunpack.c.l.b16 %v63
  %v173 = vunpack.c.l.b16 %v64
  %v174 = vpack.c.b16 %v139, %v138
  %v175 = vpack.c.b16 %v141, %v140
  %v176 = vpack.c.b16 %v143, %v142
  %v177 = vpack.c.b16 %v145, %v144
  %v178 = vpack.c.b16 %v147, %v146
  %v179 = vpack.c.b16 %v149, %v148
  %v180 = vpack.c.b16 %v151, %v150
  %v181 = vpack.c.b16 %v153, %v152
  %v182 = vpack.c.b16 %v155, %v154
  %v183 = vpack.c.b16 %v157, %v156
  %v184 = vpack.c.b16 %v159, %v158
  %v185 = vpack.c.b16 %v161, %v160
  %v186 = vpack.c.b16 %v163, %v162
  %v187 = vpack.c.b16 %v165, %v164
  %v188 = vpack.c.b16 %v167, %v166
  %v189 = vpack.c.b16 %v169, %v168
  %v190 = vpack.c.b16 %v171, %v170
  %v191 = vpack.c.b16 %v173, %v172
  %vm210 = vcmask 261120
  %v212 = vsel %vm210, %v94, 0
  %v215 = vsel %vm210, %v97, 0
  %217 = vmatprep.subr.bf16.mxu0 0
  %218 = vmatpush1.bf16.msra.mxu0 %v181
  %219 = vmatprep.subr.bf16.mxu0 0
  %220 = vmatpush1.bf16.msra.mxu0 %v180
  %221 = vmatprep.subr.bf16.mxu0 0
  %222 = vmatpush1.bf16.msra.mxu0 %v179
  %223 = vmatprep.subr.bf16.mxu0 0
  %224 = vmatpush1.bf16.msra.mxu0 %v178
  %225 = vmatprep.subr.bf16.mxu0 0
  %226 = vmatpush1.bf16.msra.mxu0 %v177
  %227 = vmatprep.subr.bf16.mxu0 0
  %228 = vmatpush1.bf16.msra.mxu0 %v176
  %229 = vmatprep.subr.bf16.mxu0 0
  %230 = vmatpush1.bf16.msra.mxu0 %v175
  %231 = vmatprep.subr.bf16.mxu0 0
  %232 = vmatpush1.bf16.msra.mxu0 %v174
  %233 = vmatprep.subr.bf16.mxu0 0
  %234 = vmatpush2.bf16.msra.mxu0 %v189
  %235 = vmatprep.subr.bf16.mxu0 0
  %236 = vmatpush2.bf16.msra.mxu0 %v188
  %237 = vmatprep.subr.bf16.mxu0 0
  %238 = vmatpush2.bf16.msra.mxu0 %v187
  %239 = vmatprep.subr.bf16.mxu0 0
  %240 = vmatpush2.bf16.msra.mxu0 %v186
  %241 = vmatprep.subr.bf16.mxu0 0
  %242 = vmatpush2.bf16.msra.mxu0 %v185
  %243 = vmatprep.subr.bf16.mxu0 0
  %244 = vmatpush2.bf16.msra.mxu0 %v184
  %245 = vmatprep.subr.bf16.mxu0 0
  %246 = vmatpush2.bf16.msra.mxu0 %v183
  %247 = vmatprep.subr.bf16.mxu0 0
  %248 = vmatpush2.bf16.msra.mxu0 %v182
  %249 = vmatprep.mubr.bf16.mxu0 %v93
  %250 = vmatmul.mubr.bf16.gmra.mxu0 %v92
  %v251 = vpop.f32.mrf.mxu0
  %v252 = vadd.f32 %v70, %v251
  %v253 = vpop.f32.mrf.mxu0
  %v254 = vpop.f32.mrf.mxu0
  %v255 = vadd.f32 %v70, %v254
  %v256 = vpop.f32.mrf.mxu0
  %257 = vmatprep.mubr.bf16.mxu0 %v96
  %258 = vmatmul.mubr.bf16.gmra.mxu0 %v95
  %v259 = vpop.f32.mrf.mxu0
  %v260 = vadd.f32 %v70, %v259
  %v261 = vpop.f32.mrf.mxu0
  %v262 = vpop.f32.mrf.mxu0
  %v263 = vadd.f32 %v70, %v262
  %v264 = vpop.f32.mrf.mxu0
  %265 = vdwg.mxu0
  %266 = vmatprep.subr.bf16.mxu0 0
  %267 = vmatpush1.bf16.msra.mxu0 0
  %268 = vmatprep.subr.bf16.mxu0 0
  %269 = vmatpush1.bf16.msra.mxu0 0
  %270 = vmatprep.subr.bf16.mxu0 0
  %271 = vmatpush1.bf16.msra.mxu0 0
  %272 = vmatprep.subr.bf16.mxu0 0
  %273 = vmatpush1.bf16.msra.mxu0 0
  %274 = vmatprep.subr.bf16.mxu0 0
  %275 = vmatpush1.bf16.msra.mxu0 0
  %276 = vmatprep.subr.bf16.mxu0 0
  %277 = vmatpush1.bf16.msra.mxu0 0
  %278 = vmatprep.subr.bf16.mxu0 0
  %279 = vmatpush1.bf16.msra.mxu0 %v191
  %280 = vmatprep.subr.bf16.mxu0 0
  %281 = vmatpush1.bf16.msra.mxu0 %v190
  %282 = vmatprep.subr.bf16.mxu0 0
  %283 = vmatpush2.bf16.msra.mxu0 0
  %284 = vmatprep.subr.bf16.mxu0 0
  %285 = vmatpush2.bf16.msra.mxu0 0
  %286 = vmatprep.subr.bf16.mxu0 0
  %287 = vmatpush2.bf16.msra.mxu0 0
  %288 = vmatprep.subr.bf16.mxu0 0
  %289 = vmatpush2.bf16.msra.mxu0 0
  %290 = vmatprep.subr.bf16.mxu0 0
  %291 = vmatpush2.bf16.msra.mxu0 0
  %292 = vmatprep.subr.bf16.mxu0 0
  %293 = vmatpush2.bf16.msra.mxu0 0
  %294 = vmatprep.subr.bf16.mxu0 0
  %295 = vmatpush2.bf16.msra.mxu0 0
  %296 = vmatprep.subr.bf16.mxu0 0
  %297 = vmatpush2.bf16.msra.mxu0 0
  %298 = vmatprep.mubr.bf16.mxu0 0
  %299 = vmatmul.mubr.bf16.gmra.mxu0 %v212
  %v300 = vpop.f32.mrf.mxu0
  %v301 = vadd.f32 %v252, %v300
  %v302 = vpop.f32.mrf.mxu0
  %v303 = vpop.f32.mrf.mxu0
  %v304 = vadd.f32 %v255, %v303
  %v305 = vpop.f32.mrf.mxu0
  %306 = vmatprep.mubr.bf16.mxu0 0
  %307 = vmatmul.mubr.bf16.gmra.mxu0 %v215
  %v308 = vpop.f32.mrf.mxu0
  %v309 = vadd.f32 %v260, %v308
  %v310 = vpop.f32.mrf.mxu0
  %v311 = vpop.f32.mrf.mxu0
  %v312 = vadd.f32 %v263, %v311
  %v313 = vpop.f32.mrf.mxu0
  %314 = vdwg.mxu0
  %v315 = vmax.f32 %v301, 0.0
  %v316 = vmax.f32 %v304, 0.0
  %v317 = vmax.f32 %v309, 0.0
  %v318 = vmax.f32 %v312, 0.0
  %v319 = vld [vmem:[%s3] sm:$0x1]
  %v321 = vlaneseq
  %v322 = vshrl.u32 %v321, 7
  %v323 = vsub.s32 0, %v322
  %v324 = vrot.slane %v319, %v323
  %v326 = vmul.f32 %v315, %v324
  %v327 = vmul.f32 %v316, %v324
  %v328 = vmul.f32 %v317, %v324
  %v329 = vmul.f32 %v318, %v324
  %v330 = vld [vmem:[%s4] sm:$0x1]
  %v332 = vlaneseq
  %v333 = vshrl.u32 %v332, 7
  %v334 = vsub.s32 0, %v333
  %v335 = vrot.slane %v330, %v334
  %v337 = vadd.f32 %v326, %v335
  %v338 = vadd.f32 %v327, %v335
  %v339 = vadd.f32 %v328, %v335
  %v340 = vadd.f32 %v329, %v335
  %341 = vst [vmem:[%s5] sm:$0xff] %v337
  %342 = vst [vmem:[%s5 + $0x8] sm:$0xff] %v338
  %343 = vst [vmem:[%s5 + $0x10] sm:$0xff] %v339
  %344 = vst [vmem:[%s5 + $0x18] sm:$0xff] %v340
  // Predicated region
  $region22: #{network_forward.40} parent=0 // pred_check
    _
  $region23: #{network_forward.40} parent=0 // pred_check_branch
    %346 = sbr.rel (0) target = $region25
  $region24: #{network_forward.40} parent=0 // pred_region
    _
  $region25: #{network_forward.40} parent=0 // pred_fallthru
    _
  // Predicated region
  $region26: #{network_forward.40} parent=0 // pred_check
    _
  $region27: #{network_forward.40} parent=0 // pred_check_branch
    %348 = sbr.rel (0) target = $region29
  $region28: #{network_forward.40} parent=0 // pred_region
    _
  $region29: #{network_forward.40} parent=0 // pred_fallthru
    _

// kernel: network_forward.43
$region0: #{network_forward.43}
  #allocation0 [shape = 'u32[]', space=smem, size = 0x4, offset = 0x4, fixed_abs, tag = 'smem constant byte address 0x4 - core index']
  #allocation1 [shape = 'u32[144,128]{1,0:T(1,128)}', space=vmem, size = 0x12000, scoped, tag = 'internal scratch']
  %s0 = inlined_call_operand.vmem [shape: bf16[32,16], index: 0, kind: input, shape index: {}]
  %s1 = inlined_call_operand.vmem [shape: bf16[16,128], index: 1, kind: input, shape index: {}]
  %s2 = inlined_call_operand.vmem [shape: f32[1,128], index: 2, kind: input, shape index: {}]
  %s3 = inlined_call_operand.vmem [shape: f32[32,128], index: 3, kind: input, shape index: {}]
  %s4 = inlined_call_operand.vmem [shape: f32[1,128], index: 4, kind: input, shape index: {}]
  %s5 = inlined_call_operand.vmem [shape: f32[1,128], index: 5, kind: input, shape index: {}]
  %s6 = inlined_call_operand.hbm [shape: f32[32,128], index: 6, kind: output, shape index: {0}]
  %s7 = inlined_call_operand.vmem [shape: f32[32,128], index: 7, kind: output, shape index: {1}]
  %8 = xla_tuple %s6, %s7
  %s9 = sld [smem:[#allocation0]]
  $region42: #{network_forward.43} parent=0
    _
  %s11 = ssub.s32 1, %s9
  %s12 = scalar_select 0, %s11, %s9
  $region1: #{network_forward.43} parent=0
    #allocation2 [shape = 'u8[16384]{0}', space=vmem, size = 0x4000, scoped, tag = 'output window, operand 0, single buffered']
    #allocation3 [shape = 's32[1]{0}', space=sflag, size = 0x4, scoped, tag = 'scoped memory for network_forward.43']
    %13 = vsyncpa [#allocation3], 0
    // Predicated region
    $region2: #{network_forward.43} parent=1 // pred_check
      _
    $region3: #{network_forward.43} parent=1 // pred_check_branch
      %15 = sbr.rel (0) target = $region5
    $region4: #{network_forward.43} parent=1 // pred_region
      _
    $region5: #{network_forward.43} parent=1 // pred_fallthru
      _
    // Predicated region
    $region6: #{network_forward.43} parent=1 // pred_check
      _
    $region7: #{network_forward.43} parent=1 // pred_check_branch
      %17 = sbr.rel (0) target = $region9
    $region8: #{network_forward.43} parent=1 // pred_region
      _
    $region9: #{network_forward.43} parent=1 // pred_fallthru
      _
    // Predicated region
    $region10: #{network_forward.43} parent=1 // pred_check
      _
    $region11: #{network_forward.43} parent=1 // pred_check_branch
      %19 = sbr.rel (0) target = $region13
    $region12: #{network_forward.43} parent=1 // pred_region
      _
    $region13: #{network_forward.43} parent=1 // pred_fallthru
      _
    // Predicated region
    $region14: #{network_forward.43} parent=1 // pred_check
      _
    $region15: #{network_forward.43} parent=1 // pred_check_branch
      %21 = sbr.rel (0) target = $region17
    $region16: #{network_forward.43} parent=1 // pred_region
      _
    $region17: #{network_forward.43} parent=1 // pred_fallthru
      _
    // Predicated region
    $region18: #{network_forward.43} parent=1 // pred_check
      _
    $region19: #{network_forward.43} parent=1 // pred_check_branch
      %23 = sbr.rel (0) target = $region21
    $region20: #{network_forward.43} parent=1 // pred_region
      _
    $region21: #{network_forward.43} parent=1 // pred_fallthru
      _
    // Predicated region
    $region22: #{network_forward.43} parent=1 // pred_check
      _
    $region23: #{network_forward.43} parent=1 // pred_check_branch
      %25 = sbr.rel (0) target = $region25
    $region24: #{network_forward.43} parent=1 // pred_region
      _
    $region25: #{network_forward.43} parent=1 // pred_fallthru
      _
    %v27 = vld [vmem:[%s0] sm:$0xf]
    %v28 = vld [vmem:[%s0 + $0x4] sm:$0xf]
    %v29 = vld [vmem:[%s0 + $0x8] sm:$0xf]
    %v30 = vld [vmem:[%s0 + $0xc] sm:$0xf]
    %v31 = vld [vmem:[%s1] sm:$0xf]
    %v32 = vld [vmem:[%s1 + $0x4] sm:$0xf]
    %v33 = vld [vmem:[%s2] sm:$0x1]
    %v35 = vlaneseq
    %v36 = vshrl.u32 %v35, 7
    %v37 = vsub.s32 0, %v36
    %v38 = vrot.slane %v33, %v37
    %v44 = vunpack.c.l.b16 %v27
    %v45 = vunpack.c.l.b16 %v28
    %v46 = vunpack.c.l.b16 %v29
    %v47 = vunpack.c.l.b16 %v30
    %v48 = vpack.c.b16 %v45, %v44
    %v49 = vpack.c.b16 %v47, %v46
    %v52 = vunpack.c.l.b16 %v31
    %v53 = vunpack.c.l.b16 %v32
    %v54 = vpack.c.b16 %v53, %v52
    %vm56 = vcmask 130048
    %v58 = vsel %vm56, %v48, 0
    %v61 = vsel %vm56, %v49, 0
    %63 = vmatprep.subr.bf16.mxu0 0
    %64 = vmatpush1.bf16.msra.mxu0 0
    %65 = vmatprep.subr.bf16.mxu0 0
    %66 = vmatpush1.bf16.msra.mxu0 0
    %67 = vmatprep.subr.bf16.mxu0 0
    %68 = vmatpush1.bf16.msra.mxu0 0
    %69 = vmatprep.subr.bf16.mxu0 0
    %70 = vmatpush1.bf16.msra.mxu0 0
    %71 = vmatprep.subr.bf16.mxu0 0
    %72 = vmatpush1.bf16.msra.mxu0 0
    %73 = vmatprep.subr.bf16.mxu0 0
    %74 = vmatpush1.bf16.msra.mxu0 0
    %75 = vmatprep.subr.bf16.mxu0 0
    %76 = vmatpush1.bf16.msra.mxu0 0
    %77 = vmatprep.subr.bf16.mxu0 0
    %78 = vmatpush1.bf16.msra.mxu0 %v54
    %79 = vmatprep.subr.bf16.mxu0 0
    %80 = vmatpush2.bf16.msra.mxu0 0
    %81 = vmatprep.subr.bf16.mxu0 0
    %82 = vmatpush2.bf16.msra.mxu0 0
    %83 = vmatprep.subr.bf16.mxu0 0
    %84 = vmatpush2.bf16.msra.mxu0 0
    %85 = vmatprep.subr.bf16.mxu0 0
    %86 = vmatpush2.bf16.msra.mxu0 0
    %87 = vmatprep.subr.bf16.mxu0 0
    %88 = vmatpush2.bf16.msra.mxu0 0
    %89 = vmatprep.subr.bf16.mxu0 0
    %90 = vmatpush2.bf16.msra.mxu0 0
    %91 = vmatprep.subr.bf16.mxu0 0
    %92 = vmatpush2.bf16.msra.mxu0 0
    %93 = vmatprep.subr.bf16.mxu0 0
    %94 = vmatpush2.bf16.msra.mxu0 0
    %95 = vmatprep.mubr.bf16.mxu0 0
    %96 = vmatmul.mubr.bf16.gmra.mxu0 %v58
    %v97 = vpop.f32.mrf.mxu0
    %v98 = vadd.f32 %v38, %v97
    %v99 = vpop.f32.mrf.mxu0
    %v100 = vpop.f32.mrf.mxu0
    %v101 = vadd.f32 %v38, %v100
    %v102 = vpop.f32.mrf.mxu0
    %103 = vmatprep.mubr.bf16.mxu0 0
    %104 = vmatmul.mubr.bf16.gmra.mxu0 %v61
    %v105 = vpop.f32.mrf.mxu0
    %v106 = vadd.f32 %v38, %v105
    %v107 = vpop.f32.mrf.mxu0
    %v108 = vpop.f32.mrf.mxu0
    %v109 = vadd.f32 %v38, %v108
    %v110 = vpop.f32.mrf.mxu0
    %111 = vdwg.mxu0
    %v112 = vld [vmem:[%s3] sm:$0xff]
    %v113 = vld [vmem:[%s3 + $0x8] sm:$0xff]
    %v114 = vld [vmem:[%s3 + $0x10] sm:$0xff]
    %v115 = vld [vmem:[%s3 + $0x18] sm:$0xff]
    %v116 = vadd.f32 %v98, %v112
    %v117 = vadd.f32 %v101, %v113
    %v118 = vadd.f32 %v106, %v114
    %v119 = vadd.f32 %v109, %v115
    %120 = vst [vmem:[#allocation2] sm:$0xff] %v116
    %121 = vst [vmem:[#allocation2 + $0x8] sm:$0xff] %v117
    %122 = vst [vmem:[#allocation2 + $0x10] sm:$0xff] %v118
    %123 = vst [vmem:[#allocation2 + $0x18] sm:$0xff] %v119
    %v124 = vmax.f32 %v116, 0.0
    %v125 = vmax.f32 %v117, 0.0
    %v126 = vmax.f32 %v118, 0.0
    %v127 = vmax.f32 %v119, 0.0
    %v128 = vld [vmem:[%s4] sm:$0x1]
    %v130 = vlaneseq
    %v131 = vshrl.u32 %v130, 7
    %v132 = vsub.s32 0, %v131
    %v133 = vrot.slane %v128, %v132
    %v135 = vmul.f32 %v124, %v133
    %v136 = vmul.f32 %v125, %v133
    %v137 = vmul.f32 %v126, %v133
    %v138 = vmul.f32 %v127, %v133
    %v139 = vld [vmem:[%s5] sm:$0x1]
    %v141 = vlaneseq
    %v142 = vshrl.u32 %v141, 7
    %v143 = vsub.s32 0, %v142
    %v144 = vrot.slane %v139, %v143
    %v146 = vadd.f32 %v135, %v144
    %v147 = vadd.f32 %v136, %v144
    %v148 = vadd.f32 %v137, %v144
    %v149 = vadd.f32 %v138, %v144
    %150 = vst [vmem:[%s7] sm:$0xff] %v146
    %151 = vst [vmem:[%s7 + $0x8] sm:$0xff] %v147
    %152 = vst [vmem:[%s7 + $0x10] sm:$0xff] %v148
    %153 = vst [vmem:[%s7 + $0x18] sm:$0xff] %v149
    // Predicated region
    $region26: #{network_forward.43} parent=1 // pred_check
      _
    $region27: #{network_forward.43} parent=1 // pred_check_branch
      %155 = sbr.rel (0) target = $region29
    $region28: #{network_forward.43} parent=1 // pred_region
      %s157 = ssub.s32 512, 512
      %158 = vsyncadd [#allocation3], %s157
      %s159 = sshll.u32 [#allocation2], 4
      %s160 = int_to_ptr.vmem [resolvable:$true] %s159
      %165 = dma.vmem_to_hbm [thread:$0]  %s160, 512, %s6, [#allocation3], 128, 128, 8
    $region29: #{network_forward.43} parent=1 // pred_fallthru
      _
    // Predicated region
    $region30: #{network_forward.43} parent=1 // pred_check
      _
    $region31: #{network_forward.43} parent=1 // pred_check_branch
      %167 = sbr.rel (0) target = $region33
    $region32: #{network_forward.43} parent=1 // pred_region
      _
    $region33: #{network_forward.43} parent=1 // pred_fallthru
      _
    // Predicated region
    $region34: #{network_forward.43} parent=1 // pred_check
      _
    $region35: #{network_forward.43} parent=1 // pred_check_branch
      %169 = sbr.rel (0) target = $region37
    $region36: #{network_forward.43} parent=1 // pred_region
      %170 = dma.done [#allocation3], 512
    $region37: #{network_forward.43} parent=1 // pred_fallthru
      _
    // Predicated region
    $region38: #{network_forward.43} parent=1 // pred_check
      _
    $region39: #{network_forward.43} parent=1 // pred_check_branch
      %172 = sbr.rel (0) target = $region41
    $region40: #{network_forward.43} parent=1 // pred_region
      _
    $region41: #{network_forward.43} parent=1 // pred_fallthru
      _
    %173 = vsyncpa [#allocation3], 1

// kernel: network_forward.44
$region0: #{network_forward.44}
  #allocation0 [shape = 'u32[]', space=smem, size = 0x4, offset = 0x4, fixed_abs, tag = 'smem constant byte address 0x4 - core index']
  #allocation1 [shape = 'u32[144,128]{1,0:T(1,128)}', space=vmem, size = 0x12000, scoped, tag = 'internal scratch']
  %s0 = inlined_call_operand.vmem [shape: bf16[32,32], index: 0, kind: input, shape index: {}]
  %s1 = inlined_call_operand.vmem [shape: bf16[32,128], index: 1, kind: input, shape index: {}]
  %s2 = inlined_call_operand.vmem [shape: f32[1,128], index: 2, kind: input, shape index: {}]
  %s3 = inlined_call_operand.vmem [shape: f32[32,128], index: 3, kind: output, shape index: {}]
  %s4 = sld [smem:[#allocation0]]
  $region22: #{network_forward.44} parent=0
    _
  %s6 = ssub.s32 1, %s4
  %s7 = scalar_select 0, %s6, %s4
  // Predicated region
  $region2: #{network_forward.44} parent=0 // pred_check
    _
  $region3: #{network_forward.44} parent=0 // pred_check_branch
    %9 = sbr.rel (0) target = $region5
  $region4: #{network_forward.44} parent=0 // pred_region
    _
  $region5: #{network_forward.44} parent=0 // pred_fallthru
    _
  // Predicated region
  $region6: #{network_forward.44} parent=0 // pred_check
    _
  $region7: #{network_forward.44} parent=0 // pred_check_branch
    %11 = sbr.rel (0) target = $region9
  $region8: #{network_forward.44} parent=0 // pred_region
    _
  $region9: #{network_forward.44} parent=0 // pred_fallthru
    _
  // Predicated region
  $region10: #{network_forward.44} parent=0 // pred_check
    _
  $region11: #{network_forward.44} parent=0 // pred_check_branch
    %13 = sbr.rel (0) target = $region13
  $region12: #{network_forward.44} parent=0 // pred_region
    _
  $region13: #{network_forward.44} parent=0 // pred_fallthru
    _
  %v15 = vld [vmem:[%s0] sm:$0xf]
  %v16 = vld [vmem:[%s0 + $0x4] sm:$0xf]
  %v17 = vld [vmem:[%s0 + $0x8] sm:$0xf]
  %v18 = vld [vmem:[%s0 + $0xc] sm:$0xf]
  %v19 = vld [vmem:[%s1] sm:$0xf]
  %v20 = vld [vmem:[%s1 + $0x4] sm:$0xf]
  %v21 = vld [vmem:[%s1 + $0x8] sm:$0xf]
  %v22 = vld [vmem:[%s1 + $0xc] sm:$0xf]
  %v23 = vld [vmem:[%s2] sm:$0x1]
  %v25 = vlaneseq
  %v26 = vshrl.u32 %v25, 7
  %v27 = vsub.s32 0, %v26
  %v28 = vrot.slane %v23, %v27
  %v34 = vunpack.c.l.b16 %v15
  %v35 = vunpack.c.l.b16 %v16
  %v36 = vunpack.c.l.b16 %v17
  %v37 = vunpack.c.l.b16 %v18
  %v38 = vpack.c.b16 %v35, %v34
  %v39 = vpack.c.b16 %v37, %v36
  %v44 = vunpack.c.l.b16 %v19
  %v45 = vunpack.c.l.b16 %v20
  %v46 = vunpack.c.l.b16 %v21
  %v47 = vunpack.c.l.b16 %v22
  %v48 = vpack.c.b16 %v45, %v44
  %v49 = vpack.c.b16 %v47, %v46
  %vm52 = vcmask 261120
  %v54 = vsel %vm52, %v38, 0
  %v57 = vsel %vm52, %v39, 0
  %59 = vmatprep.subr.bf16.mxu0 0
  %60 = vmatpush1.bf16.msra.mxu0 0
  %61 = vmatprep.subr.bf16.mxu0 0
  %62 = vmatpush1.bf16.msra.mxu0 0
  %63 = vmatprep.subr.bf16.mxu0 0
  %64 = vmatpush1.bf16.msra.mxu0 0
  %65 = vmatprep.subr.bf16.mxu0 0
  %66 = vmatpush1.bf16.msra.mxu0 0
  %67 = vmatprep.subr.bf16.mxu0 0
  %68 = vmatpush1.bf16.msra.mxu0 0
  %69 = vmatprep.subr.bf16.mxu0 0
  %70 = vmatpush1.bf16.msra.mxu0 0
  %71 = vmatprep.subr.bf16.mxu0 0
  %72 = vmatpush1.bf16.msra.mxu0 %v49
  %73 = vmatprep.subr.bf16.mxu0 0
  %74 = vmatpush1.bf16.msra.mxu0 %v48
  %75 = vmatprep.subr.bf16.mxu0 0
  %76 = vmatpush2.bf16.msra.mxu0 0
  %77 = vmatprep.subr.bf16.mxu0 0
  %78 = vmatpush2.bf16.msra.mxu0 0
  %79 = vmatprep.subr.bf16.mxu0 0
  %80 = vmatpush2.bf16.msra.mxu0 0
  %81 = vmatprep.subr.bf16.mxu0 0
  %82 = vmatpush2.bf16.msra.mxu0 0
  %83 = vmatprep.subr.bf16.mxu0 0
  %84 = vmatpush2.bf16.msra.mxu0 0
  %85 = vmatprep.subr.bf16.mxu0 0
  %86 = vmatpush2.bf16.msra.mxu0 0
  %87 = vmatprep.subr.bf16.mxu0 0
  %88 = vmatpush2.bf16.msra.mxu0 0
  %89 = vmatprep.subr.bf16.mxu0 0
  %90 = vmatpush2.bf16.msra.mxu0 0
  %91 = vmatprep.mubr.bf16.mxu0 0
  %92 = vmatmul.mubr.bf16.gmra.mxu0 %v54
  %v93 = vpop.f32.mrf.mxu0
  %v94 = vadd.f32 %v28, %v93
  %v95 = vpop.f32.mrf.mxu0
  %v96 = vpop.f32.mrf.mxu0
  %v97 = vadd.f32 %v28, %v96
  %v98 = vpop.f32.mrf.mxu0
  %99 = vmatprep.mubr.bf16.mxu0 0
  %100 = vmatmul.mubr.bf16.gmra.mxu0 %v57
  %v101 = vpop.f32.mrf.mxu0
  %v102 = vadd.f32 %v28, %v101
  %v103 = vpop.f32.mrf.mxu0
  %v104 = vpop.f32.mrf.mxu0
  %v105 = vadd.f32 %v28, %v104
  %v106 = vpop.f32.mrf.mxu0
  %107 = vdwg.mxu0
  %108 = vst [vmem:[%s3] sm:$0xff] %v94
  %109 = vst [vmem:[%s3 + $0x8] sm:$0xff] %v97
  %110 = vst [vmem:[%s3 + $0x10] sm:$0xff] %v102
  %111 = vst [vmem:[%s3 + $0x18] sm:$0xff] %v105
  // Predicated region
  $region14: #{network_forward.44} parent=0 // pred_check
    _
  $region15: #{network_forward.44} parent=0 // pred_check_branch
    %113 = sbr.rel (0) target = $region17
  $region16: #{network_forward.44} parent=0 // pred_region
    _
  $region17: #{network_forward.44} parent=0 // pred_fallthru
    _
  // Predicated region
  $region18: #{network_forward.44} parent=0 // pred_check
    _
  $region19: #{network_forward.44} parent=0 // pred_check_branch
    %115 = sbr.rel (0) target = $region21
  $region20: #{network_forward.44} parent=0 // pred_region
    _
  $region21: #{network_forward.44} parent=0 // pred_fallthru
    _

// kernel: network_forward.45
$region0: #{network_forward.45}
  #allocation0 [shape = 'u32[]', space=smem, size = 0x4, offset = 0x4, fixed_abs, tag = 'smem constant byte address 0x4 - core index']
  #allocation1 [shape = 'u32[144,128]{1,0:T(1,128)}', space=vmem, size = 0x12000, scoped, tag = 'internal scratch']
  %s0 = inlined_call_operand.vmem [shape: f32[32,16], index: 0, kind: input, shape index: {}]
  %s1 = inlined_call_operand.vmem [shape: f32[16,32], index: 1, kind: input, shape index: {}]
  %s2 = inlined_call_operand.vmem [shape: f32[32,16], index: 2, kind: output, shape index: {0}]
  %s3 = inlined_call_operand.vmem [shape: s32[32,1], index: 3, kind: output, shape index: {1}]
  %s4 = inlined_call_operand.hbm [shape: f32[1,1], index: 4, kind: output, shape index: {2}]
  %5 = xla_tuple %s2, %s3, %s4
  %s6 = sld [smem:[#allocation0]]
  $region34: #{network_forward.45} parent=0
    _
  %s8 = ssub.s32 1, %s6
  %s9 = scalar_select 0, %s8, %s6
  $region1: #{network_forward.45} parent=0
    #allocation2 [shape = 'u8[512]{0}', space=vmem, size = 0x400, scoped, tag = 'output window, operand 2, single buffered']
    #allocation3 [shape = 's32[1]{0}', space=sflag, size = 0x4, scoped, tag = 'scoped memory for network_forward.45']
    %10 = vsyncpa [#allocation3], 0
    // Predicated region
    $region2: #{network_forward.45} parent=1 // pred_check
      _
    $region3: #{network_forward.45} parent=1 // pred_check_branch
      %12 = sbr.rel (0) target = $region5
    $region4: #{network_forward.45} parent=1 // pred_region
      _
    $region5: #{network_forward.45} parent=1 // pred_fallthru
      _
    // Predicated region
    $region6: #{network_forward.45} parent=1 // pred_check
      _
    $region7: #{network_forward.45} parent=1 // pred_check_branch
      %14 = sbr.rel (0) target = $region9
    $region8: #{network_forward.45} parent=1 // pred_region
      _
    $region9: #{network_forward.45} parent=1 // pred_fallthru
      _
    %v15 = vld [vmem:[%s0] sm:$0xff]
    %v16 = vld [vmem:[%s0 + $0x8] sm:$0xff]
    %v17 = vld [vmem:[%s0 + $0x10] sm:$0xff]
    %v18 = vld [vmem:[%s0 + $0x18] sm:$0xff]
    %v19 = vld [vmem:[%s1] sm:$0xff]
    %v20 = vld [vmem:[%s1 + $0x8] sm:$0xff]
    %v21 = vmul.f32 %v19, %v19
    %v22 = vmul.f32 %v20, %v20
    %vm23 = vcmask 261120
    %v24 = vsel %vm23, %v21, 0.0
    %v25 = vsel %vm23, %v22, 0.0
    %v26 = vadd.f32 %v24, %v25
    %v27 = vrot.slane %v26, 4
    %v28 = vadd.f32 %v26, %v27
    %v29 = vrot.slane %v28, 2
    %v30 = vadd.f32 %v28, %v29
    %v31 = vrot.slane %v30, 1
    %v32 = vadd.f32 %v30, %v31
    %vm33 = vcmask 130048
    %v35 = vsel %vm33, %v15, 0
    %v38 = vsel %vm33, %v16, 0
    %v41 = vsel %vm33, %v17, 0
    %v44 = vsel %vm33, %v18, 0
    %46 = vmatprep.subr.mxu0 0.0
    %47 = vmatpush1.msra.mxu0 0.0
    %48 = vmatprep.subr.mxu0 0.0
    %49 = vmatpush1.msra.mxu0 0.0
    %50 = vmatprep.subr.mxu0 0.0
    %51 = vmatpush1.msra.mxu0 0.0
    %52 = vmatprep.subr.mxu0 0.0
    %53 = vmatpush1.msra.mxu0 0.0
    %54 = vmatprep.subr.mxu0 0.0
    %55 = vmatpush1.msra.mxu0 0.0
    %56 = vmatprep.subr.mxu0 0.0
    %57 = vmatpush1.msra.mxu0 0.0
    %58 = vmatprep.subr.mxu0 0.0
    %59 = vmatpush1.msra.mxu0 0.0
    %60 = vmatprep.subr.mxu0 0.0
    %61 = vmatpush1.msra.mxu0 0.0
    %62 = vmatprep.subr.mxu0 0.0
    %63 = vmatpush1.msra.mxu0 0.0
    %64 = vmatprep.subr.mxu0 0.0
    %65 = vmatpush1.msra.mxu0 0.0
    %66 = vmatprep.subr.mxu0 0.0
    %67 = vmatpush1.msra.mxu0 0.0
    %68 = vmatprep.subr.mxu0 0.0
    %69 = vmatpush1.msra.mxu0 0.0
    %70 = vmatprep.subr.mxu0 0.0
    %71 = vmatpush1.msra.mxu0 0.0
    %72 = vmatprep.subr.mxu0 0.0
    %73 = vmatpush1.msra.mxu0 0.0
    %74 = vmatprep.subr.mxu0 0.0
    %75 = vmatpush1.msra.mxu0 %v20
    %76 = vmatprep.subr.mxu0 0.0
    %77 = vmatpush1.msra.mxu0 %v19
    %78 = vmatprep.subr.mxu0 0.0
    %79 = vmatpush2.msra.mxu0 0.0
    %80 = vmatprep.subr.mxu0 0.0
    %81 = vmatpush2.msra.mxu0 0.0
    %82 = vmatprep.subr.mxu0 0.0
    %83 = vmatpush2.msra.mxu0 0.0
    %84 = vmatprep.subr.mxu0 0.0
    %85 = vmatpush2.msra.mxu0 0.0
    %86 = vmatprep.subr.mxu0 0.0
    %87 = vmatpush2.msra.mxu0 0.0
    %88 = vmatprep.subr.mxu0 0.0
    %89 = vmatpush2.msra.mxu0 0.0
    %90 = vmatprep.subr.mxu0 0.0
    %91 = vmatpush2.msra.mxu0 0.0
    %92 = vmatprep.subr.mxu0 0.0
    %93 = vmatpush2.msra.mxu0 0.0
    %94 = vmatprep.subr.mxu0 0.0
    %95 = vmatpush2.msra.mxu0 0.0
    %96 = vmatprep.subr.mxu0 0.0
    %97 = vmatpush2.msra.mxu0 0.0
    %98 = vmatprep.subr.mxu0 0.0
    %99 = vmatpush2.msra.mxu0 0.0
    %100 = vmatprep.subr.mxu0 0.0
    %101 = vmatpush2.msra.mxu0 0.0
    %102 = vmatprep.subr.mxu0 0.0
    %103 = vmatpush2.msra.mxu0 0.0
    %104 = vmatprep.subr.mxu0 0.0
    %105 = vmatpush2.msra.mxu0 0.0
    %106 = vmatprep.subr.mxu0 0.0
    %107 = vmatpush2.msra.mxu0 0.0
    %108 = vmatprep.subr.mxu0 0.0
    %109 = vmatpush2.msra.mxu0 0.0
    %110 = vmatprep.mubr.f32.mxu0 0.0
    %111 = vmatmul.mubr.f32.gmra.mxu0 %v35
    %v112 = vpop.f32.mrf.mxu0
    %v113 = vadd.f32 0.0, %v112
    %v114 = vpop.f32.mrf.mxu0
    %115 = vmatprep.mubr.f32.mxu0 0.0
    %116 = vmatmul.mubr.f32.gmra.mxu0 %v38
    %v117 = vpop.f32.mrf.mxu0
    %v118 = vadd.f32 0.0, %v117
    %v119 = vpop.f32.mrf.mxu0
    %120 = vmatprep.mubr.f32.mxu0 0.0
    %121 = vmatmul.mubr.f32.gmra.mxu0 %v41
    %v122 = vpop.f32.mrf.mxu0
    %v123 = vadd.f32 0.0, %v122
    %v124 = vpop.f32.mrf.mxu0
    %125 = vmatprep.mubr.f32.mxu0 0.0
    %126 = vmatmul.mubr.f32.gmra.mxu0 %v44
    %v127 = vpop.f32.mrf.mxu0
    %v128 = vadd.f32 0.0, %v127
    %v129 = vpop.f32.mrf.mxu0
    %130 = vdwg.mxu0
    %v131 = vmul.f32 %v113, 2.0
    %v132 = vmul.f32 %v118, 2.0
    %v133 = vmul.f32 %v123, 2.0
    %v134 = vmul.f32 %v128, 2.0
    %v135 = vsub.f32 %v32, %v131
    %v136 = vsub.f32 %v32, %v132
    %v137 = vsub.f32 %v32, %v133
    %v138 = vsub.f32 %v32, %v134
    %v139 = vlaneseq
    %v140 = vand.u32 %v139, 127
    %v141 = vsel %vm23, %v135, inf
    %142 = vmin.xlane.f32.xlu0 %v141
    %v143 = vpop.xlane.xlu0 %142
    %v144 = vsel %vm23, %v136, inf
    %145 = vmin.xlane.f32.xlu0 %v144
    %v146 = vpop.xlane.xlu0 %145
    %v147 = vsel %vm23, %v137, inf
    %148 = vmin.xlane.f32.xlu0 %v147
    %v149 = vpop.xlane.xlu0 %148
    %v150 = vsel %vm23, %v138, inf
    %151 = vmin.xlane.f32.xlu0 %v150
    %v152 = vpop.xlane.xlu0 %151
    %vm153 = vcmp.le.f32.partialorder %v135, %v143
    %vm154 = vcmp.le.f32.partialorder %v136, %v146
    %vm155 = vcmp.le.f32.partialorder %v137, %v149
    %vm156 = vcmp.le.f32.partialorder %v138, %v152
    %v157 = vsel %vm153, %v140, 32
    %v158 = vsel %vm154, %v140, 32
    %v159 = vsel %vm155, %v140, 32
    %v160 = vsel %vm156, %v140, 32
    %v161 = vsel %vm23, %v157, 2147483647
    %v162 = vand.u32 %v161, 65535
    %v163 = vshra.s32 %v161, 16
    %v164 = vcvt.s32.f32 %v162
    %v165 = vcvt.s32.f32 %v163
    %166 = vmin.xlane.f32.xlu0 %v165
    %v167 = vpop.xlane.xlu0 %166
    %vm168 = vcmp.eq.f32.partialorder %v165, %v167
    %v169 = vsel %vm168, %v164, inf
    %170 = vmin.xlane.f32.xlu0 %v169
    %v171 = vpop.xlane.xlu0 %170
    %v172 = vcvt.f32.s32 %v171
    %v173 = vcvt.f32.s32 %v167
    %v174 = vshll.u32 %v173, 16
    %v175 = vadd.s32 %v174, %v172
    %v176 = vsel %vm23, %v158, 2147483647
    %v177 = vand.u32 %v176, 65535
    %v178 = vshra.s32 %v176, 16
    %v179 = vcvt.s32.f32 %v177
    %v180 = vcvt.s32.f32 %v178
    %181 = vmin.xlane.f32.xlu0 %v180
    %v182 = vpop.xlane.xlu0 %181
    %vm183 = vcmp.eq.f32.partialorder %v180, %v182
    %v184 = vsel %vm183, %v179, inf
    %185 = vmin.xlane.f32.xlu0 %v184
    %v186 = vpop.xlane.xlu0 %185
    %v187 = vcvt.f32.s32 %v186
    %v188 = vcvt.f32.s32 %v182
    %v189 = vshll.u32 %v188, 16
    %v190 = vadd.s32 %v189, %v187
    %v191 = vsel %vm23, %v159, 2147483647
    %v192 = vand.u32 %v191, 65535
    %v193 = vshra.s32 %v191, 16
    %v194 = vcvt.s32.f32 %v192
    %v195 = vcvt.s32.f32 %v193
    %196 = vmin.xlane.f32.xlu0 %v195
    %v197 = vpop.xlane.xlu0 %196
    %vm198 = vcmp.eq.f32.partialorder %v195, %v197
    %v199 = vsel %vm198, %v194, inf
    %200 = vmin.xlane.f32.xlu0 %v199
    %v201 = vpop.xlane.xlu0 %200
    %v202 = vcvt.f32.s32 %v201
    %v203 = vcvt.f32.s32 %v197
    %v204 = vshll.u32 %v203, 16
    %v205 = vadd.s32 %v204, %v202
    %v206 = vsel %vm23, %v160, 2147483647
    %v207 = vand.u32 %v206, 65535
    %v208 = vshra.s32 %v206, 16
    %v209 = vcvt.s32.f32 %v207
    %v210 = vcvt.s32.f32 %v208
    %211 = vmin.xlane.f32.xlu0 %v210
    %v212 = vpop.xlane.xlu0 %211
    %vm213 = vcmp.eq.f32.partialorder %v210, %v212
    %v214 = vsel %vm213, %v209, inf
    %215 = vmin.xlane.f32.xlu0 %v214
    %v216 = vpop.xlane.xlu0 %215
    %v217 = vcvt.f32.s32 %v216
    %v218 = vcvt.f32.s32 %v212
    %v219 = vshll.u32 %v218, 16
    %v220 = vadd.s32 %v219, %v217
    %vm221 = vcmp.eq.s32.totalorder %v140, %v175
    %vm222 = vcmp.eq.s32.totalorder %v140, %v190
    %vm223 = vcmp.eq.s32.totalorder %v140, %v205
    %vm224 = vcmp.eq.s32.totalorder %v140, %v220
    %v225 = vsel %vm221, 1, 0
    %v226 = vsel %vm222, 1, 0
    %v227 = vsel %vm223, 1, 0
    %v228 = vsel %vm224, 1, 0
    %v229 = vcvt.s32.f32 %v225
    %v230 = vcvt.s32.f32 %v226
    %v231 = vcvt.s32.f32 %v227
    %v232 = vcvt.s32.f32 %v228
    %v234 = vsel %vm23, %v229, 0
    %v237 = vsel %vm23, %v230, 0
    %v240 = vsel %vm23, %v231, 0
    %v243 = vsel %vm23, %v232, 0
    %v246 = vsel %vm23, %v19, 0
    %v249 = vsel %vm23, %v20, 0
    %251 = vmatprep.subr.mxu0 0.0
    %252 = vmatpush1.xpose.msra.mxu0 0.0
    %253 = vmatprep.subr.mxu0 0.0
    %254 = vmatpush1.xpose.msra.mxu0 0.0
    %255 = vmatprep.subr.mxu0 0.0
    %256 = vmatpush1.xpose.msra.mxu0 0.0
    %257 = vmatprep.subr.mxu0 0.0
    %258 = vmatpush1.xpose.msra.mxu0 0.0
    %259 = vmatprep.subr.mxu0 0.0
    %260 = vmatpush1.xpose.msra.mxu0 0.0
    %261 = vmatprep.subr.mxu0 0.0
    %262 = vmatpush1.xpose.msra.mxu0 0.0
    %263 = vmatprep.subr.mxu0 0.0
    %264 = vmatpush1.xpose.msra.mxu0 0.0
    %265 = vmatprep.subr.mxu0 0.0
    %266 = vmatpush1.xpose.msra.mxu0 0.0
    %267 = vmatprep.subr.mxu0 0.0
    %268 = vmatpush1.xpose.msra.mxu0 0.0
    %269 = vmatprep.subr.mxu0 0.0
    %270 = vmatpush1.xpose.msra.mxu0 0.0
    %271 = vmatprep.subr.mxu0 0.0
    %272 = vmatpush1.xpose.msra.mxu0 0.0
    %273 = vmatprep.subr.mxu0 0.0
    %274 = vmatpush1.xpose.msra.mxu0 0.0
    %275 = vmatprep.subr.mxu0 0.0
    %276 = vmatpush1.xpose.msra.mxu0 0.0
    %277 = vmatprep.subr.mxu0 0.0
    %278 = vmatpush1.xpose.msra.mxu0 0.0
    %279 = vmatprep.subr.mxu0 0.0
    %280 = vmatpush1.xpose.msra.mxu0 %v249
    %281 = vmatprep.subr.mxu0 0.0
    %282 = vmatpush1.xpose.msra.mxu0 %v246
    %283 = vmatprep.subr.mxu0 0.0
    %284 = vmatpush2.xpose.msra.mxu0 0.0
    %285 = vmatprep.subr.mxu0 0.0
    %286 = vmatpush2.xpose.msra.mxu0 0.0
    %287 = vmatprep.subr.mxu0 0.0
    %288 = vmatpush2.xpose.msra.mxu0 0.0
    %289 = vmatprep.subr.mxu0 0.0
    %290 = vmatpush2.xpose.msra.mxu0 0.0
    %291 = vmatprep.subr.mxu0 0.0
    %292 = vmatpush2.xpose.msra.mxu0 0.0
    %293 = vmatprep.subr.mxu0 0.0
    %294 = vmatpush2.xpose.msra.mxu0 0.0
    %295 = vmatprep.subr.mxu0 0.0
    %296 = vmatpush2.xpose.msra.mxu0 0.0
    %297 = vmatprep.subr.mxu0 0.0
    %298 = vmatpush2.xpose.msra.mxu0 0.0
    %299 = vmatprep.subr.mxu0 0.0
    %300 = vmatpush2.xpose.msra.mxu0 0.0
    %301 = vmatprep.subr.mxu0 0.0
    %302 = vmatpush2.xpose.msra.mxu0 0.0
    %303 = vmatprep.subr.mxu0 0.0
    %304 = vmatpush2.xpose.msra.mxu0 0.0
    %305 = vmatprep.subr.mxu0 0.0
    %306 = vmatpush2.xpose.msra.mxu0 0.0
    %307 = vmatprep.subr.mxu0 0.0
    %308 = vmatpush2.xpose.msra.mxu0 0.0
    %309 = vmatprep.subr.mxu0 0.0
    %310 = vmatpush2.xpose.msra.mxu0 0.0
    %311 = vmatprep.subr.mxu0 0.0
    %312 = vmatpush2.xpose.msra.mxu0 0.0
    %313 = vmatprep.subr.mxu0 0.0
    %314 = vmatpush2.xpose.msra.mxu0 0.0
    %315 = vmatprep.mubr.f32.mxu0 0.0
    %316 = vmatmul.mubr.f32.gmra.mxu0 %v234
    %v317 = vpop.f32.mrf.mxu0
    %v318 = vadd.f32 0.0, %v317
    %v319 = vpop.f32.mrf.mxu0
    %320 = vmatprep.mubr.f32.mxu0 0.0
    %321 = vmatmul.mubr.f32.gmra.mxu0 %v237
    %v322 = vpop.f32.mrf.mxu0
    %v323 = vadd.f32 0.0, %v322
    %v324 = vpop.f32.mrf.mxu0
    %325 = vmatprep.mubr.f32.mxu0 0.0
    %326 = vmatmul.mubr.f32.gmra.mxu0 %v240
    %v327 = vpop.f32.mrf.mxu0
    %v328 = vadd.f32 0.0, %v327
    %v329 = vpop.f32.mrf.mxu0
    %330 = vmatprep.mubr.f32.mxu0 0.0
    %331 = vmatmul.mubr.f32.gmra.mxu0 %v243
    %v332 = vpop.f32.mrf.mxu0
    %v333 = vadd.f32 0.0, %v332
    %v334 = vpop.f32.mrf.mxu0
    %335 = vdwg.mxu0
    %v336 = vsub.f32 %v318, %v15
    %v337 = vsub.f32 %v323, %v16
    %v338 = vsub.f32 %v328, %v17
    %v339 = vsub.f32 %v333, %v18
    %v340 = vmul.f32 %v336, %v336
    %v341 = vmul.f32 %v337, %v337
    %v342 = vmul.f32 %v338, %v338
    %v343 = vmul.f32 %v339, %v339
    %v344 = vsel %vm33, %v340, 0.0
    %v345 = vsel %vm33, %v341, 0.0
    %v346 = vadd.f32 %v344, %v345
    %v347 = vsel %vm33, %v342, 0.0
    %v348 = vadd.f32 %v346, %v347
    %v349 = vsel %vm33, %v343, 0.0
    %v350 = vadd.f32 %v348, %v349
    %351 = vadd.xlane.f32.xlu0 %v350
    %v352 = vpop.xlane.xlu0 %351
    %v353 = vrot.slane %v352, 4
    %v354 = vadd.f32 %v352, %v353
    %v355 = vrot.slane %v354, 2
    %v356 = vadd.f32 %v354, %v355
    %v357 = vrot.slane %v356, 1
    %v358 = vadd.f32 %v356, %v357
    %s359 = vtos %v358
    %v360 = vrcp.pop 512.0
    %s361 = vtos %v360
    %s362 = smul.f32 %s359, %s361
    %363 = vst.msk [vmem:[%s2] sm:$0xff] %vm33, %v318
    %364 = vst.msk [vmem:[%s2 + $0x8] sm:$0xff] %vm33, %v323
    %365 = vst.msk [vmem:[%s2 + $0x10] sm:$0xff] %vm33, %v328
    %366 = vst.msk [vmem:[%s2 + $0x18] sm:$0xff] %vm33, %v333
    %vm367 = vcmask 7168
    %368 = vst.msk [vmem:[%s3] sm:$0xff] %vm367, %v175
    %369 = vst.msk [vmem:[%s3 + $0x8] sm:$0xff] %vm367, %v190
    %370 = vst.msk [vmem:[%s3 + $0x10] sm:$0xff] %vm367, %v205
    %371 = vst.msk [vmem:[%s3 + $0x18] sm:$0xff] %vm367, %v220
    %v372 = vstv %s362
    %vm373 = vcmask 0
    %374 = vst.msk [vmem:[#allocation2] sm:$0x1] %vm373, %v372
    // Predicated region
    $region10: #{network_forward.45} parent=1 // pred_check
      _
    $region11: #{network_forward.45} parent=1 // pred_check_branch
      %376 = sbr.rel (0) target = $region13
    $region12: #{network_forward.45} parent=1 // pred_region
      _
    $region13: #{network_forward.45} parent=1 // pred_fallthru
      _
    // Predicated region
    $region14: #{network_forward.45} parent=1 // pred_check
      _
    $region15: #{network_forward.45} parent=1 // pred_check_branch
      %378 = sbr.rel (0) target = $region17
    $region16: #{network_forward.45} parent=1 // pred_region
      _
    $region17: #{network_forward.45} parent=1 // pred_fallthru
      _
    // Predicated region
    $region18: #{network_forward.45} parent=1 // pred_check
      _
    $region19: #{network_forward.45} parent=1 // pred_check_branch
      %380 = sbr.rel (0) target = $region21
    $region20: #{network_forward.45} parent=1 // pred_region
      %s382 = ssub.s32 16, 16
      %383 = vsyncadd [#allocation3], %s382
      %s385 = sshll.u32 [#allocation2], 4
      %s386 = int_to_ptr.vmem [resolvable:$true] %s385
      %388 = dma.vmem_to_hbm [thread:$0]  %s386, 16, %s4, [#allocation3]
    $region21: #{network_forward.45} parent=1 // pred_fallthru
      _
    // Predicated region
    $region22: #{network_forward.45} parent=1 // pred_check
      _
    $region23: #{network_forward.45} parent=1 // pred_check_branch
      %390 = sbr.rel (0) target = $region25
    $region24: #{network_forward.45} parent=1 // pred_region
      _
    $region25: #{network_forward.45} parent=1 // pred_fallthru
      _
    // Predicated region
    $region26: #{network_forward.45} parent=1 // pred_check
      _
    $region27: #{network_forward.45} parent=1 // pred_check_branch
      %392 = sbr.rel (0) target = $region29
    $region28: #{network_forward.45} parent=1 // pred_region
      _
    $region29: #{network_forward.45} parent=1 // pred_fallthru
      _
    // Predicated region
    $region30: #{network_forward.45} parent=1 // pred_check
      _
    $region31: #{network_forward.45} parent=1 // pred_check_branch
      %394 = sbr.rel (0) target = $region33
    $region32: #{network_forward.45} parent=1 // pred_region
      %395 = dma.done [#allocation3], 16
    $region33: #{network_forward.45} parent=1 // pred_fallthru
      _
    %396 = vsyncpa [#allocation3], 1

// kernel: tile.38
$region0: #{tile.38}
  #allocation0 [shape = 's32[1]{0}', space=sflag, size = 0x4, scoped, tag = 'scoped memory for tile.38']
  %s0 = inlined_call_operand.vmem [shape: f32[16], index: 0, kind: input, shape index: {}]
  %s1 = inlined_call_operand.vmem [shape: f32[4,16], index: 1, kind: output, shape index: {}]
  // Predicated region
  $region2: #{tile.38} parent=0 // pred_check
    _
  $region3: #{tile.38} parent=0 // pred_check_branch
    %3 = sbr.rel (0) target = $region5
  $region4: #{tile.38} parent=0 // pred_region
    _
  $region5: #{tile.38} parent=0 // pred_fallthru
    _
  %v4 = vld [vmem:[%s0] ss:$0 sm:$0xff]
  %5 = vst [vmem:[%s1] sm:$0xf] %v4

// kernel: tile.39
$region0: #{tile.39}
  %s0 = inlined_call_operand.vmem [shape: f32[4,16], index: 0, kind: input, shape index: {}]
  %s1 = inlined_call_operand.vmem [shape: f32[64], index: 1, kind: output, shape index: {}]
  $region1: #{tile.39} parent=0
    #allocation0 [shape = 'u8[4096]{0}', space=vmem, size = 0x1000, scoped, tag = 'scoped mem for output reshape']
    #allocation1 [shape = 'u8[4096]{0}', space=vmem, size = 0x1000, scoped, tag = 'scoped mem for input reshape']
    %s3 = sshll.u32 1, 4
    %s4 = ssub.s32 %s3, 1
    %v5 = vld [vmem:[%s0] sm:%s4]
    %6 = vst [vmem:[#allocation1] sm:%s4] %v5
    %v7 = vld [vmem:[#allocation1] sm:$0x1]
    %vm8 = vcmask 130048
    %9 = vst.msk [vmem:[#allocation0] sm:$0x1] %vm8, %v7
    %s10 = scalar_lea.vmem [#allocation1], 3
    %v11 = vld [vmem:[%s10] sm:$0x1]
    %12 = vrot.lane.b32.xlu0 %v11, 48
    %v13 = vpop.permute.xlu0 %12
    %vm14 = vcmask 523648
    %15 = vst.msk [vmem:[#allocation0] sm:$0x1] %vm14, %v13
    %s16 = scalar_lea.vmem [#allocation1], 2
    %v17 = vld [vmem:[%s16] sm:$0x1]
    %18 = vrot.lane.b32.xlu0 %v17, 32
    %v19 = vpop.permute.xlu0 %18
    %vm20 = vcmask 392448
    %21 = vst.msk [vmem:[#allocation0] sm:$0x1] %vm20, %v19
    %s22 = scalar_lea.vmem [#allocation1], 1
    %v23 = vld [vmem:[%s22] sm:$0x1]
    %24 = vrot.lane.b32.xlu0 %v23, 16
    %v25 = vpop.permute.xlu0 %24
    %vm26 = vcmask 261248
    %27 = vst.msk [vmem:[#allocation0] sm:$0x1] %vm26, %v25
    %s29 = sshll.u32 1, 1
    %s30 = ssub.s32 %s29, 1
    %v32 = vld [vmem:[#allocation0] sm:%s30]
    %s33 = sshll.u32 1, 1
    %s34 = ssub.s32 %s33, 1
    %35 = vst [vmem:[%s1] sm:%s34] %v32

// kernel: network_forward.54
$region0: #{network_forward.54}
  #allocation0 [shape = 'u32[]', space=smem, size = 0x4, offset = 0x4, fixed_abs, tag = 'smem constant byte address 0x4 - core index']
  #allocation1 [shape = 'u32[144,128]{1,0:T(1,128)}', space=vmem, size = 0x12000, scoped, tag = 'internal scratch']
  %s0 = inlined_call_operand.vmem [shape: bf16[32,144], index: 0, kind: input, shape index: {}]
  %s1 = inlined_call_operand.vmem [shape: bf16[144,128], index: 1, kind: input, shape index: {}]
  %s2 = inlined_call_operand.vmem [shape: f32[1,128], index: 2, kind: input, shape index: {}]
  %s3 = inlined_call_operand.vmem [shape: f32[32,128], index: 3, kind: output, shape index: {}]
  %s4 = sld [smem:[#allocation0]]
  $region22: #{network_forward.54} parent=0
    _
  %s6 = ssub.s32 1, %s4
  %s7 = scalar_select 0, %s6, %s4
  // Predicated region
  $region2: #{network_forward.54} parent=0 // pred_check
    _
  $region3: #{network_forward.54} parent=0 // pred_check_branch
    %9 = sbr.rel (0) target = $region5
  $region4: #{network_forward.54} parent=0 // pred_region
    _
  $region5: #{network_forward.54} parent=0 // pred_fallthru
    _
  // Predicated region
  $region6: #{network_forward.54} parent=0 // pred_check
    _
  $region7: #{network_forward.54} parent=0 // pred_check_branch
    %11 = sbr.rel (0) target = $region9
  $region8: #{network_forward.54} parent=0 // pred_region
    _
  $region9: #{network_forward.54} parent=0 // pred_fallthru
    _
  // Predicated region
  $region10: #{network_forward.54} parent=0 // pred_check
    _
  $region11: #{network_forward.54} parent=0 // pred_check_branch
    %13 = sbr.rel (0) target = $region13
  $region12: #{network_forward.54} parent=0 // pred_region
    _
  $region13: #{network_forward.54} parent=0 // pred_fallthru
    _
  %v15 = vld [vmem:[%s0] sm:$0xff]
  %v16 = vld [vmem:[%s0 + $0x8] sm:$0xff]
  %v17 = vld [vmem:[%s0 + $0x10] sm:$0xff]
  %v18 = vld [vmem:[%s0 + $0x18] sm:$0xff]
  %v19 = vld [vmem:[%s1] sm:$0xf]
  %v20 = vld [vmem:[%s1 + $0x4] sm:$0xf]
  %v21 = vld [vmem:[%s1 + $0x8] sm:$0xf]
  %v22 = vld [vmem:[%s1 + $0xc] sm:$0xf]
  %v23 = vld [vmem:[%s1 + $0x10] sm:$0xf]
  %v24 = vld [vmem:[%s1 + $0x14] sm:$0xf]
  %v25 = vld [vmem:[%s1 + $0x18] sm:$0xf]
  %v26 = vld [vmem:[%s1 + $0x1c] sm:$0xf]
  %v27 = vld [vmem:[%s1 + $0x20] sm:$0xf]
  %v28 = vld [vmem:[%s1 + $0x24] sm:$0xf]
  %v29 = vld [vmem:[%s1 + $0x28] sm:$0xf]
  %v30 = vld [vmem:[%s1 + $0x2c] sm:$0xf]
  %v31 = vld [vmem:[%s1 + $0x30] sm:$0xf]
  %v32 = vld [vmem:[%s1 + $0x34] sm:$0xf]
  %v33 = vld [vmem:[%s1 + $0x38] sm:$0xf]
  %v34 = vld [vmem:[%s1 + $0x3c] sm:$0xf]
  %v35 = vld [vmem:[%s1 + $0x40] sm:$0xf]
  %v36 = vld [vmem:[%s1 + $0x44] sm:$0xf]
  %v37 = vld [vmem:[%s2] sm:$0x1]
  %v39 = vlaneseq
  %v40 = vshrl.u32 %v39, 7
  %v41 = vsub.s32 0, %v40
  %v42 = vrot.slane %v37, %v41
  %v48 = vunpack.c.l.b16 %v15
  %v49 = vunpack.c.h.b16 %v15
  %v50 = vunpack.c.l.b16 %v16
  %v51 = vunpack.c.h.b16 %v16
  %v52 = vunpack.c.l.b16 %v17
  %v53 = vunpack.c.h.b16 %v17
  %v54 = vunpack.c.l.b16 %v18
  %v55 = vunpack.c.h.b16 %v18
  %v56 = vpack.c.b16 %v50, %v48
  %v57 = vpack.c.b16 %v51, %v49
  %v58 = vpack.c.b16 %v54, %v52
  %v59 = vpack.c.b16 %v55, %v53
  %v80 = vunpack.c.l.b16 %v19
  %v81 = vunpack.c.l.b16 %v20
  %v82 = vunpack.c.l.b16 %v21
  %v83 = vunpack.c.l.b16 %v22
  %v84 = vunpack.c.l.b16 %v23
  %v85 = vunpack.c.l.b16 %v24
  %v86 = vunpack.c.l.b16 %v25
  %v87 = vunpack.c.l.b16 %v26
  %v88 = vunpack.c.l.b16 %v27
  %v89 = vunpack.c.l.b16 %v28
  %v90 = vunpack.c.l.b16 %v29
  %v91 = vunpack.c.l.b16 %v30
  %v92 = vunpack.c.l.b16 %v31
  %v93 = vunpack.c.l.b16 %v32
  %v94 = vunpack.c.l.b16 %v33
  %v95 = vunpack.c.l.b16 %v34
  %v96 = vunpack.c.l.b16 %v35
  %v97 = vunpack.c.l.b16 %v36
  %v98 = vpack.c.b16 %v81, %v80
  %v99 = vpack.c.b16 %v83, %v82
  %v100 = vpack.c.b16 %v85, %v84
  %v101 = vpack.c.b16 %v87, %v86
  %v102 = vpack.c.b16 %v89, %v88
  %v103 = vpack.c.b16 %v91, %v90
  %v104 = vpack.c.b16 %v93, %v92
  %v105 = vpack.c.b16 %v95, %v94
  %v106 = vpack.c.b16 %v97, %v96
  %vm116 = vcmask 130048
  %v118 = vsel %vm116, %v57, 0
  %v121 = vsel %vm116, %v59, 0
  %123 = vmatprep.subr.bf16.mxu0 0
  %124 = vmatpush1.bf16.msra.mxu0 %v105
  %125 = vmatprep.subr.bf16.mxu0 0
  %126 = vmatpush1.bf16.msra.mxu0 %v104
  %127 = vmatprep.subr.bf16.mxu0 0
  %128 = vmatpush1.bf16.msra.mxu0 %v103
  %129 = vmatprep.subr.bf16.mxu0 0
  %130 = vmatpush1.bf16.msra.mxu0 %v102
  %131 = vmatprep.subr.bf16.mxu0 0
  %132 = vmatpush1.bf16.msra.mxu0 %v101
  %133 = vmatprep.subr.bf16.mxu0 0
  %134 = vmatpush1.bf16.msra.mxu0 %v100
  %135 = vmatprep.subr.bf16.mxu0 0
  %136 = vmatpush1.bf16.msra.mxu0 %v99
  %137 = vmatprep.subr.bf16.mxu0 0
  %138 = vmatpush1.bf16.msra.mxu0 %v98
  %139 = vmatprep.subr.bf16.mxu0 0
  %140 = vmatpush2.bf16.msra.mxu0 0
  %141 = vmatprep.subr.bf16.mxu0 0
  %142 = vmatpush2.bf16.msra.mxu0 0
  %143 = vmatprep.subr.bf16.mxu0 0
  %144 = vmatpush2.bf16.msra.mxu0 0
  %145 = vmatprep.subr.bf16.mxu0 0
  %146 = vmatpush2.bf16.msra.mxu0 0
  %147 = vmatprep.subr.bf16.mxu0 0
  %148 = vmatpush2.bf16.msra.mxu0 0
  %149 = vmatprep.subr.bf16.mxu0 0
  %150 = vmatpush2.bf16.msra.mxu0 0
  %151 = vmatprep.subr.bf16.mxu0 0
  %152 = vmatpush2.bf16.msra.mxu0 0
  %153 = vmatprep.subr.bf16.mxu0 0
  %154 = vmatpush2.bf16.msra.mxu0 %v106
  %155 = vmatprep.mubr.bf16.mxu0 %v118
  %156 = vmatmul.mubr.bf16.gmra.mxu0 %v56
  %v157 = vpop.f32.mrf.mxu0
  %v158 = vadd.f32 %v42, %v157
  %v159 = vpop.f32.mrf.mxu0
  %v160 = vpop.f32.mrf.mxu0
  %v161 = vadd.f32 %v42, %v160
  %v162 = vpop.f32.mrf.mxu0
  %163 = vmatprep.mubr.bf16.mxu0 %v121
  %164 = vmatmul.mubr.bf16.gmra.mxu0 %v58
  %v165 = vpop.f32.mrf.mxu0
  %v166 = vadd.f32 %v42, %v165
  %v167 = vpop.f32.mrf.mxu0
  %v168 = vpop.f32.mrf.mxu0
  %v169 = vadd.f32 %v42, %v168
  %v170 = vpop.f32.mrf.mxu0
  %171 = vdwg.mxu0
  %172 = vst [vmem:[%s3] sm:$0xff] %v158
  %173 = vst [vmem:[%s3 + $0x8] sm:$0xff] %v161
  %174 = vst [vmem:[%s3 + $0x10] sm:$0xff] %v166
  %175 = vst [vmem:[%s3 + $0x18] sm:$0xff] %v169
  // Predicated region
  $region14: #{network_forward.54} parent=0 // pred_check
    _
  $region15: #{network_forward.54} parent=0 // pred_check_branch
    %177 = sbr.rel (0) target = $region17
  $region16: #{network_forward.54} parent=0 // pred_region
    _
  $region17: #{network_forward.54} parent=0 // pred_fallthru
    _
  // Predicated region
  $region18: #{network_forward.54} parent=0 // pred_check
    _
  $region19: #{network_forward.54} parent=0 // pred_check_branch
    %179 = sbr.rel (0) target = $region21
  $region20: #{network_forward.54} parent=0 // pred_region
    _
  $region21: #{network_forward.54} parent=0 // pred_fallthru
    _

// kernel: network_forward.52
$region0: #{network_forward.52}
  #allocation0 [shape = 'u32[]', space=smem, size = 0x4, offset = 0x4, fixed_abs, tag = 'smem constant byte address 0x4 - core index']
  #allocation1 [shape = 'u32[144,128]{1,0:T(1,128)}', space=vmem, size = 0x12000, scoped, tag = 'internal scratch']
  %s0 = inlined_call_operand.vmem [shape: bf16[128,48], index: 0, kind: input, shape index: {}]
  %s1 = inlined_call_operand.vmem [shape: bf16[48,128], index: 1, kind: input, shape index: {}]
  %s2 = inlined_call_operand.vmem [shape: f32[1,128], index: 2, kind: input, shape index: {}]
  %s3 = inlined_call_operand.vmem [shape: f32[128,128], index: 3, kind: output, shape index: {}]
  %s4 = sld [smem:[#allocation0]]
  $region22: #{network_forward.52} parent=0
    _
  %s6 = ssub.s32 1, %s4
  %s7 = scalar_select 0, %s6, %s4
  // Predicated region
  $region2: #{network_forward.52} parent=0 // pred_check
    _
  $region3: #{network_forward.52} parent=0 // pred_check_branch
    %9 = sbr.rel (0) target = $region5
  $region4: #{network_forward.52} parent=0 // pred_region
    _
  $region5: #{network_forward.52} parent=0 // pred_fallthru
    _
  // Predicated region
  $region6: #{network_forward.52} parent=0 // pred_check
    _
  $region7: #{network_forward.52} parent=0 // pred_check_branch
    %11 = sbr.rel (0) target = $region9
  $region8: #{network_forward.52} parent=0 // pred_region
    _
  $region9: #{network_forward.52} parent=0 // pred_fallthru
    _
  // Predicated region
  $region10: #{network_forward.52} parent=0 // pred_check
    _
  $region11: #{network_forward.52} parent=0 // pred_check_branch
    %13 = sbr.rel (0) target = $region13
  $region12: #{network_forward.52} parent=0 // pred_region
    _
  $region13: #{network_forward.52} parent=0 // pred_fallthru
    _
  %v15 = vld [vmem:[%s0] sm:$0xf]
  %v16 = vld [vmem:[%s0 + $0x4] sm:$0xf]
  %v17 = vld [vmem:[%s0 + $0x8] sm:$0xf]
  %v18 = vld [vmem:[%s0 + $0xc] sm:$0xf]
  %v19 = vld [vmem:[%s0 + $0x10] sm:$0xf]
  %v20 = vld [vmem:[%s0 + $0x14] sm:$0xf]
  %v21 = vld [vmem:[%s0 + $0x18] sm:$0xf]
  %v22 = vld [vmem:[%s0 + $0x1c] sm:$0xf]
  %v23 = vld [vmem:[%s0 + $0x20] sm:$0xf]
  %v24 = vld [vmem:[%s0 + $0x24] sm:$0xf]
  %v25 = vld [vmem:[%s0 + $0x28] sm:$0xf]
  %v26 = vld [vmem:[%s0 + $0x2c] sm:$0xf]
  %v27 = vld [vmem:[%s0 + $0x30] sm:$0xf]
  %v28 = vld [vmem:[%s0 + $0x34] sm:$0xf]
  %v29 = vld [vmem:[%s0 + $0x38] sm:$0xf]
  %v30 = vld [vmem:[%s0 + $0x3c] sm:$0xf]
  %v31 = vld [vmem:[%s1] sm:$0xf]
  %v32 = vld [vmem:[%s1 + $0x4] sm:$0xf]
  %v33 = vld [vmem:[%s1 + $0x8] sm:$0xf]
  %v34 = vld [vmem:[%s1 + $0xc] sm:$0xf]
  %v35 = vld [vmem:[%s1 + $0x10] sm:$0xf]
  %v36 = vld [vmem:[%s1 + $0x14] sm:$0xf]
  %v37 = vld [vmem:[%s2] sm:$0x1]
  %v39 = vlaneseq
  %v40 = vshrl.u32 %v39, 7
  %v41 = vsub.s32 0, %v40
  %v42 = vrot.slane %v37, %v41
  %v60 = vunpack.c.l.b16 %v15
  %v61 = vunpack.c.l.b16 %v16
  %v62 = vunpack.c.l.b16 %v17
  %v63 = vunpack.c.l.b16 %v18
  %v64 = vunpack.c.l.b16 %v19
  %v65 = vunpack.c.l.b16 %v20
  %v66 = vunpack.c.l.b16 %v21
  %v67 = vunpack.c.l.b16 %v22
  %v68 = vunpack.c.l.b16 %v23
  %v69 = vunpack.c.l.b16 %v24
  %v70 = vunpack.c.l.b16 %v25
  %v71 = vunpack.c.l.b16 %v26
  %v72 = vunpack.c.l.b16 %v27
  %v73 = vunpack.c.l.b16 %v28
  %v74 = vunpack.c.l.b16 %v29
  %v75 = vunpack.c.l.b16 %v30
  %v76 = vpack.c.b16 %v61, %v60
  %v77 = vpack.c.b16 %v63, %v62
  %v78 = vpack.c.b16 %v65, %v64
  %v79 = vpack.c.b16 %v67, %v66
  %v80 = vpack.c.b16 %v69, %v68
  %v81 = vpack.c.b16 %v71, %v70
  %v82 = vpack.c.b16 %v73, %v72
  %v83 = vpack.c.b16 %v75, %v74
  %v90 = vunpack.c.l.b16 %v31
  %v91 = vunpack.c.l.b16 %v32
  %v92 = vunpack.c.l.b16 %v33
  %v93 = vunpack.c.l.b16 %v34
  %v94 = vunpack.c.l.b16 %v35
  %v95 = vunpack.c.l.b16 %v36
  %v96 = vpack.c.b16 %v91, %v90
  %v97 = vpack.c.b16 %v93, %v92
  %v98 = vpack.c.b16 %v95, %v94
  %vm102 = vcmask 392192
  %v104 = vsel %vm102, %v76, 0
  %v107 = vsel %vm102, %v77, 0
  %v110 = vsel %vm102, %v78, 0
  %v113 = vsel %vm102, %v79, 0
  %v116 = vsel %vm102, %v80, 0
  %v119 = vsel %vm102, %v81, 0
  %v122 = vsel %vm102, %v82, 0
  %v125 = vsel %vm102, %v83, 0
  %127 = vmatprep.subr.bf16.mxu0 0
  %128 = vmatpush1.bf16.msra.mxu0 0
  %129 = vmatprep.subr.bf16.mxu0 0
  %130 = vmatpush1.bf16.msra.mxu0 0
  %131 = vmatprep.subr.bf16.mxu0 0
  %132 = vmatpush1.bf16.msra.mxu0 0
  %133 = vmatprep.subr.bf16.mxu0 0
  %134 = vmatpush1.bf16.msra.mxu0 0
  %135 = vmatprep.subr.bf16.mxu0 0
  %136 = vmatpush1.bf16.msra.mxu0 0
  %137 = vmatprep.subr.bf16.mxu0 0
  %138 = vmatpush1.bf16.msra.mxu0 %v98
  %139 = vmatprep.subr.bf16.mxu0 0
  %140 = vmatpush1.bf16.msra.mxu0 %v97
  %141 = vmatprep.subr.bf16.mxu0 0
  %142 = vmatpush1.bf16.msra.mxu0 %v96
  %143 = vmatprep.subr.bf16.mxu0 0
  %144 = vmatpush2.bf16.msra.mxu0 0
  %145 = vmatprep.subr.bf16.mxu0 0
  %146 = vmatpush2.bf16.msra.mxu0 0
  %147 = vmatprep.subr.bf16.mxu0 0
  %148 = vmatpush2.bf16.msra.mxu0 0
  %149 = vmatprep.subr.bf16.mxu0 0
  %150 = vmatpush2.bf16.msra.mxu0 0
  %151 = vmatprep.subr.bf16.mxu0 0
  %152 = vmatpush2.bf16.msra.mxu0 0
  %153 = vmatprep.subr.bf16.mxu0 0
  %154 = vmatpush2.bf16.msra.mxu0 0
  %155 = vmatprep.subr.bf16.mxu0 0
  %156 = vmatpush2.bf16.msra.mxu0 0
  %157 = vmatprep.subr.bf16.mxu0 0
  %158 = vmatpush2.bf16.msra.mxu0 0
  %159 = vmatprep.mubr.bf16.mxu0 0
  %160 = vmatmul.mubr.bf16.gmra.mxu0 %v104
  %v161 = vpop.f32.mrf.mxu0
  %v162 = vadd.f32 %v42, %v161
  %v163 = vpop.f32.mrf.mxu0
  %v164 = vpop.f32.mrf.mxu0
  %v165 = vadd.f32 %v42, %v164
  %v166 = vpop.f32.mrf.mxu0
  %167 = vmatprep.mubr.bf16.mxu0 0
  %168 = vmatmul.mubr.bf16.gmra.mxu0 %v107
  %v169 = vpop.f32.mrf.mxu0
  %v170 = vadd.f32 %v42, %v169
  %v171 = vpop.f32.mrf.mxu0
  %v172 = vpop.f32.mrf.mxu0
  %v173 = vadd.f32 %v42, %v172
  %v174 = vpop.f32.mrf.mxu0
  %175 = vmatprep.mubr.bf16.mxu0 0
  %176 = vmatmul.mubr.bf16.gmra.mxu0 %v110
  %v177 = vpop.f32.mrf.mxu0
  %v178 = vadd.f32 %v42, %v177
  %v179 = vpop.f32.mrf.mxu0
  %v180 = vpop.f32.mrf.mxu0
  %v181 = vadd.f32 %v42, %v180
  %v182 = vpop.f32.mrf.mxu0
  %183 = vmatprep.mubr.bf16.mxu0 0
  %184 = vmatmul.mubr.bf16.gmra.mxu0 %v113
  %v185 = vpop.f32.mrf.mxu0
  %v186 = vadd.f32 %v42, %v185
  %v187 = vpop.f32.mrf.mxu0
  %v188 = vpop.f32.mrf.mxu0
  %v189 = vadd.f32 %v42, %v188
  %v190 = vpop.f32.mrf.mxu0
  %191 = vmatprep.mubr.bf16.mxu0 0
  %192 = vmatmul.mubr.bf16.gmra.mxu0 %v116
  %v193 = vpop.f32.mrf.mxu0
  %v194 = vadd.f32 %v42, %v193
  %v195 = vpop.f32.mrf.mxu0
  %v196 = vpop.f32.mrf.mxu0
  %v197 = vadd.f32 %v42, %v196
  %v198 = vpop.f32.mrf.mxu0
  %199 = vmatprep.mubr.bf16.mxu0 0
  %200 = vmatmul.mubr.bf16.gmra.mxu0 %v119
  %v201 = vpop.f32.mrf.mxu0
  %v202 = vadd.f32 %v42, %v201
  %v203 = vpop.f32.mrf.mxu0
  %v204 = vpop.f32.mrf.mxu0
  %v205 = vadd.f32 %v42, %v204
  %v206 = vpop.f32.mrf.mxu0
  %207 = vmatprep.mubr.bf16.mxu0 0
  %208 = vmatmul.mubr.bf16.gmra.mxu0 %v122
  %v209 = vpop.f32.mrf.mxu0
  %v210 = vadd.f32 %v42, %v209
  %v211 = vpop.f32.mrf.mxu0
  %v212 = vpop.f32.mrf.mxu0
  %v213 = vadd.f32 %v42, %v212
  %v214 = vpop.f32.mrf.mxu0
  %215 = vmatprep.mubr.bf16.mxu0 0
  %216 = vmatmul.mubr.bf16.gmra.mxu0 %v125
  %v217 = vpop.f32.mrf.mxu0
  %v218 = vadd.f32 %v42, %v217
  %v219 = vpop.f32.mrf.mxu0
  %v220 = vpop.f32.mrf.mxu0
  %v221 = vadd.f32 %v42, %v220
  %v222 = vpop.f32.mrf.mxu0
  %223 = vdwg.mxu0
  %224 = vst [vmem:[%s3] sm:$0xff] %v162
  %225 = vst [vmem:[%s3 + $0x8] sm:$0xff] %v165
  %226 = vst [vmem:[%s3 + $0x10] sm:$0xff] %v170
  %227 = vst [vmem:[%s3 + $0x18] sm:$0xff] %v173
  %228 = vst [vmem:[%s3 + $0x20] sm:$0xff] %v178
  %229 = vst [vmem:[%s3 + $0x28] sm:$0xff] %v181
  %230 = vst [vmem:[%s3 + $0x30] sm:$0xff] %v186
  %231 = vst [vmem:[%s3 + $0x38] sm:$0xff] %v189
  %232 = vst [vmem:[%s3 + $0x40] sm:$0xff] %v194
  %233 = vst [vmem:[%s3 + $0x48] sm:$0xff] %v197
  %234 = vst [vmem:[%s3 + $0x50] sm:$0xff] %v202
  %235 = vst [vmem:[%s3 + $0x58] sm:$0xff] %v205
  %236 = vst [vmem:[%s3 + $0x60] sm:$0xff] %v210
  %237 = vst [vmem:[%s3 + $0x68] sm:$0xff] %v213
  %238 = vst [vmem:[%s3 + $0x70] sm:$0xff] %v218
  %239 = vst [vmem:[%s3 + $0x78] sm:$0xff] %v221
  // Predicated region
  $region14: #{network_forward.52} parent=0 // pred_check
    _
  $region15: #{network_forward.52} parent=0 // pred_check_branch
    %241 = sbr.rel (0) target = $region17
  $region16: #{network_forward.52} parent=0 // pred_region
    _
  $region17: #{network_forward.52} parent=0 // pred_fallthru
    _
  // Predicated region
  $region18: #{network_forward.52} parent=0 // pred_check
    _
  $region19: #{network_forward.52} parent=0 // pred_check_branch
    %243 = sbr.rel (0) target = $region21
  $region20: #{network_forward.52} parent=0 // pred_region
    _
  $region21: #{network_forward.52} parent=0 // pred_fallthru
    _

// kernel: network_forward.51
$region0: #{network_forward.51}
  #allocation0 [shape = 'u32[]', space=smem, size = 0x4, offset = 0x4, fixed_abs, tag = 'smem constant byte address 0x4 - core index']
  #allocation1 [shape = 'u32[144,128]{1,0:T(1,128)}', space=vmem, size = 0x12000, scoped, tag = 'internal scratch']
  %s0 = inlined_call_operand.vmem [shape: bf16[32,288], index: 0, kind: input, shape index: {}]
  %s1 = inlined_call_operand.vmem [shape: bf16[288,128], index: 1, kind: input, shape index: {}]
  %s2 = inlined_call_operand.vmem [shape: f32[1,128], index: 2, kind: input, shape index: {}]
  %s3 = inlined_call_operand.vmem [shape: f32[32,128], index: 3, kind: output, shape index: {}]
  %s4 = sld [smem:[#allocation0]]
  $region22: #{network_forward.51} parent=0
    _
  %s6 = ssub.s32 1, %s4
  %s7 = scalar_select 0, %s6, %s4
  // Predicated region
  $region2: #{network_forward.51} parent=0 // pred_check
    _
  $region3: #{network_forward.51} parent=0 // pred_check_branch
    %9 = sbr.rel (0) target = $region5
  $region4: #{network_forward.51} parent=0 // pred_region
    _
  $region5: #{network_forward.51} parent=0 // pred_fallthru
    _
  // Predicated region
  $region6: #{network_forward.51} parent=0 // pred_check
    _
  $region7: #{network_forward.51} parent=0 // pred_check_branch
    %11 = sbr.rel (0) target = $region9
  $region8: #{network_forward.51} parent=0 // pred_region
    _
  $region9: #{network_forward.51} parent=0 // pred_fallthru
    _
  // Predicated region
  $region10: #{network_forward.51} parent=0 // pred_check
    _
  $region11: #{network_forward.51} parent=0 // pred_check_branch
    %13 = sbr.rel (0) target = $region13
  $region12: #{network_forward.51} parent=0 // pred_region
    _
  $region13: #{network_forward.51} parent=0 // pred_fallthru
    _
  %v15 = vld [vmem:[%s0] sm:$0xff]
  %v16 = vld [vmem:[%s0 + $0x8] sm:$0xf]
  %v17 = vld [vmem:[%s0 + $0xc] sm:$0xff]
  %v18 = vld [vmem:[%s0 + $0x14] sm:$0xf]
  %v19 = vld [vmem:[%s0 + $0x18] sm:$0xff]
  %v20 = vld [vmem:[%s0 + $0x20] sm:$0xf]
  %v21 = vld [vmem:[%s0 + $0x24] sm:$0xff]
  %v22 = vld [vmem:[%s0 + $0x2c] sm:$0xf]
  %v23 = vld [vmem:[%s1] sm:$0xf]
  %v24 = vld [vmem:[%s1 + $0x4] sm:$0xf]
  %v25 = vld [vmem:[%s1 + $0x8] sm:$0xf]
  %v26 = vld [vmem:[%s1 + $0xc] sm:$0xf]
  %v27 = vld [vmem:[%s1 + $0x10] sm:$0xf]
  %v28 = vld [vmem:[%s1 + $0x14] sm:$0xf]
  %v29 = vld [vmem:[%s1 + $0x18] sm:$0xf]
  %v30 = vld [vmem:[%s1 + $0x1c] sm:$0xf]
  %v31 = vld [vmem:[%s1 + $0x20] sm:$0xf]
  %v32 = vld [vmem:[%s1 + $0x24] sm:$0xf]
  %v33 = vld [vmem:[%s1 + $0x28] sm:$0xf]
  %v34 = vld [vmem:[%s1 + $0x2c] sm:$0xf]
  %v35 = vld [vmem:[%s1 + $0x30] sm:$0xf]
  %v36 = vld [vmem:[%s1 + $0x34] sm:$0xf]
  %v37 = vld [vmem:[%s1 + $0x38] sm:$0xf]
  %v38 = vld [vmem:[%s1 + $0x3c] sm:$0xf]
  %v39 = vld [vmem:[%s1 + $0x40] sm:$0xf]
  %v40 = vld [vmem:[%s1 + $0x44] sm:$0xf]
  %v41 = vld [vmem:[%s1 + $0x48] sm:$0xf]
  %v42 = vld [vmem:[%s1 + $0x4c] sm:$0xf]
  %v43 = vld [vmem:[%s1 + $0x50] sm:$0xf]
  %v44 = vld [vmem:[%s1 + $0x54] sm:$0xf]
  %v45 = vld [vmem:[%s1 + $0x58] sm:$0xf]
  %v46 = vld [vmem:[%s1 + $0x5c] sm:$0xf]
  %v47 = vld [vmem:[%s1 + $0x60] sm:$0xf]
  %v48 = vld [vmem:[%s1 + $0x64] sm:$0xf]
  %v49 = vld [vmem:[%s1 + $0x68] sm:$0xf]
  %v50 = vld [vmem:[%s1 + $0x6c] sm:$0xf]
  %v51 = vld [vmem:[%s1 + $0x70] sm:$0xf]
  %v52 = vld [vmem:[%s1 + $0x74] sm:$0xf]
  %v53 = vld [vmem:[%s1 + $0x78] sm:$0xf]
  %v54 = vld [vmem:[%s1 + $0x7c] sm:$0xf]
  %v55 = vld [vmem:[%s1 + $0x80] sm:$0xf]
  %v56 = vld [vmem:[%s1 + $0x84] sm:$0xf]
  %v57 = vld [vmem:[%s1 + $0x88] sm:$0xf]
  %v58 = vld [vmem:[%s1 + $0x8c] sm:$0xf]
  %v59 = vld [vmem:[%s2] sm:$0x1]
  %v61 = vlaneseq
  %v62 = vshrl.u32 %v61, 7
  %v63 = vsub.s32 0, %v62
  %v64 = vrot.slane %v59, %v63
  %v74 = vunpack.c.l.b16 %v15
  %v75 = vunpack.c.h.b16 %v15
  %v76 = vunpack.c.l.b16 %v16
  %v77 = vunpack.c.l.b16 %v17
  %v78 = vunpack.c.h.b16 %v17
  %v79 = vunpack.c.l.b16 %v18
  %v80 = vunpack.c.l.b16 %v19
  %v81 = vunpack.c.h.b16 %v19
  %v82 = vunpack.c.l.b16 %v20
  %v83 = vunpack.c.l.b16 %v21
  %v84 = vunpack.c.h.b16 %v21
  %v85 = vunpack.c.l.b16 %v22
  %v86 = vpack.c.b16 %v77, %v74
  %v87 = vpack.c.b16 %v78, %v75
  %v88 = vpack.c.b16 %v79, %v76
  %v89 = vpack.c.b16 %v83, %v80
  %v90 = vpack.c.b16 %v84, %v81
  %v91 = vpack.c.b16 %v85, %v82
  %v132 = vunpack.c.l.b16 %v23
  %v133 = vunpack.c.l.b16 %v24
  %v134 = vunpack.c.l.b16 %v25
  %v135 = vunpack.c.l.b16 %v26
  %v136 = vunpack.c.l.b16 %v27
  %v137 = vunpack.c.l.b16 %v28
  %v138 = vunpack.c.l.b16 %v29
  %v139 = vunpack.c.l.b16 %v30
  %v140 = vunpack.c.l.b16 %v31
  %v141 = vunpack.c.l.b16 %v32
  %v142 = vunpack.c.l.b16 %v33
  %v143 = vunpack.c.l.b16 %v34
  %v144 = vunpack.c.l.b16 %v35
  %v145 = vunpack.c.l.b16 %v36
  %v146 = vunpack.c.l.b16 %v37
  %v147 = vunpack.c.l.b16 %v38
  %v148 = vunpack.c.l.b16 %v39
  %v149 = vunpack.c.l.b16 %v40
  %v150 = vunpack.c.l.b16 %v41
  %v151 = vunpack.c.l.b16 %v42
  %v152 = vunpack.c.l.b16 %v43
  %v153 = vunpack.c.l.b16 %v44
  %v154 = vunpack.c.l.b16 %v45
  %v155 = vunpack.c.l.b16 %v46
  %v156 = vunpack.c.l.b16 %v47
  %v157 = vunpack.c.l.b16 %v48
  %v158 = vunpack.c.l.b16 %v49
  %v159 = vunpack.c.l.b16 %v50
  %v160 = vunpack.c.l.b16 %v51
  %v161 = vunpack.c.l.b16 %v52
  %v162 = vunpack.c.l.b16 %v53
  %v163 = vunpack.c.l.b16 %v54
  %v164 = vunpack.c.l.b16 %v55
  %v165 = vunpack.c.l.b16 %v56
  %v166 = vunpack.c.l.b16 %v57
  %v167 = vunpack.c.l.b16 %v58
  %v168 = vpack.c.b16 %v133, %v132
  %v169 = vpack.c.b16 %v135, %v134
  %v170 = vpack.c.b16 %v137, %v136
  %v171 = vpack.c.b16 %v139, %v138
  %v172 = vpack.c.b16 %v141, %v140
  %v173 = vpack.c.b16 %v143, %v142
  %v174 = vpack.c.b16 %v145, %v144
  %v175 = vpack.c.b16 %v147, %v146
  %v176 = vpack.c.b16 %v149, %v148
  %v177 = vpack.c.b16 %v151, %v150
  %v178 = vpack.c.b16 %v153, %v152
  %v179 = vpack.c.b16 %v155, %v154
  %v180 = vpack.c.b16 %v157, %v156
  %v181 = vpack.c.b16 %v159, %v158
  %v182 = vpack.c.b16 %v161, %v160
  %v183 = vpack.c.b16 %v163, %v162
  %v184 = vpack.c.b16 %v165, %v164
  %v185 = vpack.c.b16 %v167, %v166
  %vm204 = vcmask 261120
  %v206 = vsel %vm204, %v88, 0
  %v209 = vsel %vm204, %v91, 0
  %211 = vmatprep.subr.bf16.mxu0 0
  %212 = vmatpush1.bf16.msra.mxu0 %v175
  %213 = vmatprep.subr.bf16.mxu0 0
  %214 = vmatpush1.bf16.msra.mxu0 %v174
  %215 = vmatprep.subr.bf16.mxu0 0
  %216 = vmatpush1.bf16.msra.mxu0 %v173
  %217 = vmatprep.subr.bf16.mxu0 0
  %218 = vmatpush1.bf16.msra.mxu0 %v172
  %219 = vmatprep.subr.bf16.mxu0 0
  %220 = vmatpush1.bf16.msra.mxu0 %v171
  %221 = vmatprep.subr.bf16.mxu0 0
  %222 = vmatpush1.bf16.msra.mxu0 %v170
  %223 = vmatprep.subr.bf16.mxu0 0
  %224 = vmatpush1.bf16.msra.mxu0 %v169
  %225 = vmatprep.subr.bf16.mxu0 0
  %226 = vmatpush1.bf16.msra.mxu0 %v168
  %227 = vmatprep.subr.bf16.mxu0 0
  %228 = vmatpush2.bf16.msra.mxu0 %v183
  %229 = vmatprep.subr.bf16.mxu0 0
  %230 = vmatpush2.bf16.msra.mxu0 %v182
  %231 = vmatprep.subr.bf16.mxu0 0
  %232 = vmatpush2.bf16.msra.mxu0 %v181
  %233 = vmatprep.subr.bf16.mxu0 0
  %234 = vmatpush2.bf16.msra.mxu0 %v180
  %235 = vmatprep.subr.bf16.mxu0 0
  %236 = vmatpush2.bf16.msra.mxu0 %v179
  %237 = vmatprep.subr.bf16.mxu0 0
  %238 = vmatpush2.bf16.msra.mxu0 %v178
  %239 = vmatprep.subr.bf16.mxu0 0
  %240 = vmatpush2.bf16.msra.mxu0 %v177
  %241 = vmatprep.subr.bf16.mxu0 0
  %242 = vmatpush2.bf16.msra.mxu0 %v176
  %243 = vmatprep.mubr.bf16.mxu0 %v87
  %244 = vmatmul.mubr.bf16.gmra.mxu0 %v86
  %v245 = vpop.f32.mrf.mxu0
  %v246 = vadd.f32 %v64, %v245
  %v247 = vpop.f32.mrf.mxu0
  %v248 = vpop.f32.mrf.mxu0
  %v249 = vadd.f32 %v64, %v248
  %v250 = vpop.f32.mrf.mxu0
  %251 = vmatprep.mubr.bf16.mxu0 %v90
  %252 = vmatmul.mubr.bf16.gmra.mxu0 %v89
  %v253 = vpop.f32.mrf.mxu0
  %v254 = vadd.f32 %v64, %v253
  %v255 = vpop.f32.mrf.mxu0
  %v256 = vpop.f32.mrf.mxu0
  %v257 = vadd.f32 %v64, %v256
  %v258 = vpop.f32.mrf.mxu0
  %259 = vdwg.mxu0
  %260 = vmatprep.subr.bf16.mxu0 0
  %261 = vmatpush1.bf16.msra.mxu0 0
  %262 = vmatprep.subr.bf16.mxu0 0
  %263 = vmatpush1.bf16.msra.mxu0 0
  %264 = vmatprep.subr.bf16.mxu0 0
  %265 = vmatpush1.bf16.msra.mxu0 0
  %266 = vmatprep.subr.bf16.mxu0 0
  %267 = vmatpush1.bf16.msra.mxu0 0
  %268 = vmatprep.subr.bf16.mxu0 0
  %269 = vmatpush1.bf16.msra.mxu0 0
  %270 = vmatprep.subr.bf16.mxu0 0
  %271 = vmatpush1.bf16.msra.mxu0 0
  %272 = vmatprep.subr.bf16.mxu0 0
  %273 = vmatpush1.bf16.msra.mxu0 %v185
  %274 = vmatprep.subr.bf16.mxu0 0
  %275 = vmatpush1.bf16.msra.mxu0 %v184
  %276 = vmatprep.subr.bf16.mxu0 0
  %277 = vmatpush2.bf16.msra.mxu0 0
  %278 = vmatprep.subr.bf16.mxu0 0
  %279 = vmatpush2.bf16.msra.mxu0 0
  %280 = vmatprep.subr.bf16.mxu0 0
  %281 = vmatpush2.bf16.msra.mxu0 0
  %282 = vmatprep.subr.bf16.mxu0 0
  %283 = vmatpush2.bf16.msra.mxu0 0
  %284 = vmatprep.subr.bf16.mxu0 0
  %285 = vmatpush2.bf16.msra.mxu0 0
  %286 = vmatprep.subr.bf16.mxu0 0
  %287 = vmatpush2.bf16.msra.mxu0 0
  %288 = vmatprep.subr.bf16.mxu0 0
  %289 = vmatpush2.bf16.msra.mxu0 0
  %290 = vmatprep.subr.bf16.mxu0 0
  %291 = vmatpush2.bf16.msra.mxu0 0
  %292 = vmatprep.mubr.bf16.mxu0 0
  %293 = vmatmul.mubr.bf16.gmra.mxu0 %v206
  %v294 = vpop.f32.mrf.mxu0
  %v295 = vadd.f32 %v246, %v294
  %v296 = vpop.f32.mrf.mxu0
  %v297 = vpop.f32.mrf.mxu0
  %v298 = vadd.f32 %v249, %v297
  %v299 = vpop.f32.mrf.mxu0
  %300 = vmatprep.mubr.bf16.mxu0 0
  %301 = vmatmul.mubr.bf16.gmra.mxu0 %v209
  %v302 = vpop.f32.mrf.mxu0
  %v303 = vadd.f32 %v254, %v302
  %v304 = vpop.f32.mrf.mxu0
  %v305 = vpop.f32.mrf.mxu0
  %v306 = vadd.f32 %v257, %v305
  %v307 = vpop.f32.mrf.mxu0
  %308 = vdwg.mxu0
  %v309 = vmax.f32 %v295, 0.0
  %v310 = vmax.f32 %v298, 0.0
  %v311 = vmax.f32 %v303, 0.0
  %v312 = vmax.f32 %v306, 0.0
  %v313 = vtanh.pop %v309
  %v314 = vtanh.pop %v310
  %v315 = vtanh.pop %v311
  %v316 = vtanh.pop %v312
  %v317 = vmul.f32 %v313, 1.05
  %v318 = vmul.f32 %v314, 1.05
  %v319 = vmul.f32 %v315, 1.05
  %v320 = vmul.f32 %v316, 1.05
  %v321 = vmax.f32 %v317, -1.0
  %v322 = vmax.f32 %v318, -1.0
  %v323 = vmax.f32 %v319, -1.0
  %v324 = vmax.f32 %v320, -1.0
  %v325 = vmin.f32 %v321, 1.0
  %v326 = vmin.f32 %v322, 1.0
  %v327 = vmin.f32 %v323, 1.0
  %v328 = vmin.f32 %v324, 1.0
  %329 = vst [vmem:[%s3] sm:$0xff] %v325
  %330 = vst [vmem:[%s3 + $0x8] sm:$0xff] %v326
  %331 = vst [vmem:[%s3 + $0x10] sm:$0xff] %v327
  %332 = vst [vmem:[%s3 + $0x18] sm:$0xff] %v328
  // Predicated region
  $region14: #{network_forward.51} parent=0 // pred_check
    _
  $region15: #{network_forward.51} parent=0 // pred_check_branch
    %334 = sbr.rel (0) target = $region17
  $region16: #{network_forward.51} parent=0 // pred_region
    _
  $region17: #{network_forward.51} parent=0 // pred_fallthru
    _
  // Predicated region
  $region18: #{network_forward.51} parent=0 // pred_check
    _
  $region19: #{network_forward.51} parent=0 // pred_check_branch
    %336 = sbr.rel (0) target = $region21
  $region20: #{network_forward.51} parent=0 // pred_region
    _
  $region21: #{network_forward.51} parent=0 // pred_fallthru
    _

// kernel: network_forward.53
$region0: #{network_forward.53}
  #allocation0 [shape = 'u32[]', space=smem, size = 0x4, offset = 0x4, fixed_abs, tag = 'smem constant byte address 0x4 - core index']
  #allocation1 [shape = 'u32[144,128]{1,0:T(1,128)}', space=vmem, size = 0x12000, scoped, tag = 'internal scratch']
  %s0 = inlined_call_operand.vmem [shape: f32[128,16], index: 0, kind: input, shape index: {}]
  %s1 = inlined_call_operand.vmem [shape: f32[16,32], index: 1, kind: input, shape index: {}]
  %s2 = inlined_call_operand.vmem [shape: f32[128,16], index: 2, kind: output, shape index: {0}]
  %s3 = inlined_call_operand.vmem [shape: s32[128,1], index: 3, kind: output, shape index: {1}]
  %s4 = inlined_call_operand.hbm [shape: f32[1,1], index: 4, kind: output, shape index: {2}]
  %5 = xla_tuple %s2, %s3, %s4
  %s6 = sld [smem:[#allocation0]]
  $region34: #{network_forward.53} parent=0
    _
  %s8 = ssub.s32 1, %s6
  %s9 = scalar_select 0, %s8, %s6
  $region1: #{network_forward.53} parent=0
    #allocation2 [shape = 'u8[512]{0}', space=vmem, size = 0x400, scoped, tag = 'output window, operand 2, single buffered']
    #allocation3 [shape = 's32[1]{0}', space=sflag, size = 0x4, scoped, tag = 'scoped memory for network_forward.53']
    %10 = vsyncpa [#allocation3], 0
    // Predicated region
    $region2: #{network_forward.53} parent=1 // pred_check
      _
    $region3: #{network_forward.53} parent=1 // pred_check_branch
      %12 = sbr.rel (0) target = $region5
    $region4: #{network_forward.53} parent=1 // pred_region
      _
    $region5: #{network_forward.53} parent=1 // pred_fallthru
      _
    // Predicated region
    $region6: #{network_forward.53} parent=1 // pred_check
      _
    $region7: #{network_forward.53} parent=1 // pred_check_branch
      %14 = sbr.rel (0) target = $region9
    $region8: #{network_forward.53} parent=1 // pred_region
      _
    $region9: #{network_forward.53} parent=1 // pred_fallthru
      _
    %v15 = vld [vmem:[%s0] sm:$0xff]
    %v16 = vld [vmem:[%s0 + $0x8] sm:$0xff]
    %v17 = vld [vmem:[%s0 + $0x10] sm:$0xff]
    %v18 = vld [vmem:[%s0 + $0x18] sm:$0xff]
    %v19 = vld [vmem:[%s0 + $0x20] sm:$0xff]
    %v20 = vld [vmem:[%s0 + $0x28] sm:$0xff]
    %v21 = vld [vmem:[%s0 + $0x30] sm:$0xff]
    %v22 = vld [vmem:[%s0 + $0x38] sm:$0xff]
    %v23 = vld [vmem:[%s0 + $0x40] sm:$0xff]
    %v24 = vld [vmem:[%s0 + $0x48] sm:$0xff]
    %v25 = vld [vmem:[%s0 + $0x50] sm:$0xff]
    %v26 = vld [vmem:[%s0 + $0x58] sm:$0xff]
    %v27 = vld [vmem:[%s0 + $0x60] sm:$0xff]
    %v28 = vld [vmem:[%s0 + $0x68] sm:$0xff]
    %v29 = vld [vmem:[%s0 + $0x70] sm:$0xff]
    %v30 = vld [vmem:[%s0 + $0x78] sm:$0xff]
    %v31 = vld [vmem:[%s1] sm:$0xff]
    %v32 = vld [vmem:[%s1 + $0x8] sm:$0xff]
    %v33 = vmul.f32 %v31, %v31
    %v34 = vmul.f32 %v32, %v32
    %vm35 = vcmask 261120
    %v36 = vsel %vm35, %v33, 0.0
    %v37 = vsel %vm35, %v34, 0.0
    %v38 = vadd.f32 %v36, %v37
    %v39 = vrot.slane %v38, 4
    %v40 = vadd.f32 %v38, %v39
    %v41 = vrot.slane %v40, 2
    %v42 = vadd.f32 %v40, %v41
    %v43 = vrot.slane %v42, 1
    %v44 = vadd.f32 %v42, %v43
    %vm45 = vcmask 130048
    %v47 = vsel %vm45, %v15, 0
    %v50 = vsel %vm45, %v16, 0
    %v53 = vsel %vm45, %v17, 0
    %v56 = vsel %vm45, %v18, 0
    %v59 = vsel %vm45, %v19, 0
    %v62 = vsel %vm45, %v20, 0
    %v65 = vsel %vm45, %v21, 0
    %v68 = vsel %vm45, %v22, 0
    %v71 = vsel %vm45, %v23, 0
    %v74 = vsel %vm45, %v24, 0
    %v77 = vsel %vm45, %v25, 0
    %v80 = vsel %vm45, %v26, 0
    %v83 = vsel %vm45, %v27, 0
    %v86 = vsel %vm45, %v28, 0
    %v89 = vsel %vm45, %v29, 0
    %v92 = vsel %vm45, %v30, 0
    %94 = vmatprep.subr.mxu0 0.0
    %95 = vmatpush1.msra.mxu0 0.0
    %96 = vmatprep.subr.mxu0 0.0
    %97 = vmatpush1.msra.mxu0 0.0
    %98 = vmatprep.subr.mxu0 0.0
    %99 = vmatpush1.msra.mxu0 0.0
    %100 = vmatprep.subr.mxu0 0.0
    %101 = vmatpush1.msra.mxu0 0.0
    %102 = vmatprep.subr.mxu0 0.0
    %103 = vmatpush1.msra.mxu0 0.0
    %104 = vmatprep.subr.mxu0 0.0
    %105 = vmatpush1.msra.mxu0 0.0
    %106 = vmatprep.subr.mxu0 0.0
    %107 = vmatpush1.msra.mxu0 0.0
    %108 = vmatprep.subr.mxu0 0.0
    %109 = vmatpush1.msra.mxu0 0.0
    %110 = vmatprep.subr.mxu0 0.0
    %111 = vmatpush1.msra.mxu0 0.0
    %112 = vmatprep.subr.mxu0 0.0
    %113 = vmatpush1.msra.mxu0 0.0
    %114 = vmatprep.subr.mxu0 0.0
    %115 = vmatpush1.msra.mxu0 0.0
    %116 = vmatprep.subr.mxu0 0.0
    %117 = vmatpush1.msra.mxu0 0.0
    %118 = vmatprep.subr.mxu0 0.0
    %119 = vmatpush1.msra.mxu0 0.0
    %120 = vmatprep.subr.mxu0 0.0
    %121 = vmatpush1.msra.mxu0 0.0
    %122 = vmatprep.subr.mxu0 0.0
    %123 = vmatpush1.msra.mxu0 %v32
    %124 = vmatprep.subr.mxu0 0.0
    %125 = vmatpush1.msra.mxu0 %v31
    %126 = vmatprep.subr.mxu0 0.0
    %127 = vmatpush2.msra.mxu0 0.0
    %128 = vmatprep.subr.mxu0 0.0
    %129 = vmatpush2.msra.mxu0 0.0
    %130 = vmatprep.subr.mxu0 0.0
    %131 = vmatpush2.msra.mxu0 0.0
    %132 = vmatprep.subr.mxu0 0.0
    %133 = vmatpush2.msra.mxu0 0.0
    %134 = vmatprep.subr.mxu0 0.0
    %135 = vmatpush2.msra.mxu0 0.0
    %136 = vmatprep.subr.mxu0 0.0
    %137 = vmatpush2.msra.mxu0 0.0
    %138 = vmatprep.subr.mxu0 0.0
    %139 = vmatpush2.msra.mxu0 0.0
    %140 = vmatprep.subr.mxu0 0.0
    %141 = vmatpush2.msra.mxu0 0.0
    %142 = vmatprep.subr.mxu0 0.0
    %143 = vmatpush2.msra.mxu0 0.0
    %144 = vmatprep.subr.mxu0 0.0
    %145 = vmatpush2.msra.mxu0 0.0
    %146 = vmatprep.subr.mxu0 0.0
    %147 = vmatpush2.msra.mxu0 0.0
    %148 = vmatprep.subr.mxu0 0.0
    %149 = vmatpush2.msra.mxu0 0.0
    %150 = vmatprep.subr.mxu0 0.0
    %151 = vmatpush2.msra.mxu0 0.0
    %152 = vmatprep.subr.mxu0 0.0
    %153 = vmatpush2.msra.mxu0 0.0
    %154 = vmatprep.subr.mxu0 0.0
    %155 = vmatpush2.msra.mxu0 0.0
    %156 = vmatprep.subr.mxu0 0.0
    %157 = vmatpush2.msra.mxu0 0.0
    %158 = vmatprep.mubr.f32.mxu0 0.0
    %159 = vmatmul.mubr.f32.gmra.mxu0 %v47
    %v160 = vpop.f32.mrf.mxu0
    %v161 = vadd.f32 0.0, %v160
    %v162 = vpop.f32.mrf.mxu0
    %163 = vmatprep.mubr.f32.mxu0 0.0
    %164 = vmatmul.mubr.f32.gmra.mxu0 %v50
    %v165 = vpop.f32.mrf.mxu0
    %v166 = vadd.f32 0.0, %v165
    %v167 = vpop.f32.mrf.mxu0
    %168 = vmatprep.mubr.f32.mxu0 0.0
    %169 = vmatmul.mubr.f32.gmra.mxu0 %v53
    %v170 = vpop.f32.mrf.mxu0
    %v171 = vadd.f32 0.0, %v170
    %v172 = vpop.f32.mrf.mxu0
    %173 = vmatprep.mubr.f32.mxu0 0.0
    %174 = vmatmul.mubr.f32.gmra.mxu0 %v56
    %v175 = vpop.f32.mrf.mxu0
    %v176 = vadd.f32 0.0, %v175
    %v177 = vpop.f32.mrf.mxu0
    %178 = vmatprep.mubr.f32.mxu0 0.0
    %179 = vmatmul.mubr.f32.gmra.mxu0 %v59
    %v180 = vpop.f32.mrf.mxu0
    %v181 = vadd.f32 0.0, %v180
    %v182 = vpop.f32.mrf.mxu0
    %183 = vmatprep.mubr.f32.mxu0 0.0
    %184 = vmatmul.mubr.f32.gmra.mxu0 %v62
    %v185 = vpop.f32.mrf.mxu0
    %v186 = vadd.f32 0.0, %v185
    %v187 = vpop.f32.mrf.mxu0
    %188 = vmatprep.mubr.f32.mxu0 0.0
    %189 = vmatmul.mubr.f32.gmra.mxu0 %v65
    %v190 = vpop.f32.mrf.mxu0
    %v191 = vadd.f32 0.0, %v190
    %v192 = vpop.f32.mrf.mxu0
    %193 = vmatprep.mubr.f32.mxu0 0.0
    %194 = vmatmul.mubr.f32.gmra.mxu0 %v68
    %v195 = vpop.f32.mrf.mxu0
    %v196 = vadd.f32 0.0, %v195
    %v197 = vpop.f32.mrf.mxu0
    %198 = vmatprep.mubr.f32.mxu0 0.0
    %199 = vmatmul.mubr.f32.gmra.mxu0 %v71
    %v200 = vpop.f32.mrf.mxu0
    %v201 = vadd.f32 0.0, %v200
    %v202 = vpop.f32.mrf.mxu0
    %203 = vmatprep.mubr.f32.mxu0 0.0
    %204 = vmatmul.mubr.f32.gmra.mxu0 %v74
    %v205 = vpop.f32.mrf.mxu0
    %v206 = vadd.f32 0.0, %v205
    %v207 = vpop.f32.mrf.mxu0
    %208 = vmatprep.mubr.f32.mxu0 0.0
    %209 = vmatmul.mubr.f32.gmra.mxu0 %v77
    %v210 = vpop.f32.mrf.mxu0
    %v211 = vadd.f32 0.0, %v210
    %v212 = vpop.f32.mrf.mxu0
    %213 = vmatprep.mubr.f32.mxu0 0.0
    %214 = vmatmul.mubr.f32.gmra.mxu0 %v80
    %v215 = vpop.f32.mrf.mxu0
    %v216 = vadd.f32 0.0, %v215
    %v217 = vpop.f32.mrf.mxu0
    %218 = vmatprep.mubr.f32.mxu0 0.0
    %219 = vmatmul.mubr.f32.gmra.mxu0 %v83
    %v220 = vpop.f32.mrf.mxu0
    %v221 = vadd.f32 0.0, %v220
    %v222 = vpop.f32.mrf.mxu0
    %223 = vmatprep.mubr.f32.mxu0 0.0
    %224 = vmatmul.mubr.f32.gmra.mxu0 %v86
    %v225 = vpop.f32.mrf.mxu0
    %v226 = vadd.f32 0.0, %v225
    %v227 = vpop.f32.mrf.mxu0
    %228 = vmatprep.mubr.f32.mxu0 0.0
    %229 = vmatmul.mubr.f32.gmra.mxu0 %v89
    %v230 = vpop.f32.mrf.mxu0
    %v231 = vadd.f32 0.0, %v230
    %v232 = vpop.f32.mrf.mxu0
    %233 = vmatprep.mubr.f32.mxu0 0.0
    %234 = vmatmul.mubr.f32.gmra.mxu0 %v92
    %v235 = vpop.f32.mrf.mxu0
    %v236 = vadd.f32 0.0, %v235
    %v237 = vpop.f32.mrf.mxu0
    %238 = vdwg.mxu0
    %v239 = vmul.f32 %v161, 2.0
    %v240 = vmul.f32 %v166, 2.0
    %v241 = vmul.f32 %v171, 2.0
    %v242 = vmul.f32 %v176, 2.0
    %v243 = vmul.f32 %v181, 2.0
    %v244 = vmul.f32 %v186, 2.0
    %v245 = vmul.f32 %v191, 2.0
    %v246 = vmul.f32 %v196, 2.0
    %v247 = vmul.f32 %v201, 2.0
    %v248 = vmul.f32 %v206, 2.0
    %v249 = vmul.f32 %v211, 2.0
    %v250 = vmul.f32 %v216, 2.0
    %v251 = vmul.f32 %v221, 2.0
    %v252 = vmul.f32 %v226, 2.0
    %v253 = vmul.f32 %v231, 2.0
    %v254 = vmul.f32 %v236, 2.0
    %v255 = vsub.f32 %v44, %v239
    %v256 = vsub.f32 %v44, %v240
    %v257 = vsub.f32 %v44, %v241
    %v258 = vsub.f32 %v44, %v242
    %v259 = vsub.f32 %v44, %v243
    %v260 = vsub.f32 %v44, %v244
    %v261 = vsub.f32 %v44, %v245
    %v262 = vsub.f32 %v44, %v246
    %v263 = vsub.f32 %v44, %v247
    %v264 = vsub.f32 %v44, %v248
    %v265 = vsub.f32 %v44, %v249
    %v266 = vsub.f32 %v44, %v250
    %v267 = vsub.f32 %v44, %v251
    %v268 = vsub.f32 %v44, %v252
    %v269 = vsub.f32 %v44, %v253
    %v270 = vsub.f32 %v44, %v254
    %v271 = vlaneseq
    %v272 = vand.u32 %v271, 127
    %v273 = vsel %vm35, %v255, inf
    %274 = vmin.xlane.f32.xlu0 %v273
    %v275 = vpop.xlane.xlu0 %274
    %v276 = vsel %vm35, %v256, inf
    %277 = vmin.xlane.f32.xlu0 %v276
    %v278 = vpop.xlane.xlu0 %277
    %v279 = vsel %vm35, %v257, inf
    %280 = vmin.xlane.f32.xlu0 %v279
    %v281 = vpop.xlane.xlu0 %280
    %v282 = vsel %vm35, %v258, inf
    %283 = vmin.xlane.f32.xlu0 %v282
    %v284 = vpop.xlane.xlu0 %283
    %v285 = vsel %vm35, %v259, inf
    %286 = vmin.xlane.f32.xlu0 %v285
    %v287 = vpop.xlane.xlu0 %286
    %v288 = vsel %vm35, %v260, inf
    %289 = vmin.xlane.f32.xlu0 %v288
    %v290 = vpop.xlane.xlu0 %289
    %v291 = vsel %vm35, %v261, inf
    %292 = vmin.xlane.f32.xlu0 %v291
    %v293 = vpop.xlane.xlu0 %292
    %v294 = vsel %vm35, %v262, inf
    %295 = vmin.xlane.f32.xlu0 %v294
    %v296 = vpop.xlane.xlu0 %295
    %v297 = vsel %vm35, %v263, inf
    %298 = vmin.xlane.f32.xlu0 %v297
    %v299 = vpop.xlane.xlu0 %298
    %v300 = vsel %vm35, %v264, inf
    %301 = vmin.xlane.f32.xlu0 %v300
    %v302 = vpop.xlane.xlu0 %301
    %v303 = vsel %vm35, %v265, inf
    %304 = vmin.xlane.f32.xlu0 %v303
    %v305 = vpop.xlane.xlu0 %304
    %v306 = vsel %vm35, %v266, inf
    %307 = vmin.xlane.f32.xlu0 %v306
    %v308 = vpop.xlane.xlu0 %307
    %v309 = vsel %vm35, %v267, inf
    %310 = vmin.xlane.f32.xlu0 %v309
    %v311 = vpop.xlane.xlu0 %310
    %v312 = vsel %vm35, %v268, inf
    %313 = vmin.xlane.f32.xlu0 %v312
    %v314 = vpop.xlane.xlu0 %313
    %v315 = vsel %vm35, %v269, inf
    %316 = vmin.xlane.f32.xlu0 %v315
    %v317 = vpop.xlane.xlu0 %316
    %v318 = vsel %vm35, %v270, inf
    %319 = vmin.xlane.f32.xlu0 %v318
    %v320 = vpop.xlane.xlu0 %319
    %vm321 = vcmp.le.f32.partialorder %v255, %v275
    %vm322 = vcmp.le.f32.partialorder %v256, %v278
    %vm323 = vcmp.le.f32.partialorder %v257, %v281
    %vm324 = vcmp.le.f32.partialorder %v258, %v284
    %vm325 = vcmp.le.f32.partialorder %v259, %v287
    %vm326 = vcmp.le.f32.partialorder %v260, %v290
    %vm327 = vcmp.le.f32.partialorder %v261, %v293
    %vm328 = vcmp.le.f32.partialorder %v262, %v296
    %vm329 = vcmp.le.f32.partialorder %v263, %v299
    %vm330 = vcmp.le.f32.partialorder %v264, %v302
    %vm331 = vcmp.le.f32.partialorder %v265, %v305
    %vm332 = vcmp.le.f32.partialorder %v266, %v308
    %vm333 = vcmp.le.f32.partialorder %v267, %v311
    %vm334 = vcmp.le.f32.partialorder %v268, %v314
    %vm335 = vcmp.le.f32.partialorder %v269, %v317
    %vm336 = vcmp.le.f32.partialorder %v270, %v320
    %v337 = vsel %vm321, %v272, 32
    %v338 = vsel %vm322, %v272, 32
    %v339 = vsel %vm323, %v272, 32
    %v340 = vsel %vm324, %v272, 32
    %v341 = vsel %vm325, %v272, 32
    %v342 = vsel %vm326, %v272, 32
    %v343 = vsel %vm327, %v272, 32
    %v344 = vsel %vm328, %v272, 32
    %v345 = vsel %vm329, %v272, 32
    %v346 = vsel %vm330, %v272, 32
    %v347 = vsel %vm331, %v272, 32
    %v348 = vsel %vm332, %v272, 32
    %v349 = vsel %vm333, %v272, 32
    %v350 = vsel %vm334, %v272, 32
    %v351 = vsel %vm335, %v272, 32
    %v352 = vsel %vm336, %v272, 32
    %v353 = vsel %vm35, %v337, 2147483647
    %v354 = vand.u32 %v353, 65535
    %v355 = vshra.s32 %v353, 16
    %v356 = vcvt.s32.f32 %v354
    %v357 = vcvt.s32.f32 %v355
    %358 = vmin.xlane.f32.xlu0 %v357
    %v359 = vpop.xlane.xlu0 %358
    %vm360 = vcmp.eq.f32.partialorder %v357, %v359
    %v361 = vsel %vm360, %v356, inf
    %362 = vmin.xlane.f32.xlu0 %v361
    %v363 = vpop.xlane.xlu0 %362
    %v364 = vcvt.f32.s32 %v363
    %v365 = vcvt.f32.s32 %v359
    %v366 = vshll.u32 %v365, 16
    %v367 = vadd.s32 %v366, %v364
    %v368 = vsel %vm35, %v338, 2147483647
    %v369 = vand.u32 %v368, 65535
    %v370 = vshra.s32 %v368, 16
    %v371 = vcvt.s32.f32 %v369
    %v372 = vcvt.s32.f32 %v370
    %373 = vmin.xlane.f32.xlu0 %v372
    %v374 = vpop.xlane.xlu0 %373
    %vm375 = vcmp.eq.f32.partialorder %v372, %v374
    %v376 = vsel %vm375, %v371, inf
    %377 = vmin.xlane.f32.xlu0 %v376
    %v378 = vpop.xlane.xlu0 %377
    %v379 = vcvt.f32.s32 %v378
    %v380 = vcvt.f32.s32 %v374
    %v381 = vshll.u32 %v380, 16
    %v382 = vadd.s32 %v381, %v379
    %v383 = vsel %vm35, %v339, 2147483647
    %v384 = vand.u32 %v383, 65535
    %v385 = vshra.s32 %v383, 16
    %v386 = vcvt.s32.f32 %v384
    %v387 = vcvt.s32.f32 %v385
    %388 = vmin.xlane.f32.xlu0 %v387
    %v389 = vpop.xlane.xlu0 %388
    %vm390 = vcmp.eq.f32.partialorder %v387, %v389
    %v391 = vsel %vm390, %v386, inf
    %392 = vmin.xlane.f32.xlu0 %v391
    %v393 = vpop.xlane.xlu0 %392
    %v394 = vcvt.f32.s32 %v393
    %v395 = vcvt.f32.s32 %v389
    %v396 = vshll.u32 %v395, 16
    %v397 = vadd.s32 %v396, %v394
    %v398 = vsel %vm35, %v340, 2147483647
    %v399 = vand.u32 %v398, 65535
    %v400 = vshra.s32 %v398, 16
    %v401 = vcvt.s32.f32 %v399
    %v402 = vcvt.s32.f32 %v400
    %403 = vmin.xlane.f32.xlu0 %v402
    %v404 = vpop.xlane.xlu0 %403
    %vm405 = vcmp.eq.f32.partialorder %v402, %v404
    %v406 = vsel %vm405, %v401, inf
    %407 = vmin.xlane.f32.xlu0 %v406
    %v408 = vpop.xlane.xlu0 %407
    %v409 = vcvt.f32.s32 %v408
    %v410 = vcvt.f32.s32 %v404
    %v411 = vshll.u32 %v410, 16
    %v412 = vadd.s32 %v411, %v409
    %v413 = vsel %vm35, %v341, 2147483647
    %v414 = vand.u32 %v413, 65535
    %v415 = vshra.s32 %v413, 16
    %v416 = vcvt.s32.f32 %v414
    %v417 = vcvt.s32.f32 %v415
    %418 = vmin.xlane.f32.xlu0 %v417
    %v419 = vpop.xlane.xlu0 %418
    %vm420 = vcmp.eq.f32.partialorder %v417, %v419
    %v421 = vsel %vm420, %v416, inf
    %422 = vmin.xlane.f32.xlu0 %v421
    %v423 = vpop.xlane.xlu0 %422
    %v424 = vcvt.f32.s32 %v423
    %v425 = vcvt.f32.s32 %v419
    %v426 = vshll.u32 %v425, 16
    %v427 = vadd.s32 %v426, %v424
    %v428 = vsel %vm35, %v342, 2147483647
    %v429 = vand.u32 %v428, 65535
    %v430 = vshra.s32 %v428, 16
    %v431 = vcvt.s32.f32 %v429
    %v432 = vcvt.s32.f32 %v430
    %433 = vmin.xlane.f32.xlu0 %v432
    %v434 = vpop.xlane.xlu0 %433
    %vm435 = vcmp.eq.f32.partialorder %v432, %v434
    %v436 = vsel %vm435, %v431, inf
    %437 = vmin.xlane.f32.xlu0 %v436
    %v438 = vpop.xlane.xlu0 %437
    %v439 = vcvt.f32.s32 %v438
    %v440 = vcvt.f32.s32 %v434
    %v441 = vshll.u32 %v440, 16
    %v442 = vadd.s32 %v441, %v439
    %v443 = vsel %vm35, %v343, 2147483647
    %v444 = vand.u32 %v443, 65535
    %v445 = vshra.s32 %v443, 16
    %v446 = vcvt.s32.f32 %v444
    %v447 = vcvt.s32.f32 %v445
    %448 = vmin.xlane.f32.xlu0 %v447
    %v449 = vpop.xlane.xlu0 %448
    %vm450 = vcmp.eq.f32.partialorder %v447, %v449
    %v451 = vsel %vm450, %v446, inf
    %452 = vmin.xlane.f32.xlu0 %v451
    %v453 = vpop.xlane.xlu0 %452
    %v454 = vcvt.f32.s32 %v453
    %v455 = vcvt.f32.s32 %v449
    %v456 = vshll.u32 %v455, 16
    %v457 = vadd.s32 %v456, %v454
    %v458 = vsel %vm35, %v344, 2147483647
    %v459 = vand.u32 %v458, 65535
    %v460 = vshra.s32 %v458, 16
    %v461 = vcvt.s32.f32 %v459
    %v462 = vcvt.s32.f32 %v460
    %463 = vmin.xlane.f32.xlu0 %v462
    %v464 = vpop.xlane.xlu0 %463
    %vm465 = vcmp.eq.f32.partialorder %v462, %v464
    %v466 = vsel %vm465, %v461, inf
    %467 = vmin.xlane.f32.xlu0 %v466
    %v468 = vpop.xlane.xlu0 %467
    %v469 = vcvt.f32.s32 %v468
    %v470 = vcvt.f32.s32 %v464
    %v471 = vshll.u32 %v470, 16
    %v472 = vadd.s32 %v471, %v469
    %v473 = vsel %vm35, %v345, 2147483647
    %v474 = vand.u32 %v473, 65535
    %v475 = vshra.s32 %v473, 16
    %v476 = vcvt.s32.f32 %v474
    %v477 = vcvt.s32.f32 %v475
    %478 = vmin.xlane.f32.xlu0 %v477
    %v479 = vpop.xlane.xlu0 %478
    %vm480 = vcmp.eq.f32.partialorder %v477, %v479
    %v481 = vsel %vm480, %v476, inf
    %482 = vmin.xlane.f32.xlu0 %v481
    %v483 = vpop.xlane.xlu0 %482
    %v484 = vcvt.f32.s32 %v483
    %v485 = vcvt.f32.s32 %v479
    %v486 = vshll.u32 %v485, 16
    %v487 = vadd.s32 %v486, %v484
    %v488 = vsel %vm35, %v346, 2147483647
    %v489 = vand.u32 %v488, 65535
    %v490 = vshra.s32 %v488, 16
    %v491 = vcvt.s32.f32 %v489
    %v492 = vcvt.s32.f32 %v490
    %493 = vmin.xlane.f32.xlu0 %v492
    %v494 = vpop.xlane.xlu0 %493
    %vm495 = vcmp.eq.f32.partialorder %v492, %v494
    %v496 = vsel %vm495, %v491, inf
    %497 = vmin.xlane.f32.xlu0 %v496
    %v498 = vpop.xlane.xlu0 %497
    %v499 = vcvt.f32.s32 %v498
    %v500 = vcvt.f32.s32 %v494
    %v501 = vshll.u32 %v500, 16
    %v502 = vadd.s32 %v501, %v499
    %v503 = vsel %vm35, %v347, 2147483647
    %v504 = vand.u32 %v503, 65535
    %v505 = vshra.s32 %v503, 16
    %v506 = vcvt.s32.f32 %v504
    %v507 = vcvt.s32.f32 %v505
    %508 = vmin.xlane.f32.xlu0 %v507
    %v509 = vpop.xlane.xlu0 %508
    %vm510 = vcmp.eq.f32.partialorder %v507, %v509
    %v511 = vsel %vm510, %v506, inf
    %512 = vmin.xlane.f32.xlu0 %v511
    %v513 = vpop.xlane.xlu0 %512
    %v514 = vcvt.f32.s32 %v513
    %v515 = vcvt.f32.s32 %v509
    %v516 = vshll.u32 %v515, 16
    %v517 = vadd.s32 %v516, %v514
    %v518 = vsel %vm35, %v348, 2147483647
    %v519 = vand.u32 %v518, 65535
    %v520 = vshra.s32 %v518, 16
    %v521 = vcvt.s32.f32 %v519
    %v522 = vcvt.s32.f32 %v520
    %523 = vmin.xlane.f32.xlu0 %v522
    %v524 = vpop.xlane.xlu0 %523
    %vm525 = vcmp.eq.f32.partialorder %v522, %v524
    %v526 = vsel %vm525, %v521, inf
    %527 = vmin.xlane.f32.xlu0 %v526
    %v528 = vpop.xlane.xlu0 %527
    %v529 = vcvt.f32.s32 %v528
    %v530 = vcvt.f32.s32 %v524
    %v531 = vshll.u32 %v530, 16
    %v532 = vadd.s32 %v531, %v529
    %v533 = vsel %vm35, %v349, 2147483647
    %v534 = vand.u32 %v533, 65535
    %v535 = vshra.s32 %v533, 16
    %v536 = vcvt.s32.f32 %v534
    %v537 = vcvt.s32.f32 %v535
    %538 = vmin.xlane.f32.xlu0 %v537
    %v539 = vpop.xlane.xlu0 %538
    %vm540 = vcmp.eq.f32.partialorder %v537, %v539
    %v541 = vsel %vm540, %v536, inf
    %542 = vmin.xlane.f32.xlu0 %v541
    %v543 = vpop.xlane.xlu0 %542
    %v544 = vcvt.f32.s32 %v543
    %v545 = vcvt.f32.s32 %v539
    %v546 = vshll.u32 %v545, 16
    %v547 = vadd.s32 %v546, %v544
    %v548 = vsel %vm35, %v350, 2147483647
    %v549 = vand.u32 %v548, 65535
    %v550 = vshra.s32 %v548, 16
    %v551 = vcvt.s32.f32 %v549
    %v552 = vcvt.s32.f32 %v550
    %553 = vmin.xlane.f32.xlu0 %v552
    %v554 = vpop.xlane.xlu0 %553
    %vm555 = vcmp.eq.f32.partialorder %v552, %v554
    %v556 = vsel %vm555, %v551, inf
    %557 = vmin.xlane.f32.xlu0 %v556
    %v558 = vpop.xlane.xlu0 %557
    %v559 = vcvt.f32.s32 %v558
    %v560 = vcvt.f32.s32 %v554
    %v561 = vshll.u32 %v560, 16
    %v562 = vadd.s32 %v561, %v559
    %v563 = vsel %vm35, %v351, 2147483647
    %v564 = vand.u32 %v563, 65535
    %v565 = vshra.s32 %v563, 16
    %v566 = vcvt.s32.f32 %v564
    %v567 = vcvt.s32.f32 %v565
    %568 = vmin.xlane.f32.xlu0 %v567
    %v569 = vpop.xlane.xlu0 %568
    %vm570 = vcmp.eq.f32.partialorder %v567, %v569
    %v571 = vsel %vm570, %v566, inf
    %572 = vmin.xlane.f32.xlu0 %v571
    %v573 = vpop.xlane.xlu0 %572
    %v574 = vcvt.f32.s32 %v573
    %v575 = vcvt.f32.s32 %v569
    %v576 = vshll.u32 %v575, 16
    %v577 = vadd.s32 %v576, %v574
    %v578 = vsel %vm35, %v352, 2147483647
    %v579 = vand.u32 %v578, 65535
    %v580 = vshra.s32 %v578, 16
    %v581 = vcvt.s32.f32 %v579
    %v582 = vcvt.s32.f32 %v580
    %583 = vmin.xlane.f32.xlu0 %v582
    %v584 = vpop.xlane.xlu0 %583
    %vm585 = vcmp.eq.f32.partialorder %v582, %v584
    %v586 = vsel %vm585, %v581, inf
    %587 = vmin.xlane.f32.xlu0 %v586
    %v588 = vpop.xlane.xlu0 %587
    %v589 = vcvt.f32.s32 %v588
    %v590 = vcvt.f32.s32 %v584
    %v591 = vshll.u32 %v590, 16
    %v592 = vadd.s32 %v591, %v589
    %vm593 = vcmp.eq.s32.totalorder %v272, %v367
    %vm594 = vcmp.eq.s32.totalorder %v272, %v382
    %vm595 = vcmp.eq.s32.totalorder %v272, %v397
    %vm596 = vcmp.eq.s32.totalorder %v272, %v412
    %vm597 = vcmp.eq.s32.totalorder %v272, %v427
    %vm598 = vcmp.eq.s32.totalorder %v272, %v442
    %vm599 = vcmp.eq.s32.totalorder %v272, %v457
    %vm600 = vcmp.eq.s32.totalorder %v272, %v472
    %vm601 = vcmp.eq.s32.totalorder %v272, %v487
    %vm602 = vcmp.eq.s32.totalorder %v272, %v502
    %vm603 = vcmp.eq.s32.totalorder %v272, %v517
    %vm604 = vcmp.eq.s32.totalorder %v272, %v532
    %vm605 = vcmp.eq.s32.totalorder %v272, %v547
    %vm606 = vcmp.eq.s32.totalorder %v272, %v562
    %vm607 = vcmp.eq.s32.totalorder %v272, %v577
    %vm608 = vcmp.eq.s32.totalorder %v272, %v592
    %v609 = vsel %vm593, 1, 0
    %v610 = vsel %vm594, 1, 0
    %v611 = vsel %vm595, 1, 0
    %v612 = vsel %vm596, 1, 0
    %v613 = vsel %vm597, 1, 0
    %v614 = vsel %vm598, 1, 0
    %v615 = vsel %vm599, 1, 0
    %v616 = vsel %vm600, 1, 0
    %v617 = vsel %vm601, 1, 0
    %v618 = vsel %vm602, 1, 0
    %v619 = vsel %vm603, 1, 0
    %v620 = vsel %vm604, 1, 0
    %v621 = vsel %vm605, 1, 0
    %v622 = vsel %vm606, 1, 0
    %v623 = vsel %vm607, 1, 0
    %v624 = vsel %vm608, 1, 0
    %v625 = vcvt.s32.f32 %v609
    %v626 = vcvt.s32.f32 %v610
    %v627 = vcvt.s32.f32 %v611
    %v628 = vcvt.s32.f32 %v612
    %v629 = vcvt.s32.f32 %v613
    %v630 = vcvt.s32.f32 %v614
    %v631 = vcvt.s32.f32 %v615
    %v632 = vcvt.s32.f32 %v616
    %v633 = vcvt.s32.f32 %v617
    %v634 = vcvt.s32.f32 %v618
    %v635 = vcvt.s32.f32 %v619
    %v636 = vcvt.s32.f32 %v620
    %v637 = vcvt.s32.f32 %v621
    %v638 = vcvt.s32.f32 %v622
    %v639 = vcvt.s32.f32 %v623
    %v640 = vcvt.s32.f32 %v624
    %v642 = vsel %vm35, %v625, 0
    %v645 = vsel %vm35, %v626, 0
    %v648 = vsel %vm35, %v627, 0
    %v651 = vsel %vm35, %v628, 0
    %v654 = vsel %vm35, %v629, 0
    %v657 = vsel %vm35, %v630, 0
    %v660 = vsel %vm35, %v631, 0
    %v663 = vsel %vm35, %v632, 0
    %v666 = vsel %vm35, %v633, 0
    %v669 = vsel %vm35, %v634, 0
    %v672 = vsel %vm35, %v635, 0
    %v675 = vsel %vm35, %v636, 0
    %v678 = vsel %vm35, %v637, 0
    %v681 = vsel %vm35, %v638, 0
    %v684 = vsel %vm35, %v639, 0
    %v687 = vsel %vm35, %v640, 0
    %v690 = vsel %vm35, %v31, 0
    %v693 = vsel %vm35, %v32, 0
    %695 = vmatprep.subr.mxu0 0.0
    %696 = vmatpush1.xpose.msra.mxu0 0.0
    %697 = vmatprep.subr.mxu0 0.0
    %698 = vmatpush1.xpose.msra.mxu0 0.0
    %699 = vmatprep.subr.mxu0 0.0
    %700 = vmatpush1.xpose.msra.mxu0 0.0
    %701 = vmatprep.subr.mxu0 0.0
    %702 = vmatpush1.xpose.msra.mxu0 0.0
    %703 = vmatprep.subr.mxu0 0.0
    %704 = vmatpush1.xpose.msra.mxu0 0.0
    %705 = vmatprep.subr.mxu0 0.0
    %706 = vmatpush1.xpose.msra.mxu0 0.0
    %707 = vmatprep.subr.mxu0 0.0
    %708 = vmatpush1.xpose.msra.mxu0 0.0
    %709 = vmatprep.subr.mxu0 0.0
    %710 = vmatpush1.xpose.msra.mxu0 0.0
    %711 = vmatprep.subr.mxu0 0.0
    %712 = vmatpush1.xpose.msra.mxu0 0.0
    %713 = vmatprep.subr.mxu0 0.0
    %714 = vmatpush1.xpose.msra.mxu0 0.0
    %715 = vmatprep.subr.mxu0 0.0
    %716 = vmatpush1.xpose.msra.mxu0 0.0
    %717 = vmatprep.subr.mxu0 0.0
    %718 = vmatpush1.xpose.msra.mxu0 0.0
    %719 = vmatprep.subr.mxu0 0.0
    %720 = vmatpush1.xpose.msra.mxu0 0.0
    %721 = vmatprep.subr.mxu0 0.0
    %722 = vmatpush1.xpose.msra.mxu0 0.0
    %723 = vmatprep.subr.mxu0 0.0
    %724 = vmatpush1.xpose.msra.mxu0 %v693
    %725 = vmatprep.subr.mxu0 0.0
    %726 = vmatpush1.xpose.msra.mxu0 %v690
    %727 = vmatprep.subr.mxu0 0.0
    %728 = vmatpush2.xpose.msra.mxu0 0.0
    %729 = vmatprep.subr.mxu0 0.0
    %730 = vmatpush2.xpose.msra.mxu0 0.0
    %731 = vmatprep.subr.mxu0 0.0
    %732 = vmatpush2.xpose.msra.mxu0 0.0
    %733 = vmatprep.subr.mxu0 0.0
    %734 = vmatpush2.xpose.msra.mxu0 0.0
    %735 = vmatprep.subr.mxu0 0.0
    %736 = vmatpush2.xpose.msra.mxu0 0.0
    %737 = vmatprep.subr.mxu0 0.0
    %738 = vmatpush2.xpose.msra.mxu0 0.0
    %739 = vmatprep.subr.mxu0 0.0
    %740 = vmatpush2.xpose.msra.mxu0 0.0
    %741 = vmatprep.subr.mxu0 0.0
    %742 = vmatpush2.xpose.msra.mxu0 0.0
    %743 = vmatprep.subr.mxu0 0.0
    %744 = vmatpush2.xpose.msra.mxu0 0.0
    %745 = vmatprep.subr.mxu0 0.0
    %746 = vmatpush2.xpose.msra.mxu0 0.0
    %747 = vmatprep.subr.mxu0 0.0
    %748 = vmatpush2.xpose.msra.mxu0 0.0
    %749 = vmatprep.subr.mxu0 0.0
    %750 = vmatpush2.xpose.msra.mxu0 0.0
    %751 = vmatprep.subr.mxu0 0.0
    %752 = vmatpush2.xpose.msra.mxu0 0.0
    %753 = vmatprep.subr.mxu0 0.0
    %754 = vmatpush2.xpose.msra.mxu0 0.0
    %755 = vmatprep.subr.mxu0 0.0
    %756 = vmatpush2.xpose.msra.mxu0 0.0
    %757 = vmatprep.subr.mxu0 0.0
    %758 = vmatpush2.xpose.msra.mxu0 0.0
    %759 = vmatprep.mubr.f32.mxu0 0.0
    %760 = vmatmul.mubr.f32.gmra.mxu0 %v642
    %v761 = vpop.f32.mrf.mxu0
    %v762 = vadd.f32 0.0, %v761
    %v763 = vpop.f32.mrf.mxu0
    %764 = vmatprep.mubr.f32.mxu0 0.0
    %765 = vmatmul.mubr.f32.gmra.mxu0 %v645
    %v766 = vpop.f32.mrf.mxu0
    %v767 = vadd.f32 0.0, %v766
    %v768 = vpop.f32.mrf.mxu0
    %769 = vmatprep.mubr.f32.mxu0 0.0
    %770 = vmatmul.mubr.f32.gmra.mxu0 %v648
    %v771 = vpop.f32.mrf.mxu0
    %v772 = vadd.f32 0.0, %v771
    %v773 = vpop.f32.mrf.mxu0
    %774 = vmatprep.mubr.f32.mxu0 0.0
    %775 = vmatmul.mubr.f32.gmra.mxu0 %v651
    %v776 = vpop.f32.mrf.mxu0
    %v777 = vadd.f32 0.0, %v776
    %v778 = vpop.f32.mrf.mxu0
    %779 = vmatprep.mubr.f32.mxu0 0.0
    %780 = vmatmul.mubr.f32.gmra.mxu0 %v654
    %v781 = vpop.f32.mrf.mxu0
    %v782 = vadd.f32 0.0, %v781
    %v783 = vpop.f32.mrf.mxu0
    %784 = vmatprep.mubr.f32.mxu0 0.0
    %785 = vmatmul.mubr.f32.gmra.mxu0 %v657
    %v786 = vpop.f32.mrf.mxu0
    %v787 = vadd.f32 0.0, %v786
    %v788 = vpop.f32.mrf.mxu0
    %789 = vmatprep.mubr.f32.mxu0 0.0
    %790 = vmatmul.mubr.f32.gmra.mxu0 %v660
    %v791 = vpop.f32.mrf.mxu0
    %v792 = vadd.f32 0.0, %v791
    %v793 = vpop.f32.mrf.mxu0
    %794 = vmatprep.mubr.f32.mxu0 0.0
    %795 = vmatmul.mubr.f32.gmra.mxu0 %v663
    %v796 = vpop.f32.mrf.mxu0
    %v797 = vadd.f32 0.0, %v796
    %v798 = vpop.f32.mrf.mxu0
    %799 = vmatprep.mubr.f32.mxu0 0.0
    %800 = vmatmul.mubr.f32.gmra.mxu0 %v666
    %v801 = vpop.f32.mrf.mxu0
    %v802 = vadd.f32 0.0, %v801
    %v803 = vpop.f32.mrf.mxu0
    %804 = vmatprep.mubr.f32.mxu0 0.0
    %805 = vmatmul.mubr.f32.gmra.mxu0 %v669
    %v806 = vpop.f32.mrf.mxu0
    %v807 = vadd.f32 0.0, %v806
    %v808 = vpop.f32.mrf.mxu0
    %809 = vmatprep.mubr.f32.mxu0 0.0
    %810 = vmatmul.mubr.f32.gmra.mxu0 %v672
    %v811 = vpop.f32.mrf.mxu0
    %v812 = vadd.f32 0.0, %v811
    %v813 = vpop.f32.mrf.mxu0
    %814 = vmatprep.mubr.f32.mxu0 0.0
    %815 = vmatmul.mubr.f32.gmra.mxu0 %v675
    %v816 = vpop.f32.mrf.mxu0
    %v817 = vadd.f32 0.0, %v816
    %v818 = vpop.f32.mrf.mxu0
    %819 = vmatprep.mubr.f32.mxu0 0.0
    %820 = vmatmul.mubr.f32.gmra.mxu0 %v678
    %v821 = vpop.f32.mrf.mxu0
    %v822 = vadd.f32 0.0, %v821
    %v823 = vpop.f32.mrf.mxu0
    %824 = vmatprep.mubr.f32.mxu0 0.0
    %825 = vmatmul.mubr.f32.gmra.mxu0 %v681
    %v826 = vpop.f32.mrf.mxu0
    %v827 = vadd.f32 0.0, %v826
    %v828 = vpop.f32.mrf.mxu0
    %829 = vmatprep.mubr.f32.mxu0 0.0
    %830 = vmatmul.mubr.f32.gmra.mxu0 %v684
    %v831 = vpop.f32.mrf.mxu0
    %v832 = vadd.f32 0.0, %v831
    %v833 = vpop.f32.mrf.mxu0
    %834 = vmatprep.mubr.f32.mxu0 0.0
    %835 = vmatmul.mubr.f32.gmra.mxu0 %v687
    %v836 = vpop.f32.mrf.mxu0
    %v837 = vadd.f32 0.0, %v836
    %v838 = vpop.f32.mrf.mxu0
    %839 = vdwg.mxu0
    %v840 = vsub.f32 %v762, %v15
    %v841 = vsub.f32 %v767, %v16
    %v842 = vsub.f32 %v772, %v17
    %v843 = vsub.f32 %v777, %v18
    %v844 = vsub.f32 %v782, %v19
    %v845 = vsub.f32 %v787, %v20
    %v846 = vsub.f32 %v792, %v21
    %v847 = vsub.f32 %v797, %v22
    %v848 = vsub.f32 %v802, %v23
    %v849 = vsub.f32 %v807, %v24
    %v850 = vsub.f32 %v812, %v25
    %v851 = vsub.f32 %v817, %v26
    %v852 = vsub.f32 %v822, %v27
    %v853 = vsub.f32 %v827, %v28
    %v854 = vsub.f32 %v832, %v29
    %v855 = vsub.f32 %v837, %v30
    %v856 = vmul.f32 %v840, %v840
    %v857 = vmul.f32 %v841, %v841
    %v858 = vmul.f32 %v842, %v842
    %v859 = vmul.f32 %v843, %v843
    %v860 = vmul.f32 %v844, %v844
    %v861 = vmul.f32 %v845, %v845
    %v862 = vmul.f32 %v846, %v846
    %v863 = vmul.f32 %v847, %v847
    %v864 = vmul.f32 %v848, %v848
    %v865 = vmul.f32 %v849, %v849
    %v866 = vmul.f32 %v850, %v850
    %v867 = vmul.f32 %v851, %v851
    %v868 = vmul.f32 %v852, %v852
    %v869 = vmul.f32 %v853, %v853
    %v870 = vmul.f32 %v854, %v854
    %v871 = vmul.f32 %v855, %v855
    %v872 = vsel %vm45, %v856, 0.0
    %v873 = vsel %vm45, %v857, 0.0
    %v874 = vadd.f32 %v872, %v873
    %v875 = vsel %vm45, %v858, 0.0
    %v876 = vadd.f32 %v874, %v875
    %v877 = vsel %vm45, %v859, 0.0
    %v878 = vadd.f32 %v876, %v877
    %v879 = vsel %vm45, %v860, 0.0
    %v880 = vadd.f32 %v878, %v879
    %v881 = vsel %vm45, %v861, 0.0
    %v882 = vadd.f32 %v880, %v881
    %v883 = vsel %vm45, %v862, 0.0
    %v884 = vadd.f32 %v882, %v883
    %v885 = vsel %vm45, %v863, 0.0
    %v886 = vadd.f32 %v884, %v885
    %v887 = vsel %vm45, %v864, 0.0
    %v888 = vadd.f32 %v886, %v887
    %v889 = vsel %vm45, %v865, 0.0
    %v890 = vadd.f32 %v888, %v889
    %v891 = vsel %vm45, %v866, 0.0
    %v892 = vadd.f32 %v890, %v891
    %v893 = vsel %vm45, %v867, 0.0
    %v894 = vadd.f32 %v892, %v893
    %v895 = vsel %vm45, %v868, 0.0
    %v896 = vadd.f32 %v894, %v895
    %v897 = vsel %vm45, %v869, 0.0
    %v898 = vadd.f32 %v896, %v897
    %v899 = vsel %vm45, %v870, 0.0
    %v900 = vadd.f32 %v898, %v899
    %v901 = vsel %vm45, %v871, 0.0
    %v902 = vadd.f32 %v900, %v901
    %903 = vadd.xlane.f32.xlu0 %v902
    %v904 = vpop.xlane.xlu0 %903
    %v905 = vrot.slane %v904, 4
    %v906 = vadd.f32 %v904, %v905
    %v907 = vrot.slane %v906, 2
    %v908 = vadd.f32 %v906, %v907
    %v909 = vrot.slane %v908, 1
    %v910 = vadd.f32 %v908, %v909
    %s911 = vtos %v910
    %v912 = vrcp.pop 2048.0
    %s913 = vtos %v912
    %s914 = smul.f32 %s911, %s913
    %915 = vst.msk [vmem:[%s2] sm:$0xff] %vm45, %v762
    %916 = vst.msk [vmem:[%s2 + $0x8] sm:$0xff] %vm45, %v767
    %917 = vst.msk [vmem:[%s2 + $0x10] sm:$0xff] %vm45, %v772
    %918 = vst.msk [vmem:[%s2 + $0x18] sm:$0xff] %vm45, %v777
    %919 = vst.msk [vmem:[%s2 + $0x20] sm:$0xff] %vm45, %v782
    %920 = vst.msk [vmem:[%s2 + $0x28] sm:$0xff] %vm45, %v787
    %921 = vst.msk [vmem:[%s2 + $0x30] sm:$0xff] %vm45, %v792
    %922 = vst.msk [vmem:[%s2 + $0x38] sm:$0xff] %vm45, %v797
    %923 = vst.msk [vmem:[%s2 + $0x40] sm:$0xff] %vm45, %v802
    %924 = vst.msk [vmem:[%s2 + $0x48] sm:$0xff] %vm45, %v807
    %925 = vst.msk [vmem:[%s2 + $0x50] sm:$0xff] %vm45, %v812
    %926 = vst.msk [vmem:[%s2 + $0x58] sm:$0xff] %vm45, %v817
    %927 = vst.msk [vmem:[%s2 + $0x60] sm:$0xff] %vm45, %v822
    %928 = vst.msk [vmem:[%s2 + $0x68] sm:$0xff] %vm45, %v827
    %929 = vst.msk [vmem:[%s2 + $0x70] sm:$0xff] %vm45, %v832
    %930 = vst.msk [vmem:[%s2 + $0x78] sm:$0xff] %vm45, %v837
    %vm931 = vcmask 7168
    %932 = vst.msk [vmem:[%s3] sm:$0xff] %vm931, %v367
    %933 = vst.msk [vmem:[%s3 + $0x8] sm:$0xff] %vm931, %v382
    %934 = vst.msk [vmem:[%s3 + $0x10] sm:$0xff] %vm931, %v397
    %935 = vst.msk [vmem:[%s3 + $0x18] sm:$0xff] %vm931, %v412
    %936 = vst.msk [vmem:[%s3 + $0x20] sm:$0xff] %vm931, %v427
    %937 = vst.msk [vmem:[%s3 + $0x28] sm:$0xff] %vm931, %v442
    %938 = vst.msk [vmem:[%s3 + $0x30] sm:$0xff] %vm931, %v457
    %939 = vst.msk [vmem:[%s3 + $0x38] sm:$0xff] %vm931, %v472
    %940 = vst.msk [vmem:[%s3 + $0x40] sm:$0xff] %vm931, %v487
    %941 = vst.msk [vmem:[%s3 + $0x48] sm:$0xff] %vm931, %v502
    %942 = vst.msk [vmem:[%s3 + $0x50] sm:$0xff] %vm931, %v517
    %943 = vst.msk [vmem:[%s3 + $0x58] sm:$0xff] %vm931, %v532
    %944 = vst.msk [vmem:[%s3 + $0x60] sm:$0xff] %vm931, %v547
    %945 = vst.msk [vmem:[%s3 + $0x68] sm:$0xff] %vm931, %v562
    %946 = vst.msk [vmem:[%s3 + $0x70] sm:$0xff] %vm931, %v577
    %947 = vst.msk [vmem:[%s3 + $0x78] sm:$0xff] %vm931, %v592
    %v948 = vstv %s914
    %vm949 = vcmask 0
    %950 = vst.msk [vmem:[#allocation2] sm:$0x1] %vm949, %v948
    // Predicated region
    $region10: #{network_forward.53} parent=1 // pred_check
      _
    $region11: #{network_forward.53} parent=1 // pred_check_branch
      %952 = sbr.rel (0) target = $region13
    $region12: #{network_forward.53} parent=1 // pred_region
      _
    $region13: #{network_forward.53} parent=1 // pred_fallthru
      _
    // Predicated region
    $region14: #{network_forward.53} parent=1 // pred_check
      _
    $region15: #{network_forward.53} parent=1 // pred_check_branch
      %954 = sbr.rel (0) target = $region17
    $region16: #{network_forward.53} parent=1 // pred_region
      _
    $region17: #{network_forward.53} parent=1 // pred_fallthru
      _
    // Predicated region
    $region18: #{network_forward.53} parent=1 // pred_check
      _
    $region19: #{network_forward.53} parent=1 // pred_check_branch
      %956 = sbr.rel (0) target = $region21
    $region20: #{network_forward.53} parent=1 // pred_region
      %s958 = ssub.s32 16, 16
      %959 = vsyncadd [#allocation3], %s958
      %s961 = sshll.u32 [#allocation2], 4
      %s962 = int_to_ptr.vmem [resolvable:$true] %s961
      %964 = dma.vmem_to_hbm [thread:$0]  %s962, 16, %s4, [#allocation3]
    $region21: #{network_forward.53} parent=1 // pred_fallthru
      _
    // Predicated region
    $region22: #{network_forward.53} parent=1 // pred_check
      _
    $region23: #{network_forward.53} parent=1 // pred_check_branch
      %966 = sbr.rel (0) target = $region25
    $region24: #{network_forward.53} parent=1 // pred_region
      _
    $region25: #{network_forward.53} parent=1 // pred_fallthru
      _
    // Predicated region
    $region26: #{network_forward.53} parent=1 // pred_check
      _
    $region27: #{network_forward.53} parent=1 // pred_check_branch
      %968 = sbr.rel (0) target = $region29
    $region28: #{network_forward.53} parent=1 // pred_region
      _
    $region29: #{network_forward.53} parent=1 // pred_fallthru
      _
    // Predicated region
    $region30: #{network_forward.53} parent=1 // pred_check
      _
    $region31: #{network_forward.53} parent=1 // pred_check_branch
      %970 = sbr.rel (0) target = $region33
    $region32: #{network_forward.53} parent=1 // pred_region
      %971 = dma.done [#allocation3], 16
    $region33: #{network_forward.53} parent=1 // pred_fallthru
      _
    %972 = vsyncpa [#allocation3], 1

// kernel: tile.58
$region0: #{tile.58}
  #allocation0 [shape = 's32[1]{0}', space=sflag, size = 0x4, scoped, tag = 'scoped memory for tile.58']
  %s0 = inlined_call_operand.vmem [shape: f32[3], index: 0, kind: input, shape index: {}]
  %s1 = inlined_call_operand.vmem [shape: f32[4,3], index: 1, kind: output, shape index: {}]
  // Predicated region
  $region2: #{tile.58} parent=0 // pred_check
    _
  $region3: #{tile.58} parent=0 // pred_check_branch
    %3 = sbr.rel (0) target = $region5
  $region4: #{tile.58} parent=0 // pred_region
    _
  $region5: #{tile.58} parent=0 // pred_fallthru
    _
  %v4 = vld [vmem:[%s0] ss:$0 sm:$0xff]
  %5 = vst [vmem:[%s1] sm:$0xf] %v4

// kernel: tile.59
$region0: #{tile.59}
  %s0 = inlined_call_operand.vmem [shape: f32[4,3], index: 0, kind: input, shape index: {}]
  %s1 = inlined_call_operand.vmem [shape: f32[12], index: 1, kind: output, shape index: {}]
  $region1: #{tile.59} parent=0
    #allocation0 [shape = 'u8[4096]{0}', space=vmem, size = 0x1000, scoped, tag = 'scoped mem for output reshape']
    #allocation1 [shape = 'u8[4096]{0}', space=vmem, size = 0x1000, scoped, tag = 'scoped mem for input reshape']
    %s3 = sshll.u32 1, 4
    %s4 = ssub.s32 %s3, 1
    %v5 = vld [vmem:[%s0] sm:%s4]
    %6 = vst [vmem:[#allocation1] sm:%s4] %v5
    %v7 = vld [vmem:[#allocation1] sm:$0x1]
    %vm8 = vcmask 23552
    %9 = vst.msk [vmem:[#allocation0] sm:$0x1] %vm8, %v7
    %s10 = scalar_lea.vmem [#allocation1], 3
    %v11 = vld [vmem:[%s10] sm:$0x1]
    %12 = vrot.lane.b32.xlu0 %v11, 9
    %v13 = vpop.permute.xlu0 %12
    %vm14 = vcmask 97352
    %15 = vst.msk [vmem:[#allocation0] sm:$0x1] %vm14, %v13
    %s16 = scalar_lea.vmem [#allocation1], 2
    %v17 = vld [vmem:[%s16] sm:$0x1]
    %18 = vrot.lane.b32.xlu0 %v17, 6
    %v19 = vpop.permute.xlu0 %18
    %vm20 = vcmask 72752
    %21 = vst.msk [vmem:[#allocation0] sm:$0x1] %vm20, %v19
    %s22 = scalar_lea.vmem [#allocation1], 1
    %v23 = vld [vmem:[%s22] sm:$0x1]
    %24 = vrot.lane.b32.xlu0 %v23, 3
    %v25 = vpop.permute.xlu0 %24
    %vm26 = vcmask 48152
    %27 = vst.msk [vmem:[#allocation0] sm:$0x1] %vm26, %v25
    %s29 = sshll.u32 1, 1
    %s30 = ssub.s32 %s29, 1
    %v32 = vld [vmem:[#allocation0] sm:%s30]
    %s33 = sshll.u32 1, 1
    %s34 = ssub.s32 %s33, 1
    %35 = vst [vmem:[%s1] sm:%s34] %v32

// kernel: network_forward.61
$region0: #{network_forward.61}
  #allocation0 [shape = 'u32[]', space=smem, size = 0x4, offset = 0x4, fixed_abs, tag = 'smem constant byte address 0x4 - core index']
  #allocation1 [shape = 'u32[144,128]{1,0:T(1,128)}', space=vmem, size = 0x12000, scoped, tag = 'internal scratch']
  %s0 = inlined_call_operand.vmem [shape: bf16[512,144], index: 0, kind: input, shape index: {}]
  %s1 = inlined_call_operand.vmem [shape: bf16[144,128], index: 1, kind: input, shape index: {}]
  %s2 = inlined_call_operand.vmem [shape: f32[1,128], index: 2, kind: input, shape index: {}]
  %s3 = inlined_call_operand.vmem [shape: f32[512,128], index: 3, kind: output, shape index: {}]
  %s4 = sld [smem:[#allocation0]]
  $region45: #{network_forward.61} parent=0
    _
  %s6 = ssub.s32 1, %s4
  %s7 = scalar_select 0, %s6, %s4
  loop: start=0, step=1, limit=4
  $region2: #{network_forward.61} parent=0 // loop_pre_header
    _
  $region3: #{network_forward.61} parent=0 // loop_header
    %s9 = sphi 0, %s13
    %p10 = scmp.ge.s32.totalorder %s9, 4
    %s19 = sphi 0, %s21
    %s22 = sphi 0, %s19
    %s23 = sphi 0, %s22
    %s39 = sphi 0, %s23
    %s43 = sphi 0, %s43
    %s45 = sphi 0, %s43
    %s46 = sphi 0, %s45
    %s60 = sphi 0, %s46
    %s64 = sphi 0, %s64
    %s66 = sphi 0, %s64
    %s67 = sphi 0, %s66
    %s81 = sphi 0, %s67
    %s87 = sphi 0, %s89
    %s90 = sphi 0, %s87
    %s91 = sphi 0, %s90
    %s107 = sphi 0, %s91
  $region4: #{network_forward.61} parent=0 // loop_header_branch
    %12 = sbr.rel (%p10) target = $region8
  $region5: #{network_forward.61} parent=0 // loop_body
    %s14 = ssub.s32 %s9, 1
    %s15 = ssub.s32 %s9, 2
    %s16 = sadd.s32 %s9, 1
    %s17 = ssub.s32 %s9, %s16
    %p18 = scmp.eq.s32.totalorder %s17, 0
    %s20 = sadd.s32 %s19, 1
    %s21 = scalar_select %p18, %s19, %s20
    %p24 = pneg %p18
    %p25 = scmp.eq.s32.totalorder %s9, 1
    %p26 = por %p24, %p25
    %p27 = scmp.ne.s32.totalorder %s19, %s22
    %p28 = scmp.eq.s32.totalorder %s9, 0
    %p29 = por %p27, %p28
    %p30 = scmp.ne.s32.totalorder %s19, %s22
    %p31 = scmp.eq.s32.totalorder %s14, 1
    %p32 = por %p30, %p31
    %p33 = scmp.ne.s32.totalorder %s22, %s23
    %p34 = scmp.eq.s32.totalorder %s14, 0
    %p35 = por %p33, %p34
    %p36 = scmp.ne.s32.totalorder %s22, %s23
    %p37 = scmp.eq.s32.totalorder %s15, 1
    %p38 = por %p36, %p37
    %p40 = scmp.ne.s32.totalorder %s23, %s39
    %p41 = scmp.eq.s32.totalorder %s15, 0
    %p42 = por %p40, %p41
    %s44 = sadd.s32 %s43, 1
    %p47 = scmp.eq.s32.totalorder %s9, 1
    %p48 = scmp.ne.s32.totalorder %s43, %s45
    %p49 = scmp.eq.s32.totalorder %s9, 0
    %p50 = por %p48, %p49
    %p51 = scmp.ne.s32.totalorder %s43, %s45
    %p52 = scmp.eq.s32.totalorder %s14, 1
    %p53 = por %p51, %p52
    %p54 = scmp.ne.s32.totalorder %s45, %s46
    %p55 = scmp.eq.s32.totalorder %s14, 0
    %p56 = por %p54, %p55
    %p57 = scmp.ne.s32.totalorder %s45, %s46
    %p58 = scmp.eq.s32.totalorder %s15, 1
    %p59 = por %p57, %p58
    %p61 = scmp.ne.s32.totalorder %s46, %s60
    %p62 = scmp.eq.s32.totalorder %s15, 0
    %p63 = por %p61, %p62
    %s65 = sadd.s32 %s64, 1
    %p68 = scmp.eq.s32.totalorder %s9, 1
    %p69 = scmp.ne.s32.totalorder %s64, %s66
    %p70 = scmp.eq.s32.totalorder %s9, 0
    %p71 = por %p69, %p70
    %p72 = scmp.ne.s32.totalorder %s64, %s66
    %p73 = scmp.eq.s32.totalorder %s14, 1
    %p74 = por %p72, %p73
    %p75 = scmp.ne.s32.totalorder %s66, %s67
    %p76 = scmp.eq.s32.totalorder %s14, 0
    %p77 = por %p75, %p76
    %p78 = scmp.ne.s32.totalorder %s66, %s67
    %p79 = scmp.eq.s32.totalorder %s15, 1
    %p80 = por %p78, %p79
    %p82 = scmp.ne.s32.totalorder %s67, %s81
    %p83 = scmp.eq.s32.totalorder %s15, 0
    %p84 = por %p82, %p83
    %s85 = ssub.s32 %s9, %s16
    %p86 = scmp.eq.s32.totalorder %s85, 0
    %s88 = sadd.s32 %s87, 1
    %s89 = scalar_select %p86, %s87, %s88
    %p92 = pneg %p86
    %p93 = scmp.eq.s32.totalorder %s9, 1
    %p94 = por %p92, %p93
    %p95 = scmp.ne.s32.totalorder %s87, %s90
    %p96 = scmp.eq.s32.totalorder %s9, 0
    %p97 = por %p95, %p96
    %p98 = scmp.ne.s32.totalorder %s87, %s90
    %p99 = scmp.eq.s32.totalorder %s14, 1
    %p100 = por %p98, %p99
    %p101 = scmp.ne.s32.totalorder %s90, %s91
    %p102 = scmp.eq.s32.totalorder %s14, 0
    %p103 = por %p101, %p102
    %p104 = scmp.ne.s32.totalorder %s90, %s91
    %p105 = scmp.eq.s32.totalorder %s15, 1
    %p106 = por %p104, %p105
    %p108 = scmp.ne.s32.totalorder %s91, %s107
    %p109 = scmp.eq.s32.totalorder %s15, 0
    %p110 = por %p108, %p109
    %p111 = scmp.le.s32.totalorder 1, %s9
    %p112 = scmp.lt.s32.totalorder %s9, 3
    %p113 = pnand %p111, %p112
    %p114 = pneg %p113
    // Predicated region
    $region9: #{network_forward.61} parent=5 // pred_check
      _
    $region10: #{network_forward.61} parent=5 // pred_check_branch
      %116 = sbr.rel (%p113) target = $region12
    $region11: #{network_forward.61} parent=5 // pred_region
      %s117 = ssub.s32 %s9, 1
      // Predicated region
      $region13: #{network_forward.61} parent=11 // pred_check
        %p118 = pneg %p56
      $region14: #{network_forward.61} parent=11 // pred_check_branch
        %120 = sbr.rel (%p118) target = $region16
      $region15: #{network_forward.61} parent=11 // pred_region
        _
      $region16: #{network_forward.61} parent=11 // pred_fallthru
        _
      // Predicated region
      $region17: #{network_forward.61} parent=11 // pred_check
        %p121 = pneg %p77
      $region18: #{network_forward.61} parent=11 // pred_check_branch
        %123 = sbr.rel (%p121) target = $region20
      $region19: #{network_forward.61} parent=11 // pred_region
        _
      $region20: #{network_forward.61} parent=11 // pred_fallthru
        _
    $region12: #{network_forward.61} parent=5 // pred_fallthru
      _
    %p124 = scmp.lt.s32.totalorder %s9, 2
    // Predicated region
    $region21: #{network_forward.61} parent=5 // pred_check
      %p125 = pneg %p124
    $region22: #{network_forward.61} parent=5 // pred_check_branch
      %127 = sbr.rel (%p125) target = $region24
    $region23: #{network_forward.61} parent=5 // pred_region
      // Predicated region
      $region25: #{network_forward.61} parent=23 // pred_check
        %p128 = pneg %p29
      $region26: #{network_forward.61} parent=23 // pred_check_branch
        %130 = sbr.rel (%p128) target = $region28
      $region27: #{network_forward.61} parent=23 // pred_region
        %s131 = smul.u32 32, %s9
        %p132 = scmp.lt.s32.totalorder %s131, 63
        %s133 = scalar_select %p132, %s131, 63
        %s134 = smul.addr %s133, 2
        %s135 = smul.addr %s134, 4
        %s136 = scalar_lea.vmem %s0, %s135
        %s137 = smul.u32 32, %s9
      $region28: #{network_forward.61} parent=23 // pred_fallthru
        _
    $region24: #{network_forward.61} parent=5 // pred_fallthru
      _
    %p138 = scmp.le.s32.totalorder 1, %s9
    %p139 = scmp.lt.s32.totalorder %s9, 3
    %p140 = pnand %p138, %p139
    %p141 = pneg %p140
    // Predicated region
    $region29: #{network_forward.61} parent=5 // pred_check
      _
    $region30: #{network_forward.61} parent=5 // pred_check_branch
      %143 = sbr.rel (%p140) target = $region32
    $region31: #{network_forward.61} parent=5 // pred_region
      %s144 = ssub.s32 %s9, 1
      %s145 = smul.u32 32, %s14
      %p146 = scmp.lt.s32.totalorder %s145, 63
      %s147 = scalar_select %p146, %s145, 63
      %s148 = smul.addr %s147, 2
      %s149 = smul.addr %s148, 4
      %s150 = scalar_lea.vmem %s0, %s149
      %p151 = pneg %p35
      %p152 = pneg %p32
      %p153 = pneg %p56
      %p154 = pneg %p53
      %p155 = pneg %p77
      %p156 = pneg %p74
      %p157 = pneg %p103
      %p158 = pneg %p100
      %s159 = smul.u32 32, %s14
      %p160 = scmp.lt.s32.totalorder %s159, 63
      %s161 = scalar_select %p160, %s159, 63
      %s162 = smul.addr %s161, 8
      %s163 = scalar_lea.vmem %s3, %s162
      %s164 = smul.u32 32, %s14
      %p165 = scmp.lt.s32.totalorder %s164, 63
      %s166 = scalar_select %p165, %s164, 63
      %s167 = smul.addr %s166, 2
      %s168 = smul.addr %s167, 4
      %s169 = scalar_lea.vmem %s0, %s168
      %s170 = smul.u32 32, %s14
      %s171 = smul.u32 32, %s14
      %p172 = scmp.lt.s32.totalorder %s171, 63
      %s173 = scalar_select %p172, %s171, 63
      %s174 = smul.addr %s173, 8
      %s175 = scalar_lea.vmem %s3, %s174
      %s176 = smul.u32 32, %s14
      %v178 = vld [vmem:[%s169] sm:$0xff]
      %v179 = vld [vmem:[%s169 + $0x8] sm:$0xff]
      %v180 = vld [vmem:[%s169 + $0x10] sm:$0xff]
      %v181 = vld [vmem:[%s169 + $0x18] sm:$0xff]
      %v182 = vld [vmem:[%s169 + $0x20] sm:$0xff]
      %v183 = vld [vmem:[%s169 + $0x28] sm:$0xff]
      %v184 = vld [vmem:[%s169 + $0x30] sm:$0xff]
      %v185 = vld [vmem:[%s169 + $0x38] sm:$0xff]
      %v186 = vld [vmem:[%s169 + $0x40] sm:$0xff]
      %v187 = vld [vmem:[%s169 + $0x48] sm:$0xff]
      %v188 = vld [vmem:[%s169 + $0x50] sm:$0xff]
      %v189 = vld [vmem:[%s169 + $0x58] sm:$0xff]
      %v190 = vld [vmem:[%s169 + $0x60] sm:$0xff]
      %v191 = vld [vmem:[%s169 + $0x68] sm:$0xff]
      %v192 = vld [vmem:[%s169 + $0x70] sm:$0xff]
      %v193 = vld [vmem:[%s169 + $0x78] sm:$0xff]
      %v194 = vld [vmem:[%s169 + $0x80] sm:$0xff]
      %v195 = vld [vmem:[%s169 + $0x88] sm:$0xff]
      %v196 = vld [vmem:[%s169 + $0x90] sm:$0xff]
      %v197 = vld [vmem:[%s169 + $0x98] sm:$0xff]
      %v198 = vld [vmem:[%s169 + $0xa0] sm:$0xff]
      %v199 = vld [vmem:[%s169 + $0xa8] sm:$0xff]
      %v200 = vld [vmem:[%s169 + $0xb0] sm:$0xff]
      %v201 = vld [vmem:[%s169 + $0xb8] sm:$0xff]
      %v202 = vld [vmem:[%s169 + $0xc0] sm:$0xff]
      %v203 = vld [vmem:[%s169 + $0xc8] sm:$0xff]
      %v204 = vld [vmem:[%s169 + $0xd0] sm:$0xff]
      %v205 = vld [vmem:[%s169 + $0xd8] sm:$0xff]
      %v206 = vld [vmem:[%s169 + $0xe0] sm:$0xff]
      %v207 = vld [vmem:[%s169 + $0xe8] sm:$0xff]
      %v208 = vld [vmem:[%s169 + $0xf0] sm:$0xff]
      %v209 = vld [vmem:[%s169 + $0xf8] sm:$0xff]
      %v210 = vld [vmem:[%s1] sm:$0xf]
      %v211 = vld [vmem:[%s1 + $0x4] sm:$0xf]
      %v212 = vld [vmem:[%s1 + $0x8] sm:$0xf]
      %v213 = vld [vmem:[%s1 + $0xc] sm:$0xf]
      %v214 = vld [vmem:[%s1 + $0x10] sm:$0xf]
      %v215 = vld [vmem:[%s1 + $0x14] sm:$0xf]
      %v216 = vld [vmem:[%s1 + $0x18] sm:$0xf]
      %v217 = vld [vmem:[%s1 + $0x1c] sm:$0xf]
      %v218 = vld [vmem:[%s1 + $0x20] sm:$0xf]
      %v219 = vld [vmem:[%s1 + $0x24] sm:$0xf]
      %v220 = vld [vmem:[%s1 + $0x28] sm:$0xf]
      %v221 = vld [vmem:[%s1 + $0x2c] sm:$0xf]
      %v222 = vld [vmem:[%s1 + $0x30] sm:$0xf]
      %v223 = vld [vmem:[%s1 + $0x34] sm:$0xf]
      %v224 = vld [vmem:[%s1 + $0x38] sm:$0xf]
      %v225 = vld [vmem:[%s1 + $0x3c] sm:$0xf]
      %v226 = vld [vmem:[%s1 + $0x40] sm:$0xf]
      %v227 = vld [vmem:[%s1 + $0x44] sm:$0xf]
      %v228 = vld [vmem:[%s2] sm:$0x1]
      %v230 = vlaneseq
      %v231 = vshrl.u32 %v230, 7
      %v232 = vsub.s32 0, %v231
      %v233 = vrot.slane %v228, %v232
      %v267 = vunpack.c.l.b16 %v178
      %v268 = vunpack.c.h.b16 %v178
      %v269 = vunpack.c.l.b16 %v179
      %v270 = vunpack.c.h.b16 %v179
      %v271 = vunpack.c.l.b16 %v180
      %v272 = vunpack.c.h.b16 %v180
      %v273 = vunpack.c.l.b16 %v181
      %v274 = vunpack.c.h.b16 %v181
      %v275 = vunpack.c.l.b16 %v182
      %v276 = vunpack.c.h.b16 %v182
      %v277 = vunpack.c.l.b16 %v183
      %v278 = vunpack.c.h.b16 %v183
      %v279 = vunpack.c.l.b16 %v184
      %v280 = vunpack.c.h.b16 %v184
      %v281 = vunpack.c.l.b16 %v185
      %v282 = vunpack.c.h.b16 %v185
      %v283 = vunpack.c.l.b16 %v186
      %v284 = vunpack.c.h.b16 %v186
      %v285 = vunpack.c.l.b16 %v187
      %v286 = vunpack.c.h.b16 %v187
      %v287 = vunpack.c.l.b16 %v188
      %v288 = vunpack.c.h.b16 %v188
      %v289 = vunpack.c.l.b16 %v189
      %v290 = vunpack.c.h.b16 %v189
      %v291 = vunpack.c.l.b16 %v190
      %v292 = vunpack.c.h.b16 %v190
      %v293 = vunpack.c.l.b16 %v191
      %v294 = vunpack.c.h.b16 %v191
      %v295 = vunpack.c.l.b16 %v192
      %v296 = vunpack.c.h.b16 %v192
      %v297 = vunpack.c.l.b16 %v193
      %v298 = vunpack.c.h.b16 %v193
      %v299 = vunpack.c.l.b16 %v194
      %v300 = vunpack.c.h.b16 %v194
      %v301 = vunpack.c.l.b16 %v195
      %v302 = vunpack.c.h.b16 %v195
      %v303 = vunpack.c.l.b16 %v196
      %v304 = vunpack.c.h.b16 %v196
      %v305 = vunpack.c.l.b16 %v197
      %v306 = vunpack.c.h.b16 %v197
      %v307 = vunpack.c.l.b16 %v198
      %v308 = vunpack.c.h.b16 %v198
      %v309 = vunpack.c.l.b16 %v199
      %v310 = vunpack.c.h.b16 %v199
      %v311 = vunpack.c.l.b16 %v200
      %v312 = vunpack.c.h.b16 %v200
      %v313 = vunpack.c.l.b16 %v201
      %v314 = vunpack.c.h.b16 %v201
      %v315 = vunpack.c.l.b16 %v202
      %v316 = vunpack.c.h.b16 %v202
      %v317 = vunpack.c.l.b16 %v203
      %v318 = vunpack.c.h.b16 %v203
      %v319 = vunpack.c.l.b16 %v204
      %v320 = vunpack.c.h.b16 %v204
      %v321 = vunpack.c.l.b16 %v205
      %v322 = vunpack.c.h.b16 %v205
      %v323 = vunpack.c.l.b16 %v206
      %v324 = vunpack.c.h.b16 %v206
      %v325 = vunpack.c.l.b16 %v207
      %v326 = vunpack.c.h.b16 %v207
      %v327 = vunpack.c.l.b16 %v208
      %v328 = vunpack.c.h.b16 %v208
      %v329 = vunpack.c.l.b16 %v209
      %v330 = vunpack.c.h.b16 %v209
      %v331 = vpack.c.b16 %v269, %v267
      %v332 = vpack.c.b16 %v270, %v268
      %v333 = vpack.c.b16 %v273, %v271
      %v334 = vpack.c.b16 %v274, %v272
      %v335 = vpack.c.b16 %v277, %v275
      %v336 = vpack.c.b16 %v278, %v276
      %v337 = vpack.c.b16 %v281, %v279
      %v338 = vpack.c.b16 %v282, %v280
      %v339 = vpack.c.b16 %v285, %v283
      %v340 = vpack.c.b16 %v286, %v284
      %v341 = vpack.c.b16 %v289, %v287
      %v342 = vpack.c.b16 %v290, %v288
      %v343 = vpack.c.b16 %v293, %v291
      %v344 = vpack.c.b16 %v294, %v292
      %v345 = vpack.c.b16 %v297, %v295
      %v346 = vpack.c.b16 %v298, %v296
      %v347 = vpack.c.b16 %v301, %v299
      %v348 = vpack.c.b16 %v302, %v300
      %v349 = vpack.c.b16 %v305, %v303
      %v350 = vpack.c.b16 %v306, %v304
      %v351 = vpack.c.b16 %v309, %v307
      %v352 = vpack.c.b16 %v310, %v308
      %v353 = vpack.c.b16 %v313, %v311
      %v354 = vpack.c.b16 %v314, %v312
      %v355 = vpack.c.b16 %v317, %v315
      %v356 = vpack.c.b16 %v318, %v316
      %v357 = vpack.c.b16 %v321, %v319
      %v358 = vpack.c.b16 %v322, %v320
      %v359 = vpack.c.b16 %v325, %v323
      %v360 = vpack.c.b16 %v326, %v324
      %v361 = vpack.c.b16 %v329, %v327
      %v362 = vpack.c.b16 %v330, %v328
      %v397 = vunpack.c.l.b16 %v210
      %v398 = vunpack.c.l.b16 %v211
      %v399 = vunpack.c.l.b16 %v212
      %v400 = vunpack.c.l.b16 %v213
      %v401 = vunpack.c.l.b16 %v214
      %v402 = vunpack.c.l.b16 %v215
      %v403 = vunpack.c.l.b16 %v216
      %v404 = vunpack.c.l.b16 %v217
      %v405 = vunpack.c.l.b16 %v218
      %v406 = vunpack.c.l.b16 %v219
      %v407 = vunpack.c.l.b16 %v220
      %v408 = vunpack.c.l.b16 %v221
      %v409 = vunpack.c.l.b16 %v222
      %v410 = vunpack.c.l.b16 %v223
      %v411 = vunpack.c.l.b16 %v224
      %v412 = vunpack.c.l.b16 %v225
      %v413 = vunpack.c.l.b16 %v226
      %v414 = vunpack.c.l.b16 %v227
      %v415 = vpack.c.b16 %v398, %v397
      %v416 = vpack.c.b16 %v400, %v399
      %v417 = vpack.c.b16 %v402, %v401
      %v418 = vpack.c.b16 %v404, %v403
      %v419 = vpack.c.b16 %v406, %v405
      %v420 = vpack.c.b16 %v408, %v407
      %v421 = vpack.c.b16 %v410, %v409
      %v422 = vpack.c.b16 %v412, %v411
      %v423 = vpack.c.b16 %v414, %v413
      %vm433 = vcmask 130048
      %v435 = vsel %vm433, %v332, 0
      %v438 = vsel %vm433, %v334, 0
      %v441 = vsel %vm433, %v336, 0
      %v444 = vsel %vm433, %v338, 0
      %v447 = vsel %vm433, %v340, 0
      %v450 = vsel %vm433, %v342, 0
      %v453 = vsel %vm433, %v344, 0
      %v456 = vsel %vm433, %v346, 0
      %v459 = vsel %vm433, %v348, 0
      %v462 = vsel %vm433, %v350, 0
      %v465 = vsel %vm433, %v352, 0
      %v468 = vsel %vm433, %v354, 0
      %v471 = vsel %vm433, %v356, 0
      %v474 = vsel %vm433, %v358, 0
      %v477 = vsel %vm433, %v360, 0
      %v480 = vsel %vm433, %v362, 0
      %482 = vmatprep.subr.bf16.mxu0 0
      %483 = vmatpush1.bf16.msra.mxu0 %v422
      %484 = vmatprep.subr.bf16.mxu0 0
      %485 = vmatpush1.bf16.msra.mxu0 %v421
      %486 = vmatprep.subr.bf16.mxu0 0
      %487 = vmatpush1.bf16.msra.mxu0 %v420
      %488 = vmatprep.subr.bf16.mxu0 0
      %489 = vmatpush1.bf16.msra.mxu0 %v419
      %490 = vmatprep.subr.bf16.mxu0 0
      %491 = vmatpush1.bf16.msra.mxu0 %v418
      %492 = vmatprep.subr.bf16.mxu0 0
      %493 = vmatpush1.bf16.msra.mxu0 %v417
      %494 = vmatprep.subr.bf16.mxu0 0
      %495 = vmatpush1.bf16.msra.mxu0 %v416
      %496 = vmatprep.subr.bf16.mxu0 0
      %497 = vmatpush1.bf16.msra.mxu0 %v415
      %498 = vmatprep.subr.bf16.mxu0 0
      %499 = vmatpush2.bf16.msra.mxu0 0
      %500 = vmatprep.subr.bf16.mxu0 0
      %501 = vmatpush2.bf16.msra.mxu0 0
      %502 = vmatprep.subr.bf16.mxu0 0
      %503 = vmatpush2.bf16.msra.mxu0 0
      %504 = vmatprep.subr.bf16.mxu0 0
      %505 = vmatpush2.bf16.msra.mxu0 0
      %506 = vmatprep.subr.bf16.mxu0 0
      %507 = vmatpush2.bf16.msra.mxu0 0
      %508 = vmatprep.subr.bf16.mxu0 0
      %509 = vmatpush2.bf16.msra.mxu0 0
      %510 = vmatprep.subr.bf16.mxu0 0
      %511 = vmatpush2.bf16.msra.mxu0 0
      %512 = vmatprep.subr.bf16.mxu0 0
      %513 = vmatpush2.bf16.msra.mxu0 %v423
      %514 = vmatprep.mubr.bf16.mxu0 %v435
      %515 = vmatmul.mubr.bf16.gmra.mxu0 %v331
      %v516 = vpop.f32.mrf.mxu0
      %v517 = vadd.f32 %v233, %v516
      %v518 = vpop.f32.mrf.mxu0
      %v519 = vpop.f32.mrf.mxu0
      %v520 = vadd.f32 %v233, %v519
      %v521 = vpop.f32.mrf.mxu0
      %522 = vmatprep.mubr.bf16.mxu0 %v438
      %523 = vmatmul.mubr.bf16.gmra.mxu0 %v333
      %v524 = vpop.f32.mrf.mxu0
      %v525 = vadd.f32 %v233, %v524
      %v526 = vpop.f32.mrf.mxu0
      %v527 = vpop.f32.mrf.mxu0
      %v528 = vadd.f32 %v233, %v527
      %v529 = vpop.f32.mrf.mxu0
      %530 = vmatprep.mubr.bf16.mxu0 %v441
      %531 = vmatmul.mubr.bf16.gmra.mxu0 %v335
      %v532 = vpop.f32.mrf.mxu0
      %v533 = vadd.f32 %v233, %v532
      %v534 = vpop.f32.mrf.mxu0
      %v535 = vpop.f32.mrf.mxu0
      %v536 = vadd.f32 %v233, %v535
      %v537 = vpop.f32.mrf.mxu0
      %538 = vmatprep.mubr.bf16.mxu0 %v444
      %539 = vmatmul.mubr.bf16.gmra.mxu0 %v337
      %v540 = vpop.f32.mrf.mxu0
      %v541 = vadd.f32 %v233, %v540
      %v542 = vpop.f32.mrf.mxu0
      %v543 = vpop.f32.mrf.mxu0
      %v544 = vadd.f32 %v233, %v543
      %v545 = vpop.f32.mrf.mxu0
      %546 = vmatprep.mubr.bf16.mxu0 %v447
      %547 = vmatmul.mubr.bf16.gmra.mxu0 %v339
      %v548 = vpop.f32.mrf.mxu0
      %v549 = vadd.f32 %v233, %v548
      %v550 = vpop.f32.mrf.mxu0
      %v551 = vpop.f32.mrf.mxu0
      %v552 = vadd.f32 %v233, %v551
      %v553 = vpop.f32.mrf.mxu0
      %554 = vmatprep.mubr.bf16.mxu0 %v450
      %555 = vmatmul.mubr.bf16.gmra.mxu0 %v341
      %v556 = vpop.f32.mrf.mxu0
      %v557 = vadd.f32 %v233, %v556
      %v558 = vpop.f32.mrf.mxu0
      %v559 = vpop.f32.mrf.mxu0
      %v560 = vadd.f32 %v233, %v559
      %v561 = vpop.f32.mrf.mxu0
      %562 = vmatprep.mubr.bf16.mxu0 %v453
      %563 = vmatmul.mubr.bf16.gmra.mxu0 %v343
      %v564 = vpop.f32.mrf.mxu0
      %v565 = vadd.f32 %v233, %v564
      %v566 = vpop.f32.mrf.mxu0
      %v567 = vpop.f32.mrf.mxu0
      %v568 = vadd.f32 %v233, %v567
      %v569 = vpop.f32.mrf.mxu0
      %570 = vmatprep.mubr.bf16.mxu0 %v456
      %571 = vmatmul.mubr.bf16.gmra.mxu0 %v345
      %v572 = vpop.f32.mrf.mxu0
      %v573 = vadd.f32 %v233, %v572
      %v574 = vpop.f32.mrf.mxu0
      %v575 = vpop.f32.mrf.mxu0
      %v576 = vadd.f32 %v233, %v575
      %v577 = vpop.f32.mrf.mxu0
      %578 = vmatprep.mubr.bf16.mxu0 %v459
      %579 = vmatmul.mubr.bf16.gmra.mxu0 %v347
      %v580 = vpop.f32.mrf.mxu0
      %v581 = vadd.f32 %v233, %v580
      %v582 = vpop.f32.mrf.mxu0
      %v583 = vpop.f32.mrf.mxu0
      %v584 = vadd.f32 %v233, %v583
      %v585 = vpop.f32.mrf.mxu0
      %586 = vmatprep.mubr.bf16.mxu0 %v462
      %587 = vmatmul.mubr.bf16.gmra.mxu0 %v349
      %v588 = vpop.f32.mrf.mxu0
      %v589 = vadd.f32 %v233, %v588
      %v590 = vpop.f32.mrf.mxu0
      %v591 = vpop.f32.mrf.mxu0
      %v592 = vadd.f32 %v233, %v591
      %v593 = vpop.f32.mrf.mxu0
      %594 = vmatprep.mubr.bf16.mxu0 %v465
      %595 = vmatmul.mubr.bf16.gmra.mxu0 %v351
      %v596 = vpop.f32.mrf.mxu0
      %v597 = vadd.f32 %v233, %v596
      %v598 = vpop.f32.mrf.mxu0
      %v599 = vpop.f32.mrf.mxu0
      %v600 = vadd.f32 %v233, %v599
      %v601 = vpop.f32.mrf.mxu0
      %602 = vmatprep.mubr.bf16.mxu0 %v468
      %603 = vmatmul.mubr.bf16.gmra.mxu0 %v353
      %v604 = vpop.f32.mrf.mxu0
      %v605 = vadd.f32 %v233, %v604
      %v606 = vpop.f32.mrf.mxu0
      %v607 = vpop.f32.mrf.mxu0
      %v608 = vadd.f32 %v233, %v607
      %v609 = vpop.f32.mrf.mxu0
      %610 = vmatprep.mubr.bf16.mxu0 %v471
      %611 = vmatmul.mubr.bf16.gmra.mxu0 %v355
      %v612 = vpop.f32.mrf.mxu0
      %v613 = vadd.f32 %v233, %v612
      %v614 = vpop.f32.mrf.mxu0
      %v615 = vpop.f32.mrf.mxu0
      %v616 = vadd.f32 %v233, %v615
      %v617 = vpop.f32.mrf.mxu0
      %618 = vmatprep.mubr.bf16.mxu0 %v474
      %619 = vmatmul.mubr.bf16.gmra.mxu0 %v357
      %v620 = vpop.f32.mrf.mxu0
      %v621 = vadd.f32 %v233, %v620
      %v622 = vpop.f32.mrf.mxu0
      %v623 = vpop.f32.mrf.mxu0
      %v624 = vadd.f32 %v233, %v623
      %v625 = vpop.f32.mrf.mxu0
      %626 = vmatprep.mubr.bf16.mxu0 %v477
      %627 = vmatmul.mubr.bf16.gmra.mxu0 %v359
      %v628 = vpop.f32.mrf.mxu0
      %v629 = vadd.f32 %v233, %v628
      %v630 = vpop.f32.mrf.mxu0
      %v631 = vpop.f32.mrf.mxu0
      %v632 = vadd.f32 %v233, %v631
      %v633 = vpop.f32.mrf.mxu0
      %634 = vmatprep.mubr.bf16.mxu0 %v480
      %635 = vmatmul.mubr.bf16.gmra.mxu0 %v361
      %v636 = vpop.f32.mrf.mxu0
      %v637 = vadd.f32 %v233, %v636
      %v638 = vpop.f32.mrf.mxu0
      %v639 = vpop.f32.mrf.mxu0
      %v640 = vadd.f32 %v233, %v639
      %v641 = vpop.f32.mrf.mxu0
      %642 = vdwg.mxu0
      %v643 = vmax.f32 %v517, 0.0
      %v644 = vmax.f32 %v520, 0.0
      %v645 = vmax.f32 %v525, 0.0
      %v646 = vmax.f32 %v528, 0.0
      %v647 = vmax.f32 %v533, 0.0
      %v648 = vmax.f32 %v536, 0.0
      %v649 = vmax.f32 %v541, 0.0
      %v650 = vmax.f32 %v544, 0.0
      %v651 = vmax.f32 %v549, 0.0
      %v652 = vmax.f32 %v552, 0.0
      %v653 = vmax.f32 %v557, 0.0
      %v654 = vmax.f32 %v560, 0.0
      %v655 = vmax.f32 %v565, 0.0
      %v656 = vmax.f32 %v568, 0.0
      %v657 = vmax.f32 %v573, 0.0
      %v658 = vmax.f32 %v576, 0.0
      %v659 = vmax.f32 %v581, 0.0
      %v660 = vmax.f32 %v584, 0.0
      %v661 = vmax.f32 %v589, 0.0
      %v662 = vmax.f32 %v592, 0.0
      %v663 = vmax.f32 %v597, 0.0
      %v664 = vmax.f32 %v600, 0.0
      %v665 = vmax.f32 %v605, 0.0
      %v666 = vmax.f32 %v608, 0.0
      %v667 = vmax.f32 %v613, 0.0
      %v668 = vmax.f32 %v616, 0.0
      %v669 = vmax.f32 %v621, 0.0
      %v670 = vmax.f32 %v624, 0.0
      %v671 = vmax.f32 %v629, 0.0
      %v672 = vmax.f32 %v632, 0.0
      %v673 = vmax.f32 %v637, 0.0
      %v674 = vmax.f32 %v640, 0.0
      %v675 = vtanh.pop %v643
      %v676 = vtanh.pop %v644
      %v677 = vtanh.pop %v645
      %v678 = vtanh.pop %v646
      %v679 = vtanh.pop %v647
      %v680 = vtanh.pop %v648
      %v681 = vtanh.pop %v649
      %v682 = vtanh.pop %v650
      %v683 = vtanh.pop %v651
      %v684 = vtanh.pop %v652
      %v685 = vtanh.pop %v653
      %v686 = vtanh.pop %v654
      %v687 = vtanh.pop %v655
      %v688 = vtanh.pop %v656
      %v689 = vtanh.pop %v657
      %v690 = vtanh.pop %v658
      %v691 = vtanh.pop %v659
      %v692 = vtanh.pop %v660
      %v693 = vtanh.pop %v661
      %v694 = vtanh.pop %v662
      %v695 = vtanh.pop %v663
      %v696 = vtanh.pop %v664
      %v697 = vtanh.pop %v665
      %v698 = vtanh.pop %v666
      %v699 = vtanh.pop %v667
      %v700 = vtanh.pop %v668
      %v701 = vtanh.pop %v669
      %v702 = vtanh.pop %v670
      %v703 = vtanh.pop %v671
      %v704 = vtanh.pop %v672
      %v705 = vtanh.pop %v673
      %v706 = vtanh.pop %v674
      %v707 = vmul.f32 %v675, 1.05
      %v708 = vmul.f32 %v676, 1.05
      %v709 = vmul.f32 %v677, 1.05
      %v710 = vmul.f32 %v678, 1.05
      %v711 = vmul.f32 %v679, 1.05
      %v712 = vmul.f32 %v680, 1.05
      %v713 = vmul.f32 %v681, 1.05
      %v714 = vmul.f32 %v682, 1.05
      %v715 = vmul.f32 %v683, 1.05
      %v716 = vmul.f32 %v684, 1.05
      %v717 = vmul.f32 %v685, 1.05
      %v718 = vmul.f32 %v686, 1.05
      %v719 = vmul.f32 %v687, 1.05
      %v720 = vmul.f32 %v688, 1.05
      %v721 = vmul.f32 %v689, 1.05
      %v722 = vmul.f32 %v690, 1.05
      %v723 = vmul.f32 %v691, 1.05
      %v724 = vmul.f32 %v692, 1.05
      %v725 = vmul.f32 %v693, 1.05
      %v726 = vmul.f32 %v694, 1.05
      %v727 = vmul.f32 %v695, 1.05
      %v728 = vmul.f32 %v696, 1.05
      %v729 = vmul.f32 %v697, 1.05
      %v730 = vmul.f32 %v698, 1.05
      %v731 = vmul.f32 %v699, 1.05
      %v732 = vmul.f32 %v700, 1.05
      %v733 = vmul.f32 %v701, 1.05
      %v734 = vmul.f32 %v702, 1.05
      %v735 = vmul.f32 %v703, 1.05
      %v736 = vmul.f32 %v704, 1.05
      %v737 = vmul.f32 %v705, 1.05
      %v738 = vmul.f32 %v706, 1.05
      %v739 = vmax.f32 %v707, -1.0
      %v740 = vmax.f32 %v708, -1.0
      %v741 = vmax.f32 %v709, -1.0
      %v742 = vmax.f32 %v710, -1.0
      %v743 = vmax.f32 %v711, -1.0
      %v744 = vmax.f32 %v712, -1.0
      %v745 = vmax.f32 %v713, -1.0
      %v746 = vmax.f32 %v714, -1.0
      %v747 = vmax.f32 %v715, -1.0
      %v748 = vmax.f32 %v716, -1.0
      %v749 = vmax.f32 %v717, -1.0
      %v750 = vmax.f32 %v718, -1.0
      %v751 = vmax.f32 %v719, -1.0
      %v752 = vmax.f32 %v720, -1.0
      %v753 = vmax.f32 %v721, -1.0
      %v754 = vmax.f32 %v722, -1.0
      %v755 = vmax.f32 %v723, -1.0
      %v756 = vmax.f32 %v724, -1.0
      %v757 = vmax.f32 %v725, -1.0
      %v758 = vmax.f32 %v726, -1.0
      %v759 = vmax.f32 %v727, -1.0
      %v760 = vmax.f32 %v728, -1.0
      %v761 = vmax.f32 %v729, -1.0
      %v762 = vmax.f32 %v730, -1.0
      %v763 = vmax.f32 %v731, -1.0
      %v764 = vmax.f32 %v732, -1.0
      %v765 = vmax.f32 %v733, -1.0
      %v766 = vmax.f32 %v734, -1.0
      %v767 = vmax.f32 %v735, -1.0
      %v768 = vmax.f32 %v736, -1.0
      %v769 = vmax.f32 %v737, -1.0
      %v770 = vmax.f32 %v738, -1.0
      %v771 = vmin.f32 %v739, 1.0
      %v772 = vmin.f32 %v740, 1.0
      %v773 = vmin.f32 %v741, 1.0
      %v774 = vmin.f32 %v742, 1.0
      %v775 = vmin.f32 %v743, 1.0
      %v776 = vmin.f32 %v744, 1.0
      %v777 = vmin.f32 %v745, 1.0
      %v778 = vmin.f32 %v746, 1.0
      %v779 = vmin.f32 %v747, 1.0
      %v780 = vmin.f32 %v748, 1.0
      %v781 = vmin.f32 %v749, 1.0
      %v782 = vmin.f32 %v750, 1.0
      %v783 = vmin.f32 %v751, 1.0
      %v784 = vmin.f32 %v752, 1.0
      %v785 = vmin.f32 %v753, 1.0
      %v786 = vmin.f32 %v754, 1.0
      %v787 = vmin.f32 %v755, 1.0
      %v788 = vmin.f32 %v756, 1.0
      %v789 = vmin.f32 %v757, 1.0
      %v790 = vmin.f32 %v758, 1.0
      %v791 = vmin.f32 %v759, 1.0
      %v792 = vmin.f32 %v760, 1.0
      %v793 = vmin.f32 %v761, 1.0
      %v794 = vmin.f32 %v762, 1.0
      %v795 = vmin.f32 %v763, 1.0
      %v796 = vmin.f32 %v764, 1.0
      %v797 = vmin.f32 %v765, 1.0
      %v798 = vmin.f32 %v766, 1.0
      %v799 = vmin.f32 %v767, 1.0
      %v800 = vmin.f32 %v768, 1.0
      %v801 = vmin.f32 %v769, 1.0
      %v802 = vmin.f32 %v770, 1.0
      %803 = vst [vmem:[%s175] sm:$0xff] %v771
      %804 = vst [vmem:[%s175 + $0x8] sm:$0xff] %v772
      %805 = vst [vmem:[%s175 + $0x10] sm:$0xff] %v773
      %806 = vst [vmem:[%s175 + $0x18] sm:$0xff] %v774
      %807 = vst [vmem:[%s175 + $0x20] sm:$0xff] %v775
      %808 = vst [vmem:[%s175 + $0x28] sm:$0xff] %v776
      %809 = vst [vmem:[%s175 + $0x30] sm:$0xff] %v777
      %810 = vst [vmem:[%s175 + $0x38] sm:$0xff] %v778
      %811 = vst [vmem:[%s175 + $0x40] sm:$0xff] %v779
      %812 = vst [vmem:[%s175 + $0x48] sm:$0xff] %v780
      %813 = vst [vmem:[%s175 + $0x50] sm:$0xff] %v781
      %814 = vst [vmem:[%s175 + $0x58] sm:$0xff] %v782
      %815 = vst [vmem:[%s175 + $0x60] sm:$0xff] %v783
      %816 = vst [vmem:[%s175 + $0x68] sm:$0xff] %v784
      %817 = vst [vmem:[%s175 + $0x70] sm:$0xff] %v785
      %818 = vst [vmem:[%s175 + $0x78] sm:$0xff] %v786
      %819 = vst [vmem:[%s175 + $0x80] sm:$0xff] %v787
      %820 = vst [vmem:[%s175 + $0x88] sm:$0xff] %v788
      %821 = vst [vmem:[%s175 + $0x90] sm:$0xff] %v789
      %822 = vst [vmem:[%s175 + $0x98] sm:$0xff] %v790
      %823 = vst [vmem:[%s175 + $0xa0] sm:$0xff] %v791
      %824 = vst [vmem:[%s175 + $0xa8] sm:$0xff] %v792
      %825 = vst [vmem:[%s175 + $0xb0] sm:$0xff] %v793
      %826 = vst [vmem:[%s175 + $0xb8] sm:$0xff] %v794
      %827 = vst [vmem:[%s175 + $0xc0] sm:$0xff] %v795
      %828 = vst [vmem:[%s175 + $0xc8] sm:$0xff] %v796
      %829 = vst [vmem:[%s175 + $0xd0] sm:$0xff] %v797
      %830 = vst [vmem:[%s175 + $0xd8] sm:$0xff] %v798
      %831 = vst [vmem:[%s175 + $0xe0] sm:$0xff] %v799
      %832 = vst [vmem:[%s175 + $0xe8] sm:$0xff] %v800
      %833 = vst [vmem:[%s175 + $0xf0] sm:$0xff] %v801
      %834 = vst [vmem:[%s175 + $0xf8] sm:$0xff] %v802
      %s835 = smul.u32 32, %s14
      %p836 = scmp.lt.s32.totalorder %s835, 63
      %s837 = scalar_select %p836, %s835, 63
      %s838 = smul.addr %s837, 8
      %s839 = scalar_lea.vmem %s3, %s838
      // Predicated region
      $region33: #{network_forward.61} parent=31 // pred_check
        %p840 = pneg %p100
      $region34: #{network_forward.61} parent=31 // pred_check_branch
        %842 = sbr.rel (%p840) target = $region36
      $region35: #{network_forward.61} parent=31 // pred_region
        %s843 = smul.u32 32, %s14
      $region36: #{network_forward.61} parent=31 // pred_fallthru
        _
    $region32: #{network_forward.61} parent=5 // pred_fallthru
      _
    %p844 = scmp.le.s32.totalorder 2, %s9
    // Predicated region
    $region37: #{network_forward.61} parent=5 // pred_check
      %p845 = pneg %p844
    $region38: #{network_forward.61} parent=5 // pred_check_branch
      %847 = sbr.rel (%p845) target = $region40
    $region39: #{network_forward.61} parent=5 // pred_region
      %s848 = ssub.s32 %s9, 2
      // Predicated region
      $region41: #{network_forward.61} parent=39 // pred_check
        %p849 = pneg %p106
      $region42: #{network_forward.61} parent=39 // pred_check_branch
        %851 = sbr.rel (%p849) target = $region44
      $region43: #{network_forward.61} parent=39 // pred_region
        %s852 = smul.u32 32, %s15
        %p853 = scmp.lt.s32.totalorder %s852, 63
        %s854 = scalar_select %p853, %s852, 63
        %s855 = smul.addr %s854, 8
        %s856 = scalar_lea.vmem %s3, %s855
      $region44: #{network_forward.61} parent=39 // pred_fallthru
        _
    $region40: #{network_forward.61} parent=5 // pred_fallthru
      _
  $region6: #{network_forward.61} parent=0 // loop_footer
    %s13 = sadd.s32 1, %s9
  $region7: #{network_forward.61} parent=0 // loop_footer_branch
    %8 = sbr.rel target = $region3
  $region8: #{network_forward.61} parent=0 // loop_exit
    _

</llo_original>
